<compile_context>
chip_gen: v6e
topology: v6e:2x2x1
jax: 0.10.0
libtpu: 0.0.40
codegen_flags: <defaults>
</compile_context>

<pallas_src>
import math

import jax
import jax.numpy as jnp
from jax import lax
from jax.experimental import pallas as pl
from jax.experimental.pallas import tpu as pltpu


HEAD_TK = 7680                    # fc1 K-tile -> 2 grid steps over padded 15360 rows
CONV1_K, CONV1_S = (2, 3, 3), (4, 4, 4)
CONV2_K, CONV2_S = (1, 3, 3), (2, 2, 2)


def round_up(x, m):
    return (x + m - 1) // m * m


# ----------------------------------------------------------------------------
# Pallas kernels
# ----------------------------------------------------------------------------
def _conv_mm_relu_kernel(p_ref, w_ref, b_ref, o_ref):
    """o = relu(W @ P + b); single (Cout, N*M) tile -> lane-dense stores, bf16 out."""
    acc = jnp.dot(w_ref[...], p_ref[...], preferred_element_type=jnp.float32)
    o_ref[...] = jnp.maximum(acc + b_ref[...], 0.0).astype(o_ref.dtype)


def _head_kernel(x_ref, w1_ref, b1_ref, w2_ref, b2_ref, o_ref, acc_ref):
    """Fused fc1(tanh) + fc2 + softmax.  Grid iterates over K-chunks of w1.

    x (resident, bf16) / w1 (streamed, bf16) feed the MXU; accumulation is f32.
    """
    k = pl.program_id(0)
    tk = w1_ref.shape[0]

    @pl.when(k == 0)
    def _():
        acc_ref[...] = jnp.zeros_like(acc_ref)

    start = pl.multiple_of(k * tk, tk)
    xk = x_ref[:, pl.ds(start, tk)]                                  # (B, tk) bf16
    acc_ref[...] += jnp.dot(xk, w1_ref[...],
                            preferred_element_type=jnp.float32)

    @pl.when(k == pl.num_programs(0) - 1)
    def _():
        h = jnp.tanh(acc_ref[...] + b1_ref[...])                     # (B, 256) f32
        logits = jnp.dot(h, w2_ref[...],
                         preferred_element_type=jnp.float32) + b2_ref[...]  # (B, 2)
        m = jnp.max(logits, axis=1, keepdims=True)
        e = jnp.exp(logits - m)
        o_ref[...] = e / jnp.sum(e, axis=1, keepdims=True)


# ----------------------------------------------------------------------------
# Conv3d = strided-slice im2col (XLA glue, bf16) + one Pallas matmul per conv
# ----------------------------------------------------------------------------
def _conv_out_dims(spatial, ksize, stride):
    return tuple((s - k) // st + 1 for s, k, st in zip(spatial, ksize, stride))


def _im2col_kxm(x_ncdhw, ksize, stride, oshape, out_dtype=jnp.bfloat16):
    """(N,C,D,H,W) -> (C*kd*kh*kw, N*OD*OH*OW) patches, cast to out_dtype.

    K rows ordered (C, kd, kh, kw) to match torch weight.reshape(Cout, -1);
    columns ordered (n, od, oh, ow).  Only static strided slices + one stack.
    """
    n, c = x_ncdhw.shape[:2]
    kd, kh, kw = ksize
    sd, sh, sw = stride
    od, oh, ow = oshape
    m = od * oh * ow
    cols = []
    for dd in range(kd):
        for hh in range(kh):
            for ww in range(kw):
                sl = x_ncdhw[:, :,
                             dd: dd + sd * (od - 1) + 1: sd,
                             hh: hh + sh * (oh - 1) + 1: sh,
                             ww: ww + sw * (ow - 1) + 1: sw]        # (N, C, od, oh, ow)
                cols.append(jnp.moveaxis(sl.reshape(n, c, m), 0, 1))  # (C, N, M)
    p = jnp.stack(cols, axis=1)                                      # (C, khw, N, M)
    return p.reshape(c * kd * kh * kw, n * m).astype(out_dtype)


def conv_matmul_relu_pallas(patches, w_mat, b_col, out_dtype=jnp.bfloat16):
    """relu(W @ patches + b).

    patches: (K, N*M) bf16; w_mat: (Cout, K) bf16; b_col: (Cout, 1) f32
    -> (Cout, N*M) bf16.  Single grid step; long N*M axis on lanes.
    """
    k, nm = patches.shape
    c_out = w_mat.shape[0]
    return pl.pallas_call(
        _conv_mm_relu_kernel,
        out_shape=jax.ShapeDtypeStruct((c_out, nm), out_dtype),
        grid=(1,),
        in_specs=[
            pl.BlockSpec((k, nm), lambda i: (0, 0)),
            pl.BlockSpec((c_out, k), lambda i: (0, 0)),
            pl.BlockSpec((c_out, 1), lambda i: (0, 0)),
        ],
        out_specs=pl.BlockSpec((c_out, nm), lambda i: (0, 0)),
    )(patches, w_mat, b_col)


def head_pallas(x_bf16, w1_bf16, b1, w2, b2, tk=HEAD_TK):
    """softmax(fc2(tanh(fc1(x)))), K-tiled over the (pre-padded, bf16) fc1 weight."""
    bsz, kp = x_bf16.shape
    assert kp % tk == 0 and tk % 128 == 0, (kp, tk)
    hidden = w1_bf16.shape[1]
    n_cls = w2.shape[1]
    nsteps = kp // tk
    cost = pl.CostEstimate(
        flops=2 * bsz * kp * hidden + 2 * bsz * hidden * n_cls,
        transcendentals=bsz * (hidden + n_cls),
        bytes_accessed=(x_bf16.size * 2 + w1_bf16.size * 2
                        + b1.size * 4 + w2.size * 4 + b2.size * 4
                        + bsz * n_cls * 4),
    )
    return pl.pallas_call(
        _head_kernel,
        out_shape=jax.ShapeDtypeStruct((bsz, n_cls), jnp.float32),
        grid=(nsteps,),
        in_specs=[
            pl.BlockSpec((bsz, kp), lambda kk: (0, 0)),      # x: resident, untiled
            pl.BlockSpec((tk, hidden), lambda kk: (kk, 0)),  # w1: streamed K-tiles
            pl.BlockSpec((1, hidden), lambda kk: (0, 0)),
            pl.BlockSpec((hidden, n_cls), lambda kk: (0, 0)),
            pl.BlockSpec((1, n_cls), lambda kk: (0, 0)),
        ],
        out_specs=pl.BlockSpec((bsz, n_cls), lambda kk: (0, 0)),
        scratch_shapes=[pltpu.VMEM((bsz, hidden), jnp.float32)],
        compiler_params=pltpu.CompilerParams(dimension_semantics=("arbitrary",)),
        cost_estimate=cost,
    )(x_bf16, w1_bf16, b1, w2, b2)


# ----------------------------------------------------------------------------
# One-time weight preparation (outside jit: no per-call padding / casting)
# ----------------------------------------------------------------------------
def prepare_params(params, tk=HEAD_TK):
    c1 = params["w_conv1"].shape[0]
    c2 = params["w_conv2"].shape[0]
    k_fc1 = params["w_fc1"].shape[0]
    kp = round_up(k_fc1, tk)
    return {
        "w_conv1": params["w_conv1"].reshape(c1, -1).astype(jnp.bfloat16),  # (16, 72)
        "b_conv1": params["b_conv1"].reshape(c1, 1).astype(jnp.float32),
        "w_conv2": params["w_conv2"].reshape(c2, -1).astype(jnp.bfloat16),  # (32, 144)
        "b_conv2": params["b_conv2"].reshape(c2, 1).astype(jnp.float32),
        # fc1 weight: pad K 15202 -> 15360 once, cast to bf16 (halves HBM stream)
        "w_fc1": jnp.pad(params["w_fc1"],
                         ((0, kp - k_fc1), (0, 0))).astype(jnp.bfloat16),
        "b_fc1": params["b_fc1"].reshape(1, -1).astype(jnp.float32),
        "w_fc2": params["w_fc2"].astype(jnp.float32),
        "b_fc2": params["b_fc2"].reshape(1, -1).astype(jnp.float32),
    }


# ----------------------------------------------------------------------------
# Full TwoArgCNN forward (Pallas for all hot paths)
# ----------------------------------------------------------------------------
def two_arg_cnn_forward(p, x_ncdhw, xc):
    x = x_ncdhw.astype(jnp.float32)
    n = x.shape[0]
    c1 = p["w_conv1"].shape[0]
    c2 = p["w_conv2"].shape[0]

    # conv1 + relu -------------------------------------------------------------
    o1 = _conv_out_dims(x.shape[2:], CONV1_K, CONV1_S)             # (1, 52, 40)
    p1 = _im2col_kxm(x, CONV1_K, CONV1_S, o1)                      # (72, N*2080) bf16
    h1 = conv_matmul_relu_pallas(p1, p["w_conv1"], p["b_conv1"])   # (16, N*2080) bf16

    # conv2 + relu -------------------------------------------------------------
    h1_ncdhw = jnp.moveaxis(h1.reshape(c1, n, *o1), 0, 1)          # (N, 16, 1, 52, 40)
    o2 = _conv_out_dims(o1, CONV2_K, CONV2_S)                      # (1, 25, 19)
    p2 = _im2col_kxm(h1_ncdhw, CONV2_K, CONV2_S, o2)               # (144, N*475) bf16
    h2 = conv_matmul_relu_pallas(p2, p["w_conv2"], p["b_conv2"])   # (32, N*475) bf16

    # flatten in PyTorch view order (C, D, H, W) + concat(xc) + pad -------------
    m2 = o2[0] * o2[1] * o2[2]                                     # 475
    flat = jnp.moveaxis(h2.reshape(c2, n, m2), 0, 1).reshape(n, c2 * m2)  # (N, 15200)

    kp = p["w_fc1"].shape[0]
    pad = kp - (flat.shape[1] + xc.shape[1])
    pieces = [flat, xc.astype(jnp.bfloat16)]
    if pad:
        pieces.append(jnp.zeros((n, pad), jnp.bfloat16))
    xcat = jnp.concatenate(pieces, axis=1)                         # (N, 15360) bf16

    # fused tanh(fc1) -> fc2 -> softmax -----------------------------------------
    return head_pallas(xcat, p["w_fc1"], p["b_fc1"], p["w_fc2"], p["b_fc2"])


# ----------------------------------------------------------------------------
# Pure-JAX reference (uses raw, unpacked params; f32, HIGHEST precision)
# ----------------------------------------------------------------------------
def reference_forward(params, x, xc):
    dn = ("NCDHW", "OIDHW", "NCDHW")
    out = lax.conv_general_dilated(x, params["w_conv1"], CONV1_S, "VALID",
                                   dimension_numbers=dn,
                                   precision=lax.Precision.HIGHEST)
    out = jax.nn.relu(out + params["b_conv1"][None, :, None, None, None])
    out = lax.conv_general_dilated(out, params["w_conv2"], CONV2_S, "VALID",
                                   dimension_numbers=dn,
                                   precision=lax.Precision.HIGHEST)
    out = jax.nn.relu(out + params["b_conv2"][None, :, None, None, None])
    flat = out.reshape(out.shape[0], -1)
    xcat = jnp.concatenate([flat, xc], axis=1)
    h = jnp.tanh(xcat @ params["w_fc1"] + params["b_fc1"])
    logits = h @ params["w_fc2"] + params["b_fc2"]
    return jax.nn.softmax(logits, axis=1)


def init_params(key):
    ks = jax.random.split(key, 8)

    def u(k, shape, fan_in):
        bound = 1.0 / math.sqrt(fan_in)
        return jax.random.uniform(k, shape, jnp.float32, -bound, bound)

    return {
        # conv1: Conv3d(4 -> 16, kernel (2,3,3), stride (4,4,4)); fan_in = 72
        "w_conv1": u(ks[0], (16, 4, 2, 3, 3), 72),
        "b_conv1": u(ks[1], (16,), 72),
        # conv2: Conv3d(16 -> 32, kernel (1,3,3), stride (2,2,2)); fan_in = 144
        "w_conv2": u(ks[2], (32, 16, 1, 3, 3), 144),
        "b_conv2": u(ks[3], (32,), 144),
        # fc1: Linear(15202 -> 256)  (stored as (in, out))
        "w_fc1": u(ks[4], (15202, 256), 15202),
        "b_fc1": u(ks[5], (1, 256), 15202),
        # fc2: Linear(256 -> 2)
        "w_fc2": u(ks[6], (256, 2), 256),
        "b_fc2": u(ks[7], (1, 2), 256),
    }


if __name__ == "__main__":
    key = jax.random.PRNGKey(0)
    kparam, kx, kxc = jax.random.split(key, 3)
    raw_params = init_params(kparam)

    # Shapes implied by fc1 in_features = 15202 = 32*1*25*19 (conv stack) + 2 (xc):
    # x: (N=2, C=4, D=2, H=210, W=160), xc: (2, 2)
    x = jax.random.normal(kx, (2, 4, 2, 210, 160), jnp.float32)
    xc = jax.random.normal(kxc, (2, 2), jnp.float32)

    prepped = prepare_params(raw_params)       # one-time weight packing, outside jit
    fwd = jax.jit(two_arg_cnn_forward)
    out = jax.block_until_ready(fwd(prepped, x, xc))

    ref = jax.block_until_ready(jax.jit(reference_forward)(raw_params, x, xc))
    assert out.shape == (2, 2), out.shape
    assert jnp.allclose(jnp.sum(out, axis=1), 1.0, atol=1e-4)
    # convs + fc1 run with bf16 operands (f32 accumulation) -> looser tolerance.
    assert jnp.allclose(out, ref, rtol=1e-2, atol=1e-2), (out, ref)
    print("KERNEL_OK")
</pallas_src>

<mosaic_0001>
module attributes {stable_mosaic.version = 11 : i64} {
  func.func @_conv_mm_relu_kernel(%arg0: i32, %arg1: memref<72x4160xbf16, #tpu.memory_space<vmem>>, %arg2: memref<16x72xbf16, #tpu.memory_space<vmem>>, %arg3: memref<16x1xf32, #tpu.memory_space<vmem>>, %arg4: memref<16x4160xbf16, #tpu.memory_space<vmem>>) attributes {dimension_semantics = [#tpu.dimension_semantics<arbitrary>], iteration_bounds = array<i64: 1>, scalar_prefetch = 0 : i64, scratch_operands = 0 : i64, tpu.core_type = #tpu.core_type<tc>, window_params = [{pipeline_mode = #tpu.pipeline_mode<synchronous>, transform_indices = @transform_0, window_bounds = array<i64: 72, 4160>}, {pipeline_mode = #tpu.pipeline_mode<synchronous>, transform_indices = @transform_1, window_bounds = array<i64: 16, 72>}, {pipeline_mode = #tpu.pipeline_mode<synchronous>, transform_indices = @transform_2, window_bounds = array<i64: 16, 1>}, {pipeline_mode = #tpu.pipeline_mode<synchronous>, transform_indices = @transform_3, window_bounds = array<i64: 16, 4160>}]} {
    %c0 = arith.constant 0 : index
    %c0_0 = arith.constant 0 : index
    %0 = vector.load %arg2[%c0, %c0_0] : memref<16x72xbf16, #tpu.memory_space<vmem>>, vector<16x72xbf16>
    %c0_1 = arith.constant 0 : index
    %c0_2 = arith.constant 0 : index
    %1 = vector.load %arg1[%c0_1, %c0_2] : memref<72x4160xbf16, #tpu.memory_space<vmem>>, vector<72x4160xbf16>
    %cst = arith.constant dense<0.000000e+00> : vector<16x4160xf32>
    %2 = tpu.matmul %0, %1, %cst {dimension_numbers = #tpu.dot_dimension_numbers<[1], [0], [0], [1], [0, 0, 1, 1], [], []>} : vector<16x72xbf16>, vector<72x4160xbf16>, vector<16x4160xf32> -> vector<16x4160xf32>
    %c0_3 = arith.constant 0 : index
    %c0_4 = arith.constant 0 : index
    %3 = vector.load %arg3[%c0_3, %c0_4] : memref<16x1xf32, #tpu.memory_space<vmem>>, vector<16x1xf32>
    %4 = vector.broadcast %3 : vector<16x1xf32> to vector<16x4160xf32>
    %5 = arith.addf %2, %4 : vector<16x4160xf32>
    %cst_5 = arith.constant 0.000000e+00 : f32
    %6 = vector.broadcast %cst_5 : f32 to vector<16x4160xf32>
    %7 = arith.maximumf %5, %6 : vector<16x4160xf32>
    %8 = arith.truncf %7 : vector<16x4160xf32> to vector<16x4160xbf16>
    %c0_6 = arith.constant 0 : index
    %c0_7 = arith.constant 0 : index
    %9 = vector.load %arg4[%c0_6, %c0_7] : memref<16x4160xbf16, #tpu.memory_space<vmem>>, vector<16x4160xbf16>
    tpu.vector_store %arg4[%c0_6, %c0_7], %8 {strides = array<i32>} : memref<16x4160xbf16, #tpu.memory_space<vmem>>, vector<16x4160xbf16>,
    return
  }
  func.func @transform_0(%arg0: i32) -> (i32, i32) {
    %c0_i32 = arith.constant 0 : i32
    %c0_i32_0 = arith.constant 0 : i32
    %c0_i32_1 = arith.constant 0 : i32
    return %c0_i32, %c0_i32_0 : i32, i32
  }
  func.func @transform_1(%arg0: i32) -> (i32, i32) {
    %c0_i32 = arith.constant 0 : i32
    %c0_i32_0 = arith.constant 0 : i32
    %c0_i32_1 = arith.constant 0 : i32
    return %c0_i32, %c0_i32_0 : i32, i32
  }
  func.func @transform_2(%arg0: i32) -> (i32, i32) {
    %c0_i32 = arith.constant 0 : i32
    %c0_i32_0 = arith.constant 0 : i32
    %c0_i32_1 = arith.constant 0 : i32
    return %c0_i32, %c0_i32_0 : i32, i32
  }
  func.func @transform_3(%arg0: i32) -> (i32, i32) {
    %c0_i32 = arith.constant 0 : i32
    %c0_i32_0 = arith.constant 0 : i32
    %c0_i32_1 = arith.constant 0 : i32
    return %c0_i32, %c0_i32_0 : i32, i32
  }
}

module attributes {stable_mosaic.version = 11 : i64} {
  func.func @_conv_mm_relu_kernel(%arg0: i32, %arg1: memref<144x950xbf16, #tpu.memory_space<vmem>>, %arg2: memref<32x144xbf16, #tpu.memory_space<vmem>>, %arg3: memref<32x1xf32, #tpu.memory_space<vmem>>, %arg4: memref<32x950xbf16, #tpu.memory_space<vmem>>) attributes {dimension_semantics = [#tpu.dimension_semantics<arbitrary>], iteration_bounds = array<i64: 1>, scalar_prefetch = 0 : i64, scratch_operands = 0 : i64, tpu.core_type = #tpu.core_type<tc>, window_params = [{pipeline_mode = #tpu.pipeline_mode<synchronous>, transform_indices = @transform_0, window_bounds = array<i64: 144, 950>}, {pipeline_mode = #tpu.pipeline_mode<synchronous>, transform_indices = @transform_1, window_bounds = array<i64: 32, 144>}, {pipeline_mode = #tpu.pipeline_mode<synchronous>, transform_indices = @transform_2, window_bounds = array<i64: 32, 1>}, {pipeline_mode = #tpu.pipeline_mode<synchronous>, transform_indices = @transform_3, window_bounds = array<i64: 32, 950>}]} {
    %c0 = arith.constant 0 : index
    %c0_0 = arith.constant 0 : index
    %0 = vector.load %arg2[%c0, %c0_0] : memref<32x144xbf16, #tpu.memory_space<vmem>>, vector<32x144xbf16>
    %c0_1 = arith.constant 0 : index
    %c0_2 = arith.constant 0 : index
    %1 = vector.load %arg1[%c0_1, %c0_2] : memref<144x950xbf16, #tpu.memory_space<vmem>>, vector<144x950xbf16>
    %cst = arith.constant dense<0.000000e+00> : vector<32x950xf32>
    %2 = tpu.matmul %0, %1, %cst {dimension_numbers = #tpu.dot_dimension_numbers<[1], [0], [0], [1], [0, 0, 1, 1], [], []>} : vector<32x144xbf16>, vector<144x950xbf16>, vector<32x950xf32> -> vector<32x950xf32>
    %c0_3 = arith.constant 0 : index
    %c0_4 = arith.constant 0 : index
    %3 = vector.load %arg3[%c0_3, %c0_4] : memref<32x1xf32, #tpu.memory_space<vmem>>, vector<32x1xf32>
    %4 = vector.broadcast %3 : vector<32x1xf32> to vector<32x950xf32>
    %5 = arith.addf %2, %4 : vector<32x950xf32>
    %cst_5 = arith.constant 0.000000e+00 : f32
    %6 = vector.broadcast %cst_5 : f32 to vector<32x950xf32>
    %7 = arith.maximumf %5, %6 : vector<32x950xf32>
    %8 = arith.truncf %7 : vector<32x950xf32> to vector<32x950xbf16>
    %c0_6 = arith.constant 0 : index
    %c0_7 = arith.constant 0 : index
    %9 = vector.load %arg4[%c0_6, %c0_7] : memref<32x950xbf16, #tpu.memory_space<vmem>>, vector<32x950xbf16>
    tpu.vector_store %arg4[%c0_6, %c0_7], %8 {strides = array<i32>} : memref<32x950xbf16, #tpu.memory_space<vmem>>, vector<32x950xbf16>,
    return
  }
  func.func @transform_0(%arg0: i32) -> (i32, i32) {
    %c0_i32 = arith.constant 0 : i32
    %c0_i32_0 = arith.constant 0 : i32
    %c0_i32_1 = arith.constant 0 : i32
    return %c0_i32, %c0_i32_0 : i32, i32
  }
  func.func @transform_1(%arg0: i32) -> (i32, i32) {
    %c0_i32 = arith.constant 0 : i32
    %c0_i32_0 = arith.constant 0 : i32
    %c0_i32_1 = arith.constant 0 : i32
    return %c0_i32, %c0_i32_0 : i32, i32
  }
  func.func @transform_2(%arg0: i32) -> (i32, i32) {
    %c0_i32 = arith.constant 0 : i32
    %c0_i32_0 = arith.constant 0 : i32
    %c0_i32_1 = arith.constant 0 : i32
    return %c0_i32, %c0_i32_0 : i32, i32
  }
  func.func @transform_3(%arg0: i32) -> (i32, i32) {
    %c0_i32 = arith.constant 0 : i32
    %c0_i32_0 = arith.constant 0 : i32
    %c0_i32_1 = arith.constant 0 : i32
    return %c0_i32, %c0_i32_0 : i32, i32
  }
}

module attributes {stable_mosaic.version = 11 : i64} {
  func.func @_head_kernel(%arg0: i32, %arg1: memref<2x15360xbf16, #tpu.memory_space<vmem>>, %arg2: memref<7680x256xbf16, #tpu.memory_space<vmem>>, %arg3: memref<1x256xf32, #tpu.memory_space<vmem>>, %arg4: memref<256x2xf32, #tpu.memory_space<vmem>>, %arg5: memref<1x2xf32, #tpu.memory_space<vmem>>, %arg6: memref<2x2xf32, #tpu.memory_space<vmem>>, %arg7: memref<2x256xf32, #tpu.memory_space<vmem>>) attributes {dimension_semantics = [#tpu.dimension_semantics<arbitrary>], iteration_bounds = array<i64: 2>, scalar_prefetch = 0 : i64, scratch_operands = 1 : i64, tpu.core_type = #tpu.core_type<tc>, window_params = [{pipeline_mode = #tpu.pipeline_mode<synchronous>, transform_indices = @transform_0, window_bounds = array<i64: 2, 15360>}, {transform_indices = @transform_1, window_bounds = array<i64: 7680, 256>}, {pipeline_mode = #tpu.pipeline_mode<synchronous>, transform_indices = @transform_2, window_bounds = array<i64: 1, 256>}, {pipeline_mode = #tpu.pipeline_mode<synchronous>, transform_indices = @transform_3, window_bounds = array<i64: 256, 2>}, {pipeline_mode = #tpu.pipeline_mode<synchronous>, transform_indices = @transform_4, window_bounds = array<i64: 1, 2>}, {pipeline_mode = #tpu.pipeline_mode<synchronous>, transform_indices = @transform_5, window_bounds = array<i64: 2, 2>}]} {
    %c0_i32 = arith.constant 0 : i32
    %0 = arith.cmpi eq, %arg0, %c0_i32 : i32
    %1 = arith.extui %0 : i1 to i32
    %c0_i32_0 = arith.constant 0 : i32
    %2 = arith.cmpi ne, %1, %c0_i32_0 : i32
    scf.if %2 {
      %cst_8 = arith.constant 0.000000e+00 : f32
      %15 = vector.broadcast %cst_8 : f32 to vector<2x256xf32>
      %c0_9 = arith.constant 0 : index
      %c0_10 = arith.constant 0 : index
      %16 = vector.load %arg7[%c0_9, %c0_10] : memref<2x256xf32, #tpu.memory_space<vmem>>, vector<2x256xf32>
      tpu.vector_store %arg7[%c0_9, %c0_10], %15 {strides = array<i32>} : memref<2x256xf32, #tpu.memory_space<vmem>>, vector<2x256xf32>,
    } else {
    }
    %c7680_i32 = arith.constant 7680 : i32
    %3 = arith.muli %arg0, %c7680_i32 : i32
    %4 = tpu.assume_multiple %3, 7680 : i32
    %c0 = arith.constant 0 : index
    %5 = arith.index_cast %4 : i32 to index
    %6 = vector.load %arg1[%c0, %5] : memref<2x15360xbf16, #tpu.memory_space<vmem>>, vector<2x7680xbf16>
    %c0_1 = arith.constant 0 : index
    %c0_2 = arith.constant 0 : index
    %7 = vector.load %arg7[%c0_1, %c0_2] : memref<2x256xf32, #tpu.memory_space<vmem>>, vector<2x256xf32>
    %c0_3 = arith.constant 0 : index
    %c0_4 = arith.constant 0 : index
    %8 = vector.load %arg2[%c0_3, %c0_4] : memref<7680x256xbf16, #tpu.memory_space<vmem>>, vector<7680x256xbf16>
    %cst = arith.constant dense<0.000000e+00> : vector<2x256xf32>
    %9 = tpu.matmul %6, %8, %cst {dimension_numbers = #tpu.dot_dimension_numbers<[1], [0], [0], [1], [0, 0, 1, 1], [], []>} : vector<2x7680xbf16>, vector<7680x256xbf16>, vector<2x256xf32> -> vector<2x256xf32>
    %10 = arith.addf %7, %9 : vector<2x256xf32>
    %c0_5 = arith.constant 0 : index
    %c0_6 = arith.constant 0 : index
    %11 = vector.load %arg7[%c0_5, %c0_6] : memref<2x256xf32, #tpu.memory_space<vmem>>, vector<2x256xf32>
    tpu.vector_store %arg7[%c0_5, %c0_6], %10 {strides = array<i32>} : memref<2x256xf32, #tpu.memory_space<vmem>>, vector<2x256xf32>,
    %c1_i32 = arith.constant 1 : i32
    %12 = arith.cmpi eq, %arg0, %c1_i32 : i32
    %13 = arith.extui %12 : i1 to i32
    %c0_i32_7 = arith.constant 0 : i32
    %14 = arith.cmpi ne, %13, %c0_i32_7 : i32
    scf.if %14 {
      %c0_8 = arith.constant 0 : index
      %c0_9 = arith.constant 0 : index
      %15 = vector.load %arg7[%c0_8, %c0_9] : memref<2x256xf32, #tpu.memory_space<vmem>>, vector<2x256xf32>
      %c0_10 = arith.constant 0 : index
      %c0_11 = arith.constant 0 : index
      %16 = vector.load %arg3[%c0_10, %c0_11] : memref<1x256xf32, #tpu.memory_space<vmem>>, vector<1x256xf32>
      %17 = vector.broadcast %16 : vector<1x256xf32> to vector<2x256xf32>
      %18 = arith.addf %15, %17 : vector<2x256xf32>
      %19 = math.tanh %18 : vector<2x256xf32>
      %c0_12 = arith.constant 0 : index
      %c0_13 = arith.constant 0 : index
      %20 = vector.load %arg4[%c0_12, %c0_13] : memref<256x2xf32, #tpu.memory_space<vmem>>, vector<256x2xf32>
      %cst_14 = arith.constant dense<0.000000e+00> : vector<2x2xf32>
      %21 = tpu.matmul %19, %20, %cst_14 {dimension_numbers = #tpu.dot_dimension_numbers<[1], [0], [0], [1], [0, 0, 1, 1], [], []>} : vector<2x256xf32>, vector<256x2xf32>, vector<2x2xf32> -> vector<2x2xf32>
      %c0_15 = arith.constant 0 : index
      %c0_16 = arith.constant 0 : index
      %22 = vector.load %arg5[%c0_15, %c0_16] : memref<1x2xf32, #tpu.memory_space<vmem>>, vector<1x2xf32>
      %23 = vector.broadcast %22 : vector<1x2xf32> to vector<2x2xf32>
      %24 = arith.addf %21, %23 : vector<2x2xf32>
      %cst_17 = arith.constant dense<0xFF800000> : vector<2xf32>
      %25 = vector.multi_reduction <maximumf>, %24, %cst_17 [1] : vector<2x2xf32> to vector<2xf32>
      %26 = vector.shape_cast %25 : vector<2xf32> to vector<2x1xf32>
      %27 = vector.broadcast %26 : vector<2x1xf32> to vector<2x2xf32>
      %28 = arith.subf %24, %27 : vector<2x2xf32>
      %29 = math.exp %28 : vector<2x2xf32>
      %cst_18 = arith.constant dense<0.000000e+00> : vector<2xf32>
      %30 = vector.multi_reduction <add>, %29, %cst_18 [1] : vector<2x2xf32> to vector<2xf32>
      %31 = vector.shape_cast %30 : vector<2xf32> to vector<2x1xf32>
      %32 = vector.broadcast %31 : vector<2x1xf32> to vector<2x2xf32>
      %33 = arith.divf %29, %32 : vector<2x2xf32>
      %c0_19 = arith.constant 0 : index
      %c0_20 = arith.constant 0 : index
      %34 = vector.load %arg6[%c0_19, %c0_20] : memref<2x2xf32, #tpu.memory_space<vmem>>, vector<2x2xf32>
      tpu.vector_store %arg6[%c0_19, %c0_20], %33 {strides = array<i32>} : memref<2x2xf32, #tpu.memory_space<vmem>>, vector<2x2xf32>,
    } else {
    }
    return
  }
  func.func @transform_0(%arg0: i32) -> (i32, i32) {
    %c0_i32 = arith.constant 0 : i32
    %c0_i32_0 = arith.constant 0 : i32
    %c0_i32_1 = arith.constant 0 : i32
    return %c0_i32, %c0_i32_0 : i32, i32
  }
  func.func @transform_1(%arg0: i32) -> (i32, i32) {
    %c0_i32 = arith.constant 0 : i32
    %c0_i32_0 = arith.constant 0 : i32
    return %arg0, %c0_i32 : i32, i32
  }
  func.func @transform_2(%arg0: i32) -> (i32, i32) {
    %c0_i32 = arith.constant 0 : i32
    %c0_i32_0 = arith.constant 0 : i32
    %c0_i32_1 = arith.constant 0 : i32
    return %c0_i32, %c0_i32_0 : i32, i32
  }
  func.func @transform_3(%arg0: i32) -> (i32, i32) {
    %c0_i32 = arith.constant 0 : i32
    %c0_i32_0 = arith.constant 0 : i32
    %c0_i32_1 = arith.constant 0 : i32
    return %c0_i32, %c0_i32_0 : i32, i32
  }
  func.func @transform_4(%arg0: i32) -> (i32, i32) {
    %c0_i32 = arith.constant 0 : i32
    %c0_i32_0 = arith.constant 0 : i32
    %c0_i32_1 = arith.constant 0 : i32
    return %c0_i32, %c0_i32_0 : i32, i32
  }
  func.func @transform_5(%arg0: i32) -> (i32, i32) {
    %c0_i32 = arith.constant 0 : i32
    %c0_i32_0 = arith.constant 0 : i32
    %c0_i32_1 = arith.constant 0 : i32
    return %c0_i32, %c0_i32_0 : i32, i32
  }
}

</mosaic_0001>

<llo_original>
// kernel: two_arg_cnn_forward.3
$region0: #{two_arg_cnn_forward.3}
  #allocation0 [shape = 'u32[]', space=smem, size = 0x4, offset = 0x4, fixed_abs, tag = 'smem constant byte address 0x4 - core index']
  #allocation1 [shape = 'u32[144,128]{1,0:T(1,128)}', space=vmem, size = 0x12000, scoped, tag = 'internal scratch']
  %s0 = inlined_call_operand.vmem [shape: bf16[72,4160], index: 0, kind: input, shape index: {}]
  %s1 = inlined_call_operand.vmem [shape: bf16[16,72], index: 1, kind: input, shape index: {}]
  %s2 = inlined_call_operand.vmem [shape: f32[16,1], index: 2, kind: input, shape index: {}]
  %s3 = inlined_call_operand.vmem [shape: bf16[16,4160], index: 3, kind: output, shape index: {}]
  %s4 = sld [smem:[#allocation0]]
  $region22: #{two_arg_cnn_forward.3} parent=0
    _
  %s6 = ssub.s32 1, %s4
  %s7 = scalar_select 0, %s6, %s4
  // Predicated region
  $region2: #{two_arg_cnn_forward.3} parent=0 // pred_check
    _
  $region3: #{two_arg_cnn_forward.3} parent=0 // pred_check_branch
    %9 = sbr.rel (0) target = $region5
  $region4: #{two_arg_cnn_forward.3} parent=0 // pred_region
    _
  $region5: #{two_arg_cnn_forward.3} parent=0 // pred_fallthru
    _
  // Predicated region
  $region6: #{two_arg_cnn_forward.3} parent=0 // pred_check
    _
  $region7: #{two_arg_cnn_forward.3} parent=0 // pred_check_branch
    %11 = sbr.rel (0) target = $region9
  $region8: #{two_arg_cnn_forward.3} parent=0 // pred_region
    _
  $region9: #{two_arg_cnn_forward.3} parent=0 // pred_fallthru
    _
  // Predicated region
  $region10: #{two_arg_cnn_forward.3} parent=0 // pred_check
    _
  $region11: #{two_arg_cnn_forward.3} parent=0 // pred_check_branch
    %13 = sbr.rel (0) target = $region13
  $region12: #{two_arg_cnn_forward.3} parent=0 // pred_region
    _
  $region13: #{two_arg_cnn_forward.3} parent=0 // pred_fallthru
    _
  %v15 = vld [vmem:[%s1] sm:$0xf]
  %v16 = vld [vmem:[%s1 + $0x4] sm:$0xf]
  %v17 = vld [vmem:[%s0] sm:$0xff]
  %v18 = vld [vmem:[%s0 + $0x8] sm:$0xff]
  %v19 = vld [vmem:[%s0 + $0x10] sm:$0xff]
  %v20 = vld [vmem:[%s0 + $0x18] sm:$0xff]
  %v21 = vld [vmem:[%s0 + $0x20] sm:$0xff]
  %v22 = vld [vmem:[%s0 + $0x28] sm:$0xff]
  %v23 = vld [vmem:[%s0 + $0x30] sm:$0xff]
  %v24 = vld [vmem:[%s0 + $0x38] sm:$0xff]
  %v25 = vld [vmem:[%s0 + $0x40] sm:$0xff]
  %v26 = vld [vmem:[%s0 + $0x48] sm:$0xff]
  %v27 = vld [vmem:[%s0 + $0x50] sm:$0xff]
  %v28 = vld [vmem:[%s0 + $0x58] sm:$0xff]
  %v29 = vld [vmem:[%s0 + $0x60] sm:$0xff]
  %v30 = vld [vmem:[%s0 + $0x68] sm:$0xff]
  %v31 = vld [vmem:[%s0 + $0x70] sm:$0xff]
  %v32 = vld [vmem:[%s0 + $0x78] sm:$0xff]
  %v33 = vld [vmem:[%s0 + $0x80] sm:$0xf]
  %v34 = vld [vmem:[%s0 + $0x84] sm:$0xff]
  %v35 = vld [vmem:[%s0 + $0x8c] sm:$0xff]
  %v36 = vld [vmem:[%s0 + $0x94] sm:$0xff]
  %v37 = vld [vmem:[%s0 + $0x9c] sm:$0xff]
  %v38 = vld [vmem:[%s0 + $0xa4] sm:$0xff]
  %v39 = vld [vmem:[%s0 + $0xac] sm:$0xff]
  %v40 = vld [vmem:[%s0 + $0xb4] sm:$0xff]
  %v41 = vld [vmem:[%s0 + $0xbc] sm:$0xff]
  %v42 = vld [vmem:[%s0 + $0xc4] sm:$0xff]
  %v43 = vld [vmem:[%s0 + $0xcc] sm:$0xff]
  %v44 = vld [vmem:[%s0 + $0xd4] sm:$0xff]
  %v45 = vld [vmem:[%s0 + $0xdc] sm:$0xff]
  %v46 = vld [vmem:[%s0 + $0xe4] sm:$0xff]
  %v47 = vld [vmem:[%s0 + $0xec] sm:$0xff]
  %v48 = vld [vmem:[%s0 + $0xf4] sm:$0xff]
  %v49 = vld [vmem:[%s0 + $0xfc] sm:$0xff]
  %v50 = vld [vmem:[%s0 + $0x104] sm:$0xf]
  %v51 = vld [vmem:[%s0 + $0x108] sm:$0xff]
  %v52 = vld [vmem:[%s0 + $0x110] sm:$0xff]
  %v53 = vld [vmem:[%s0 + $0x118] sm:$0xff]
  %v54 = vld [vmem:[%s0 + $0x120] sm:$0xff]
  %v55 = vld [vmem:[%s0 + $0x128] sm:$0xff]
  %v56 = vld [vmem:[%s0 + $0x130] sm:$0xff]
  %v57 = vld [vmem:[%s0 + $0x138] sm:$0xff]
  %v58 = vld [vmem:[%s0 + $0x140] sm:$0xff]
  %v59 = vld [vmem:[%s0 + $0x148] sm:$0xff]
  %v60 = vld [vmem:[%s0 + $0x150] sm:$0xff]
  %v61 = vld [vmem:[%s0 + $0x158] sm:$0xff]
  %v62 = vld [vmem:[%s0 + $0x160] sm:$0xff]
  %v63 = vld [vmem:[%s0 + $0x168] sm:$0xff]
  %v64 = vld [vmem:[%s0 + $0x170] sm:$0xff]
  %v65 = vld [vmem:[%s0 + $0x178] sm:$0xff]
  %v66 = vld [vmem:[%s0 + $0x180] sm:$0xff]
  %v67 = vld [vmem:[%s0 + $0x188] sm:$0xf]
  %v68 = vld [vmem:[%s0 + $0x18c] sm:$0xff]
  %v69 = vld [vmem:[%s0 + $0x194] sm:$0xff]
  %v70 = vld [vmem:[%s0 + $0x19c] sm:$0xff]
  %v71 = vld [vmem:[%s0 + $0x1a4] sm:$0xff]
  %v72 = vld [vmem:[%s0 + $0x1ac] sm:$0xff]
  %v73 = vld [vmem:[%s0 + $0x1b4] sm:$0xff]
  %v74 = vld [vmem:[%s0 + $0x1bc] sm:$0xff]
  %v75 = vld [vmem:[%s0 + $0x1c4] sm:$0xff]
  %v76 = vld [vmem:[%s0 + $0x1cc] sm:$0xff]
  %v77 = vld [vmem:[%s0 + $0x1d4] sm:$0xff]
  %v78 = vld [vmem:[%s0 + $0x1dc] sm:$0xff]
  %v79 = vld [vmem:[%s0 + $0x1e4] sm:$0xff]
  %v80 = vld [vmem:[%s0 + $0x1ec] sm:$0xff]
  %v81 = vld [vmem:[%s0 + $0x1f4] sm:$0xff]
  %v82 = vld [vmem:[%s0 + $0x1fc] sm:$0xff]
  %v83 = vld [vmem:[%s0 + $0x204] sm:$0xff]
  %v84 = vld [vmem:[%s0 + $0x20c] sm:$0xf]
  %v85 = vld [vmem:[%s0 + $0x210] sm:$0xff]
  %v86 = vld [vmem:[%s0 + $0x218] sm:$0xff]
  %v87 = vld [vmem:[%s0 + $0x220] sm:$0xff]
  %v88 = vld [vmem:[%s0 + $0x228] sm:$0xff]
  %v89 = vld [vmem:[%s0 + $0x230] sm:$0xff]
  %v90 = vld [vmem:[%s0 + $0x238] sm:$0xff]
  %v91 = vld [vmem:[%s0 + $0x240] sm:$0xff]
  %v92 = vld [vmem:[%s0 + $0x248] sm:$0xff]
  %v93 = vld [vmem:[%s0 + $0x250] sm:$0xff]
  %v94 = vld [vmem:[%s0 + $0x258] sm:$0xff]
  %v95 = vld [vmem:[%s0 + $0x260] sm:$0xff]
  %v96 = vld [vmem:[%s0 + $0x268] sm:$0xff]
  %v97 = vld [vmem:[%s0 + $0x270] sm:$0xff]
  %v98 = vld [vmem:[%s0 + $0x278] sm:$0xff]
  %v99 = vld [vmem:[%s0 + $0x280] sm:$0xff]
  %v100 = vld [vmem:[%s0 + $0x288] sm:$0xff]
  %v101 = vld [vmem:[%s0 + $0x290] sm:$0xf]
  %v102 = vld [vmem:[%s0 + $0x294] sm:$0xff]
  %v103 = vld [vmem:[%s0 + $0x29c] sm:$0xff]
  %v104 = vld [vmem:[%s0 + $0x2a4] sm:$0xff]
  %v105 = vld [vmem:[%s0 + $0x2ac] sm:$0xff]
  %v106 = vld [vmem:[%s0 + $0x2b4] sm:$0xff]
  %v107 = vld [vmem:[%s0 + $0x2bc] sm:$0xff]
  %v108 = vld [vmem:[%s0 + $0x2c4] sm:$0xff]
  %v109 = vld [vmem:[%s0 + $0x2cc] sm:$0xff]
  %v110 = vld [vmem:[%s0 + $0x2d4] sm:$0xff]
  %v111 = vld [vmem:[%s0 + $0x2dc] sm:$0xff]
  %v112 = vld [vmem:[%s0 + $0x2e4] sm:$0xff]
  %v113 = vld [vmem:[%s0 + $0x2ec] sm:$0xff]
  %v114 = vld [vmem:[%s0 + $0x2f4] sm:$0xff]
  %v115 = vld [vmem:[%s0 + $0x2fc] sm:$0xff]
  %v116 = vld [vmem:[%s0 + $0x304] sm:$0xff]
  %v117 = vld [vmem:[%s0 + $0x30c] sm:$0xff]
  %v118 = vld [vmem:[%s0 + $0x314] sm:$0xf]
  %v119 = vld [vmem:[%s0 + $0x318] sm:$0xff]
  %v120 = vld [vmem:[%s0 + $0x320] sm:$0xff]
  %v121 = vld [vmem:[%s0 + $0x328] sm:$0xff]
  %v122 = vld [vmem:[%s0 + $0x330] sm:$0xff]
  %v123 = vld [vmem:[%s0 + $0x338] sm:$0xff]
  %v124 = vld [vmem:[%s0 + $0x340] sm:$0xff]
  %v125 = vld [vmem:[%s0 + $0x348] sm:$0xff]
  %v126 = vld [vmem:[%s0 + $0x350] sm:$0xff]
  %v127 = vld [vmem:[%s0 + $0x358] sm:$0xff]
  %v128 = vld [vmem:[%s0 + $0x360] sm:$0xff]
  %v129 = vld [vmem:[%s0 + $0x368] sm:$0xff]
  %v130 = vld [vmem:[%s0 + $0x370] sm:$0xff]
  %v131 = vld [vmem:[%s0 + $0x378] sm:$0xff]
  %v132 = vld [vmem:[%s0 + $0x380] sm:$0xff]
  %v133 = vld [vmem:[%s0 + $0x388] sm:$0xff]
  %v134 = vld [vmem:[%s0 + $0x390] sm:$0xff]
  %v135 = vld [vmem:[%s0 + $0x398] sm:$0xf]
  %v136 = vld [vmem:[%s0 + $0x39c] sm:$0xff]
  %v137 = vld [vmem:[%s0 + $0x3a4] sm:$0xff]
  %v138 = vld [vmem:[%s0 + $0x3ac] sm:$0xff]
  %v139 = vld [vmem:[%s0 + $0x3b4] sm:$0xff]
  %v140 = vld [vmem:[%s0 + $0x3bc] sm:$0xff]
  %v141 = vld [vmem:[%s0 + $0x3c4] sm:$0xff]
  %v142 = vld [vmem:[%s0 + $0x3cc] sm:$0xff]
  %v143 = vld [vmem:[%s0 + $0x3d4] sm:$0xff]
  %v144 = vld [vmem:[%s0 + $0x3dc] sm:$0xff]
  %v145 = vld [vmem:[%s0 + $0x3e4] sm:$0xff]
  %v146 = vld [vmem:[%s0 + $0x3ec] sm:$0xff]
  %v147 = vld [vmem:[%s0 + $0x3f4] sm:$0xff]
  %v148 = vld [vmem:[%s0 + $0x3fc] sm:$0xff]
  %v149 = vld [vmem:[%s0 + $0x404] sm:$0xff]
  %v150 = vld [vmem:[%s0 + $0x40c] sm:$0xff]
  %v151 = vld [vmem:[%s0 + $0x414] sm:$0xff]
  %v152 = vld [vmem:[%s0 + $0x41c] sm:$0xf]
  %v153 = vld [vmem:[%s0 + $0x420] sm:$0xff]
  %v154 = vld [vmem:[%s0 + $0x428] sm:$0xff]
  %v155 = vld [vmem:[%s0 + $0x430] sm:$0xff]
  %v156 = vld [vmem:[%s0 + $0x438] sm:$0xff]
  %v157 = vld [vmem:[%s0 + $0x440] sm:$0xff]
  %v158 = vld [vmem:[%s0 + $0x448] sm:$0xff]
  %v159 = vld [vmem:[%s0 + $0x450] sm:$0xff]
  %v160 = vld [vmem:[%s0 + $0x458] sm:$0xff]
  %v161 = vld [vmem:[%s0 + $0x460] sm:$0xff]
  %v162 = vld [vmem:[%s0 + $0x468] sm:$0xff]
  %v163 = vld [vmem:[%s0 + $0x470] sm:$0xff]
  %v164 = vld [vmem:[%s0 + $0x478] sm:$0xff]
  %v165 = vld [vmem:[%s0 + $0x480] sm:$0xff]
  %v166 = vld [vmem:[%s0 + $0x488] sm:$0xff]
  %v167 = vld [vmem:[%s0 + $0x490] sm:$0xff]
  %v168 = vld [vmem:[%s0 + $0x498] sm:$0xff]
  %v169 = vld [vmem:[%s0 + $0x4a0] sm:$0xf]
  %v170 = vld [vmem:[%s2] sm:$0xff]
  %v171 = vld [vmem:[%s2 + $0x8] sm:$0xff]
  %173 = vset.pattern.permute.xlu0 0
  %174 = vperm.xlu0 %173, %v170
  %v175 = vpop.permute.xlu0 %174
  %178 = vset.pattern.permute.xlu0 0
  %179 = vperm.xlu0 %178, %v171
  %v180 = vpop.permute.xlu0 %179
  %v184 = vunpack.c.l.b16 %v15
  %v185 = vunpack.c.l.b16 %v16
  %v186 = vpack.c.b16 %v185, %v184
  %v340 = vunpack.c.l.b16 %v17
  %v341 = vunpack.c.h.b16 %v17
  %v342 = vunpack.c.l.b16 %v18
  %v343 = vunpack.c.h.b16 %v18
  %v344 = vunpack.c.l.b16 %v19
  %v345 = vunpack.c.h.b16 %v19
  %v346 = vunpack.c.l.b16 %v20
  %v347 = vunpack.c.h.b16 %v20
  %v348 = vunpack.c.l.b16 %v21
  %v349 = vunpack.c.h.b16 %v21
  %v350 = vunpack.c.l.b16 %v22
  %v351 = vunpack.c.h.b16 %v22
  %v352 = vunpack.c.l.b16 %v23
  %v353 = vunpack.c.h.b16 %v23
  %v354 = vunpack.c.l.b16 %v24
  %v355 = vunpack.c.h.b16 %v24
  %v356 = vunpack.c.l.b16 %v25
  %v357 = vunpack.c.h.b16 %v25
  %v358 = vunpack.c.l.b16 %v26
  %v359 = vunpack.c.h.b16 %v26
  %v360 = vunpack.c.l.b16 %v27
  %v361 = vunpack.c.h.b16 %v27
  %v362 = vunpack.c.l.b16 %v28
  %v363 = vunpack.c.h.b16 %v28
  %v364 = vunpack.c.l.b16 %v29
  %v365 = vunpack.c.h.b16 %v29
  %v366 = vunpack.c.l.b16 %v30
  %v367 = vunpack.c.h.b16 %v30
  %v368 = vunpack.c.l.b16 %v31
  %v369 = vunpack.c.h.b16 %v31
  %v370 = vunpack.c.l.b16 %v32
  %v371 = vunpack.c.h.b16 %v32
  %v372 = vunpack.c.l.b16 %v33
  %v373 = vunpack.c.l.b16 %v34
  %v374 = vunpack.c.h.b16 %v34
  %v375 = vunpack.c.l.b16 %v35
  %v376 = vunpack.c.h.b16 %v35
  %v377 = vunpack.c.l.b16 %v36
  %v378 = vunpack.c.h.b16 %v36
  %v379 = vunpack.c.l.b16 %v37
  %v380 = vunpack.c.h.b16 %v37
  %v381 = vunpack.c.l.b16 %v38
  %v382 = vunpack.c.h.b16 %v38
  %v383 = vunpack.c.l.b16 %v39
  %v384 = vunpack.c.h.b16 %v39
  %v385 = vunpack.c.l.b16 %v40
  %v386 = vunpack.c.h.b16 %v40
  %v387 = vunpack.c.l.b16 %v41
  %v388 = vunpack.c.h.b16 %v41
  %v389 = vunpack.c.l.b16 %v42
  %v390 = vunpack.c.h.b16 %v42
  %v391 = vunpack.c.l.b16 %v43
  %v392 = vunpack.c.h.b16 %v43
  %v393 = vunpack.c.l.b16 %v44
  %v394 = vunpack.c.h.b16 %v44
  %v395 = vunpack.c.l.b16 %v45
  %v396 = vunpack.c.h.b16 %v45
  %v397 = vunpack.c.l.b16 %v46
  %v398 = vunpack.c.h.b16 %v46
  %v399 = vunpack.c.l.b16 %v47
  %v400 = vunpack.c.h.b16 %v47
  %v401 = vunpack.c.l.b16 %v48
  %v402 = vunpack.c.h.b16 %v48
  %v403 = vunpack.c.l.b16 %v49
  %v404 = vunpack.c.h.b16 %v49
  %v405 = vunpack.c.l.b16 %v50
  %v406 = vunpack.c.l.b16 %v51
  %v407 = vunpack.c.h.b16 %v51
  %v408 = vunpack.c.l.b16 %v52
  %v409 = vunpack.c.h.b16 %v52
  %v410 = vunpack.c.l.b16 %v53
  %v411 = vunpack.c.h.b16 %v53
  %v412 = vunpack.c.l.b16 %v54
  %v413 = vunpack.c.h.b16 %v54
  %v414 = vunpack.c.l.b16 %v55
  %v415 = vunpack.c.h.b16 %v55
  %v416 = vunpack.c.l.b16 %v56
  %v417 = vunpack.c.h.b16 %v56
  %v418 = vunpack.c.l.b16 %v57
  %v419 = vunpack.c.h.b16 %v57
  %v420 = vunpack.c.l.b16 %v58
  %v421 = vunpack.c.h.b16 %v58
  %v422 = vunpack.c.l.b16 %v59
  %v423 = vunpack.c.h.b16 %v59
  %v424 = vunpack.c.l.b16 %v60
  %v425 = vunpack.c.h.b16 %v60
  %v426 = vunpack.c.l.b16 %v61
  %v427 = vunpack.c.h.b16 %v61
  %v428 = vunpack.c.l.b16 %v62
  %v429 = vunpack.c.h.b16 %v62
  %v430 = vunpack.c.l.b16 %v63
  %v431 = vunpack.c.h.b16 %v63
  %v432 = vunpack.c.l.b16 %v64
  %v433 = vunpack.c.h.b16 %v64
  %v434 = vunpack.c.l.b16 %v65
  %v435 = vunpack.c.h.b16 %v65
  %v436 = vunpack.c.l.b16 %v66
  %v437 = vunpack.c.h.b16 %v66
  %v438 = vunpack.c.l.b16 %v67
  %v439 = vunpack.c.l.b16 %v68
  %v440 = vunpack.c.h.b16 %v68
  %v441 = vunpack.c.l.b16 %v69
  %v442 = vunpack.c.h.b16 %v69
  %v443 = vunpack.c.l.b16 %v70
  %v444 = vunpack.c.h.b16 %v70
  %v445 = vunpack.c.l.b16 %v71
  %v446 = vunpack.c.h.b16 %v71
  %v447 = vunpack.c.l.b16 %v72
  %v448 = vunpack.c.h.b16 %v72
  %v449 = vunpack.c.l.b16 %v73
  %v450 = vunpack.c.h.b16 %v73
  %v451 = vunpack.c.l.b16 %v74
  %v452 = vunpack.c.h.b16 %v74
  %v453 = vunpack.c.l.b16 %v75
  %v454 = vunpack.c.h.b16 %v75
  %v455 = vunpack.c.l.b16 %v76
  %v456 = vunpack.c.h.b16 %v76
  %v457 = vunpack.c.l.b16 %v77
  %v458 = vunpack.c.h.b16 %v77
  %v459 = vunpack.c.l.b16 %v78
  %v460 = vunpack.c.h.b16 %v78
  %v461 = vunpack.c.l.b16 %v79
  %v462 = vunpack.c.h.b16 %v79
  %v463 = vunpack.c.l.b16 %v80
  %v464 = vunpack.c.h.b16 %v80
  %v465 = vunpack.c.l.b16 %v81
  %v466 = vunpack.c.h.b16 %v81
  %v467 = vunpack.c.l.b16 %v82
  %v468 = vunpack.c.h.b16 %v82
  %v469 = vunpack.c.l.b16 %v83
  %v470 = vunpack.c.h.b16 %v83
  %v471 = vunpack.c.l.b16 %v84
  %v472 = vunpack.c.l.b16 %v85
  %v473 = vunpack.c.h.b16 %v85
  %v474 = vunpack.c.l.b16 %v86
  %v475 = vunpack.c.h.b16 %v86
  %v476 = vunpack.c.l.b16 %v87
  %v477 = vunpack.c.h.b16 %v87
  %v478 = vunpack.c.l.b16 %v88
  %v479 = vunpack.c.h.b16 %v88
  %v480 = vunpack.c.l.b16 %v89
  %v481 = vunpack.c.h.b16 %v89
  %v482 = vunpack.c.l.b16 %v90
  %v483 = vunpack.c.h.b16 %v90
  %v484 = vunpack.c.l.b16 %v91
  %v485 = vunpack.c.h.b16 %v91
  %v486 = vunpack.c.l.b16 %v92
  %v487 = vunpack.c.h.b16 %v92
  %v488 = vunpack.c.l.b16 %v93
  %v489 = vunpack.c.h.b16 %v93
  %v490 = vunpack.c.l.b16 %v94
  %v491 = vunpack.c.h.b16 %v94
  %v492 = vunpack.c.l.b16 %v95
  %v493 = vunpack.c.h.b16 %v95
  %v494 = vunpack.c.l.b16 %v96
  %v495 = vunpack.c.h.b16 %v96
  %v496 = vunpack.c.l.b16 %v97
  %v497 = vunpack.c.h.b16 %v97
  %v498 = vunpack.c.l.b16 %v98
  %v499 = vunpack.c.h.b16 %v98
  %v500 = vunpack.c.l.b16 %v99
  %v501 = vunpack.c.h.b16 %v99
  %v502 = vunpack.c.l.b16 %v100
  %v503 = vunpack.c.h.b16 %v100
  %v504 = vunpack.c.l.b16 %v101
  %v505 = vunpack.c.l.b16 %v102
  %v506 = vunpack.c.h.b16 %v102
  %v507 = vunpack.c.l.b16 %v103
  %v508 = vunpack.c.h.b16 %v103
  %v509 = vunpack.c.l.b16 %v104
  %v510 = vunpack.c.h.b16 %v104
  %v511 = vunpack.c.l.b16 %v105
  %v512 = vunpack.c.h.b16 %v105
  %v513 = vunpack.c.l.b16 %v106
  %v514 = vunpack.c.h.b16 %v106
  %v515 = vunpack.c.l.b16 %v107
  %v516 = vunpack.c.h.b16 %v107
  %v517 = vunpack.c.l.b16 %v108
  %v518 = vunpack.c.h.b16 %v108
  %v519 = vunpack.c.l.b16 %v109
  %v520 = vunpack.c.h.b16 %v109
  %v521 = vunpack.c.l.b16 %v110
  %v522 = vunpack.c.h.b16 %v110
  %v523 = vunpack.c.l.b16 %v111
  %v524 = vunpack.c.h.b16 %v111
  %v525 = vunpack.c.l.b16 %v112
  %v526 = vunpack.c.h.b16 %v112
  %v527 = vunpack.c.l.b16 %v113
  %v528 = vunpack.c.h.b16 %v113
  %v529 = vunpack.c.l.b16 %v114
  %v530 = vunpack.c.h.b16 %v114
  %v531 = vunpack.c.l.b16 %v115
  %v532 = vunpack.c.h.b16 %v115
  %v533 = vunpack.c.l.b16 %v116
  %v534 = vunpack.c.h.b16 %v116
  %v535 = vunpack.c.l.b16 %v117
  %v536 = vunpack.c.h.b16 %v117
  %v537 = vunpack.c.l.b16 %v118
  %v538 = vunpack.c.l.b16 %v119
  %v539 = vunpack.c.h.b16 %v119
  %v540 = vunpack.c.l.b16 %v120
  %v541 = vunpack.c.h.b16 %v120
  %v542 = vunpack.c.l.b16 %v121
  %v543 = vunpack.c.h.b16 %v121
  %v544 = vunpack.c.l.b16 %v122
  %v545 = vunpack.c.h.b16 %v122
  %v546 = vunpack.c.l.b16 %v123
  %v547 = vunpack.c.h.b16 %v123
  %v548 = vunpack.c.l.b16 %v124
  %v549 = vunpack.c.h.b16 %v124
  %v550 = vunpack.c.l.b16 %v125
  %v551 = vunpack.c.h.b16 %v125
  %v552 = vunpack.c.l.b16 %v126
  %v553 = vunpack.c.h.b16 %v126
  %v554 = vunpack.c.l.b16 %v127
  %v555 = vunpack.c.h.b16 %v127
  %v556 = vunpack.c.l.b16 %v128
  %v557 = vunpack.c.h.b16 %v128
  %v558 = vunpack.c.l.b16 %v129
  %v559 = vunpack.c.h.b16 %v129
  %v560 = vunpack.c.l.b16 %v130
  %v561 = vunpack.c.h.b16 %v130
  %v562 = vunpack.c.l.b16 %v131
  %v563 = vunpack.c.h.b16 %v131
  %v564 = vunpack.c.l.b16 %v132
  %v565 = vunpack.c.h.b16 %v132
  %v566 = vunpack.c.l.b16 %v133
  %v567 = vunpack.c.h.b16 %v133
  %v568 = vunpack.c.l.b16 %v134
  %v569 = vunpack.c.h.b16 %v134
  %v570 = vunpack.c.l.b16 %v135
  %v571 = vunpack.c.l.b16 %v136
  %v572 = vunpack.c.h.b16 %v136
  %v573 = vunpack.c.l.b16 %v137
  %v574 = vunpack.c.h.b16 %v137
  %v575 = vunpack.c.l.b16 %v138
  %v576 = vunpack.c.h.b16 %v138
  %v577 = vunpack.c.l.b16 %v139
  %v578 = vunpack.c.h.b16 %v139
  %v579 = vunpack.c.l.b16 %v140
  %v580 = vunpack.c.h.b16 %v140
  %v581 = vunpack.c.l.b16 %v141
  %v582 = vunpack.c.h.b16 %v141
  %v583 = vunpack.c.l.b16 %v142
  %v584 = vunpack.c.h.b16 %v142
  %v585 = vunpack.c.l.b16 %v143
  %v586 = vunpack.c.h.b16 %v143
  %v587 = vunpack.c.l.b16 %v144
  %v588 = vunpack.c.h.b16 %v144
  %v589 = vunpack.c.l.b16 %v145
  %v590 = vunpack.c.h.b16 %v145
  %v591 = vunpack.c.l.b16 %v146
  %v592 = vunpack.c.h.b16 %v146
  %v593 = vunpack.c.l.b16 %v147
  %v594 = vunpack.c.h.b16 %v147
  %v595 = vunpack.c.l.b16 %v148
  %v596 = vunpack.c.h.b16 %v148
  %v597 = vunpack.c.l.b16 %v149
  %v598 = vunpack.c.h.b16 %v149
  %v599 = vunpack.c.l.b16 %v150
  %v600 = vunpack.c.h.b16 %v150
  %v601 = vunpack.c.l.b16 %v151
  %v602 = vunpack.c.h.b16 %v151
  %v603 = vunpack.c.l.b16 %v152
  %v604 = vunpack.c.l.b16 %v153
  %v605 = vunpack.c.h.b16 %v153
  %v606 = vunpack.c.l.b16 %v154
  %v607 = vunpack.c.h.b16 %v154
  %v608 = vunpack.c.l.b16 %v155
  %v609 = vunpack.c.h.b16 %v155
  %v610 = vunpack.c.l.b16 %v156
  %v611 = vunpack.c.h.b16 %v156
  %v612 = vunpack.c.l.b16 %v157
  %v613 = vunpack.c.h.b16 %v157
  %v614 = vunpack.c.l.b16 %v158
  %v615 = vunpack.c.h.b16 %v158
  %v616 = vunpack.c.l.b16 %v159
  %v617 = vunpack.c.h.b16 %v159
  %v618 = vunpack.c.l.b16 %v160
  %v619 = vunpack.c.h.b16 %v160
  %v620 = vunpack.c.l.b16 %v161
  %v621 = vunpack.c.h.b16 %v161
  %v622 = vunpack.c.l.b16 %v162
  %v623 = vunpack.c.h.b16 %v162
  %v624 = vunpack.c.l.b16 %v163
  %v625 = vunpack.c.h.b16 %v163
  %v626 = vunpack.c.l.b16 %v164
  %v627 = vunpack.c.h.b16 %v164
  %v628 = vunpack.c.l.b16 %v165
  %v629 = vunpack.c.h.b16 %v165
  %v630 = vunpack.c.l.b16 %v166
  %v631 = vunpack.c.h.b16 %v166
  %v632 = vunpack.c.l.b16 %v167
  %v633 = vunpack.c.h.b16 %v167
  %v634 = vunpack.c.l.b16 %v168
  %v635 = vunpack.c.h.b16 %v168
  %v636 = vunpack.c.l.b16 %v169
  %v637 = vpack.c.b16 %v373, %v340
  %v638 = vpack.c.b16 %v374, %v341
  %v639 = vpack.c.b16 %v375, %v342
  %v640 = vpack.c.b16 %v376, %v343
  %v641 = vpack.c.b16 %v377, %v344
  %v642 = vpack.c.b16 %v378, %v345
  %v643 = vpack.c.b16 %v379, %v346
  %v644 = vpack.c.b16 %v380, %v347
  %v645 = vpack.c.b16 %v381, %v348
  %v646 = vpack.c.b16 %v382, %v349
  %v647 = vpack.c.b16 %v383, %v350
  %v648 = vpack.c.b16 %v384, %v351
  %v649 = vpack.c.b16 %v385, %v352
  %v650 = vpack.c.b16 %v386, %v353
  %v651 = vpack.c.b16 %v387, %v354
  %v652 = vpack.c.b16 %v388, %v355
  %v653 = vpack.c.b16 %v389, %v356
  %v654 = vpack.c.b16 %v390, %v357
  %v655 = vpack.c.b16 %v391, %v358
  %v656 = vpack.c.b16 %v392, %v359
  %v657 = vpack.c.b16 %v393, %v360
  %v658 = vpack.c.b16 %v394, %v361
  %v659 = vpack.c.b16 %v395, %v362
  %v660 = vpack.c.b16 %v396, %v363
  %v661 = vpack.c.b16 %v397, %v364
  %v662 = vpack.c.b16 %v398, %v365
  %v663 = vpack.c.b16 %v399, %v366
  %v664 = vpack.c.b16 %v400, %v367
  %v665 = vpack.c.b16 %v401, %v368
  %v666 = vpack.c.b16 %v402, %v369
  %v667 = vpack.c.b16 %v403, %v370
  %v668 = vpack.c.b16 %v404, %v371
  %v669 = vpack.c.b16 %v405, %v372
  %v670 = vpack.c.b16 %v439, %v406
  %v671 = vpack.c.b16 %v440, %v407
  %v672 = vpack.c.b16 %v441, %v408
  %v673 = vpack.c.b16 %v442, %v409
  %v674 = vpack.c.b16 %v443, %v410
  %v675 = vpack.c.b16 %v444, %v411
  %v676 = vpack.c.b16 %v445, %v412
  %v677 = vpack.c.b16 %v446, %v413
  %v678 = vpack.c.b16 %v447, %v414
  %v679 = vpack.c.b16 %v448, %v415
  %v680 = vpack.c.b16 %v449, %v416
  %v681 = vpack.c.b16 %v450, %v417
  %v682 = vpack.c.b16 %v451, %v418
  %v683 = vpack.c.b16 %v452, %v419
  %v684 = vpack.c.b16 %v453, %v420
  %v685 = vpack.c.b16 %v454, %v421
  %v686 = vpack.c.b16 %v455, %v422
  %v687 = vpack.c.b16 %v456, %v423
  %v688 = vpack.c.b16 %v457, %v424
  %v689 = vpack.c.b16 %v458, %v425
  %v690 = vpack.c.b16 %v459, %v426
  %v691 = vpack.c.b16 %v460, %v427
  %v692 = vpack.c.b16 %v461, %v428
  %v693 = vpack.c.b16 %v462, %v429
  %v694 = vpack.c.b16 %v463, %v430
  %v695 = vpack.c.b16 %v464, %v431
  %v696 = vpack.c.b16 %v465, %v432
  %v697 = vpack.c.b16 %v466, %v433
  %v698 = vpack.c.b16 %v467, %v434
  %v699 = vpack.c.b16 %v468, %v435
  %v700 = vpack.c.b16 %v469, %v436
  %v701 = vpack.c.b16 %v470, %v437
  %v702 = vpack.c.b16 %v471, %v438
  %v703 = vpack.c.b16 %v505, %v472
  %v704 = vpack.c.b16 %v506, %v473
  %v705 = vpack.c.b16 %v507, %v474
  %v706 = vpack.c.b16 %v508, %v475
  %v707 = vpack.c.b16 %v509, %v476
  %v708 = vpack.c.b16 %v510, %v477
  %v709 = vpack.c.b16 %v511, %v478
  %v710 = vpack.c.b16 %v512, %v479
  %v711 = vpack.c.b16 %v513, %v480
  %v712 = vpack.c.b16 %v514, %v481
  %v713 = vpack.c.b16 %v515, %v482
  %v714 = vpack.c.b16 %v516, %v483
  %v715 = vpack.c.b16 %v517, %v484
  %v716 = vpack.c.b16 %v518, %v485
  %v717 = vpack.c.b16 %v519, %v486
  %v718 = vpack.c.b16 %v520, %v487
  %v719 = vpack.c.b16 %v521, %v488
  %v720 = vpack.c.b16 %v522, %v489
  %v721 = vpack.c.b16 %v523, %v490
  %v722 = vpack.c.b16 %v524, %v491
  %v723 = vpack.c.b16 %v525, %v492
  %v724 = vpack.c.b16 %v526, %v493
  %v725 = vpack.c.b16 %v527, %v494
  %v726 = vpack.c.b16 %v528, %v495
  %v727 = vpack.c.b16 %v529, %v496
  %v728 = vpack.c.b16 %v530, %v497
  %v729 = vpack.c.b16 %v531, %v498
  %v730 = vpack.c.b16 %v532, %v499
  %v731 = vpack.c.b16 %v533, %v500
  %v732 = vpack.c.b16 %v534, %v501
  %v733 = vpack.c.b16 %v535, %v502
  %v734 = vpack.c.b16 %v536, %v503
  %v735 = vpack.c.b16 %v537, %v504
  %v736 = vpack.c.b16 %v571, %v538
  %v737 = vpack.c.b16 %v572, %v539
  %v738 = vpack.c.b16 %v573, %v540
  %v739 = vpack.c.b16 %v574, %v541
  %v740 = vpack.c.b16 %v575, %v542
  %v741 = vpack.c.b16 %v576, %v543
  %v742 = vpack.c.b16 %v577, %v544
  %v743 = vpack.c.b16 %v578, %v545
  %v744 = vpack.c.b16 %v579, %v546
  %v745 = vpack.c.b16 %v580, %v547
  %v746 = vpack.c.b16 %v581, %v548
  %v747 = vpack.c.b16 %v582, %v549
  %v748 = vpack.c.b16 %v583, %v550
  %v749 = vpack.c.b16 %v584, %v551
  %v750 = vpack.c.b16 %v585, %v552
  %v751 = vpack.c.b16 %v586, %v553
  %v752 = vpack.c.b16 %v587, %v554
  %v753 = vpack.c.b16 %v588, %v555
  %v754 = vpack.c.b16 %v589, %v556
  %v755 = vpack.c.b16 %v590, %v557
  %v756 = vpack.c.b16 %v591, %v558
  %v757 = vpack.c.b16 %v592, %v559
  %v758 = vpack.c.b16 %v593, %v560
  %v759 = vpack.c.b16 %v594, %v561
  %v760 = vpack.c.b16 %v595, %v562
  %v761 = vpack.c.b16 %v596, %v563
  %v762 = vpack.c.b16 %v597, %v564
  %v763 = vpack.c.b16 %v598, %v565
  %v764 = vpack.c.b16 %v599, %v566
  %v765 = vpack.c.b16 %v600, %v567
  %v766 = vpack.c.b16 %v601, %v568
  %v767 = vpack.c.b16 %v602, %v569
  %v768 = vpack.c.b16 %v603, %v570
  %v769 = vpack.c.b16 %v604, %v604
  %v770 = vpack.c.b16 %v605, %v605
  %v771 = vpack.c.b16 %v606, %v606
  %v772 = vpack.c.b16 %v607, %v607
  %v773 = vpack.c.b16 %v608, %v608
  %v774 = vpack.c.b16 %v609, %v609
  %v775 = vpack.c.b16 %v610, %v610
  %v776 = vpack.c.b16 %v611, %v611
  %v777 = vpack.c.b16 %v612, %v612
  %v778 = vpack.c.b16 %v613, %v613
  %v779 = vpack.c.b16 %v614, %v614
  %v780 = vpack.c.b16 %v615, %v615
  %v781 = vpack.c.b16 %v616, %v616
  %v782 = vpack.c.b16 %v617, %v617
  %v783 = vpack.c.b16 %v618, %v618
  %v784 = vpack.c.b16 %v619, %v619
  %v785 = vpack.c.b16 %v620, %v620
  %v786 = vpack.c.b16 %v621, %v621
  %v787 = vpack.c.b16 %v622, %v622
  %v788 = vpack.c.b16 %v623, %v623
  %v789 = vpack.c.b16 %v624, %v624
  %v790 = vpack.c.b16 %v625, %v625
  %v791 = vpack.c.b16 %v626, %v626
  %v792 = vpack.c.b16 %v627, %v627
  %v793 = vpack.c.b16 %v628, %v628
  %v794 = vpack.c.b16 %v629, %v629
  %v795 = vpack.c.b16 %v630, %v630
  %v796 = vpack.c.b16 %v631, %v631
  %v797 = vpack.c.b16 %v632, %v632
  %v798 = vpack.c.b16 %v633, %v633
  %v799 = vpack.c.b16 %v634, %v634
  %v800 = vpack.c.b16 %v635, %v635
  %v801 = vpack.c.b16 %v636, %v636
  %vm934 = vcmask 588800
  %v936 = vsel %vm934, %v186, 0
  %vm938 = vcmask 1043456
  %v940 = vsel %vm938, %v769, 0
  %v943 = vsel %vm938, %v770, 0
  %v946 = vsel %vm938, %v771, 0
  %v949 = vsel %vm938, %v772, 0
  %v952 = vsel %vm938, %v773, 0
  %v955 = vsel %vm938, %v774, 0
  %v958 = vsel %vm938, %v775, 0
  %v961 = vsel %vm938, %v776, 0
  %v964 = vsel %vm938, %v777, 0
  %v967 = vsel %vm938, %v778, 0
  %v970 = vsel %vm938, %v779, 0
  %v973 = vsel %vm938, %v780, 0
  %v976 = vsel %vm938, %v781, 0
  %v979 = vsel %vm938, %v782, 0
  %v982 = vsel %vm938, %v783, 0
  %v985 = vsel %vm938, %v784, 0
  %v988 = vsel %vm938, %v785, 0
  %v991 = vsel %vm938, %v786, 0
  %v994 = vsel %vm938, %v787, 0
  %v997 = vsel %vm938, %v788, 0
  %v1000 = vsel %vm938, %v789, 0
  %v1003 = vsel %vm938, %v790, 0
  %v1006 = vsel %vm938, %v791, 0
  %v1009 = vsel %vm938, %v792, 0
  %v1012 = vsel %vm938, %v793, 0
  %v1015 = vsel %vm938, %v794, 0
  %v1018 = vsel %vm938, %v795, 0
  %v1021 = vsel %vm938, %v796, 0
  %v1024 = vsel %vm938, %v797, 0
  %v1027 = vsel %vm938, %v798, 0
  %v1030 = vsel %vm938, %v799, 0
  %v1033 = vsel %vm938, %v800, 0
  %v1036 = vsel %vm938, %v801, 0
  %1038 = vmatprep.subr.bf16.mxu0 0
  %1039 = vmatpush1.bf16.msra.mxu0 0
  %1040 = vmatprep.subr.bf16.mxu0 0
  %1041 = vmatpush1.bf16.msra.mxu0 0
  %1042 = vmatprep.subr.bf16.mxu0 0
  %1043 = vmatpush1.bf16.msra.mxu0 0
  %1044 = vmatprep.subr.bf16.mxu0 %v943
  %1045 = vmatpush1.bf16.msra.mxu0 %v940
  %1046 = vmatprep.subr.bf16.mxu0 %v737
  %1047 = vmatpush1.bf16.msra.mxu0 %v736
  %1048 = vmatprep.subr.bf16.mxu0 %v704
  %1049 = vmatpush1.bf16.msra.mxu0 %v703
  %1050 = vmatprep.subr.bf16.mxu0 %v671
  %1051 = vmatpush1.bf16.msra.mxu0 %v670
  %1052 = vmatprep.subr.bf16.mxu0 %v638
  %1053 = vmatpush1.bf16.msra.mxu0 %v637
  %1054 = vmatprep.subr.bf16.mxu0 0
  %1055 = vmatpush2.bf16.msra.mxu0 0
  %1056 = vmatprep.subr.bf16.mxu0 0
  %1057 = vmatpush2.bf16.msra.mxu0 0
  %1058 = vmatprep.subr.bf16.mxu0 0
  %1059 = vmatpush2.bf16.msra.mxu0 0
  %1060 = vmatprep.subr.bf16.mxu0 0
  %1061 = vmatpush2.bf16.msra.mxu0 0
  %1062 = vmatprep.subr.bf16.mxu0 0
  %1063 = vmatpush2.bf16.msra.mxu0 0
  %1064 = vmatprep.subr.bf16.mxu0 0
  %1065 = vmatpush2.bf16.msra.mxu0 0
  %1066 = vmatprep.subr.bf16.mxu0 0
  %1067 = vmatpush2.bf16.msra.mxu0 0
  %1068 = vmatprep.subr.bf16.mxu0 0
  %1069 = vmatpush2.bf16.msra.mxu0 0
  %1070 = vmatprep.mubr.bf16.mxu0 0
  %1071 = vmatmul.mubr.bf16.gmra.mxu0 %v936
  %v1072 = vpop.f32.mrf.mxu0
  %v1073 = vadd.f32 %v175, %v1072
  %v1074 = vpop.f32.mrf.mxu0
  %v1075 = vadd.f32 %v175, %v1074
  %v1076 = vpop.f32.mrf.mxu0
  %v1077 = vadd.f32 %v180, %v1076
  %v1078 = vpop.f32.mrf.mxu0
  %v1079 = vadd.f32 %v180, %v1078
  %1080 = vdwg.mxu0
  %1081 = vmatprep.subr.bf16.mxu0 0
  %1082 = vmatpush1.bf16.msra.mxu0 0
  %1083 = vmatprep.subr.bf16.mxu0 0
  %1084 = vmatpush1.bf16.msra.mxu0 0
  %1085 = vmatprep.subr.bf16.mxu0 0
  %1086 = vmatpush1.bf16.msra.mxu0 0
  %1087 = vmatprep.subr.bf16.mxu0 %v949
  %1088 = vmatpush1.bf16.msra.mxu0 %v946
  %1089 = vmatprep.subr.bf16.mxu0 %v739
  %1090 = vmatpush1.bf16.msra.mxu0 %v738
  %1091 = vmatprep.subr.bf16.mxu0 %v706
  %1092 = vmatpush1.bf16.msra.mxu0 %v705
  %1093 = vmatprep.subr.bf16.mxu0 %v673
  %1094 = vmatpush1.bf16.msra.mxu0 %v672
  %1095 = vmatprep.subr.bf16.mxu0 %v640
  %1096 = vmatpush1.bf16.msra.mxu0 %v639
  %1097 = vmatprep.subr.bf16.mxu0 0
  %1098 = vmatpush2.bf16.msra.mxu0 0
  %1099 = vmatprep.subr.bf16.mxu0 0
  %1100 = vmatpush2.bf16.msra.mxu0 0
  %1101 = vmatprep.subr.bf16.mxu0 0
  %1102 = vmatpush2.bf16.msra.mxu0 0
  %1103 = vmatprep.subr.bf16.mxu0 0
  %1104 = vmatpush2.bf16.msra.mxu0 0
  %1105 = vmatprep.subr.bf16.mxu0 0
  %1106 = vmatpush2.bf16.msra.mxu0 0
  %1107 = vmatprep.subr.bf16.mxu0 0
  %1108 = vmatpush2.bf16.msra.mxu0 0
  %1109 = vmatprep.subr.bf16.mxu0 0
  %1110 = vmatpush2.bf16.msra.mxu0 0
  %1111 = vmatprep.subr.bf16.mxu0 0
  %1112 = vmatpush2.bf16.msra.mxu0 0
  %1113 = vmatprep.mubr.bf16.mxu0 0
  %1114 = vmatmul.mubr.bf16.gmra.mxu0 %v936
  %v1115 = vpop.f32.mrf.mxu0
  %v1116 = vadd.f32 %v175, %v1115
  %v1117 = vpop.f32.mrf.mxu0
  %v1118 = vadd.f32 %v175, %v1117
  %v1119 = vpop.f32.mrf.mxu0
  %v1120 = vadd.f32 %v180, %v1119
  %v1121 = vpop.f32.mrf.mxu0
  %v1122 = vadd.f32 %v180, %v1121
  %1123 = vdwg.mxu0
  %1124 = vmatprep.subr.bf16.mxu0 0
  %1125 = vmatpush1.bf16.msra.mxu0 0
  %1126 = vmatprep.subr.bf16.mxu0 0
  %1127 = vmatpush1.bf16.msra.mxu0 0
  %1128 = vmatprep.subr.bf16.mxu0 0
  %1129 = vmatpush1.bf16.msra.mxu0 0
  %1130 = vmatprep.subr.bf16.mxu0 %v955
  %1131 = vmatpush1.bf16.msra.mxu0 %v952
  %1132 = vmatprep.subr.bf16.mxu0 %v741
  %1133 = vmatpush1.bf16.msra.mxu0 %v740
  %1134 = vmatprep.subr.bf16.mxu0 %v708
  %1135 = vmatpush1.bf16.msra.mxu0 %v707
  %1136 = vmatprep.subr.bf16.mxu0 %v675
  %1137 = vmatpush1.bf16.msra.mxu0 %v674
  %1138 = vmatprep.subr.bf16.mxu0 %v642
  %1139 = vmatpush1.bf16.msra.mxu0 %v641
  %1140 = vmatprep.subr.bf16.mxu0 0
  %1141 = vmatpush2.bf16.msra.mxu0 0
  %1142 = vmatprep.subr.bf16.mxu0 0
  %1143 = vmatpush2.bf16.msra.mxu0 0
  %1144 = vmatprep.subr.bf16.mxu0 0
  %1145 = vmatpush2.bf16.msra.mxu0 0
  %1146 = vmatprep.subr.bf16.mxu0 0
  %1147 = vmatpush2.bf16.msra.mxu0 0
  %1148 = vmatprep.subr.bf16.mxu0 0
  %1149 = vmatpush2.bf16.msra.mxu0 0
  %1150 = vmatprep.subr.bf16.mxu0 0
  %1151 = vmatpush2.bf16.msra.mxu0 0
  %1152 = vmatprep.subr.bf16.mxu0 0
  %1153 = vmatpush2.bf16.msra.mxu0 0
  %1154 = vmatprep.subr.bf16.mxu0 0
  %1155 = vmatpush2.bf16.msra.mxu0 0
  %1156 = vmatprep.mubr.bf16.mxu0 0
  %1157 = vmatmul.mubr.bf16.gmra.mxu0 %v936
  %v1158 = vpop.f32.mrf.mxu0
  %v1159 = vadd.f32 %v175, %v1158
  %v1160 = vpop.f32.mrf.mxu0
  %v1161 = vadd.f32 %v175, %v1160
  %v1162 = vpop.f32.mrf.mxu0
  %v1163 = vadd.f32 %v180, %v1162
  %v1164 = vpop.f32.mrf.mxu0
  %v1165 = vadd.f32 %v180, %v1164
  %1166 = vdwg.mxu0
  %1167 = vmatprep.subr.bf16.mxu0 0
  %1168 = vmatpush1.bf16.msra.mxu0 0
  %1169 = vmatprep.subr.bf16.mxu0 0
  %1170 = vmatpush1.bf16.msra.mxu0 0
  %1171 = vmatprep.subr.bf16.mxu0 0
  %1172 = vmatpush1.bf16.msra.mxu0 0
  %1173 = vmatprep.subr.bf16.mxu0 %v961
  %1174 = vmatpush1.bf16.msra.mxu0 %v958
  %1175 = vmatprep.subr.bf16.mxu0 %v743
  %1176 = vmatpush1.bf16.msra.mxu0 %v742
  %1177 = vmatprep.subr.bf16.mxu0 %v710
  %1178 = vmatpush1.bf16.msra.mxu0 %v709
  %1179 = vmatprep.subr.bf16.mxu0 %v677
  %1180 = vmatpush1.bf16.msra.mxu0 %v676
  %1181 = vmatprep.subr.bf16.mxu0 %v644
  %1182 = vmatpush1.bf16.msra.mxu0 %v643
  %1183 = vmatprep.subr.bf16.mxu0 0
  %1184 = vmatpush2.bf16.msra.mxu0 0
  %1185 = vmatprep.subr.bf16.mxu0 0
  %1186 = vmatpush2.bf16.msra.mxu0 0
  %1187 = vmatprep.subr.bf16.mxu0 0
  %1188 = vmatpush2.bf16.msra.mxu0 0
  %1189 = vmatprep.subr.bf16.mxu0 0
  %1190 = vmatpush2.bf16.msra.mxu0 0
  %1191 = vmatprep.subr.bf16.mxu0 0
  %1192 = vmatpush2.bf16.msra.mxu0 0
  %1193 = vmatprep.subr.bf16.mxu0 0
  %1194 = vmatpush2.bf16.msra.mxu0 0
  %1195 = vmatprep.subr.bf16.mxu0 0
  %1196 = vmatpush2.bf16.msra.mxu0 0
  %1197 = vmatprep.subr.bf16.mxu0 0
  %1198 = vmatpush2.bf16.msra.mxu0 0
  %1199 = vmatprep.mubr.bf16.mxu0 0
  %1200 = vmatmul.mubr.bf16.gmra.mxu0 %v936
  %v1201 = vpop.f32.mrf.mxu0
  %v1202 = vadd.f32 %v175, %v1201
  %v1203 = vpop.f32.mrf.mxu0
  %v1204 = vadd.f32 %v175, %v1203
  %v1205 = vpop.f32.mrf.mxu0
  %v1206 = vadd.f32 %v180, %v1205
  %v1207 = vpop.f32.mrf.mxu0
  %v1208 = vadd.f32 %v180, %v1207
  %1209 = vdwg.mxu0
  %1210 = vmatprep.subr.bf16.mxu0 0
  %1211 = vmatpush1.bf16.msra.mxu0 0
  %1212 = vmatprep.subr.bf16.mxu0 0
  %1213 = vmatpush1.bf16.msra.mxu0 0
  %1214 = vmatprep.subr.bf16.mxu0 0
  %1215 = vmatpush1.bf16.msra.mxu0 0
  %1216 = vmatprep.subr.bf16.mxu0 %v967
  %1217 = vmatpush1.bf16.msra.mxu0 %v964
  %1218 = vmatprep.subr.bf16.mxu0 %v745
  %1219 = vmatpush1.bf16.msra.mxu0 %v744
  %1220 = vmatprep.subr.bf16.mxu0 %v712
  %1221 = vmatpush1.bf16.msra.mxu0 %v711
  %1222 = vmatprep.subr.bf16.mxu0 %v679
  %1223 = vmatpush1.bf16.msra.mxu0 %v678
  %1224 = vmatprep.subr.bf16.mxu0 %v646
  %1225 = vmatpush1.bf16.msra.mxu0 %v645
  %1226 = vmatprep.subr.bf16.mxu0 0
  %1227 = vmatpush2.bf16.msra.mxu0 0
  %1228 = vmatprep.subr.bf16.mxu0 0
  %1229 = vmatpush2.bf16.msra.mxu0 0
  %1230 = vmatprep.subr.bf16.mxu0 0
  %1231 = vmatpush2.bf16.msra.mxu0 0
  %1232 = vmatprep.subr.bf16.mxu0 0
  %1233 = vmatpush2.bf16.msra.mxu0 0
  %1234 = vmatprep.subr.bf16.mxu0 0
  %1235 = vmatpush2.bf16.msra.mxu0 0
  %1236 = vmatprep.subr.bf16.mxu0 0
  %1237 = vmatpush2.bf16.msra.mxu0 0
  %1238 = vmatprep.subr.bf16.mxu0 0
  %1239 = vmatpush2.bf16.msra.mxu0 0
  %1240 = vmatprep.subr.bf16.mxu0 0
  %1241 = vmatpush2.bf16.msra.mxu0 0
  %1242 = vmatprep.mubr.bf16.mxu0 0
  %1243 = vmatmul.mubr.bf16.gmra.mxu0 %v936
  %v1244 = vpop.f32.mrf.mxu0
  %v1245 = vadd.f32 %v175, %v1244
  %v1246 = vpop.f32.mrf.mxu0
  %v1247 = vadd.f32 %v175, %v1246
  %v1248 = vpop.f32.mrf.mxu0
  %v1249 = vadd.f32 %v180, %v1248
  %v1250 = vpop.f32.mrf.mxu0
  %v1251 = vadd.f32 %v180, %v1250
  %1252 = vdwg.mxu0
  %1253 = vmatprep.subr.bf16.mxu0 0
  %1254 = vmatpush1.bf16.msra.mxu0 0
  %1255 = vmatprep.subr.bf16.mxu0 0
  %1256 = vmatpush1.bf16.msra.mxu0 0
  %1257 = vmatprep.subr.bf16.mxu0 0
  %1258 = vmatpush1.bf16.msra.mxu0 0
  %1259 = vmatprep.subr.bf16.mxu0 %v973
  %1260 = vmatpush1.bf16.msra.mxu0 %v970
  %1261 = vmatprep.subr.bf16.mxu0 %v747
  %1262 = vmatpush1.bf16.msra.mxu0 %v746
  %1263 = vmatprep.subr.bf16.mxu0 %v714
  %1264 = vmatpush1.bf16.msra.mxu0 %v713
  %1265 = vmatprep.subr.bf16.mxu0 %v681
  %1266 = vmatpush1.bf16.msra.mxu0 %v680
  %1267 = vmatprep.subr.bf16.mxu0 %v648
  %1268 = vmatpush1.bf16.msra.mxu0 %v647
  %1269 = vmatprep.subr.bf16.mxu0 0
  %1270 = vmatpush2.bf16.msra.mxu0 0
  %1271 = vmatprep.subr.bf16.mxu0 0
  %1272 = vmatpush2.bf16.msra.mxu0 0
  %1273 = vmatprep.subr.bf16.mxu0 0
  %1274 = vmatpush2.bf16.msra.mxu0 0
  %1275 = vmatprep.subr.bf16.mxu0 0
  %1276 = vmatpush2.bf16.msra.mxu0 0
  %1277 = vmatprep.subr.bf16.mxu0 0
  %1278 = vmatpush2.bf16.msra.mxu0 0
  %1279 = vmatprep.subr.bf16.mxu0 0
  %1280 = vmatpush2.bf16.msra.mxu0 0
  %1281 = vmatprep.subr.bf16.mxu0 0
  %1282 = vmatpush2.bf16.msra.mxu0 0
  %1283 = vmatprep.subr.bf16.mxu0 0
  %1284 = vmatpush2.bf16.msra.mxu0 0
  %1285 = vmatprep.mubr.bf16.mxu0 0
  %1286 = vmatmul.mubr.bf16.gmra.mxu0 %v936
  %v1287 = vpop.f32.mrf.mxu0
  %v1288 = vadd.f32 %v175, %v1287
  %v1289 = vpop.f32.mrf.mxu0
  %v1290 = vadd.f32 %v175, %v1289
  %v1291 = vpop.f32.mrf.mxu0
  %v1292 = vadd.f32 %v180, %v1291
  %v1293 = vpop.f32.mrf.mxu0
  %v1294 = vadd.f32 %v180, %v1293
  %1295 = vdwg.mxu0
  %1296 = vmatprep.subr.bf16.mxu0 0
  %1297 = vmatpush1.bf16.msra.mxu0 0
  %1298 = vmatprep.subr.bf16.mxu0 0
  %1299 = vmatpush1.bf16.msra.mxu0 0
  %1300 = vmatprep.subr.bf16.mxu0 0
  %1301 = vmatpush1.bf16.msra.mxu0 0
  %1302 = vmatprep.subr.bf16.mxu0 %v979
  %1303 = vmatpush1.bf16.msra.mxu0 %v976
  %1304 = vmatprep.subr.bf16.mxu0 %v749
  %1305 = vmatpush1.bf16.msra.mxu0 %v748
  %1306 = vmatprep.subr.bf16.mxu0 %v716
  %1307 = vmatpush1.bf16.msra.mxu0 %v715
  %1308 = vmatprep.subr.bf16.mxu0 %v683
  %1309 = vmatpush1.bf16.msra.mxu0 %v682
  %1310 = vmatprep.subr.bf16.mxu0 %v650
  %1311 = vmatpush1.bf16.msra.mxu0 %v649
  %1312 = vmatprep.subr.bf16.mxu0 0
  %1313 = vmatpush2.bf16.msra.mxu0 0
  %1314 = vmatprep.subr.bf16.mxu0 0
  %1315 = vmatpush2.bf16.msra.mxu0 0
  %1316 = vmatprep.subr.bf16.mxu0 0
  %1317 = vmatpush2.bf16.msra.mxu0 0
  %1318 = vmatprep.subr.bf16.mxu0 0
  %1319 = vmatpush2.bf16.msra.mxu0 0
  %1320 = vmatprep.subr.bf16.mxu0 0
  %1321 = vmatpush2.bf16.msra.mxu0 0
  %1322 = vmatprep.subr.bf16.mxu0 0
  %1323 = vmatpush2.bf16.msra.mxu0 0
  %1324 = vmatprep.subr.bf16.mxu0 0
  %1325 = vmatpush2.bf16.msra.mxu0 0
  %1326 = vmatprep.subr.bf16.mxu0 0
  %1327 = vmatpush2.bf16.msra.mxu0 0
  %1328 = vmatprep.mubr.bf16.mxu0 0
  %1329 = vmatmul.mubr.bf16.gmra.mxu0 %v936
  %v1330 = vpop.f32.mrf.mxu0
  %v1331 = vadd.f32 %v175, %v1330
  %v1332 = vpop.f32.mrf.mxu0
  %v1333 = vadd.f32 %v175, %v1332
  %v1334 = vpop.f32.mrf.mxu0
  %v1335 = vadd.f32 %v180, %v1334
  %v1336 = vpop.f32.mrf.mxu0
  %v1337 = vadd.f32 %v180, %v1336
  %1338 = vdwg.mxu0
  %1339 = vmatprep.subr.bf16.mxu0 0
  %1340 = vmatpush1.bf16.msra.mxu0 0
  %1341 = vmatprep.subr.bf16.mxu0 0
  %1342 = vmatpush1.bf16.msra.mxu0 0
  %1343 = vmatprep.subr.bf16.mxu0 0
  %1344 = vmatpush1.bf16.msra.mxu0 0
  %1345 = vmatprep.subr.bf16.mxu0 %v985
  %1346 = vmatpush1.bf16.msra.mxu0 %v982
  %1347 = vmatprep.subr.bf16.mxu0 %v751
  %1348 = vmatpush1.bf16.msra.mxu0 %v750
  %1349 = vmatprep.subr.bf16.mxu0 %v718
  %1350 = vmatpush1.bf16.msra.mxu0 %v717
  %1351 = vmatprep.subr.bf16.mxu0 %v685
  %1352 = vmatpush1.bf16.msra.mxu0 %v684
  %1353 = vmatprep.subr.bf16.mxu0 %v652
  %1354 = vmatpush1.bf16.msra.mxu0 %v651
  %1355 = vmatprep.subr.bf16.mxu0 0
  %1356 = vmatpush2.bf16.msra.mxu0 0
  %1357 = vmatprep.subr.bf16.mxu0 0
  %1358 = vmatpush2.bf16.msra.mxu0 0
  %1359 = vmatprep.subr.bf16.mxu0 0
  %1360 = vmatpush2.bf16.msra.mxu0 0
  %1361 = vmatprep.subr.bf16.mxu0 0
  %1362 = vmatpush2.bf16.msra.mxu0 0
  %1363 = vmatprep.subr.bf16.mxu0 0
  %1364 = vmatpush2.bf16.msra.mxu0 0
  %1365 = vmatprep.subr.bf16.mxu0 0
  %1366 = vmatpush2.bf16.msra.mxu0 0
  %1367 = vmatprep.subr.bf16.mxu0 0
  %1368 = vmatpush2.bf16.msra.mxu0 0
  %1369 = vmatprep.subr.bf16.mxu0 0
  %1370 = vmatpush2.bf16.msra.mxu0 0
  %1371 = vmatprep.mubr.bf16.mxu0 0
  %1372 = vmatmul.mubr.bf16.gmra.mxu0 %v936
  %v1373 = vpop.f32.mrf.mxu0
  %v1374 = vadd.f32 %v175, %v1373
  %v1375 = vpop.f32.mrf.mxu0
  %v1376 = vadd.f32 %v175, %v1375
  %v1377 = vpop.f32.mrf.mxu0
  %v1378 = vadd.f32 %v180, %v1377
  %v1379 = vpop.f32.mrf.mxu0
  %v1380 = vadd.f32 %v180, %v1379
  %1381 = vdwg.mxu0
  %1382 = vmatprep.subr.bf16.mxu0 0
  %1383 = vmatpush1.bf16.msra.mxu0 0
  %1384 = vmatprep.subr.bf16.mxu0 0
  %1385 = vmatpush1.bf16.msra.mxu0 0
  %1386 = vmatprep.subr.bf16.mxu0 0
  %1387 = vmatpush1.bf16.msra.mxu0 0
  %1388 = vmatprep.subr.bf16.mxu0 %v991
  %1389 = vmatpush1.bf16.msra.mxu0 %v988
  %1390 = vmatprep.subr.bf16.mxu0 %v753
  %1391 = vmatpush1.bf16.msra.mxu0 %v752
  %1392 = vmatprep.subr.bf16.mxu0 %v720
  %1393 = vmatpush1.bf16.msra.mxu0 %v719
  %1394 = vmatprep.subr.bf16.mxu0 %v687
  %1395 = vmatpush1.bf16.msra.mxu0 %v686
  %1396 = vmatprep.subr.bf16.mxu0 %v654
  %1397 = vmatpush1.bf16.msra.mxu0 %v653
  %1398 = vmatprep.subr.bf16.mxu0 0
  %1399 = vmatpush2.bf16.msra.mxu0 0
  %1400 = vmatprep.subr.bf16.mxu0 0
  %1401 = vmatpush2.bf16.msra.mxu0 0
  %1402 = vmatprep.subr.bf16.mxu0 0
  %1403 = vmatpush2.bf16.msra.mxu0 0
  %1404 = vmatprep.subr.bf16.mxu0 0
  %1405 = vmatpush2.bf16.msra.mxu0 0
  %1406 = vmatprep.subr.bf16.mxu0 0
  %1407 = vmatpush2.bf16.msra.mxu0 0
  %1408 = vmatprep.subr.bf16.mxu0 0
  %1409 = vmatpush2.bf16.msra.mxu0 0
  %1410 = vmatprep.subr.bf16.mxu0 0
  %1411 = vmatpush2.bf16.msra.mxu0 0
  %1412 = vmatprep.subr.bf16.mxu0 0
  %1413 = vmatpush2.bf16.msra.mxu0 0
  %1414 = vmatprep.mubr.bf16.mxu0 0
  %1415 = vmatmul.mubr.bf16.gmra.mxu0 %v936
  %v1416 = vpop.f32.mrf.mxu0
  %v1417 = vadd.f32 %v175, %v1416
  %v1418 = vpop.f32.mrf.mxu0
  %v1419 = vadd.f32 %v175, %v1418
  %v1420 = vpop.f32.mrf.mxu0
  %v1421 = vadd.f32 %v180, %v1420
  %v1422 = vpop.f32.mrf.mxu0
  %v1423 = vadd.f32 %v180, %v1422
  %1424 = vdwg.mxu0
  %1425 = vmatprep.subr.bf16.mxu0 0
  %1426 = vmatpush1.bf16.msra.mxu0 0
  %1427 = vmatprep.subr.bf16.mxu0 0
  %1428 = vmatpush1.bf16.msra.mxu0 0
  %1429 = vmatprep.subr.bf16.mxu0 0
  %1430 = vmatpush1.bf16.msra.mxu0 0
  %1431 = vmatprep.subr.bf16.mxu0 %v997
  %1432 = vmatpush1.bf16.msra.mxu0 %v994
  %1433 = vmatprep.subr.bf16.mxu0 %v755
  %1434 = vmatpush1.bf16.msra.mxu0 %v754
  %1435 = vmatprep.subr.bf16.mxu0 %v722
  %1436 = vmatpush1.bf16.msra.mxu0 %v721
  %1437 = vmatprep.subr.bf16.mxu0 %v689
  %1438 = vmatpush1.bf16.msra.mxu0 %v688
  %1439 = vmatprep.subr.bf16.mxu0 %v656
  %1440 = vmatpush1.bf16.msra.mxu0 %v655
  %1441 = vmatprep.subr.bf16.mxu0 0
  %1442 = vmatpush2.bf16.msra.mxu0 0
  %1443 = vmatprep.subr.bf16.mxu0 0
  %1444 = vmatpush2.bf16.msra.mxu0 0
  %1445 = vmatprep.subr.bf16.mxu0 0
  %1446 = vmatpush2.bf16.msra.mxu0 0
  %1447 = vmatprep.subr.bf16.mxu0 0
  %1448 = vmatpush2.bf16.msra.mxu0 0
  %1449 = vmatprep.subr.bf16.mxu0 0
  %1450 = vmatpush2.bf16.msra.mxu0 0
  %1451 = vmatprep.subr.bf16.mxu0 0
  %1452 = vmatpush2.bf16.msra.mxu0 0
  %1453 = vmatprep.subr.bf16.mxu0 0
  %1454 = vmatpush2.bf16.msra.mxu0 0
  %1455 = vmatprep.subr.bf16.mxu0 0
  %1456 = vmatpush2.bf16.msra.mxu0 0
  %1457 = vmatprep.mubr.bf16.mxu0 0
  %1458 = vmatmul.mubr.bf16.gmra.mxu0 %v936
  %v1459 = vpop.f32.mrf.mxu0
  %v1460 = vadd.f32 %v175, %v1459
  %v1461 = vpop.f32.mrf.mxu0
  %v1462 = vadd.f32 %v175, %v1461
  %v1463 = vpop.f32.mrf.mxu0
  %v1464 = vadd.f32 %v180, %v1463
  %v1465 = vpop.f32.mrf.mxu0
  %v1466 = vadd.f32 %v180, %v1465
  %1467 = vdwg.mxu0
  %1468 = vmatprep.subr.bf16.mxu0 0
  %1469 = vmatpush1.bf16.msra.mxu0 0
  %1470 = vmatprep.subr.bf16.mxu0 0
  %1471 = vmatpush1.bf16.msra.mxu0 0
  %1472 = vmatprep.subr.bf16.mxu0 0
  %1473 = vmatpush1.bf16.msra.mxu0 0
  %1474 = vmatprep.subr.bf16.mxu0 %v1003
  %1475 = vmatpush1.bf16.msra.mxu0 %v1000
  %1476 = vmatprep.subr.bf16.mxu0 %v757
  %1477 = vmatpush1.bf16.msra.mxu0 %v756
  %1478 = vmatprep.subr.bf16.mxu0 %v724
  %1479 = vmatpush1.bf16.msra.mxu0 %v723
  %1480 = vmatprep.subr.bf16.mxu0 %v691
  %1481 = vmatpush1.bf16.msra.mxu0 %v690
  %1482 = vmatprep.subr.bf16.mxu0 %v658
  %1483 = vmatpush1.bf16.msra.mxu0 %v657
  %1484 = vmatprep.subr.bf16.mxu0 0
  %1485 = vmatpush2.bf16.msra.mxu0 0
  %1486 = vmatprep.subr.bf16.mxu0 0
  %1487 = vmatpush2.bf16.msra.mxu0 0
  %1488 = vmatprep.subr.bf16.mxu0 0
  %1489 = vmatpush2.bf16.msra.mxu0 0
  %1490 = vmatprep.subr.bf16.mxu0 0
  %1491 = vmatpush2.bf16.msra.mxu0 0
  %1492 = vmatprep.subr.bf16.mxu0 0
  %1493 = vmatpush2.bf16.msra.mxu0 0
  %1494 = vmatprep.subr.bf16.mxu0 0
  %1495 = vmatpush2.bf16.msra.mxu0 0
  %1496 = vmatprep.subr.bf16.mxu0 0
  %1497 = vmatpush2.bf16.msra.mxu0 0
  %1498 = vmatprep.subr.bf16.mxu0 0
  %1499 = vmatpush2.bf16.msra.mxu0 0
  %1500 = vmatprep.mubr.bf16.mxu0 0
  %1501 = vmatmul.mubr.bf16.gmra.mxu0 %v936
  %v1502 = vpop.f32.mrf.mxu0
  %v1503 = vadd.f32 %v175, %v1502
  %v1504 = vpop.f32.mrf.mxu0
  %v1505 = vadd.f32 %v175, %v1504
  %v1506 = vpop.f32.mrf.mxu0
  %v1507 = vadd.f32 %v180, %v1506
  %v1508 = vpop.f32.mrf.mxu0
  %v1509 = vadd.f32 %v180, %v1508
  %1510 = vdwg.mxu0
  %1511 = vmatprep.subr.bf16.mxu0 0
  %1512 = vmatpush1.bf16.msra.mxu0 0
  %1513 = vmatprep.subr.bf16.mxu0 0
  %1514 = vmatpush1.bf16.msra.mxu0 0
  %1515 = vmatprep.subr.bf16.mxu0 0
  %1516 = vmatpush1.bf16.msra.mxu0 0
  %1517 = vmatprep.subr.bf16.mxu0 %v1009
  %1518 = vmatpush1.bf16.msra.mxu0 %v1006
  %1519 = vmatprep.subr.bf16.mxu0 %v759
  %1520 = vmatpush1.bf16.msra.mxu0 %v758
  %1521 = vmatprep.subr.bf16.mxu0 %v726
  %1522 = vmatpush1.bf16.msra.mxu0 %v725
  %1523 = vmatprep.subr.bf16.mxu0 %v693
  %1524 = vmatpush1.bf16.msra.mxu0 %v692
  %1525 = vmatprep.subr.bf16.mxu0 %v660
  %1526 = vmatpush1.bf16.msra.mxu0 %v659
  %1527 = vmatprep.subr.bf16.mxu0 0
  %1528 = vmatpush2.bf16.msra.mxu0 0
  %1529 = vmatprep.subr.bf16.mxu0 0
  %1530 = vmatpush2.bf16.msra.mxu0 0
  %1531 = vmatprep.subr.bf16.mxu0 0
  %1532 = vmatpush2.bf16.msra.mxu0 0
  %1533 = vmatprep.subr.bf16.mxu0 0
  %1534 = vmatpush2.bf16.msra.mxu0 0
  %1535 = vmatprep.subr.bf16.mxu0 0
  %1536 = vmatpush2.bf16.msra.mxu0 0
  %1537 = vmatprep.subr.bf16.mxu0 0
  %1538 = vmatpush2.bf16.msra.mxu0 0
  %1539 = vmatprep.subr.bf16.mxu0 0
  %1540 = vmatpush2.bf16.msra.mxu0 0
  %1541 = vmatprep.subr.bf16.mxu0 0
  %1542 = vmatpush2.bf16.msra.mxu0 0
  %1543 = vmatprep.mubr.bf16.mxu0 0
  %1544 = vmatmul.mubr.bf16.gmra.mxu0 %v936
  %v1545 = vpop.f32.mrf.mxu0
  %v1546 = vadd.f32 %v175, %v1545
  %v1547 = vpop.f32.mrf.mxu0
  %v1548 = vadd.f32 %v175, %v1547
  %v1549 = vpop.f32.mrf.mxu0
  %v1550 = vadd.f32 %v180, %v1549
  %v1551 = vpop.f32.mrf.mxu0
  %v1552 = vadd.f32 %v180, %v1551
  %1553 = vdwg.mxu0
  %1554 = vmatprep.subr.bf16.mxu0 0
  %1555 = vmatpush1.bf16.msra.mxu0 0
  %1556 = vmatprep.subr.bf16.mxu0 0
  %1557 = vmatpush1.bf16.msra.mxu0 0
  %1558 = vmatprep.subr.bf16.mxu0 0
  %1559 = vmatpush1.bf16.msra.mxu0 0
  %1560 = vmatprep.subr.bf16.mxu0 %v1015
  %1561 = vmatpush1.bf16.msra.mxu0 %v1012
  %1562 = vmatprep.subr.bf16.mxu0 %v761
  %1563 = vmatpush1.bf16.msra.mxu0 %v760
  %1564 = vmatprep.subr.bf16.mxu0 %v728
  %1565 = vmatpush1.bf16.msra.mxu0 %v727
  %1566 = vmatprep.subr.bf16.mxu0 %v695
  %1567 = vmatpush1.bf16.msra.mxu0 %v694
  %1568 = vmatprep.subr.bf16.mxu0 %v662
  %1569 = vmatpush1.bf16.msra.mxu0 %v661
  %1570 = vmatprep.subr.bf16.mxu0 0
  %1571 = vmatpush2.bf16.msra.mxu0 0
  %1572 = vmatprep.subr.bf16.mxu0 0
  %1573 = vmatpush2.bf16.msra.mxu0 0
  %1574 = vmatprep.subr.bf16.mxu0 0
  %1575 = vmatpush2.bf16.msra.mxu0 0
  %1576 = vmatprep.subr.bf16.mxu0 0
  %1577 = vmatpush2.bf16.msra.mxu0 0
  %1578 = vmatprep.subr.bf16.mxu0 0
  %1579 = vmatpush2.bf16.msra.mxu0 0
  %1580 = vmatprep.subr.bf16.mxu0 0
  %1581 = vmatpush2.bf16.msra.mxu0 0
  %1582 = vmatprep.subr.bf16.mxu0 0
  %1583 = vmatpush2.bf16.msra.mxu0 0
  %1584 = vmatprep.subr.bf16.mxu0 0
  %1585 = vmatpush2.bf16.msra.mxu0 0
  %1586 = vmatprep.mubr.bf16.mxu0 0
  %1587 = vmatmul.mubr.bf16.gmra.mxu0 %v936
  %v1588 = vpop.f32.mrf.mxu0
  %v1589 = vadd.f32 %v175, %v1588
  %v1590 = vpop.f32.mrf.mxu0
  %v1591 = vadd.f32 %v175, %v1590
  %v1592 = vpop.f32.mrf.mxu0
  %v1593 = vadd.f32 %v180, %v1592
  %v1594 = vpop.f32.mrf.mxu0
  %v1595 = vadd.f32 %v180, %v1594
  %1596 = vdwg.mxu0
  %1597 = vmatprep.subr.bf16.mxu0 0
  %1598 = vmatpush1.bf16.msra.mxu0 0
  %1599 = vmatprep.subr.bf16.mxu0 0
  %1600 = vmatpush1.bf16.msra.mxu0 0
  %1601 = vmatprep.subr.bf16.mxu0 0
  %1602 = vmatpush1.bf16.msra.mxu0 0
  %1603 = vmatprep.subr.bf16.mxu0 %v1021
  %1604 = vmatpush1.bf16.msra.mxu0 %v1018
  %1605 = vmatprep.subr.bf16.mxu0 %v763
  %1606 = vmatpush1.bf16.msra.mxu0 %v762
  %1607 = vmatprep.subr.bf16.mxu0 %v730
  %1608 = vmatpush1.bf16.msra.mxu0 %v729
  %1609 = vmatprep.subr.bf16.mxu0 %v697
  %1610 = vmatpush1.bf16.msra.mxu0 %v696
  %1611 = vmatprep.subr.bf16.mxu0 %v664
  %1612 = vmatpush1.bf16.msra.mxu0 %v663
  %1613 = vmatprep.subr.bf16.mxu0 0
  %1614 = vmatpush2.bf16.msra.mxu0 0
  %1615 = vmatprep.subr.bf16.mxu0 0
  %1616 = vmatpush2.bf16.msra.mxu0 0
  %1617 = vmatprep.subr.bf16.mxu0 0
  %1618 = vmatpush2.bf16.msra.mxu0 0
  %1619 = vmatprep.subr.bf16.mxu0 0
  %1620 = vmatpush2.bf16.msra.mxu0 0
  %1621 = vmatprep.subr.bf16.mxu0 0
  %1622 = vmatpush2.bf16.msra.mxu0 0
  %1623 = vmatprep.subr.bf16.mxu0 0
  %1624 = vmatpush2.bf16.msra.mxu0 0
  %1625 = vmatprep.subr.bf16.mxu0 0
  %1626 = vmatpush2.bf16.msra.mxu0 0
  %1627 = vmatprep.subr.bf16.mxu0 0
  %1628 = vmatpush2.bf16.msra.mxu0 0
  %1629 = vmatprep.mubr.bf16.mxu0 0
  %1630 = vmatmul.mubr.bf16.gmra.mxu0 %v936
  %v1631 = vpop.f32.mrf.mxu0
  %v1632 = vadd.f32 %v175, %v1631
  %v1633 = vpop.f32.mrf.mxu0
  %v1634 = vadd.f32 %v175, %v1633
  %v1635 = vpop.f32.mrf.mxu0
  %v1636 = vadd.f32 %v180, %v1635
  %v1637 = vpop.f32.mrf.mxu0
  %v1638 = vadd.f32 %v180, %v1637
  %1639 = vdwg.mxu0
  %1640 = vmatprep.subr.bf16.mxu0 0
  %1641 = vmatpush1.bf16.msra.mxu0 0
  %1642 = vmatprep.subr.bf16.mxu0 0
  %1643 = vmatpush1.bf16.msra.mxu0 0
  %1644 = vmatprep.subr.bf16.mxu0 0
  %1645 = vmatpush1.bf16.msra.mxu0 0
  %1646 = vmatprep.subr.bf16.mxu0 %v1027
  %1647 = vmatpush1.bf16.msra.mxu0 %v1024
  %1648 = vmatprep.subr.bf16.mxu0 %v765
  %1649 = vmatpush1.bf16.msra.mxu0 %v764
  %1650 = vmatprep.subr.bf16.mxu0 %v732
  %1651 = vmatpush1.bf16.msra.mxu0 %v731
  %1652 = vmatprep.subr.bf16.mxu0 %v699
  %1653 = vmatpush1.bf16.msra.mxu0 %v698
  %1654 = vmatprep.subr.bf16.mxu0 %v666
  %1655 = vmatpush1.bf16.msra.mxu0 %v665
  %1656 = vmatprep.subr.bf16.mxu0 0
  %1657 = vmatpush2.bf16.msra.mxu0 0
  %1658 = vmatprep.subr.bf16.mxu0 0
  %1659 = vmatpush2.bf16.msra.mxu0 0
  %1660 = vmatprep.subr.bf16.mxu0 0
  %1661 = vmatpush2.bf16.msra.mxu0 0
  %1662 = vmatprep.subr.bf16.mxu0 0
  %1663 = vmatpush2.bf16.msra.mxu0 0
  %1664 = vmatprep.subr.bf16.mxu0 0
  %1665 = vmatpush2.bf16.msra.mxu0 0
  %1666 = vmatprep.subr.bf16.mxu0 0
  %1667 = vmatpush2.bf16.msra.mxu0 0
  %1668 = vmatprep.subr.bf16.mxu0 0
  %1669 = vmatpush2.bf16.msra.mxu0 0
  %1670 = vmatprep.subr.bf16.mxu0 0
  %1671 = vmatpush2.bf16.msra.mxu0 0
  %1672 = vmatprep.mubr.bf16.mxu0 0
  %1673 = vmatmul.mubr.bf16.gmra.mxu0 %v936
  %v1674 = vpop.f32.mrf.mxu0
  %v1675 = vadd.f32 %v175, %v1674
  %v1676 = vpop.f32.mrf.mxu0
  %v1677 = vadd.f32 %v175, %v1676
  %v1678 = vpop.f32.mrf.mxu0
  %v1679 = vadd.f32 %v180, %v1678
  %v1680 = vpop.f32.mrf.mxu0
  %v1681 = vadd.f32 %v180, %v1680
  %1682 = vdwg.mxu0
  %1683 = vmatprep.subr.bf16.mxu0 0
  %1684 = vmatpush1.bf16.msra.mxu0 0
  %1685 = vmatprep.subr.bf16.mxu0 0
  %1686 = vmatpush1.bf16.msra.mxu0 0
  %1687 = vmatprep.subr.bf16.mxu0 0
  %1688 = vmatpush1.bf16.msra.mxu0 0
  %1689 = vmatprep.subr.bf16.mxu0 %v1033
  %1690 = vmatpush1.bf16.msra.mxu0 %v1030
  %1691 = vmatprep.subr.bf16.mxu0 %v767
  %1692 = vmatpush1.bf16.msra.mxu0 %v766
  %1693 = vmatprep.subr.bf16.mxu0 %v734
  %1694 = vmatpush1.bf16.msra.mxu0 %v733
  %1695 = vmatprep.subr.bf16.mxu0 %v701
  %1696 = vmatpush1.bf16.msra.mxu0 %v700
  %1697 = vmatprep.subr.bf16.mxu0 %v668
  %1698 = vmatpush1.bf16.msra.mxu0 %v667
  %1699 = vmatprep.subr.bf16.mxu0 0
  %1700 = vmatpush2.bf16.msra.mxu0 0
  %1701 = vmatprep.subr.bf16.mxu0 0
  %1702 = vmatpush2.bf16.msra.mxu0 0
  %1703 = vmatprep.subr.bf16.mxu0 0
  %1704 = vmatpush2.bf16.msra.mxu0 0
  %1705 = vmatprep.subr.bf16.mxu0 0
  %1706 = vmatpush2.bf16.msra.mxu0 0
  %1707 = vmatprep.subr.bf16.mxu0 0
  %1708 = vmatpush2.bf16.msra.mxu0 0
  %1709 = vmatprep.subr.bf16.mxu0 0
  %1710 = vmatpush2.bf16.msra.mxu0 0
  %1711 = vmatprep.subr.bf16.mxu0 0
  %1712 = vmatpush2.bf16.msra.mxu0 0
  %1713 = vmatprep.subr.bf16.mxu0 0
  %1714 = vmatpush2.bf16.msra.mxu0 0
  %1715 = vmatprep.mubr.bf16.mxu0 0
  %1716 = vmatmul.mubr.bf16.gmra.mxu0 %v936
  %v1717 = vpop.f32.mrf.mxu0
  %v1718 = vadd.f32 %v175, %v1717
  %v1719 = vpop.f32.mrf.mxu0
  %v1720 = vadd.f32 %v175, %v1719
  %v1721 = vpop.f32.mrf.mxu0
  %v1722 = vadd.f32 %v180, %v1721
  %v1723 = vpop.f32.mrf.mxu0
  %v1724 = vadd.f32 %v180, %v1723
  %1725 = vdwg.mxu0
  %1726 = vmatprep.subr.bf16.mxu0 0
  %1727 = vmatpush1.bf16.msra.mxu0 0
  %1728 = vmatprep.subr.bf16.mxu0 0
  %1729 = vmatpush1.bf16.msra.mxu0 0
  %1730 = vmatprep.subr.bf16.mxu0 0
  %1731 = vmatpush1.bf16.msra.mxu0 0
  %1732 = vmatprep.subr.bf16.mxu0 0
  %1733 = vmatpush1.bf16.msra.mxu0 %v1036
  %1734 = vmatprep.subr.bf16.mxu0 0
  %1735 = vmatpush1.bf16.msra.mxu0 %v768
  %1736 = vmatprep.subr.bf16.mxu0 0
  %1737 = vmatpush1.bf16.msra.mxu0 %v735
  %1738 = vmatprep.subr.bf16.mxu0 0
  %1739 = vmatpush1.bf16.msra.mxu0 %v702
  %1740 = vmatprep.subr.bf16.mxu0 0
  %1741 = vmatpush1.bf16.msra.mxu0 %v669
  %1742 = vmatprep.subr.bf16.mxu0 0
  %1743 = vmatpush2.bf16.msra.mxu0 0
  %1744 = vmatprep.subr.bf16.mxu0 0
  %1745 = vmatpush2.bf16.msra.mxu0 0
  %1746 = vmatprep.subr.bf16.mxu0 0
  %1747 = vmatpush2.bf16.msra.mxu0 0
  %1748 = vmatprep.subr.bf16.mxu0 0
  %1749 = vmatpush2.bf16.msra.mxu0 0
  %1750 = vmatprep.subr.bf16.mxu0 0
  %1751 = vmatpush2.bf16.msra.mxu0 0
  %1752 = vmatprep.subr.bf16.mxu0 0
  %1753 = vmatpush2.bf16.msra.mxu0 0
  %1754 = vmatprep.subr.bf16.mxu0 0
  %1755 = vmatpush2.bf16.msra.mxu0 0
  %1756 = vmatprep.subr.bf16.mxu0 0
  %1757 = vmatpush2.bf16.msra.mxu0 0
  %1758 = vmatprep.mubr.bf16.mxu0 0
  %1759 = vmatmul.mubr.bf16.gmra.mxu0 %v936
  %v1760 = vpop.f32.mrf.mxu0
  %v1761 = vadd.f32 %v175, %v1760
  %v1762 = vpop.f32.mrf.mxu0
  %v1763 = vpop.f32.mrf.mxu0
  %v1764 = vadd.f32 %v180, %v1763
  %v1765 = vpop.f32.mrf.mxu0
  %1766 = vdwg.mxu0
  %v1767 = vmax.f32 %v1073, 0.0
  %v1768 = vmax.f32 %v1075, 0.0
  %v1769 = vmax.f32 %v1116, 0.0
  %v1770 = vmax.f32 %v1118, 0.0
  %v1771 = vmax.f32 %v1159, 0.0
  %v1772 = vmax.f32 %v1161, 0.0
  %v1773 = vmax.f32 %v1202, 0.0
  %v1774 = vmax.f32 %v1204, 0.0
  %v1775 = vmax.f32 %v1245, 0.0
  %v1776 = vmax.f32 %v1247, 0.0
  %v1777 = vmax.f32 %v1288, 0.0
  %v1778 = vmax.f32 %v1290, 0.0
  %v1779 = vmax.f32 %v1331, 0.0
  %v1780 = vmax.f32 %v1333, 0.0
  %v1781 = vmax.f32 %v1374, 0.0
  %v1782 = vmax.f32 %v1376, 0.0
  %v1783 = vmax.f32 %v1417, 0.0
  %v1784 = vmax.f32 %v1419, 0.0
  %v1785 = vmax.f32 %v1460, 0.0
  %v1786 = vmax.f32 %v1462, 0.0
  %v1787 = vmax.f32 %v1503, 0.0
  %v1788 = vmax.f32 %v1505, 0.0
  %v1789 = vmax.f32 %v1546, 0.0
  %v1790 = vmax.f32 %v1548, 0.0
  %v1791 = vmax.f32 %v1589, 0.0
  %v1792 = vmax.f32 %v1591, 0.0
  %v1793 = vmax.f32 %v1632, 0.0
  %v1794 = vmax.f32 %v1634, 0.0
  %v1795 = vmax.f32 %v1675, 0.0
  %v1796 = vmax.f32 %v1677, 0.0
  %v1797 = vmax.f32 %v1718, 0.0
  %v1798 = vmax.f32 %v1720, 0.0
  %v1799 = vmax.f32 %v1761, 0.0
  %v1800 = vmax.f32 %v1077, 0.0
  %v1801 = vmax.f32 %v1079, 0.0
  %v1802 = vmax.f32 %v1120, 0.0
  %v1803 = vmax.f32 %v1122, 0.0
  %v1804 = vmax.f32 %v1163, 0.0
  %v1805 = vmax.f32 %v1165, 0.0
  %v1806 = vmax.f32 %v1206, 0.0
  %v1807 = vmax.f32 %v1208, 0.0
  %v1808 = vmax.f32 %v1249, 0.0
  %v1809 = vmax.f32 %v1251, 0.0
  %v1810 = vmax.f32 %v1292, 0.0
  %v1811 = vmax.f32 %v1294, 0.0
  %v1812 = vmax.f32 %v1335, 0.0
  %v1813 = vmax.f32 %v1337, 0.0
  %v1814 = vmax.f32 %v1378, 0.0
  %v1815 = vmax.f32 %v1380, 0.0
  %v1816 = vmax.f32 %v1421, 0.0
  %v1817 = vmax.f32 %v1423, 0.0
  %v1818 = vmax.f32 %v1464, 0.0
  %v1819 = vmax.f32 %v1466, 0.0
  %v1820 = vmax.f32 %v1507, 0.0
  %v1821 = vmax.f32 %v1509, 0.0
  %v1822 = vmax.f32 %v1550, 0.0
  %v1823 = vmax.f32 %v1552, 0.0
  %v1824 = vmax.f32 %v1593, 0.0
  %v1825 = vmax.f32 %v1595, 0.0
  %v1826 = vmax.f32 %v1636, 0.0
  %v1827 = vmax.f32 %v1638, 0.0
  %v1828 = vmax.f32 %v1679, 0.0
  %v1829 = vmax.f32 %v1681, 0.0
  %v1830 = vmax.f32 %v1722, 0.0
  %v1831 = vmax.f32 %v1724, 0.0
  %v1832 = vmax.f32 %v1764, 0.0
  %v1833 = vpack.c.bf16 %v1800, %v1767
  %v1834 = vpack.c.bf16 %v1801, %v1768
  %v1835 = vpack.c.bf16 %v1802, %v1769
  %v1836 = vpack.c.bf16 %v1803, %v1770
  %v1837 = vpack.c.bf16 %v1804, %v1771
  %v1838 = vpack.c.bf16 %v1805, %v1772
  %v1839 = vpack.c.bf16 %v1806, %v1773
  %v1840 = vpack.c.bf16 %v1807, %v1774
  %v1841 = vpack.c.bf16 %v1808, %v1775
  %v1842 = vpack.c.bf16 %v1809, %v1776
  %v1843 = vpack.c.bf16 %v1810, %v1777
  %v1844 = vpack.c.bf16 %v1811, %v1778
  %v1845 = vpack.c.bf16 %v1812, %v1779
  %v1846 = vpack.c.bf16 %v1813, %v1780
  %v1847 = vpack.c.bf16 %v1814, %v1781
  %v1848 = vpack.c.bf16 %v1815, %v1782
  %v1849 = vpack.c.bf16 %v1816, %v1783
  %v1850 = vpack.c.bf16 %v1817, %v1784
  %v1851 = vpack.c.bf16 %v1818, %v1785
  %v1852 = vpack.c.bf16 %v1819, %v1786
  %v1853 = vpack.c.bf16 %v1820, %v1787
  %v1854 = vpack.c.bf16 %v1821, %v1788
  %v1855 = vpack.c.bf16 %v1822, %v1789
  %v1856 = vpack.c.bf16 %v1823, %v1790
  %v1857 = vpack.c.bf16 %v1824, %v1791
  %v1858 = vpack.c.bf16 %v1825, %v1792
  %v1859 = vpack.c.bf16 %v1826, %v1793
  %v1860 = vpack.c.bf16 %v1827, %v1794
  %v1861 = vpack.c.bf16 %v1828, %v1795
  %v1862 = vpack.c.bf16 %v1829, %v1796
  %v1863 = vpack.c.bf16 %v1830, %v1797
  %v1864 = vpack.c.bf16 %v1831, %v1798
  %v1865 = vpack.c.bf16 %v1832, %v1799
  %v1899 = vunpack.c.l.b16 %v1833
  %v1900 = vunpack.c.l.b16 %v1834
  %v1901 = vunpack.c.l.b16 %v1835
  %v1902 = vunpack.c.l.b16 %v1836
  %v1903 = vunpack.c.l.b16 %v1837
  %v1904 = vunpack.c.l.b16 %v1838
  %v1905 = vunpack.c.l.b16 %v1839
  %v1906 = vunpack.c.l.b16 %v1840
  %v1907 = vunpack.c.l.b16 %v1841
  %v1908 = vunpack.c.l.b16 %v1842
  %v1909 = vunpack.c.l.b16 %v1843
  %v1910 = vunpack.c.l.b16 %v1844
  %v1911 = vunpack.c.l.b16 %v1845
  %v1912 = vunpack.c.l.b16 %v1846
  %v1913 = vunpack.c.l.b16 %v1847
  %v1914 = vunpack.c.l.b16 %v1848
  %v1915 = vunpack.c.l.b16 %v1849
  %v1916 = vunpack.c.l.b16 %v1850
  %v1917 = vunpack.c.l.b16 %v1851
  %v1918 = vunpack.c.l.b16 %v1852
  %v1919 = vunpack.c.l.b16 %v1853
  %v1920 = vunpack.c.l.b16 %v1854
  %v1921 = vunpack.c.l.b16 %v1855
  %v1922 = vunpack.c.l.b16 %v1856
  %v1923 = vunpack.c.l.b16 %v1857
  %v1924 = vunpack.c.l.b16 %v1858
  %v1925 = vunpack.c.l.b16 %v1859
  %v1926 = vunpack.c.l.b16 %v1860
  %v1927 = vunpack.c.l.b16 %v1861
  %v1928 = vunpack.c.l.b16 %v1862
  %v1929 = vunpack.c.l.b16 %v1863
  %v1930 = vunpack.c.l.b16 %v1864
  %v1931 = vunpack.c.l.b16 %v1865
  %v1932 = vunpack.c.h.b16 %v1833
  %v1933 = vunpack.c.h.b16 %v1834
  %v1934 = vunpack.c.h.b16 %v1835
  %v1935 = vunpack.c.h.b16 %v1836
  %v1936 = vunpack.c.h.b16 %v1837
  %v1937 = vunpack.c.h.b16 %v1838
  %v1938 = vunpack.c.h.b16 %v1839
  %v1939 = vunpack.c.h.b16 %v1840
  %v1940 = vunpack.c.h.b16 %v1841
  %v1941 = vunpack.c.h.b16 %v1842
  %v1942 = vunpack.c.h.b16 %v1843
  %v1943 = vunpack.c.h.b16 %v1844
  %v1944 = vunpack.c.h.b16 %v1845
  %v1945 = vunpack.c.h.b16 %v1846
  %v1946 = vunpack.c.h.b16 %v1847
  %v1947 = vunpack.c.h.b16 %v1848
  %v1948 = vunpack.c.h.b16 %v1849
  %v1949 = vunpack.c.h.b16 %v1850
  %v1950 = vunpack.c.h.b16 %v1851
  %v1951 = vunpack.c.h.b16 %v1852
  %v1952 = vunpack.c.h.b16 %v1853
  %v1953 = vunpack.c.h.b16 %v1854
  %v1954 = vunpack.c.h.b16 %v1855
  %v1955 = vunpack.c.h.b16 %v1856
  %v1956 = vunpack.c.h.b16 %v1857
  %v1957 = vunpack.c.h.b16 %v1858
  %v1958 = vunpack.c.h.b16 %v1859
  %v1959 = vunpack.c.h.b16 %v1860
  %v1960 = vunpack.c.h.b16 %v1861
  %v1961 = vunpack.c.h.b16 %v1862
  %v1962 = vunpack.c.h.b16 %v1863
  %v1963 = vunpack.c.h.b16 %v1864
  %v1964 = vunpack.c.h.b16 %v1865
  %v1965 = vpack.c.b16 %v1900, %v1899
  %v1966 = vpack.c.b16 %v1902, %v1901
  %v1967 = vpack.c.b16 %v1904, %v1903
  %v1968 = vpack.c.b16 %v1906, %v1905
  %v1969 = vpack.c.b16 %v1908, %v1907
  %v1970 = vpack.c.b16 %v1910, %v1909
  %v1971 = vpack.c.b16 %v1912, %v1911
  %v1972 = vpack.c.b16 %v1914, %v1913
  %v1973 = vpack.c.b16 %v1916, %v1915
  %v1974 = vpack.c.b16 %v1918, %v1917
  %v1975 = vpack.c.b16 %v1920, %v1919
  %v1976 = vpack.c.b16 %v1922, %v1921
  %v1977 = vpack.c.b16 %v1924, %v1923
  %v1978 = vpack.c.b16 %v1926, %v1925
  %v1979 = vpack.c.b16 %v1928, %v1927
  %v1980 = vpack.c.b16 %v1930, %v1929
  %v1981 = vpack.c.b16 %v1931, %v1931
  %v1982 = vpack.c.b16 %v1933, %v1932
  %v1983 = vpack.c.b16 %v1935, %v1934
  %v1984 = vpack.c.b16 %v1937, %v1936
  %v1985 = vpack.c.b16 %v1939, %v1938
  %v1986 = vpack.c.b16 %v1941, %v1940
  %v1987 = vpack.c.b16 %v1943, %v1942
  %v1988 = vpack.c.b16 %v1945, %v1944
  %v1989 = vpack.c.b16 %v1947, %v1946
  %v1990 = vpack.c.b16 %v1949, %v1948
  %v1991 = vpack.c.b16 %v1951, %v1950
  %v1992 = vpack.c.b16 %v1953, %v1952
  %v1993 = vpack.c.b16 %v1955, %v1954
  %v1994 = vpack.c.b16 %v1957, %v1956
  %v1995 = vpack.c.b16 %v1959, %v1958
  %v1996 = vpack.c.b16 %v1961, %v1960
  %v1997 = vpack.c.b16 %v1963, %v1962
  %v1998 = vpack.c.b16 %v1964, %v1964
  %2033 = vst [vmem:[%s3] sm:$0xff] %v1965
  %2034 = vst [vmem:[%s3 + $0x8] sm:$0xff] %v1966
  %2035 = vst [vmem:[%s3 + $0x10] sm:$0xff] %v1967
  %2036 = vst [vmem:[%s3 + $0x18] sm:$0xff] %v1968
  %2037 = vst [vmem:[%s3 + $0x20] sm:$0xff] %v1969
  %2038 = vst [vmem:[%s3 + $0x28] sm:$0xff] %v1970
  %2039 = vst [vmem:[%s3 + $0x30] sm:$0xff] %v1971
  %2040 = vst [vmem:[%s3 + $0x38] sm:$0xff] %v1972
  %2041 = vst [vmem:[%s3 + $0x40] sm:$0xff] %v1973
  %2042 = vst [vmem:[%s3 + $0x48] sm:$0xff] %v1974
  %2043 = vst [vmem:[%s3 + $0x50] sm:$0xff] %v1975
  %2044 = vst [vmem:[%s3 + $0x58] sm:$0xff] %v1976
  %2045 = vst [vmem:[%s3 + $0x60] sm:$0xff] %v1977
  %2046 = vst [vmem:[%s3 + $0x68] sm:$0xff] %v1978
  %2047 = vst [vmem:[%s3 + $0x70] sm:$0xff] %v1979
  %2048 = vst [vmem:[%s3 + $0x78] sm:$0xff] %v1980
  %vm2049 = vcmask 519168
  %2050 = vst.msk [vmem:[%s3 + $0x80] sm:$0xf] %vm2049, %v1981
  %2051 = vst [vmem:[%s3 + $0x84] sm:$0xff] %v1982
  %2052 = vst [vmem:[%s3 + $0x8c] sm:$0xff] %v1983
  %2053 = vst [vmem:[%s3 + $0x94] sm:$0xff] %v1984
  %2054 = vst [vmem:[%s3 + $0x9c] sm:$0xff] %v1985
  %2055 = vst [vmem:[%s3 + $0xa4] sm:$0xff] %v1986
  %2056 = vst [vmem:[%s3 + $0xac] sm:$0xff] %v1987
  %2057 = vst [vmem:[%s3 + $0xb4] sm:$0xff] %v1988
  %2058 = vst [vmem:[%s3 + $0xbc] sm:$0xff] %v1989
  %2059 = vst [vmem:[%s3 + $0xc4] sm:$0xff] %v1990
  %2060 = vst [vmem:[%s3 + $0xcc] sm:$0xff] %v1991
  %2061 = vst [vmem:[%s3 + $0xd4] sm:$0xff] %v1992
  %2062 = vst [vmem:[%s3 + $0xdc] sm:$0xff] %v1993
  %2063 = vst [vmem:[%s3 + $0xe4] sm:$0xff] %v1994
  %2064 = vst [vmem:[%s3 + $0xec] sm:$0xff] %v1995
  %2065 = vst [vmem:[%s3 + $0xf4] sm:$0xff] %v1996
  %2066 = vst [vmem:[%s3 + $0xfc] sm:$0xff] %v1997
  %2067 = vst.msk [vmem:[%s3 + $0x104] sm:$0xf] %vm2049, %v1998
  // Predicated region
  $region14: #{two_arg_cnn_forward.3} parent=0 // pred_check
    _
  $region15: #{two_arg_cnn_forward.3} parent=0 // pred_check_branch
    %2069 = sbr.rel (0) target = $region17
  $region16: #{two_arg_cnn_forward.3} parent=0 // pred_region
    _
  $region17: #{two_arg_cnn_forward.3} parent=0 // pred_fallthru
    _
  // Predicated region
  $region18: #{two_arg_cnn_forward.3} parent=0 // pred_check
    _
  $region19: #{two_arg_cnn_forward.3} parent=0 // pred_check_branch
    %2071 = sbr.rel (0) target = $region21
  $region20: #{two_arg_cnn_forward.3} parent=0 // pred_region
    _
  $region21: #{two_arg_cnn_forward.3} parent=0 // pred_fallthru
    _

// kernel: two_arg_cnn_forward.4
$region0: #{two_arg_cnn_forward.4}
  #allocation0 [shape = 'u32[]', space=smem, size = 0x4, offset = 0x4, fixed_abs, tag = 'smem constant byte address 0x4 - core index']
  #allocation1 [shape = 'u32[144,128]{1,0:T(1,128)}', space=vmem, size = 0x12000, scoped, tag = 'internal scratch']
  %s0 = inlined_call_operand.vmem [shape: bf16[144,950], index: 0, kind: input, shape index: {}]
  %s1 = inlined_call_operand.vmem [shape: bf16[32,144], index: 1, kind: input, shape index: {}]
  %s2 = inlined_call_operand.vmem [shape: f32[32,1], index: 2, kind: input, shape index: {}]
  %s3 = inlined_call_operand.vmem [shape: bf16[32,950], index: 3, kind: output, shape index: {}]
  %s4 = sld [smem:[#allocation0]]
  $region22: #{two_arg_cnn_forward.4} parent=0
    _
  %s6 = ssub.s32 1, %s4
  %s7 = scalar_select 0, %s6, %s4
  // Predicated region
  $region2: #{two_arg_cnn_forward.4} parent=0 // pred_check
    _
  $region3: #{two_arg_cnn_forward.4} parent=0 // pred_check_branch
    %9 = sbr.rel (0) target = $region5
  $region4: #{two_arg_cnn_forward.4} parent=0 // pred_region
    _
  $region5: #{two_arg_cnn_forward.4} parent=0 // pred_fallthru
    _
  // Predicated region
  $region6: #{two_arg_cnn_forward.4} parent=0 // pred_check
    _
  $region7: #{two_arg_cnn_forward.4} parent=0 // pred_check_branch
    %11 = sbr.rel (0) target = $region9
  $region8: #{two_arg_cnn_forward.4} parent=0 // pred_region
    _
  $region9: #{two_arg_cnn_forward.4} parent=0 // pred_fallthru
    _
  // Predicated region
  $region10: #{two_arg_cnn_forward.4} parent=0 // pred_check
    _
  $region11: #{two_arg_cnn_forward.4} parent=0 // pred_check_branch
    %13 = sbr.rel (0) target = $region13
  $region12: #{two_arg_cnn_forward.4} parent=0 // pred_region
    _
  $region13: #{two_arg_cnn_forward.4} parent=0 // pred_fallthru
    _
  %v15 = vld [vmem:[%s1] sm:$0xff]
  %v16 = vld [vmem:[%s1 + $0x8] sm:$0xff]
  %v17 = vld [vmem:[%s1 + $0x10] sm:$0xff]
  %v18 = vld [vmem:[%s1 + $0x18] sm:$0xff]
  %v19 = vld [vmem:[%s0] sm:$0xff]
  %v20 = vld [vmem:[%s0 + $0x8] sm:$0xff]
  %v21 = vld [vmem:[%s0 + $0x10] sm:$0xff]
  %v22 = vld [vmem:[%s0 + $0x18] sm:$0xff]
  %v23 = vld [vmem:[%s0 + $0x20] sm:$0xff]
  %v24 = vld [vmem:[%s0 + $0x28] sm:$0xff]
  %v25 = vld [vmem:[%s0 + $0x30] sm:$0xff]
  %v26 = vld [vmem:[%s0 + $0x38] sm:$0xff]
  %v27 = vld [vmem:[%s0 + $0x40] sm:$0xff]
  %v28 = vld [vmem:[%s0 + $0x48] sm:$0xff]
  %v29 = vld [vmem:[%s0 + $0x50] sm:$0xff]
  %v30 = vld [vmem:[%s0 + $0x58] sm:$0xff]
  %v31 = vld [vmem:[%s0 + $0x60] sm:$0xff]
  %v32 = vld [vmem:[%s0 + $0x68] sm:$0xff]
  %v33 = vld [vmem:[%s0 + $0x70] sm:$0xff]
  %v34 = vld [vmem:[%s0 + $0x78] sm:$0xff]
  %v35 = vld [vmem:[%s0 + $0x80] sm:$0xff]
  %v36 = vld [vmem:[%s0 + $0x88] sm:$0xff]
  %v37 = vld [vmem:[%s0 + $0x90] sm:$0xff]
  %v38 = vld [vmem:[%s0 + $0x98] sm:$0xff]
  %v39 = vld [vmem:[%s0 + $0xa0] sm:$0xff]
  %v40 = vld [vmem:[%s0 + $0xa8] sm:$0xff]
  %v41 = vld [vmem:[%s0 + $0xb0] sm:$0xff]
  %v42 = vld [vmem:[%s0 + $0xb8] sm:$0xff]
  %v43 = vld [vmem:[%s0 + $0xc0] sm:$0xff]
  %v44 = vld [vmem:[%s0 + $0xc8] sm:$0xff]
  %v45 = vld [vmem:[%s0 + $0xd0] sm:$0xff]
  %v46 = vld [vmem:[%s0 + $0xd8] sm:$0xff]
  %v47 = vld [vmem:[%s0 + $0xe0] sm:$0xff]
  %v48 = vld [vmem:[%s0 + $0xe8] sm:$0xff]
  %v49 = vld [vmem:[%s0 + $0xf0] sm:$0xff]
  %v50 = vld [vmem:[%s0 + $0xf8] sm:$0xff]
  %v51 = vld [vmem:[%s0 + $0x100] sm:$0xff]
  %v52 = vld [vmem:[%s0 + $0x108] sm:$0xff]
  %v53 = vld [vmem:[%s0 + $0x110] sm:$0xff]
  %v54 = vld [vmem:[%s0 + $0x118] sm:$0xff]
  %v55 = vld [vmem:[%s0 + $0x120] sm:$0xff]
  %v56 = vld [vmem:[%s0 + $0x128] sm:$0xff]
  %v57 = vld [vmem:[%s0 + $0x130] sm:$0xff]
  %v58 = vld [vmem:[%s0 + $0x138] sm:$0xff]
  %v59 = vld [vmem:[%s0 + $0x140] sm:$0xff]
  %v60 = vld [vmem:[%s0 + $0x148] sm:$0xff]
  %v61 = vld [vmem:[%s0 + $0x150] sm:$0xff]
  %v62 = vld [vmem:[%s0 + $0x158] sm:$0xff]
  %v63 = vld [vmem:[%s0 + $0x160] sm:$0xff]
  %v64 = vld [vmem:[%s0 + $0x168] sm:$0xff]
  %v65 = vld [vmem:[%s0 + $0x170] sm:$0xff]
  %v66 = vld [vmem:[%s0 + $0x178] sm:$0xff]
  %v67 = vld [vmem:[%s0 + $0x180] sm:$0xff]
  %v68 = vld [vmem:[%s0 + $0x188] sm:$0xff]
  %v69 = vld [vmem:[%s0 + $0x190] sm:$0xff]
  %v70 = vld [vmem:[%s0 + $0x198] sm:$0xff]
  %v71 = vld [vmem:[%s0 + $0x1a0] sm:$0xff]
  %v72 = vld [vmem:[%s0 + $0x1a8] sm:$0xff]
  %v73 = vld [vmem:[%s0 + $0x1b0] sm:$0xff]
  %v74 = vld [vmem:[%s0 + $0x1b8] sm:$0xff]
  %v75 = vld [vmem:[%s0 + $0x1c0] sm:$0xff]
  %v76 = vld [vmem:[%s0 + $0x1c8] sm:$0xff]
  %v77 = vld [vmem:[%s0 + $0x1d0] sm:$0xff]
  %v78 = vld [vmem:[%s0 + $0x1d8] sm:$0xff]
  %v79 = vld [vmem:[%s0 + $0x1e0] sm:$0xff]
  %v80 = vld [vmem:[%s0 + $0x1e8] sm:$0xff]
  %v81 = vld [vmem:[%s0 + $0x1f0] sm:$0xff]
  %v82 = vld [vmem:[%s0 + $0x1f8] sm:$0xff]
  %v83 = vld [vmem:[%s0 + $0x200] sm:$0xff]
  %v84 = vld [vmem:[%s0 + $0x208] sm:$0xff]
  %v85 = vld [vmem:[%s0 + $0x210] sm:$0xff]
  %v86 = vld [vmem:[%s0 + $0x218] sm:$0xff]
  %v87 = vld [vmem:[%s0 + $0x220] sm:$0xff]
  %v88 = vld [vmem:[%s0 + $0x228] sm:$0xff]
  %v89 = vld [vmem:[%s0 + $0x230] sm:$0xff]
  %v90 = vld [vmem:[%s0 + $0x238] sm:$0xff]
  %v91 = vld [vmem:[%s2] sm:$0xff]
  %v92 = vld [vmem:[%s2 + $0x8] sm:$0xff]
  %v93 = vld [vmem:[%s2 + $0x10] sm:$0xff]
  %v94 = vld [vmem:[%s2 + $0x18] sm:$0xff]
  %96 = vset.pattern.permute.xlu0 0
  %97 = vperm.xlu0 %96, %v91
  %v98 = vpop.permute.xlu0 %97
  %101 = vset.pattern.permute.xlu0 0
  %102 = vperm.xlu0 %101, %v92
  %v103 = vpop.permute.xlu0 %102
  %106 = vset.pattern.permute.xlu0 0
  %107 = vperm.xlu0 %106, %v93
  %v108 = vpop.permute.xlu0 %107
  %111 = vset.pattern.permute.xlu0 0
  %112 = vperm.xlu0 %111, %v94
  %v113 = vpop.permute.xlu0 %112
  %v119 = vunpack.c.l.b16 %v15
  %v120 = vunpack.c.h.b16 %v15
  %v121 = vunpack.c.l.b16 %v16
  %v122 = vunpack.c.h.b16 %v16
  %v123 = vunpack.c.l.b16 %v17
  %v124 = vunpack.c.h.b16 %v17
  %v125 = vunpack.c.l.b16 %v18
  %v126 = vunpack.c.h.b16 %v18
  %v127 = vpack.c.b16 %v121, %v119
  %v128 = vpack.c.b16 %v122, %v120
  %v129 = vpack.c.b16 %v125, %v123
  %v130 = vpack.c.b16 %v126, %v124
  %v205 = vunpack.c.l.b16 %v19
  %v206 = vunpack.c.h.b16 %v19
  %v207 = vunpack.c.l.b16 %v20
  %v208 = vunpack.c.h.b16 %v20
  %v209 = vunpack.c.l.b16 %v21
  %v210 = vunpack.c.h.b16 %v21
  %v211 = vunpack.c.l.b16 %v22
  %v212 = vunpack.c.h.b16 %v22
  %v213 = vunpack.c.l.b16 %v23
  %v214 = vunpack.c.h.b16 %v23
  %v215 = vunpack.c.l.b16 %v24
  %v216 = vunpack.c.h.b16 %v24
  %v217 = vunpack.c.l.b16 %v25
  %v218 = vunpack.c.h.b16 %v25
  %v219 = vunpack.c.l.b16 %v26
  %v220 = vunpack.c.h.b16 %v26
  %v221 = vunpack.c.l.b16 %v27
  %v222 = vunpack.c.h.b16 %v27
  %v223 = vunpack.c.l.b16 %v28
  %v224 = vunpack.c.h.b16 %v28
  %v225 = vunpack.c.l.b16 %v29
  %v226 = vunpack.c.h.b16 %v29
  %v227 = vunpack.c.l.b16 %v30
  %v228 = vunpack.c.h.b16 %v30
  %v229 = vunpack.c.l.b16 %v31
  %v230 = vunpack.c.h.b16 %v31
  %v231 = vunpack.c.l.b16 %v32
  %v232 = vunpack.c.h.b16 %v32
  %v233 = vunpack.c.l.b16 %v33
  %v234 = vunpack.c.h.b16 %v33
  %v235 = vunpack.c.l.b16 %v34
  %v236 = vunpack.c.h.b16 %v34
  %v237 = vunpack.c.l.b16 %v35
  %v238 = vunpack.c.h.b16 %v35
  %v239 = vunpack.c.l.b16 %v36
  %v240 = vunpack.c.h.b16 %v36
  %v241 = vunpack.c.l.b16 %v37
  %v242 = vunpack.c.h.b16 %v37
  %v243 = vunpack.c.l.b16 %v38
  %v244 = vunpack.c.h.b16 %v38
  %v245 = vunpack.c.l.b16 %v39
  %v246 = vunpack.c.h.b16 %v39
  %v247 = vunpack.c.l.b16 %v40
  %v248 = vunpack.c.h.b16 %v40
  %v249 = vunpack.c.l.b16 %v41
  %v250 = vunpack.c.h.b16 %v41
  %v251 = vunpack.c.l.b16 %v42
  %v252 = vunpack.c.h.b16 %v42
  %v253 = vunpack.c.l.b16 %v43
  %v254 = vunpack.c.h.b16 %v43
  %v255 = vunpack.c.l.b16 %v44
  %v256 = vunpack.c.h.b16 %v44
  %v257 = vunpack.c.l.b16 %v45
  %v258 = vunpack.c.h.b16 %v45
  %v259 = vunpack.c.l.b16 %v46
  %v260 = vunpack.c.h.b16 %v46
  %v261 = vunpack.c.l.b16 %v47
  %v262 = vunpack.c.h.b16 %v47
  %v263 = vunpack.c.l.b16 %v48
  %v264 = vunpack.c.h.b16 %v48
  %v265 = vunpack.c.l.b16 %v49
  %v266 = vunpack.c.h.b16 %v49
  %v267 = vunpack.c.l.b16 %v50
  %v268 = vunpack.c.h.b16 %v50
  %v269 = vunpack.c.l.b16 %v51
  %v270 = vunpack.c.h.b16 %v51
  %v271 = vunpack.c.l.b16 %v52
  %v272 = vunpack.c.h.b16 %v52
  %v273 = vunpack.c.l.b16 %v53
  %v274 = vunpack.c.h.b16 %v53
  %v275 = vunpack.c.l.b16 %v54
  %v276 = vunpack.c.h.b16 %v54
  %v277 = vunpack.c.l.b16 %v55
  %v278 = vunpack.c.h.b16 %v55
  %v279 = vunpack.c.l.b16 %v56
  %v280 = vunpack.c.h.b16 %v56
  %v281 = vunpack.c.l.b16 %v57
  %v282 = vunpack.c.h.b16 %v57
  %v283 = vunpack.c.l.b16 %v58
  %v284 = vunpack.c.h.b16 %v58
  %v285 = vunpack.c.l.b16 %v59
  %v286 = vunpack.c.h.b16 %v59
  %v287 = vunpack.c.l.b16 %v60
  %v288 = vunpack.c.h.b16 %v60
  %v289 = vunpack.c.l.b16 %v61
  %v290 = vunpack.c.h.b16 %v61
  %v291 = vunpack.c.l.b16 %v62
  %v292 = vunpack.c.h.b16 %v62
  %v293 = vunpack.c.l.b16 %v63
  %v294 = vunpack.c.h.b16 %v63
  %v295 = vunpack.c.l.b16 %v64
  %v296 = vunpack.c.h.b16 %v64
  %v297 = vunpack.c.l.b16 %v65
  %v298 = vunpack.c.h.b16 %v65
  %v299 = vunpack.c.l.b16 %v66
  %v300 = vunpack.c.h.b16 %v66
  %v301 = vunpack.c.l.b16 %v67
  %v302 = vunpack.c.h.b16 %v67
  %v303 = vunpack.c.l.b16 %v68
  %v304 = vunpack.c.h.b16 %v68
  %v305 = vunpack.c.l.b16 %v69
  %v306 = vunpack.c.h.b16 %v69
  %v307 = vunpack.c.l.b16 %v70
  %v308 = vunpack.c.h.b16 %v70
  %v309 = vunpack.c.l.b16 %v71
  %v310 = vunpack.c.h.b16 %v71
  %v311 = vunpack.c.l.b16 %v72
  %v312 = vunpack.c.h.b16 %v72
  %v313 = vunpack.c.l.b16 %v73
  %v314 = vunpack.c.h.b16 %v73
  %v315 = vunpack.c.l.b16 %v74
  %v316 = vunpack.c.h.b16 %v74
  %v317 = vunpack.c.l.b16 %v75
  %v318 = vunpack.c.h.b16 %v75
  %v319 = vunpack.c.l.b16 %v76
  %v320 = vunpack.c.h.b16 %v76
  %v321 = vunpack.c.l.b16 %v77
  %v322 = vunpack.c.h.b16 %v77
  %v323 = vunpack.c.l.b16 %v78
  %v324 = vunpack.c.h.b16 %v78
  %v325 = vunpack.c.l.b16 %v79
  %v326 = vunpack.c.h.b16 %v79
  %v327 = vunpack.c.l.b16 %v80
  %v328 = vunpack.c.h.b16 %v80
  %v329 = vunpack.c.l.b16 %v81
  %v330 = vunpack.c.h.b16 %v81
  %v331 = vunpack.c.l.b16 %v82
  %v332 = vunpack.c.h.b16 %v82
  %v333 = vunpack.c.l.b16 %v83
  %v334 = vunpack.c.h.b16 %v83
  %v335 = vunpack.c.l.b16 %v84
  %v336 = vunpack.c.h.b16 %v84
  %v337 = vunpack.c.l.b16 %v85
  %v338 = vunpack.c.h.b16 %v85
  %v339 = vunpack.c.l.b16 %v86
  %v340 = vunpack.c.h.b16 %v86
  %v341 = vunpack.c.l.b16 %v87
  %v342 = vunpack.c.h.b16 %v87
  %v343 = vunpack.c.l.b16 %v88
  %v344 = vunpack.c.h.b16 %v88
  %v345 = vunpack.c.l.b16 %v89
  %v346 = vunpack.c.h.b16 %v89
  %v347 = vunpack.c.l.b16 %v90
  %v348 = vunpack.c.h.b16 %v90
  %v349 = vpack.c.b16 %v213, %v205
  %v350 = vpack.c.b16 %v214, %v206
  %v351 = vpack.c.b16 %v215, %v207
  %v352 = vpack.c.b16 %v216, %v208
  %v353 = vpack.c.b16 %v217, %v209
  %v354 = vpack.c.b16 %v218, %v210
  %v355 = vpack.c.b16 %v219, %v211
  %v356 = vpack.c.b16 %v220, %v212
  %v357 = vpack.c.b16 %v229, %v221
  %v358 = vpack.c.b16 %v230, %v222
  %v359 = vpack.c.b16 %v231, %v223
  %v360 = vpack.c.b16 %v232, %v224
  %v361 = vpack.c.b16 %v233, %v225
  %v362 = vpack.c.b16 %v234, %v226
  %v363 = vpack.c.b16 %v235, %v227
  %v364 = vpack.c.b16 %v236, %v228
  %v365 = vpack.c.b16 %v245, %v237
  %v366 = vpack.c.b16 %v246, %v238
  %v367 = vpack.c.b16 %v247, %v239
  %v368 = vpack.c.b16 %v248, %v240
  %v369 = vpack.c.b16 %v249, %v241
  %v370 = vpack.c.b16 %v250, %v242
  %v371 = vpack.c.b16 %v251, %v243
  %v372 = vpack.c.b16 %v252, %v244
  %v373 = vpack.c.b16 %v261, %v253
  %v374 = vpack.c.b16 %v262, %v254
  %v375 = vpack.c.b16 %v263, %v255
  %v376 = vpack.c.b16 %v264, %v256
  %v377 = vpack.c.b16 %v265, %v257
  %v378 = vpack.c.b16 %v266, %v258
  %v379 = vpack.c.b16 %v267, %v259
  %v380 = vpack.c.b16 %v268, %v260
  %v381 = vpack.c.b16 %v277, %v269
  %v382 = vpack.c.b16 %v278, %v270
  %v383 = vpack.c.b16 %v279, %v271
  %v384 = vpack.c.b16 %v280, %v272
  %v385 = vpack.c.b16 %v281, %v273
  %v386 = vpack.c.b16 %v282, %v274
  %v387 = vpack.c.b16 %v283, %v275
  %v388 = vpack.c.b16 %v284, %v276
  %v389 = vpack.c.b16 %v293, %v285
  %v390 = vpack.c.b16 %v294, %v286
  %v391 = vpack.c.b16 %v295, %v287
  %v392 = vpack.c.b16 %v296, %v288
  %v393 = vpack.c.b16 %v297, %v289
  %v394 = vpack.c.b16 %v298, %v290
  %v395 = vpack.c.b16 %v299, %v291
  %v396 = vpack.c.b16 %v300, %v292
  %v397 = vpack.c.b16 %v309, %v301
  %v398 = vpack.c.b16 %v310, %v302
  %v399 = vpack.c.b16 %v311, %v303
  %v400 = vpack.c.b16 %v312, %v304
  %v401 = vpack.c.b16 %v313, %v305
  %v402 = vpack.c.b16 %v314, %v306
  %v403 = vpack.c.b16 %v315, %v307
  %v404 = vpack.c.b16 %v316, %v308
  %v405 = vpack.c.b16 %v325, %v317
  %v406 = vpack.c.b16 %v326, %v318
  %v407 = vpack.c.b16 %v327, %v319
  %v408 = vpack.c.b16 %v328, %v320
  %v409 = vpack.c.b16 %v329, %v321
  %v410 = vpack.c.b16 %v330, %v322
  %v411 = vpack.c.b16 %v331, %v323
  %v412 = vpack.c.b16 %v332, %v324
  %v413 = vpack.c.b16 %v341, %v333
  %v414 = vpack.c.b16 %v342, %v334
  %v415 = vpack.c.b16 %v343, %v335
  %v416 = vpack.c.b16 %v344, %v336
  %v417 = vpack.c.b16 %v345, %v337
  %v418 = vpack.c.b16 %v346, %v338
  %v419 = vpack.c.b16 %v347, %v339
  %v420 = vpack.c.b16 %v348, %v340
  %vm493 = vcmask 130048
  %v495 = vsel %vm493, %v128, 0
  %v498 = vsel %vm493, %v130, 0
  %500 = vmatprep.subr.bf16.mxu0 %v406
  %501 = vmatpush1.bf16.msra.mxu0 %v405
  %502 = vmatprep.subr.bf16.mxu0 %v398
  %503 = vmatpush1.bf16.msra.mxu0 %v397
  %504 = vmatprep.subr.bf16.mxu0 %v390
  %505 = vmatpush1.bf16.msra.mxu0 %v389
  %506 = vmatprep.subr.bf16.mxu0 %v382
  %507 = vmatpush1.bf16.msra.mxu0 %v381
  %508 = vmatprep.subr.bf16.mxu0 %v374
  %509 = vmatpush1.bf16.msra.mxu0 %v373
  %510 = vmatprep.subr.bf16.mxu0 %v366
  %511 = vmatpush1.bf16.msra.mxu0 %v365
  %512 = vmatprep.subr.bf16.mxu0 %v358
  %513 = vmatpush1.bf16.msra.mxu0 %v357
  %514 = vmatprep.subr.bf16.mxu0 %v350
  %515 = vmatpush1.bf16.msra.mxu0 %v349
  %516 = vmatprep.subr.bf16.mxu0 0
  %517 = vmatpush2.bf16.msra.mxu0 0
  %518 = vmatprep.subr.bf16.mxu0 0
  %519 = vmatpush2.bf16.msra.mxu0 0
  %520 = vmatprep.subr.bf16.mxu0 0
  %521 = vmatpush2.bf16.msra.mxu0 0
  %522 = vmatprep.subr.bf16.mxu0 0
  %523 = vmatpush2.bf16.msra.mxu0 0
  %524 = vmatprep.subr.bf16.mxu0 0
  %525 = vmatpush2.bf16.msra.mxu0 0
  %526 = vmatprep.subr.bf16.mxu0 0
  %527 = vmatpush2.bf16.msra.mxu0 0
  %528 = vmatprep.subr.bf16.mxu0 0
  %529 = vmatpush2.bf16.msra.mxu0 0
  %530 = vmatprep.subr.bf16.mxu0 %v414
  %531 = vmatpush2.bf16.msra.mxu0 %v413
  %532 = vmatprep.mubr.bf16.mxu0 %v495
  %533 = vmatmul.mubr.bf16.gmra.mxu0 %v127
  %v534 = vpop.f32.mrf.mxu0
  %v535 = vadd.f32 %v98, %v534
  %v536 = vpop.f32.mrf.mxu0
  %v537 = vadd.f32 %v98, %v536
  %v538 = vpop.f32.mrf.mxu0
  %v539 = vadd.f32 %v103, %v538
  %v540 = vpop.f32.mrf.mxu0
  %v541 = vadd.f32 %v103, %v540
  %542 = vmatprep.mubr.bf16.mxu0 %v498
  %543 = vmatmul.mubr.bf16.gmra.mxu0 %v129
  %v544 = vpop.f32.mrf.mxu0
  %v545 = vadd.f32 %v108, %v544
  %v546 = vpop.f32.mrf.mxu0
  %v547 = vadd.f32 %v108, %v546
  %v548 = vpop.f32.mrf.mxu0
  %v549 = vadd.f32 %v113, %v548
  %v550 = vpop.f32.mrf.mxu0
  %v551 = vadd.f32 %v113, %v550
  %552 = vdwg.mxu0
  %553 = vmatprep.subr.bf16.mxu0 %v408
  %554 = vmatpush1.bf16.msra.mxu0 %v407
  %555 = vmatprep.subr.bf16.mxu0 %v400
  %556 = vmatpush1.bf16.msra.mxu0 %v399
  %557 = vmatprep.subr.bf16.mxu0 %v392
  %558 = vmatpush1.bf16.msra.mxu0 %v391
  %559 = vmatprep.subr.bf16.mxu0 %v384
  %560 = vmatpush1.bf16.msra.mxu0 %v383
  %561 = vmatprep.subr.bf16.mxu0 %v376
  %562 = vmatpush1.bf16.msra.mxu0 %v375
  %563 = vmatprep.subr.bf16.mxu0 %v368
  %564 = vmatpush1.bf16.msra.mxu0 %v367
  %565 = vmatprep.subr.bf16.mxu0 %v360
  %566 = vmatpush1.bf16.msra.mxu0 %v359
  %567 = vmatprep.subr.bf16.mxu0 %v352
  %568 = vmatpush1.bf16.msra.mxu0 %v351
  %569 = vmatprep.subr.bf16.mxu0 0
  %570 = vmatpush2.bf16.msra.mxu0 0
  %571 = vmatprep.subr.bf16.mxu0 0
  %572 = vmatpush2.bf16.msra.mxu0 0
  %573 = vmatprep.subr.bf16.mxu0 0
  %574 = vmatpush2.bf16.msra.mxu0 0
  %575 = vmatprep.subr.bf16.mxu0 0
  %576 = vmatpush2.bf16.msra.mxu0 0
  %577 = vmatprep.subr.bf16.mxu0 0
  %578 = vmatpush2.bf16.msra.mxu0 0
  %579 = vmatprep.subr.bf16.mxu0 0
  %580 = vmatpush2.bf16.msra.mxu0 0
  %581 = vmatprep.subr.bf16.mxu0 0
  %582 = vmatpush2.bf16.msra.mxu0 0
  %583 = vmatprep.subr.bf16.mxu0 %v416
  %584 = vmatpush2.bf16.msra.mxu0 %v415
  %585 = vmatprep.mubr.bf16.mxu0 %v495
  %586 = vmatmul.mubr.bf16.gmra.mxu0 %v127
  %v587 = vpop.f32.mrf.mxu0
  %v588 = vadd.f32 %v98, %v587
  %v589 = vpop.f32.mrf.mxu0
  %v590 = vadd.f32 %v98, %v589
  %v591 = vpop.f32.mrf.mxu0
  %v592 = vadd.f32 %v103, %v591
  %v593 = vpop.f32.mrf.mxu0
  %v594 = vadd.f32 %v103, %v593
  %595 = vmatprep.mubr.bf16.mxu0 %v498
  %596 = vmatmul.mubr.bf16.gmra.mxu0 %v129
  %v597 = vpop.f32.mrf.mxu0
  %v598 = vadd.f32 %v108, %v597
  %v599 = vpop.f32.mrf.mxu0
  %v600 = vadd.f32 %v108, %v599
  %v601 = vpop.f32.mrf.mxu0
  %v602 = vadd.f32 %v113, %v601
  %v603 = vpop.f32.mrf.mxu0
  %v604 = vadd.f32 %v113, %v603
  %605 = vdwg.mxu0
  %606 = vmatprep.subr.bf16.mxu0 %v410
  %607 = vmatpush1.bf16.msra.mxu0 %v409
  %608 = vmatprep.subr.bf16.mxu0 %v402
  %609 = vmatpush1.bf16.msra.mxu0 %v401
  %610 = vmatprep.subr.bf16.mxu0 %v394
  %611 = vmatpush1.bf16.msra.mxu0 %v393
  %612 = vmatprep.subr.bf16.mxu0 %v386
  %613 = vmatpush1.bf16.msra.mxu0 %v385
  %614 = vmatprep.subr.bf16.mxu0 %v378
  %615 = vmatpush1.bf16.msra.mxu0 %v377
  %616 = vmatprep.subr.bf16.mxu0 %v370
  %617 = vmatpush1.bf16.msra.mxu0 %v369
  %618 = vmatprep.subr.bf16.mxu0 %v362
  %619 = vmatpush1.bf16.msra.mxu0 %v361
  %620 = vmatprep.subr.bf16.mxu0 %v354
  %621 = vmatpush1.bf16.msra.mxu0 %v353
  %622 = vmatprep.subr.bf16.mxu0 0
  %623 = vmatpush2.bf16.msra.mxu0 0
  %624 = vmatprep.subr.bf16.mxu0 0
  %625 = vmatpush2.bf16.msra.mxu0 0
  %626 = vmatprep.subr.bf16.mxu0 0
  %627 = vmatpush2.bf16.msra.mxu0 0
  %628 = vmatprep.subr.bf16.mxu0 0
  %629 = vmatpush2.bf16.msra.mxu0 0
  %630 = vmatprep.subr.bf16.mxu0 0
  %631 = vmatpush2.bf16.msra.mxu0 0
  %632 = vmatprep.subr.bf16.mxu0 0
  %633 = vmatpush2.bf16.msra.mxu0 0
  %634 = vmatprep.subr.bf16.mxu0 0
  %635 = vmatpush2.bf16.msra.mxu0 0
  %636 = vmatprep.subr.bf16.mxu0 %v418
  %637 = vmatpush2.bf16.msra.mxu0 %v417
  %638 = vmatprep.mubr.bf16.mxu0 %v495
  %639 = vmatmul.mubr.bf16.gmra.mxu0 %v127
  %v640 = vpop.f32.mrf.mxu0
  %v641 = vadd.f32 %v98, %v640
  %v642 = vpop.f32.mrf.mxu0
  %v643 = vadd.f32 %v98, %v642
  %v644 = vpop.f32.mrf.mxu0
  %v645 = vadd.f32 %v103, %v644
  %v646 = vpop.f32.mrf.mxu0
  %v647 = vadd.f32 %v103, %v646
  %648 = vmatprep.mubr.bf16.mxu0 %v498
  %649 = vmatmul.mubr.bf16.gmra.mxu0 %v129
  %v650 = vpop.f32.mrf.mxu0
  %v651 = vadd.f32 %v108, %v650
  %v652 = vpop.f32.mrf.mxu0
  %v653 = vadd.f32 %v108, %v652
  %v654 = vpop.f32.mrf.mxu0
  %v655 = vadd.f32 %v113, %v654
  %v656 = vpop.f32.mrf.mxu0
  %v657 = vadd.f32 %v113, %v656
  %658 = vdwg.mxu0
  %659 = vmatprep.subr.bf16.mxu0 %v412
  %660 = vmatpush1.bf16.msra.mxu0 %v411
  %661 = vmatprep.subr.bf16.mxu0 %v404
  %662 = vmatpush1.bf16.msra.mxu0 %v403
  %663 = vmatprep.subr.bf16.mxu0 %v396
  %664 = vmatpush1.bf16.msra.mxu0 %v395
  %665 = vmatprep.subr.bf16.mxu0 %v388
  %666 = vmatpush1.bf16.msra.mxu0 %v387
  %667 = vmatprep.subr.bf16.mxu0 %v380
  %668 = vmatpush1.bf16.msra.mxu0 %v379
  %669 = vmatprep.subr.bf16.mxu0 %v372
  %670 = vmatpush1.bf16.msra.mxu0 %v371
  %671 = vmatprep.subr.bf16.mxu0 %v364
  %672 = vmatpush1.bf16.msra.mxu0 %v363
  %673 = vmatprep.subr.bf16.mxu0 %v356
  %674 = vmatpush1.bf16.msra.mxu0 %v355
  %675 = vmatprep.subr.bf16.mxu0 0
  %676 = vmatpush2.bf16.msra.mxu0 0
  %677 = vmatprep.subr.bf16.mxu0 0
  %678 = vmatpush2.bf16.msra.mxu0 0
  %679 = vmatprep.subr.bf16.mxu0 0
  %680 = vmatpush2.bf16.msra.mxu0 0
  %681 = vmatprep.subr.bf16.mxu0 0
  %682 = vmatpush2.bf16.msra.mxu0 0
  %683 = vmatprep.subr.bf16.mxu0 0
  %684 = vmatpush2.bf16.msra.mxu0 0
  %685 = vmatprep.subr.bf16.mxu0 0
  %686 = vmatpush2.bf16.msra.mxu0 0
  %687 = vmatprep.subr.bf16.mxu0 0
  %688 = vmatpush2.bf16.msra.mxu0 0
  %689 = vmatprep.subr.bf16.mxu0 %v420
  %690 = vmatpush2.bf16.msra.mxu0 %v419
  %691 = vmatprep.mubr.bf16.mxu0 %v495
  %692 = vmatmul.mubr.bf16.gmra.mxu0 %v127
  %v693 = vpop.f32.mrf.mxu0
  %v694 = vadd.f32 %v98, %v693
  %v695 = vpop.f32.mrf.mxu0
  %v696 = vadd.f32 %v98, %v695
  %v697 = vpop.f32.mrf.mxu0
  %v698 = vadd.f32 %v103, %v697
  %v699 = vpop.f32.mrf.mxu0
  %v700 = vadd.f32 %v103, %v699
  %701 = vmatprep.mubr.bf16.mxu0 %v498
  %702 = vmatmul.mubr.bf16.gmra.mxu0 %v129
  %v703 = vpop.f32.mrf.mxu0
  %v704 = vadd.f32 %v108, %v703
  %v705 = vpop.f32.mrf.mxu0
  %v706 = vadd.f32 %v108, %v705
  %v707 = vpop.f32.mrf.mxu0
  %v708 = vadd.f32 %v113, %v707
  %v709 = vpop.f32.mrf.mxu0
  %v710 = vadd.f32 %v113, %v709
  %711 = vdwg.mxu0
  %v712 = vmax.f32 %v535, 0.0
  %v713 = vmax.f32 %v537, 0.0
  %v714 = vmax.f32 %v588, 0.0
  %v715 = vmax.f32 %v590, 0.0
  %v716 = vmax.f32 %v641, 0.0
  %v717 = vmax.f32 %v643, 0.0
  %v718 = vmax.f32 %v694, 0.0
  %v719 = vmax.f32 %v696, 0.0
  %v720 = vmax.f32 %v539, 0.0
  %v721 = vmax.f32 %v541, 0.0
  %v722 = vmax.f32 %v592, 0.0
  %v723 = vmax.f32 %v594, 0.0
  %v724 = vmax.f32 %v645, 0.0
  %v725 = vmax.f32 %v647, 0.0
  %v726 = vmax.f32 %v698, 0.0
  %v727 = vmax.f32 %v700, 0.0
  %v728 = vmax.f32 %v545, 0.0
  %v729 = vmax.f32 %v547, 0.0
  %v730 = vmax.f32 %v598, 0.0
  %v731 = vmax.f32 %v600, 0.0
  %v732 = vmax.f32 %v651, 0.0
  %v733 = vmax.f32 %v653, 0.0
  %v734 = vmax.f32 %v704, 0.0
  %v735 = vmax.f32 %v706, 0.0
  %v736 = vmax.f32 %v549, 0.0
  %v737 = vmax.f32 %v551, 0.0
  %v738 = vmax.f32 %v602, 0.0
  %v739 = vmax.f32 %v604, 0.0
  %v740 = vmax.f32 %v655, 0.0
  %v741 = vmax.f32 %v657, 0.0
  %v742 = vmax.f32 %v708, 0.0
  %v743 = vmax.f32 %v710, 0.0
  %v744 = vpack.c.bf16 %v720, %v712
  %v745 = vpack.c.bf16 %v721, %v713
  %v746 = vpack.c.bf16 %v722, %v714
  %v747 = vpack.c.bf16 %v723, %v715
  %v748 = vpack.c.bf16 %v724, %v716
  %v749 = vpack.c.bf16 %v725, %v717
  %v750 = vpack.c.bf16 %v726, %v718
  %v751 = vpack.c.bf16 %v727, %v719
  %v752 = vpack.c.bf16 %v736, %v728
  %v753 = vpack.c.bf16 %v737, %v729
  %v754 = vpack.c.bf16 %v738, %v730
  %v755 = vpack.c.bf16 %v739, %v731
  %v756 = vpack.c.bf16 %v740, %v732
  %v757 = vpack.c.bf16 %v741, %v733
  %v758 = vpack.c.bf16 %v742, %v734
  %v759 = vpack.c.bf16 %v743, %v735
  %v776 = vunpack.c.l.b16 %v744
  %v777 = vunpack.c.l.b16 %v745
  %v778 = vunpack.c.l.b16 %v746
  %v779 = vunpack.c.l.b16 %v747
  %v780 = vunpack.c.l.b16 %v748
  %v781 = vunpack.c.l.b16 %v749
  %v782 = vunpack.c.l.b16 %v750
  %v783 = vunpack.c.l.b16 %v751
  %v784 = vunpack.c.h.b16 %v744
  %v785 = vunpack.c.h.b16 %v745
  %v786 = vunpack.c.h.b16 %v746
  %v787 = vunpack.c.h.b16 %v747
  %v788 = vunpack.c.h.b16 %v748
  %v789 = vunpack.c.h.b16 %v749
  %v790 = vunpack.c.h.b16 %v750
  %v791 = vunpack.c.h.b16 %v751
  %v792 = vunpack.c.l.b16 %v752
  %v793 = vunpack.c.l.b16 %v753
  %v794 = vunpack.c.l.b16 %v754
  %v795 = vunpack.c.l.b16 %v755
  %v796 = vunpack.c.l.b16 %v756
  %v797 = vunpack.c.l.b16 %v757
  %v798 = vunpack.c.l.b16 %v758
  %v799 = vunpack.c.l.b16 %v759
  %v800 = vunpack.c.h.b16 %v752
  %v801 = vunpack.c.h.b16 %v753
  %v802 = vunpack.c.h.b16 %v754
  %v803 = vunpack.c.h.b16 %v755
  %v804 = vunpack.c.h.b16 %v756
  %v805 = vunpack.c.h.b16 %v757
  %v806 = vunpack.c.h.b16 %v758
  %v807 = vunpack.c.h.b16 %v759
  %v808 = vpack.c.b16 %v777, %v776
  %v809 = vpack.c.b16 %v779, %v778
  %v810 = vpack.c.b16 %v781, %v780
  %v811 = vpack.c.b16 %v783, %v782
  %v812 = vpack.c.b16 %v785, %v784
  %v813 = vpack.c.b16 %v787, %v786
  %v814 = vpack.c.b16 %v789, %v788
  %v815 = vpack.c.b16 %v791, %v790
  %v816 = vpack.c.b16 %v793, %v792
  %v817 = vpack.c.b16 %v795, %v794
  %v818 = vpack.c.b16 %v797, %v796
  %v819 = vpack.c.b16 %v799, %v798
  %v820 = vpack.c.b16 %v801, %v800
  %v821 = vpack.c.b16 %v803, %v802
  %v822 = vpack.c.b16 %v805, %v804
  %v823 = vpack.c.b16 %v807, %v806
  %840 = vst [vmem:[%s3] sm:$0xff] %v808
  %841 = vst [vmem:[%s3 + $0x8] sm:$0xff] %v809
  %842 = vst [vmem:[%s3 + $0x10] sm:$0xff] %v810
  %vm843 = vcmask 1043456
  %vm844 = vcmask 441348
  %vm845 = vmor %vm844, %vm843
  %846 = vst.msk [vmem:[%s3 + $0x18] sm:$0xff] %vm845, %v811
  %847 = vst [vmem:[%s3 + $0x20] sm:$0xff] %v812
  %848 = vst [vmem:[%s3 + $0x28] sm:$0xff] %v813
  %849 = vst [vmem:[%s3 + $0x30] sm:$0xff] %v814
  %850 = vst.msk [vmem:[%s3 + $0x38] sm:$0xff] %vm845, %v815
  %851 = vst [vmem:[%s3 + $0x40] sm:$0xff] %v816
  %852 = vst [vmem:[%s3 + $0x48] sm:$0xff] %v817
  %853 = vst [vmem:[%s3 + $0x50] sm:$0xff] %v818
  %854 = vst.msk [vmem:[%s3 + $0x58] sm:$0xff] %vm845, %v819
  %855 = vst [vmem:[%s3 + $0x60] sm:$0xff] %v820
  %856 = vst [vmem:[%s3 + $0x68] sm:$0xff] %v821
  %857 = vst [vmem:[%s3 + $0x70] sm:$0xff] %v822
  %858 = vst.msk [vmem:[%s3 + $0x78] sm:$0xff] %vm845, %v823
  // Predicated region
  $region14: #{two_arg_cnn_forward.4} parent=0 // pred_check
    _
  $region15: #{two_arg_cnn_forward.4} parent=0 // pred_check_branch
    %860 = sbr.rel (0) target = $region17
  $region16: #{two_arg_cnn_forward.4} parent=0 // pred_region
    _
  $region17: #{two_arg_cnn_forward.4} parent=0 // pred_fallthru
    _
  // Predicated region
  $region18: #{two_arg_cnn_forward.4} parent=0 // pred_check
    _
  $region19: #{two_arg_cnn_forward.4} parent=0 // pred_check_branch
    %862 = sbr.rel (0) target = $region21
  $region20: #{two_arg_cnn_forward.4} parent=0 // pred_region
    _
  $region21: #{two_arg_cnn_forward.4} parent=0 // pred_fallthru
    _

// kernel: two_arg_cnn_forward.5
$region0: #{two_arg_cnn_forward.5}
  #allocation0 [shape = 'u32[]', space=smem, size = 0x4, offset = 0x4, fixed_abs, tag = 'smem constant byte address 0x4 - core index']
  #allocation1 [shape = 'u32[144,128]{1,0:T(1,128)}', space=vmem, size = 0x12000, scoped, tag = 'internal scratch']
  #allocation2 [shape = 'f32[2,256]{1,0:T(2,128)}', space=vmem, size = 0x800, scoped, tag = 'scratch operand']
  %s0 = inlined_call_operand.vmem [shape: bf16[2,15360], index: 0, kind: input, shape index: {}]
  %s1 = inlined_call_operand.vmem [shape: bf16[15360,256], index: 1, kind: input, shape index: {}]
  %s2 = inlined_call_operand.vmem [shape: f32[1,256], index: 2, kind: input, shape index: {}]
  %s3 = inlined_call_operand.vmem [shape: f32[256,2], index: 3, kind: input, shape index: {}]
  %s4 = inlined_call_operand.vmem [shape: f32[1,2], index: 4, kind: input, shape index: {}]
  %s5 = inlined_call_operand.hbm [shape: f32[2,2], index: 5, kind: output, shape index: {}]
  %s6 = sld [smem:[#allocation0]]
  $region61: #{two_arg_cnn_forward.5} parent=0
    _
  %s8 = ssub.s32 1, %s6
  %s9 = scalar_select 0, %s8, %s6
  $region1: #{two_arg_cnn_forward.5} parent=0
    #allocation3 [shape = 'u8[1024]{0}', space=vmem, size = 0x400, scoped, tag = 'output window, operand 0, single buffered']
    #allocation4 [shape = 's32[2]{0}', space=sflag, size = 0x8, scoped, tag = 'scoped memory for two_arg_cnn_forward.5']
    %10 = vsyncpa [#allocation4], 0
    loop: start=0, step=1, limit=4
    $region2: #{two_arg_cnn_forward.5} parent=1 // loop_pre_header
      _
    $region3: #{two_arg_cnn_forward.5} parent=1 // loop_header
      %s12 = sphi 0, %s16
      %p13 = scmp.ge.s32.totalorder %s12, 4
      %s20 = sphi 0, %s20
      %s22 = sphi 0, %s20
      %s23 = sphi 0, %s22
      %s37 = sphi 0, %s23
      %s43 = sphi 0, %s45
      %s46 = sphi 0, %s43
      %s47 = sphi 0, %s46
      %s63 = sphi 0, %s47
      %s67 = sphi 0, %s67
      %s69 = sphi 0, %s67
      %s70 = sphi 0, %s69
      %s84 = sphi 0, %s70
      %s88 = sphi 0, %s88
      %s90 = sphi 0, %s88
      %s91 = sphi 0, %s90
      %s105 = sphi 0, %s91
      %s109 = sphi 0, %s109
      %s111 = sphi 0, %s109
      %s112 = sphi 0, %s111
      %s126 = sphi 0, %s112
      %s130 = sphi 0, %s130
      %s132 = sphi 0, %s130
      %s133 = sphi 0, %s132
      %s147 = sphi 0, %s133
    $region4: #{two_arg_cnn_forward.5} parent=1 // loop_header_branch
      %15 = sbr.rel (%p13) target = $region8
    $region5: #{two_arg_cnn_forward.5} parent=1 // loop_body
      %s17 = ssub.s32 %s12, 1
      %s18 = ssub.s32 %s12, 2
      %s19 = sadd.s32 %s12, 1
      %s21 = sadd.s32 %s20, 1
      %p24 = scmp.eq.s32.totalorder %s12, 1
      %p25 = scmp.ne.s32.totalorder %s20, %s22
      %p26 = scmp.eq.s32.totalorder %s12, 0
      %p27 = por %p25, %p26
      %p28 = scmp.ne.s32.totalorder %s20, %s22
      %p29 = scmp.eq.s32.totalorder %s17, 1
      %p30 = por %p28, %p29
      %p31 = scmp.ne.s32.totalorder %s22, %s23
      %p32 = scmp.eq.s32.totalorder %s17, 0
      %p33 = por %p31, %p32
      %p34 = scmp.ne.s32.totalorder %s22, %s23
      %p35 = scmp.eq.s32.totalorder %s18, 1
      %p36 = por %p34, %p35
      %p38 = scmp.ne.s32.totalorder %s23, %s37
      %p39 = scmp.eq.s32.totalorder %s18, 0
      %p40 = por %p38, %p39
      %s41 = ssub.s32 %s12, %s19
      %p42 = scmp.eq.s32.totalorder %s41, 0
      %s44 = sadd.s32 %s43, 1
      %s45 = scalar_select %p42, %s43, %s44
      %p48 = pneg %p42
      %p49 = scmp.eq.s32.totalorder %s12, 1
      %p50 = por %p48, %p49
      %p51 = scmp.ne.s32.totalorder %s43, %s46
      %p52 = scmp.eq.s32.totalorder %s12, 0
      %p53 = por %p51, %p52
      %p54 = scmp.ne.s32.totalorder %s43, %s46
      %p55 = scmp.eq.s32.totalorder %s17, 1
      %p56 = por %p54, %p55
      %p57 = scmp.ne.s32.totalorder %s46, %s47
      %p58 = scmp.eq.s32.totalorder %s17, 0
      %p59 = por %p57, %p58
      %p60 = scmp.ne.s32.totalorder %s46, %s47
      %p61 = scmp.eq.s32.totalorder %s18, 1
      %p62 = por %p60, %p61
      %p64 = scmp.ne.s32.totalorder %s47, %s63
      %p65 = scmp.eq.s32.totalorder %s18, 0
      %p66 = por %p64, %p65
      %s68 = sadd.s32 %s67, 1
      %p71 = scmp.eq.s32.totalorder %s12, 1
      %p72 = scmp.ne.s32.totalorder %s67, %s69
      %p73 = scmp.eq.s32.totalorder %s12, 0
      %p74 = por %p72, %p73
      %p75 = scmp.ne.s32.totalorder %s67, %s69
      %p76 = scmp.eq.s32.totalorder %s17, 1
      %p77 = por %p75, %p76
      %p78 = scmp.ne.s32.totalorder %s69, %s70
      %p79 = scmp.eq.s32.totalorder %s17, 0
      %p80 = por %p78, %p79
      %p81 = scmp.ne.s32.totalorder %s69, %s70
      %p82 = scmp.eq.s32.totalorder %s18, 1
      %p83 = por %p81, %p82
      %p85 = scmp.ne.s32.totalorder %s70, %s84
      %p86 = scmp.eq.s32.totalorder %s18, 0
      %p87 = por %p85, %p86
      %s89 = sadd.s32 %s88, 1
      %p92 = scmp.eq.s32.totalorder %s12, 1
      %p93 = scmp.ne.s32.totalorder %s88, %s90
      %p94 = scmp.eq.s32.totalorder %s12, 0
      %p95 = por %p93, %p94
      %p96 = scmp.ne.s32.totalorder %s88, %s90
      %p97 = scmp.eq.s32.totalorder %s17, 1
      %p98 = por %p96, %p97
      %p99 = scmp.ne.s32.totalorder %s90, %s91
      %p100 = scmp.eq.s32.totalorder %s17, 0
      %p101 = por %p99, %p100
      %p102 = scmp.ne.s32.totalorder %s90, %s91
      %p103 = scmp.eq.s32.totalorder %s18, 1
      %p104 = por %p102, %p103
      %p106 = scmp.ne.s32.totalorder %s91, %s105
      %p107 = scmp.eq.s32.totalorder %s18, 0
      %p108 = por %p106, %p107
      %s110 = sadd.s32 %s109, 1
      %p113 = scmp.eq.s32.totalorder %s12, 1
      %p114 = scmp.ne.s32.totalorder %s109, %s111
      %p115 = scmp.eq.s32.totalorder %s12, 0
      %p116 = por %p114, %p115
      %p117 = scmp.ne.s32.totalorder %s109, %s111
      %p118 = scmp.eq.s32.totalorder %s17, 1
      %p119 = por %p117, %p118
      %p120 = scmp.ne.s32.totalorder %s111, %s112
      %p121 = scmp.eq.s32.totalorder %s17, 0
      %p122 = por %p120, %p121
      %p123 = scmp.ne.s32.totalorder %s111, %s112
      %p124 = scmp.eq.s32.totalorder %s18, 1
      %p125 = por %p123, %p124
      %p127 = scmp.ne.s32.totalorder %s112, %s126
      %p128 = scmp.eq.s32.totalorder %s18, 0
      %p129 = por %p127, %p128
      %s131 = sadd.s32 %s130, 1
      %p134 = scmp.eq.s32.totalorder %s12, 1
      %p135 = scmp.ne.s32.totalorder %s130, %s132
      %p136 = scmp.eq.s32.totalorder %s12, 0
      %p137 = por %p135, %p136
      %p138 = scmp.ne.s32.totalorder %s130, %s132
      %p139 = scmp.eq.s32.totalorder %s17, 1
      %p140 = por %p138, %p139
      %p141 = scmp.ne.s32.totalorder %s132, %s133
      %p142 = scmp.eq.s32.totalorder %s17, 0
      %p143 = por %p141, %p142
      %p144 = scmp.ne.s32.totalorder %s132, %s133
      %p145 = scmp.eq.s32.totalorder %s18, 1
      %p146 = por %p144, %p145
      %p148 = scmp.ne.s32.totalorder %s133, %s147
      %p149 = scmp.eq.s32.totalorder %s18, 0
      %p150 = por %p148, %p149
      %p151 = scmp.le.s32.totalorder 1, %s12
      %p152 = scmp.lt.s32.totalorder %s12, 3
      %p153 = pnand %p151, %p152
      %p154 = pneg %p153
      // Predicated region
      $region9: #{two_arg_cnn_forward.5} parent=5 // pred_check
        _
      $region10: #{two_arg_cnn_forward.5} parent=5 // pred_check_branch
        %156 = sbr.rel (%p153) target = $region12
      $region11: #{two_arg_cnn_forward.5} parent=5 // pred_region
        %s157 = ssub.s32 %s12, 1
        // Predicated region
        $region13: #{two_arg_cnn_forward.5} parent=11 // pred_check
          %p158 = pneg %p33
        $region14: #{two_arg_cnn_forward.5} parent=11 // pred_check_branch
          %160 = sbr.rel (%p158) target = $region16
        $region15: #{two_arg_cnn_forward.5} parent=11 // pred_region
          _
        $region16: #{two_arg_cnn_forward.5} parent=11 // pred_fallthru
          _
        // Predicated region
        $region17: #{two_arg_cnn_forward.5} parent=11 // pred_check
          %p161 = pneg %p80
        $region18: #{two_arg_cnn_forward.5} parent=11 // pred_check_branch
          %163 = sbr.rel (%p161) target = $region20
        $region19: #{two_arg_cnn_forward.5} parent=11 // pred_region
          _
        $region20: #{two_arg_cnn_forward.5} parent=11 // pred_fallthru
          _
        // Predicated region
        $region21: #{two_arg_cnn_forward.5} parent=11 // pred_check
          %p164 = pneg %p101
        $region22: #{two_arg_cnn_forward.5} parent=11 // pred_check_branch
          %166 = sbr.rel (%p164) target = $region24
        $region23: #{two_arg_cnn_forward.5} parent=11 // pred_region
          _
        $region24: #{two_arg_cnn_forward.5} parent=11 // pred_fallthru
          _
        // Predicated region
        $region25: #{two_arg_cnn_forward.5} parent=11 // pred_check
          %p167 = pneg %p122
        $region26: #{two_arg_cnn_forward.5} parent=11 // pred_check_branch
          %169 = sbr.rel (%p167) target = $region28
        $region27: #{two_arg_cnn_forward.5} parent=11 // pred_region
          _
        $region28: #{two_arg_cnn_forward.5} parent=11 // pred_fallthru
          _
      $region12: #{two_arg_cnn_forward.5} parent=5 // pred_fallthru
        _
      %p170 = scmp.lt.s32.totalorder %s12, 2
      // Predicated region
      $region29: #{two_arg_cnn_forward.5} parent=5 // pred_check
        %p171 = pneg %p170
      $region30: #{two_arg_cnn_forward.5} parent=5 // pred_check_branch
        %173 = sbr.rel (%p171) target = $region32
      $region31: #{two_arg_cnn_forward.5} parent=5 // pred_region
        // Predicated region
        $region33: #{two_arg_cnn_forward.5} parent=31 // pred_check
          %p174 = pneg %p53
        $region34: #{two_arg_cnn_forward.5} parent=31 // pred_check_branch
          %176 = sbr.rel (%p174) target = $region36
        $region35: #{two_arg_cnn_forward.5} parent=31 // pred_region
          %s177 = smul.u32 960, %s12
          %p178 = scmp.lt.s32.totalorder %s177, 1919
          %s179 = scalar_select %p178, %s177, 1919
          %s180 = smul.addr %s179, 2
          %s181 = smul.addr %s180, 4
          %s182 = scalar_lea.vmem %s1, %s181
          %s183 = smul.u32 960, %s12
        $region36: #{two_arg_cnn_forward.5} parent=31 // pred_fallthru
          _
      $region32: #{two_arg_cnn_forward.5} parent=5 // pred_fallthru
        _
      %p184 = scmp.le.s32.totalorder 1, %s12
      %p185 = scmp.lt.s32.totalorder %s12, 3
      %p186 = pnand %p184, %p185
      %p187 = pneg %p186
      // Predicated region
      $region37: #{two_arg_cnn_forward.5} parent=5 // pred_check
        _
      $region38: #{two_arg_cnn_forward.5} parent=5 // pred_check_branch
        %189 = sbr.rel (%p186) target = $region40
      $region39: #{two_arg_cnn_forward.5} parent=5 // pred_region
        %s190 = ssub.s32 %s12, 1
        %p191 = pneg %p33
        %p192 = pneg %p30
        %s193 = smul.u32 960, %s17
        %p194 = scmp.lt.s32.totalorder %s193, 1919
        %s195 = scalar_select %p194, %s193, 1919
        %s196 = smul.addr %s195, 2
        %s197 = smul.addr %s196, 4
        %s198 = scalar_lea.vmem %s1, %s197
        %p199 = pneg %p59
        %p200 = pneg %p56
        %p201 = pneg %p80
        %p202 = pneg %p77
        %p203 = pneg %p101
        %p204 = pneg %p98
        %p205 = pneg %p122
        %p206 = pneg %p119
        %p207 = pneg %p143
        %p208 = pneg %p140
        %s209 = smul.u32 960, %s17
        %p210 = scmp.lt.s32.totalorder %s209, 1919
        %s211 = scalar_select %p210, %s209, 1919
        %s212 = smul.addr %s211, 2
        %s213 = smul.addr %s212, 4
        %s214 = scalar_lea.vmem %s1, %s213
        %s215 = smul.u32 960, %s17
        %p216 = scmp.eq.s32.totalorder %s17, 0
        // Predicated region
        $region41: #{two_arg_cnn_forward.5} parent=39 // pred_check
          %p217 = pneg %p216
        $region42: #{two_arg_cnn_forward.5} parent=39 // pred_check_branch
          %219 = sbr.rel (%p217) target = $region44
        $region43: #{two_arg_cnn_forward.5} parent=39 // pred_region
          %220 = vst [vmem:[#allocation2] sm:$0xf] 0.0
        $region44: #{two_arg_cnn_forward.5} parent=39 // pred_fallthru
          _
        %s221 = smul.u32 %s17, 7680
        %s222 = sshra.s32 %s221, 7
        %s223 = sand.u32 %s221, 127
        %s224 = scalar_lea.vmem %s0, %s222
        %v225 = vld [vmem:[%s224] sm:$0xff]
        %v226 = vld [vmem:[%s224 + $0x8] sm:$0xff]
        %v227 = vld [vmem:[%s224 + $0x10] sm:$0xff]
        %v228 = vld [vmem:[%s224 + $0x18] sm:$0xff]
        %v229 = vld [vmem:[%s224 + $0x20] sm:$0xff]
        %v230 = vld [vmem:[%s224 + $0x28] sm:$0xff]
        %v231 = vld [vmem:[%s224 + $0x30] sm:$0xff]
        %v232 = vld [vmem:[%s224 + $0x38] sm:$0xf]
        %v233 = vld [vmem:[#allocation2] sm:$0xf]
        %v234 = vld [vmem:[%s214] sm:$0xff]
        %v235 = vld [vmem:[%s214 + $0x8] sm:$0xff]
        %v236 = vld [vmem:[%s214 + $0x10] sm:$0xff]
        %v237 = vld [vmem:[%s214 + $0x18] sm:$0xff]
        %v238 = vld [vmem:[%s214 + $0x20] sm:$0xff]
        %v239 = vld [vmem:[%s214 + $0x28] sm:$0xff]
        %v240 = vld [vmem:[%s214 + $0x30] sm:$0xff]
        %v241 = vld [vmem:[%s214 + $0x38] sm:$0xff]
        %v242 = vld [vmem:[%s214 + $0x40] sm:$0xff]
        %v243 = vld [vmem:[%s214 + $0x48] sm:$0xff]
        %v244 = vld [vmem:[%s214 + $0x50] sm:$0xff]
        %v245 = vld [vmem:[%s214 + $0x58] sm:$0xff]
        %v246 = vld [vmem:[%s214 + $0x60] sm:$0xff]
        %v247 = vld [vmem:[%s214 + $0x68] sm:$0xff]
        %v248 = vld [vmem:[%s214 + $0x70] sm:$0xff]
        %v249 = vld [vmem:[%s214 + $0x78] sm:$0xff]
        %v250 = vld [vmem:[%s214 + $0x80] sm:$0xff]
        %v251 = vld [vmem:[%s214 + $0x88] sm:$0xff]
        %v252 = vld [vmem:[%s214 + $0x90] sm:$0xff]
        %v253 = vld [vmem:[%s214 + $0x98] sm:$0xff]
        %v254 = vld [vmem:[%s214 + $0xa0] sm:$0xff]
        %v255 = vld [vmem:[%s214 + $0xa8] sm:$0xff]
        %v256 = vld [vmem:[%s214 + $0xb0] sm:$0xff]
        %v257 = vld [vmem:[%s214 + $0xb8] sm:$0xff]
        %v258 = vld [vmem:[%s214 + $0xc0] sm:$0xff]
        %v259 = vld [vmem:[%s214 + $0xc8] sm:$0xff]
        %v260 = vld [vmem:[%s214 + $0xd0] sm:$0xff]
        %v261 = vld [vmem:[%s214 + $0xd8] sm:$0xff]
        %v262 = vld [vmem:[%s214 + $0xe0] sm:$0xff]
        %v263 = vld [vmem:[%s214 + $0xe8] sm:$0xff]
        %v264 = vld [vmem:[%s214 + $0xf0] sm:$0xff]
        %v265 = vld [vmem:[%s214 + $0xf8] sm:$0xff]
        %v266 = vld [vmem:[%s214 + $0x100] sm:$0xff]
        %v267 = vld [vmem:[%s214 + $0x108] sm:$0xff]
        %v268 = vld [vmem:[%s214 + $0x110] sm:$0xff]
        %v269 = vld [vmem:[%s214 + $0x118] sm:$0xff]
        %v270 = vld [vmem:[%s214 + $0x120] sm:$0xff]
        %v271 = vld [vmem:[%s214 + $0x128] sm:$0xff]
        %v272 = vld [vmem:[%s214 + $0x130] sm:$0xff]
        %v273 = vld [vmem:[%s214 + $0x138] sm:$0xff]
        %v274 = vld [vmem:[%s214 + $0x140] sm:$0xff]
        %v275 = vld [vmem:[%s214 + $0x148] sm:$0xff]
        %v276 = vld [vmem:[%s214 + $0x150] sm:$0xff]
        %v277 = vld [vmem:[%s214 + $0x158] sm:$0xff]
        %v278 = vld [vmem:[%s214 + $0x160] sm:$0xff]
        %v279 = vld [vmem:[%s214 + $0x168] sm:$0xff]
        %v280 = vld [vmem:[%s214 + $0x170] sm:$0xff]
        %v281 = vld [vmem:[%s214 + $0x178] sm:$0xff]
        %v282 = vld [vmem:[%s214 + $0x180] sm:$0xff]
        %v283 = vld [vmem:[%s214 + $0x188] sm:$0xff]
        %v284 = vld [vmem:[%s214 + $0x190] sm:$0xff]
        %v285 = vld [vmem:[%s214 + $0x198] sm:$0xff]
        %v286 = vld [vmem:[%s214 + $0x1a0] sm:$0xff]
        %v287 = vld [vmem:[%s214 + $0x1a8] sm:$0xff]
        %v288 = vld [vmem:[%s214 + $0x1b0] sm:$0xff]
        %v289 = vld [vmem:[%s214 + $0x1b8] sm:$0xff]
        %v290 = vld [vmem:[%s214 + $0x1c0] sm:$0xff]
        %v291 = vld [vmem:[%s214 + $0x1c8] sm:$0xff]
        %v292 = vld [vmem:[%s214 + $0x1d0] sm:$0xff]
        %v293 = vld [vmem:[%s214 + $0x1d8] sm:$0xff]
        %v294 = vld [vmem:[%s214 + $0x1e0] sm:$0xff]
        %v295 = vld [vmem:[%s214 + $0x1e8] sm:$0xff]
        %v296 = vld [vmem:[%s214 + $0x1f0] sm:$0xff]
        %v297 = vld [vmem:[%s214 + $0x1f8] sm:$0xff]
        %v298 = vld [vmem:[%s214 + $0x200] sm:$0xff]
        %v299 = vld [vmem:[%s214 + $0x208] sm:$0xff]
        %v300 = vld [vmem:[%s214 + $0x210] sm:$0xff]
        %v301 = vld [vmem:[%s214 + $0x218] sm:$0xff]
        %v302 = vld [vmem:[%s214 + $0x220] sm:$0xff]
        %v303 = vld [vmem:[%s214 + $0x228] sm:$0xff]
        %v304 = vld [vmem:[%s214 + $0x230] sm:$0xff]
        %v305 = vld [vmem:[%s214 + $0x238] sm:$0xff]
        %v306 = vld [vmem:[%s214 + $0x240] sm:$0xff]
        %v307 = vld [vmem:[%s214 + $0x248] sm:$0xff]
        %v308 = vld [vmem:[%s214 + $0x250] sm:$0xff]
        %v309 = vld [vmem:[%s214 + $0x258] sm:$0xff]
        %v310 = vld [vmem:[%s214 + $0x260] sm:$0xff]
        %v311 = vld [vmem:[%s214 + $0x268] sm:$0xff]
        %v312 = vld [vmem:[%s214 + $0x270] sm:$0xff]
        %v313 = vld [vmem:[%s214 + $0x278] sm:$0xff]
        %v314 = vld [vmem:[%s214 + $0x280] sm:$0xff]
        %v315 = vld [vmem:[%s214 + $0x288] sm:$0xff]
        %v316 = vld [vmem:[%s214 + $0x290] sm:$0xff]
        %v317 = vld [vmem:[%s214 + $0x298] sm:$0xff]
        %v318 = vld [vmem:[%s214 + $0x2a0] sm:$0xff]
        %v319 = vld [vmem:[%s214 + $0x2a8] sm:$0xff]
        %v320 = vld [vmem:[%s214 + $0x2b0] sm:$0xff]
        %v321 = vld [vmem:[%s214 + $0x2b8] sm:$0xff]
        %v322 = vld [vmem:[%s214 + $0x2c0] sm:$0xff]
        %v323 = vld [vmem:[%s214 + $0x2c8] sm:$0xff]
        %v324 = vld [vmem:[%s214 + $0x2d0] sm:$0xff]
        %v325 = vld [vmem:[%s214 + $0x2d8] sm:$0xff]
        %v326 = vld [vmem:[%s214 + $0x2e0] sm:$0xff]
        %v327 = vld [vmem:[%s214 + $0x2e8] sm:$0xff]
        %v328 = vld [vmem:[%s214 + $0x2f0] sm:$0xff]
        %v329 = vld [vmem:[%s214 + $0x2f8] sm:$0xff]
        %v330 = vld [vmem:[%s214 + $0x300] sm:$0xff]
        %v331 = vld [vmem:[%s214 + $0x308] sm:$0xff]
        %v332 = vld [vmem:[%s214 + $0x310] sm:$0xff]
        %v333 = vld [vmem:[%s214 + $0x318] sm:$0xff]
        %v334 = vld [vmem:[%s214 + $0x320] sm:$0xff]
        %v335 = vld [vmem:[%s214 + $0x328] sm:$0xff]
        %v336 = vld [vmem:[%s214 + $0x330] sm:$0xff]
        %v337 = vld [vmem:[%s214 + $0x338] sm:$0xff]
        %v338 = vld [vmem:[%s214 + $0x340] sm:$0xff]
        %v339 = vld [vmem:[%s214 + $0x348] sm:$0xff]
        %v340 = vld [vmem:[%s214 + $0x350] sm:$0xff]
        %v341 = vld [vmem:[%s214 + $0x358] sm:$0xff]
        %v342 = vld [vmem:[%s214 + $0x360] sm:$0xff]
        %v343 = vld [vmem:[%s214 + $0x368] sm:$0xff]
        %v344 = vld [vmem:[%s214 + $0x370] sm:$0xff]
        %v345 = vld [vmem:[%s214 + $0x378] sm:$0xff]
        %v346 = vld [vmem:[%s214 + $0x380] sm:$0xff]
        %v347 = vld [vmem:[%s214 + $0x388] sm:$0xff]
        %v348 = vld [vmem:[%s214 + $0x390] sm:$0xff]
        %v349 = vld [vmem:[%s214 + $0x398] sm:$0xff]
        %v350 = vld [vmem:[%s214 + $0x3a0] sm:$0xff]
        %v351 = vld [vmem:[%s214 + $0x3a8] sm:$0xff]
        %v352 = vld [vmem:[%s214 + $0x3b0] sm:$0xff]
        %v353 = vld [vmem:[%s214 + $0x3b8] sm:$0xff]
        %v354 = vld [vmem:[%s214 + $0x3c0] sm:$0xff]
        %v355 = vld [vmem:[%s214 + $0x3c8] sm:$0xff]
        %v356 = vld [vmem:[%s214 + $0x3d0] sm:$0xff]
        %v357 = vld [vmem:[%s214 + $0x3d8] sm:$0xff]
        %v358 = vld [vmem:[%s214 + $0x3e0] sm:$0xff]
        %v359 = vld [vmem:[%s214 + $0x3e8] sm:$0xff]
        %v360 = vld [vmem:[%s214 + $0x3f0] sm:$0xff]
        %v361 = vld [vmem:[%s214 + $0x3f8] sm:$0xff]
        %v362 = vld [vmem:[%s214 + $0x400] sm:$0xff]
        %v363 = vld [vmem:[%s214 + $0x408] sm:$0xff]
        %v364 = vld [vmem:[%s214 + $0x410] sm:$0xff]
        %v365 = vld [vmem:[%s214 + $0x418] sm:$0xff]
        %v366 = vld [vmem:[%s214 + $0x420] sm:$0xff]
        %v367 = vld [vmem:[%s214 + $0x428] sm:$0xff]
        %v368 = vld [vmem:[%s214 + $0x430] sm:$0xff]
        %v369 = vld [vmem:[%s214 + $0x438] sm:$0xff]
        %v370 = vld [vmem:[%s214 + $0x440] sm:$0xff]
        %v371 = vld [vmem:[%s214 + $0x448] sm:$0xff]
        %v372 = vld [vmem:[%s214 + $0x450] sm:$0xff]
        %v373 = vld [vmem:[%s214 + $0x458] sm:$0xff]
        %v374 = vld [vmem:[%s214 + $0x460] sm:$0xff]
        %v375 = vld [vmem:[%s214 + $0x468] sm:$0xff]
        %v376 = vld [vmem:[%s214 + $0x470] sm:$0xff]
        %v377 = vld [vmem:[%s214 + $0x478] sm:$0xff]
        %v378 = vld [vmem:[%s214 + $0x480] sm:$0xff]
        %v379 = vld [vmem:[%s214 + $0x488] sm:$0xff]
        %v380 = vld [vmem:[%s214 + $0x490] sm:$0xff]
        %v381 = vld [vmem:[%s214 + $0x498] sm:$0xff]
        %v382 = vld [vmem:[%s214 + $0x4a0] sm:$0xff]
        %v383 = vld [vmem:[%s214 + $0x4a8] sm:$0xff]
        %v384 = vld [vmem:[%s214 + $0x4b0] sm:$0xff]
        %v385 = vld [vmem:[%s214 + $0x4b8] sm:$0xff]
        %v386 = vld [vmem:[%s214 + $0x4c0] sm:$0xff]
        %v387 = vld [vmem:[%s214 + $0x4c8] sm:$0xff]
        %v388 = vld [vmem:[%s214 + $0x4d0] sm:$0xff]
        %v389 = vld [vmem:[%s214 + $0x4d8] sm:$0xff]
        %v390 = vld [vmem:[%s214 + $0x4e0] sm:$0xff]
        %v391 = vld [vmem:[%s214 + $0x4e8] sm:$0xff]
        %v392 = vld [vmem:[%s214 + $0x4f0] sm:$0xff]
        %v393 = vld [vmem:[%s214 + $0x4f8] sm:$0xff]
        %v394 = vld [vmem:[%s214 + $0x500] sm:$0xff]
        %v395 = vld [vmem:[%s214 + $0x508] sm:$0xff]
        %v396 = vld [vmem:[%s214 + $0x510] sm:$0xff]
        %v397 = vld [vmem:[%s214 + $0x518] sm:$0xff]
        %v398 = vld [vmem:[%s214 + $0x520] sm:$0xff]
        %v399 = vld [vmem:[%s214 + $0x528] sm:$0xff]
        %v400 = vld [vmem:[%s214 + $0x530] sm:$0xff]
        %v401 = vld [vmem:[%s214 + $0x538] sm:$0xff]
        %v402 = vld [vmem:[%s214 + $0x540] sm:$0xff]
        %v403 = vld [vmem:[%s214 + $0x548] sm:$0xff]
        %v404 = vld [vmem:[%s214 + $0x550] sm:$0xff]
        %v405 = vld [vmem:[%s214 + $0x558] sm:$0xff]
        %v406 = vld [vmem:[%s214 + $0x560] sm:$0xff]
        %v407 = vld [vmem:[%s214 + $0x568] sm:$0xff]
        %v408 = vld [vmem:[%s214 + $0x570] sm:$0xff]
        %v409 = vld [vmem:[%s214 + $0x578] sm:$0xff]
        %v410 = vld [vmem:[%s214 + $0x580] sm:$0xff]
        %v411 = vld [vmem:[%s214 + $0x588] sm:$0xff]
        %v412 = vld [vmem:[%s214 + $0x590] sm:$0xff]
        %v413 = vld [vmem:[%s214 + $0x598] sm:$0xff]
        %v414 = vld [vmem:[%s214 + $0x5a0] sm:$0xff]
        %v415 = vld [vmem:[%s214 + $0x5a8] sm:$0xff]
        %v416 = vld [vmem:[%s214 + $0x5b0] sm:$0xff]
        %v417 = vld [vmem:[%s214 + $0x5b8] sm:$0xff]
        %v418 = vld [vmem:[%s214 + $0x5c0] sm:$0xff]
        %v419 = vld [vmem:[%s214 + $0x5c8] sm:$0xff]
        %v420 = vld [vmem:[%s214 + $0x5d0] sm:$0xff]
        %v421 = vld [vmem:[%s214 + $0x5d8] sm:$0xff]
        %v422 = vld [vmem:[%s214 + $0x5e0] sm:$0xff]
        %v423 = vld [vmem:[%s214 + $0x5e8] sm:$0xff]
        %v424 = vld [vmem:[%s214 + $0x5f0] sm:$0xff]
        %v425 = vld [vmem:[%s214 + $0x5f8] sm:$0xff]
        %v426 = vld [vmem:[%s214 + $0x600] sm:$0xff]
        %v427 = vld [vmem:[%s214 + $0x608] sm:$0xff]
        %v428 = vld [vmem:[%s214 + $0x610] sm:$0xff]
        %v429 = vld [vmem:[%s214 + $0x618] sm:$0xff]
        %v430 = vld [vmem:[%s214 + $0x620] sm:$0xff]
        %v431 = vld [vmem:[%s214 + $0x628] sm:$0xff]
        %v432 = vld [vmem:[%s214 + $0x630] sm:$0xff]
        %v433 = vld [vmem:[%s214 + $0x638] sm:$0xff]
        %v434 = vld [vmem:[%s214 + $0x640] sm:$0xff]
        %v435 = vld [vmem:[%s214 + $0x648] sm:$0xff]
        %v436 = vld [vmem:[%s214 + $0x650] sm:$0xff]
        %v437 = vld [vmem:[%s214 + $0x658] sm:$0xff]
        %v438 = vld [vmem:[%s214 + $0x660] sm:$0xff]
        %v439 = vld [vmem:[%s214 + $0x668] sm:$0xff]
        %v440 = vld [vmem:[%s214 + $0x670] sm:$0xff]
        %v441 = vld [vmem:[%s214 + $0x678] sm:$0xff]
        %v442 = vld [vmem:[%s214 + $0x680] sm:$0xff]
        %v443 = vld [vmem:[%s214 + $0x688] sm:$0xff]
        %v444 = vld [vmem:[%s214 + $0x690] sm:$0xff]
        %v445 = vld [vmem:[%s214 + $0x698] sm:$0xff]
        %v446 = vld [vmem:[%s214 + $0x6a0] sm:$0xff]
        %v447 = vld [vmem:[%s214 + $0x6a8] sm:$0xff]
        %v448 = vld [vmem:[%s214 + $0x6b0] sm:$0xff]
        %v449 = vld [vmem:[%s214 + $0x6b8] sm:$0xff]
        %v450 = vld [vmem:[%s214 + $0x6c0] sm:$0xff]
        %v451 = vld [vmem:[%s214 + $0x6c8] sm:$0xff]
        %v452 = vld [vmem:[%s214 + $0x6d0] sm:$0xff]
        %v453 = vld [vmem:[%s214 + $0x6d8] sm:$0xff]
        %v454 = vld [vmem:[%s214 + $0x6e0] sm:$0xff]
        %v455 = vld [vmem:[%s214 + $0x6e8] sm:$0xff]
        %v456 = vld [vmem:[%s214 + $0x6f0] sm:$0xff]
        %v457 = vld [vmem:[%s214 + $0x6f8] sm:$0xff]
        %v458 = vld [vmem:[%s214 + $0x700] sm:$0xff]
        %v459 = vld [vmem:[%s214 + $0x708] sm:$0xff]
        %v460 = vld [vmem:[%s214 + $0x710] sm:$0xff]
        %v461 = vld [vmem:[%s214 + $0x718] sm:$0xff]
        %v462 = vld [vmem:[%s214 + $0x720] sm:$0xff]
        %v463 = vld [vmem:[%s214 + $0x728] sm:$0xff]
        %v464 = vld [vmem:[%s214 + $0x730] sm:$0xff]
        %v465 = vld [vmem:[%s214 + $0x738] sm:$0xff]
        %v466 = vld [vmem:[%s214 + $0x740] sm:$0xff]
        %v467 = vld [vmem:[%s214 + $0x748] sm:$0xff]
        %v468 = vld [vmem:[%s214 + $0x750] sm:$0xff]
        %v469 = vld [vmem:[%s214 + $0x758] sm:$0xff]
        %v470 = vld [vmem:[%s214 + $0x760] sm:$0xff]
        %v471 = vld [vmem:[%s214 + $0x768] sm:$0xff]
        %v472 = vld [vmem:[%s214 + $0x770] sm:$0xff]
        %v473 = vld [vmem:[%s214 + $0x778] sm:$0xff]
        %v474 = vld [vmem:[%s214 + $0x780] sm:$0xff]
        %v475 = vld [vmem:[%s214 + $0x788] sm:$0xff]
        %v476 = vld [vmem:[%s214 + $0x790] sm:$0xff]
        %v477 = vld [vmem:[%s214 + $0x798] sm:$0xff]
        %v478 = vld [vmem:[%s214 + $0x7a0] sm:$0xff]
        %v479 = vld [vmem:[%s214 + $0x7a8] sm:$0xff]
        %v480 = vld [vmem:[%s214 + $0x7b0] sm:$0xff]
        %v481 = vld [vmem:[%s214 + $0x7b8] sm:$0xff]
        %v482 = vld [vmem:[%s214 + $0x7c0] sm:$0xff]
        %v483 = vld [vmem:[%s214 + $0x7c8] sm:$0xff]
        %v484 = vld [vmem:[%s214 + $0x7d0] sm:$0xff]
        %v485 = vld [vmem:[%s214 + $0x7d8] sm:$0xff]
        %v486 = vld [vmem:[%s214 + $0x7e0] sm:$0xff]
        %v487 = vld [vmem:[%s214 + $0x7e8] sm:$0xff]
        %v488 = vld [vmem:[%s214 + $0x7f0] sm:$0xff]
        %v489 = vld [vmem:[%s214 + $0x7f8] sm:$0xff]
        %v490 = vld [vmem:[%s214 + $0x800] sm:$0xff]
        %v491 = vld [vmem:[%s214 + $0x808] sm:$0xff]
        %v492 = vld [vmem:[%s214 + $0x810] sm:$0xff]
        %v493 = vld [vmem:[%s214 + $0x818] sm:$0xff]
        %v494 = vld [vmem:[%s214 + $0x820] sm:$0xff]
        %v495 = vld [vmem:[%s214 + $0x828] sm:$0xff]
        %v496 = vld [vmem:[%s214 + $0x830] sm:$0xff]
        %v497 = vld [vmem:[%s214 + $0x838] sm:$0xff]
        %v498 = vld [vmem:[%s214 + $0x840] sm:$0xff]
        %v499 = vld [vmem:[%s214 + $0x848] sm:$0xff]
        %v500 = vld [vmem:[%s214 + $0x850] sm:$0xff]
        %v501 = vld [vmem:[%s214 + $0x858] sm:$0xff]
        %v502 = vld [vmem:[%s214 + $0x860] sm:$0xff]
        %v503 = vld [vmem:[%s214 + $0x868] sm:$0xff]
        %v504 = vld [vmem:[%s214 + $0x870] sm:$0xff]
        %v505 = vld [vmem:[%s214 + $0x878] sm:$0xff]
        %v506 = vld [vmem:[%s214 + $0x880] sm:$0xff]
        %v507 = vld [vmem:[%s214 + $0x888] sm:$0xff]
        %v508 = vld [vmem:[%s214 + $0x890] sm:$0xff]
        %v509 = vld [vmem:[%s214 + $0x898] sm:$0xff]
        %v510 = vld [vmem:[%s214 + $0x8a0] sm:$0xff]
        %v511 = vld [vmem:[%s214 + $0x8a8] sm:$0xff]
        %v512 = vld [vmem:[%s214 + $0x8b0] sm:$0xff]
        %v513 = vld [vmem:[%s214 + $0x8b8] sm:$0xff]
        %v514 = vld [vmem:[%s214 + $0x8c0] sm:$0xff]
        %v515 = vld [vmem:[%s214 + $0x8c8] sm:$0xff]
        %v516 = vld [vmem:[%s214 + $0x8d0] sm:$0xff]
        %v517 = vld [vmem:[%s214 + $0x8d8] sm:$0xff]
        %v518 = vld [vmem:[%s214 + $0x8e0] sm:$0xff]
        %v519 = vld [vmem:[%s214 + $0x8e8] sm:$0xff]
        %v520 = vld [vmem:[%s214 + $0x8f0] sm:$0xff]
        %v521 = vld [vmem:[%s214 + $0x8f8] sm:$0xff]
        %v522 = vld [vmem:[%s214 + $0x900] sm:$0xff]
        %v523 = vld [vmem:[%s214 + $0x908] sm:$0xff]
        %v524 = vld [vmem:[%s214 + $0x910] sm:$0xff]
        %v525 = vld [vmem:[%s214 + $0x918] sm:$0xff]
        %v526 = vld [vmem:[%s214 + $0x920] sm:$0xff]
        %v527 = vld [vmem:[%s214 + $0x928] sm:$0xff]
        %v528 = vld [vmem:[%s214 + $0x930] sm:$0xff]
        %v529 = vld [vmem:[%s214 + $0x938] sm:$0xff]
        %v530 = vld [vmem:[%s214 + $0x940] sm:$0xff]
        %v531 = vld [vmem:[%s214 + $0x948] sm:$0xff]
        %v532 = vld [vmem:[%s214 + $0x950] sm:$0xff]
        %v533 = vld [vmem:[%s214 + $0x958] sm:$0xff]
        %v534 = vld [vmem:[%s214 + $0x960] sm:$0xff]
        %v535 = vld [vmem:[%s214 + $0x968] sm:$0xff]
        %v536 = vld [vmem:[%s214 + $0x970] sm:$0xff]
        %v537 = vld [vmem:[%s214 + $0x978] sm:$0xff]
        %v538 = vld [vmem:[%s214 + $0x980] sm:$0xff]
        %v539 = vld [vmem:[%s214 + $0x988] sm:$0xff]
        %v540 = vld [vmem:[%s214 + $0x990] sm:$0xff]
        %v541 = vld [vmem:[%s214 + $0x998] sm:$0xff]
        %v542 = vld [vmem:[%s214 + $0x9a0] sm:$0xff]
        %v543 = vld [vmem:[%s214 + $0x9a8] sm:$0xff]
        %v544 = vld [vmem:[%s214 + $0x9b0] sm:$0xff]
        %v545 = vld [vmem:[%s214 + $0x9b8] sm:$0xff]
        %v546 = vld [vmem:[%s214 + $0x9c0] sm:$0xff]
        %v547 = vld [vmem:[%s214 + $0x9c8] sm:$0xff]
        %v548 = vld [vmem:[%s214 + $0x9d0] sm:$0xff]
        %v549 = vld [vmem:[%s214 + $0x9d8] sm:$0xff]
        %v550 = vld [vmem:[%s214 + $0x9e0] sm:$0xff]
        %v551 = vld [vmem:[%s214 + $0x9e8] sm:$0xff]
        %v552 = vld [vmem:[%s214 + $0x9f0] sm:$0xff]
        %v553 = vld [vmem:[%s214 + $0x9f8] sm:$0xff]
        %v554 = vld [vmem:[%s214 + $0xa00] sm:$0xff]
        %v555 = vld [vmem:[%s214 + $0xa08] sm:$0xff]
        %v556 = vld [vmem:[%s214 + $0xa10] sm:$0xff]
        %v557 = vld [vmem:[%s214 + $0xa18] sm:$0xff]
        %v558 = vld [vmem:[%s214 + $0xa20] sm:$0xff]
        %v559 = vld [vmem:[%s214 + $0xa28] sm:$0xff]
        %v560 = vld [vmem:[%s214 + $0xa30] sm:$0xff]
        %v561 = vld [vmem:[%s214 + $0xa38] sm:$0xff]
        %v562 = vld [vmem:[%s214 + $0xa40] sm:$0xff]
        %v563 = vld [vmem:[%s214 + $0xa48] sm:$0xff]
        %v564 = vld [vmem:[%s214 + $0xa50] sm:$0xff]
        %v565 = vld [vmem:[%s214 + $0xa58] sm:$0xff]
        %v566 = vld [vmem:[%s214 + $0xa60] sm:$0xff]
        %v567 = vld [vmem:[%s214 + $0xa68] sm:$0xff]
        %v568 = vld [vmem:[%s214 + $0xa70] sm:$0xff]
        %v569 = vld [vmem:[%s214 + $0xa78] sm:$0xff]
        %v570 = vld [vmem:[%s214 + $0xa80] sm:$0xff]
        %v571 = vld [vmem:[%s214 + $0xa88] sm:$0xff]
        %v572 = vld [vmem:[%s214 + $0xa90] sm:$0xff]
        %v573 = vld [vmem:[%s214 + $0xa98] sm:$0xff]
        %v574 = vld [vmem:[%s214 + $0xaa0] sm:$0xff]
        %v575 = vld [vmem:[%s214 + $0xaa8] sm:$0xff]
        %v576 = vld [vmem:[%s214 + $0xab0] sm:$0xff]
        %v577 = vld [vmem:[%s214 + $0xab8] sm:$0xff]
        %v578 = vld [vmem:[%s214 + $0xac0] sm:$0xff]
        %v579 = vld [vmem:[%s214 + $0xac8] sm:$0xff]
        %v580 = vld [vmem:[%s214 + $0xad0] sm:$0xff]
        %v581 = vld [vmem:[%s214 + $0xad8] sm:$0xff]
        %v582 = vld [vmem:[%s214 + $0xae0] sm:$0xff]
        %v583 = vld [vmem:[%s214 + $0xae8] sm:$0xff]
        %v584 = vld [vmem:[%s214 + $0xaf0] sm:$0xff]
        %v585 = vld [vmem:[%s214 + $0xaf8] sm:$0xff]
        %v586 = vld [vmem:[%s214 + $0xb00] sm:$0xff]
        %v587 = vld [vmem:[%s214 + $0xb08] sm:$0xff]
        %v588 = vld [vmem:[%s214 + $0xb10] sm:$0xff]
        %v589 = vld [vmem:[%s214 + $0xb18] sm:$0xff]
        %v590 = vld [vmem:[%s214 + $0xb20] sm:$0xff]
        %v591 = vld [vmem:[%s214 + $0xb28] sm:$0xff]
        %v592 = vld [vmem:[%s214 + $0xb30] sm:$0xff]
        %v593 = vld [vmem:[%s214 + $0xb38] sm:$0xff]
        %v594 = vld [vmem:[%s214 + $0xb40] sm:$0xff]
        %v595 = vld [vmem:[%s214 + $0xb48] sm:$0xff]
        %v596 = vld [vmem:[%s214 + $0xb50] sm:$0xff]
        %v597 = vld [vmem:[%s214 + $0xb58] sm:$0xff]
        %v598 = vld [vmem:[%s214 + $0xb60] sm:$0xff]
        %v599 = vld [vmem:[%s214 + $0xb68] sm:$0xff]
        %v600 = vld [vmem:[%s214 + $0xb70] sm:$0xff]
        %v601 = vld [vmem:[%s214 + $0xb78] sm:$0xff]
        %v602 = vld [vmem:[%s214 + $0xb80] sm:$0xff]
        %v603 = vld [vmem:[%s214 + $0xb88] sm:$0xff]
        %v604 = vld [vmem:[%s214 + $0xb90] sm:$0xff]
        %v605 = vld [vmem:[%s214 + $0xb98] sm:$0xff]
        %v606 = vld [vmem:[%s214 + $0xba0] sm:$0xff]
        %v607 = vld [vmem:[%s214 + $0xba8] sm:$0xff]
        %v608 = vld [vmem:[%s214 + $0xbb0] sm:$0xff]
        %v609 = vld [vmem:[%s214 + $0xbb8] sm:$0xff]
        %v610 = vld [vmem:[%s214 + $0xbc0] sm:$0xff]
        %v611 = vld [vmem:[%s214 + $0xbc8] sm:$0xff]
        %v612 = vld [vmem:[%s214 + $0xbd0] sm:$0xff]
        %v613 = vld [vmem:[%s214 + $0xbd8] sm:$0xff]
        %v614 = vld [vmem:[%s214 + $0xbe0] sm:$0xff]
        %v615 = vld [vmem:[%s214 + $0xbe8] sm:$0xff]
        %v616 = vld [vmem:[%s214 + $0xbf0] sm:$0xff]
        %v617 = vld [vmem:[%s214 + $0xbf8] sm:$0xff]
        %v618 = vld [vmem:[%s214 + $0xc00] sm:$0xff]
        %v619 = vld [vmem:[%s214 + $0xc08] sm:$0xff]
        %v620 = vld [vmem:[%s214 + $0xc10] sm:$0xff]
        %v621 = vld [vmem:[%s214 + $0xc18] sm:$0xff]
        %v622 = vld [vmem:[%s214 + $0xc20] sm:$0xff]
        %v623 = vld [vmem:[%s214 + $0xc28] sm:$0xff]
        %v624 = vld [vmem:[%s214 + $0xc30] sm:$0xff]
        %v625 = vld [vmem:[%s214 + $0xc38] sm:$0xff]
        %v626 = vld [vmem:[%s214 + $0xc40] sm:$0xff]
        %v627 = vld [vmem:[%s214 + $0xc48] sm:$0xff]
        %v628 = vld [vmem:[%s214 + $0xc50] sm:$0xff]
        %v629 = vld [vmem:[%s214 + $0xc58] sm:$0xff]
        %v630 = vld [vmem:[%s214 + $0xc60] sm:$0xff]
        %v631 = vld [vmem:[%s214 + $0xc68] sm:$0xff]
        %v632 = vld [vmem:[%s214 + $0xc70] sm:$0xff]
        %v633 = vld [vmem:[%s214 + $0xc78] sm:$0xff]
        %v634 = vld [vmem:[%s214 + $0xc80] sm:$0xff]
        %v635 = vld [vmem:[%s214 + $0xc88] sm:$0xff]
        %v636 = vld [vmem:[%s214 + $0xc90] sm:$0xff]
        %v637 = vld [vmem:[%s214 + $0xc98] sm:$0xff]
        %v638 = vld [vmem:[%s214 + $0xca0] sm:$0xff]
        %v639 = vld [vmem:[%s214 + $0xca8] sm:$0xff]
        %v640 = vld [vmem:[%s214 + $0xcb0] sm:$0xff]
        %v641 = vld [vmem:[%s214 + $0xcb8] sm:$0xff]
        %v642 = vld [vmem:[%s214 + $0xcc0] sm:$0xff]
        %v643 = vld [vmem:[%s214 + $0xcc8] sm:$0xff]
        %v644 = vld [vmem:[%s214 + $0xcd0] sm:$0xff]
        %v645 = vld [vmem:[%s214 + $0xcd8] sm:$0xff]
        %v646 = vld [vmem:[%s214 + $0xce0] sm:$0xff]
        %v647 = vld [vmem:[%s214 + $0xce8] sm:$0xff]
        %v648 = vld [vmem:[%s214 + $0xcf0] sm:$0xff]
        %v649 = vld [vmem:[%s214 + $0xcf8] sm:$0xff]
        %v650 = vld [vmem:[%s214 + $0xd00] sm:$0xff]
        %v651 = vld [vmem:[%s214 + $0xd08] sm:$0xff]
        %v652 = vld [vmem:[%s214 + $0xd10] sm:$0xff]
        %v653 = vld [vmem:[%s214 + $0xd18] sm:$0xff]
        %v654 = vld [vmem:[%s214 + $0xd20] sm:$0xff]
        %v655 = vld [vmem:[%s214 + $0xd28] sm:$0xff]
        %v656 = vld [vmem:[%s214 + $0xd30] sm:$0xff]
        %v657 = vld [vmem:[%s214 + $0xd38] sm:$0xff]
        %v658 = vld [vmem:[%s214 + $0xd40] sm:$0xff]
        %v659 = vld [vmem:[%s214 + $0xd48] sm:$0xff]
        %v660 = vld [vmem:[%s214 + $0xd50] sm:$0xff]
        %v661 = vld [vmem:[%s214 + $0xd58] sm:$0xff]
        %v662 = vld [vmem:[%s214 + $0xd60] sm:$0xff]
        %v663 = vld [vmem:[%s214 + $0xd68] sm:$0xff]
        %v664 = vld [vmem:[%s214 + $0xd70] sm:$0xff]
        %v665 = vld [vmem:[%s214 + $0xd78] sm:$0xff]
        %v666 = vld [vmem:[%s214 + $0xd80] sm:$0xff]
        %v667 = vld [vmem:[%s214 + $0xd88] sm:$0xff]
        %v668 = vld [vmem:[%s214 + $0xd90] sm:$0xff]
        %v669 = vld [vmem:[%s214 + $0xd98] sm:$0xff]
        %v670 = vld [vmem:[%s214 + $0xda0] sm:$0xff]
        %v671 = vld [vmem:[%s214 + $0xda8] sm:$0xff]
        %v672 = vld [vmem:[%s214 + $0xdb0] sm:$0xff]
        %v673 = vld [vmem:[%s214 + $0xdb8] sm:$0xff]
        %v674 = vld [vmem:[%s214 + $0xdc0] sm:$0xff]
        %v675 = vld [vmem:[%s214 + $0xdc8] sm:$0xff]
        %v676 = vld [vmem:[%s214 + $0xdd0] sm:$0xff]
        %v677 = vld [vmem:[%s214 + $0xdd8] sm:$0xff]
        %v678 = vld [vmem:[%s214 + $0xde0] sm:$0xff]
        %v679 = vld [vmem:[%s214 + $0xde8] sm:$0xff]
        %v680 = vld [vmem:[%s214 + $0xdf0] sm:$0xff]
        %v681 = vld [vmem:[%s214 + $0xdf8] sm:$0xff]
        %v682 = vld [vmem:[%s214 + $0xe00] sm:$0xff]
        %v683 = vld [vmem:[%s214 + $0xe08] sm:$0xff]
        %v684 = vld [vmem:[%s214 + $0xe10] sm:$0xff]
        %v685 = vld [vmem:[%s214 + $0xe18] sm:$0xff]
        %v686 = vld [vmem:[%s214 + $0xe20] sm:$0xff]
        %v687 = vld [vmem:[%s214 + $0xe28] sm:$0xff]
        %v688 = vld [vmem:[%s214 + $0xe30] sm:$0xff]
        %v689 = vld [vmem:[%s214 + $0xe38] sm:$0xff]
        %v690 = vld [vmem:[%s214 + $0xe40] sm:$0xff]
        %v691 = vld [vmem:[%s214 + $0xe48] sm:$0xff]
        %v692 = vld [vmem:[%s214 + $0xe50] sm:$0xff]
        %v693 = vld [vmem:[%s214 + $0xe58] sm:$0xff]
        %v694 = vld [vmem:[%s214 + $0xe60] sm:$0xff]
        %v695 = vld [vmem:[%s214 + $0xe68] sm:$0xff]
        %v696 = vld [vmem:[%s214 + $0xe70] sm:$0xff]
        %v697 = vld [vmem:[%s214 + $0xe78] sm:$0xff]
        %v698 = vld [vmem:[%s214 + $0xe80] sm:$0xff]
        %v699 = vld [vmem:[%s214 + $0xe88] sm:$0xff]
        %v700 = vld [vmem:[%s214 + $0xe90] sm:$0xff]
        %v701 = vld [vmem:[%s214 + $0xe98] sm:$0xff]
        %v702 = vld [vmem:[%s214 + $0xea0] sm:$0xff]
        %v703 = vld [vmem:[%s214 + $0xea8] sm:$0xff]
        %v704 = vld [vmem:[%s214 + $0xeb0] sm:$0xff]
        %v705 = vld [vmem:[%s214 + $0xeb8] sm:$0xff]
        %v706 = vld [vmem:[%s214 + $0xec0] sm:$0xff]
        %v707 = vld [vmem:[%s214 + $0xec8] sm:$0xff]
        %v708 = vld [vmem:[%s214 + $0xed0] sm:$0xff]
        %v709 = vld [vmem:[%s214 + $0xed8] sm:$0xff]
        %v710 = vld [vmem:[%s214 + $0xee0] sm:$0xff]
        %v711 = vld [vmem:[%s214 + $0xee8] sm:$0xff]
        %v712 = vld [vmem:[%s214 + $0xef0] sm:$0xff]
        %v713 = vld [vmem:[%s214 + $0xef8] sm:$0xff]
        %v714 = vld [vmem:[%s214 + $0xf00] sm:$0xff]
        %v715 = vld [vmem:[%s214 + $0xf08] sm:$0xff]
        %v716 = vld [vmem:[%s214 + $0xf10] sm:$0xff]
        %v717 = vld [vmem:[%s214 + $0xf18] sm:$0xff]
        %v718 = vld [vmem:[%s214 + $0xf20] sm:$0xff]
        %v719 = vld [vmem:[%s214 + $0xf28] sm:$0xff]
        %v720 = vld [vmem:[%s214 + $0xf30] sm:$0xff]
        %v721 = vld [vmem:[%s214 + $0xf38] sm:$0xff]
        %v722 = vld [vmem:[%s214 + $0xf40] sm:$0xff]
        %v723 = vld [vmem:[%s214 + $0xf48] sm:$0xff]
        %v724 = vld [vmem:[%s214 + $0xf50] sm:$0xff]
        %v725 = vld [vmem:[%s214 + $0xf58] sm:$0xff]
        %v726 = vld [vmem:[%s214 + $0xf60] sm:$0xff]
        %v727 = vld [vmem:[%s214 + $0xf68] sm:$0xff]
        %v728 = vld [vmem:[%s214 + $0xf70] sm:$0xff]
        %v729 = vld [vmem:[%s214 + $0xf78] sm:$0xff]
        %v730 = vld [vmem:[%s214 + $0xf80] sm:$0xff]
        %v731 = vld [vmem:[%s214 + $0xf88] sm:$0xff]
        %v732 = vld [vmem:[%s214 + $0xf90] sm:$0xff]
        %v733 = vld [vmem:[%s214 + $0xf98] sm:$0xff]
        %v734 = vld [vmem:[%s214 + $0xfa0] sm:$0xff]
        %v735 = vld [vmem:[%s214 + $0xfa8] sm:$0xff]
        %v736 = vld [vmem:[%s214 + $0xfb0] sm:$0xff]
        %v737 = vld [vmem:[%s214 + $0xfb8] sm:$0xff]
        %v738 = vld [vmem:[%s214 + $0xfc0] sm:$0xff]
        %v739 = vld [vmem:[%s214 + $0xfc8] sm:$0xff]
        %v740 = vld [vmem:[%s214 + $0xfd0] sm:$0xff]
        %v741 = vld [vmem:[%s214 + $0xfd8] sm:$0xff]
        %v742 = vld [vmem:[%s214 + $0xfe0] sm:$0xff]
        %v743 = vld [vmem:[%s214 + $0xfe8] sm:$0xff]
        %v744 = vld [vmem:[%s214 + $0xff0] sm:$0xff]
        %v745 = vld [vmem:[%s214 + $0xff8] sm:$0xff]
        %v746 = vld [vmem:[%s214 + $0x1000] sm:$0xff]
        %v747 = vld [vmem:[%s214 + $0x1008] sm:$0xff]
        %v748 = vld [vmem:[%s214 + $0x1010] sm:$0xff]
        %v749 = vld [vmem:[%s214 + $0x1018] sm:$0xff]
        %v750 = vld [vmem:[%s214 + $0x1020] sm:$0xff]
        %v751 = vld [vmem:[%s214 + $0x1028] sm:$0xff]
        %v752 = vld [vmem:[%s214 + $0x1030] sm:$0xff]
        %v753 = vld [vmem:[%s214 + $0x1038] sm:$0xff]
        %v754 = vld [vmem:[%s214 + $0x1040] sm:$0xff]
        %v755 = vld [vmem:[%s214 + $0x1048] sm:$0xff]
        %v756 = vld [vmem:[%s214 + $0x1050] sm:$0xff]
        %v757 = vld [vmem:[%s214 + $0x1058] sm:$0xff]
        %v758 = vld [vmem:[%s214 + $0x1060] sm:$0xff]
        %v759 = vld [vmem:[%s214 + $0x1068] sm:$0xff]
        %v760 = vld [vmem:[%s214 + $0x1070] sm:$0xff]
        %v761 = vld [vmem:[%s214 + $0x1078] sm:$0xff]
        %v762 = vld [vmem:[%s214 + $0x1080] sm:$0xff]
        %v763 = vld [vmem:[%s214 + $0x1088] sm:$0xff]
        %v764 = vld [vmem:[%s214 + $0x1090] sm:$0xff]
        %v765 = vld [vmem:[%s214 + $0x1098] sm:$0xff]
        %v766 = vld [vmem:[%s214 + $0x10a0] sm:$0xff]
        %v767 = vld [vmem:[%s214 + $0x10a8] sm:$0xff]
        %v768 = vld [vmem:[%s214 + $0x10b0] sm:$0xff]
        %v769 = vld [vmem:[%s214 + $0x10b8] sm:$0xff]
        %v770 = vld [vmem:[%s214 + $0x10c0] sm:$0xff]
        %v771 = vld [vmem:[%s214 + $0x10c8] sm:$0xff]
        %v772 = vld [vmem:[%s214 + $0x10d0] sm:$0xff]
        %v773 = vld [vmem:[%s214 + $0x10d8] sm:$0xff]
        %v774 = vld [vmem:[%s214 + $0x10e0] sm:$0xff]
        %v775 = vld [vmem:[%s214 + $0x10e8] sm:$0xff]
        %v776 = vld [vmem:[%s214 + $0x10f0] sm:$0xff]
        %v777 = vld [vmem:[%s214 + $0x10f8] sm:$0xff]
        %v778 = vld [vmem:[%s214 + $0x1100] sm:$0xff]
        %v779 = vld [vmem:[%s214 + $0x1108] sm:$0xff]
        %v780 = vld [vmem:[%s214 + $0x1110] sm:$0xff]
        %v781 = vld [vmem:[%s214 + $0x1118] sm:$0xff]
        %v782 = vld [vmem:[%s214 + $0x1120] sm:$0xff]
        %v783 = vld [vmem:[%s214 + $0x1128] sm:$0xff]
        %v784 = vld [vmem:[%s214 + $0x1130] sm:$0xff]
        %v785 = vld [vmem:[%s214 + $0x1138] sm:$0xff]
        %v786 = vld [vmem:[%s214 + $0x1140] sm:$0xff]
        %v787 = vld [vmem:[%s214 + $0x1148] sm:$0xff]
        %v788 = vld [vmem:[%s214 + $0x1150] sm:$0xff]
        %v789 = vld [vmem:[%s214 + $0x1158] sm:$0xff]
        %v790 = vld [vmem:[%s214 + $0x1160] sm:$0xff]
        %v791 = vld [vmem:[%s214 + $0x1168] sm:$0xff]
        %v792 = vld [vmem:[%s214 + $0x1170] sm:$0xff]
        %v793 = vld [vmem:[%s214 + $0x1178] sm:$0xff]
        %v794 = vld [vmem:[%s214 + $0x1180] sm:$0xff]
        %v795 = vld [vmem:[%s214 + $0x1188] sm:$0xff]
        %v796 = vld [vmem:[%s214 + $0x1190] sm:$0xff]
        %v797 = vld [vmem:[%s214 + $0x1198] sm:$0xff]
        %v798 = vld [vmem:[%s214 + $0x11a0] sm:$0xff]
        %v799 = vld [vmem:[%s214 + $0x11a8] sm:$0xff]
        %v800 = vld [vmem:[%s214 + $0x11b0] sm:$0xff]
        %v801 = vld [vmem:[%s214 + $0x11b8] sm:$0xff]
        %v802 = vld [vmem:[%s214 + $0x11c0] sm:$0xff]
        %v803 = vld [vmem:[%s214 + $0x11c8] sm:$0xff]
        %v804 = vld [vmem:[%s214 + $0x11d0] sm:$0xff]
        %v805 = vld [vmem:[%s214 + $0x11d8] sm:$0xff]
        %v806 = vld [vmem:[%s214 + $0x11e0] sm:$0xff]
        %v807 = vld [vmem:[%s214 + $0x11e8] sm:$0xff]
        %v808 = vld [vmem:[%s214 + $0x11f0] sm:$0xff]
        %v809 = vld [vmem:[%s214 + $0x11f8] sm:$0xff]
        %v810 = vld [vmem:[%s214 + $0x1200] sm:$0xff]
        %v811 = vld [vmem:[%s214 + $0x1208] sm:$0xff]
        %v812 = vld [vmem:[%s214 + $0x1210] sm:$0xff]
        %v813 = vld [vmem:[%s214 + $0x1218] sm:$0xff]
        %v814 = vld [vmem:[%s214 + $0x1220] sm:$0xff]
        %v815 = vld [vmem:[%s214 + $0x1228] sm:$0xff]
        %v816 = vld [vmem:[%s214 + $0x1230] sm:$0xff]
        %v817 = vld [vmem:[%s214 + $0x1238] sm:$0xff]
        %v818 = vld [vmem:[%s214 + $0x1240] sm:$0xff]
        %v819 = vld [vmem:[%s214 + $0x1248] sm:$0xff]
        %v820 = vld [vmem:[%s214 + $0x1250] sm:$0xff]
        %v821 = vld [vmem:[%s214 + $0x1258] sm:$0xff]
        %v822 = vld [vmem:[%s214 + $0x1260] sm:$0xff]
        %v823 = vld [vmem:[%s214 + $0x1268] sm:$0xff]
        %v824 = vld [vmem:[%s214 + $0x1270] sm:$0xff]
        %v825 = vld [vmem:[%s214 + $0x1278] sm:$0xff]
        %v826 = vld [vmem:[%s214 + $0x1280] sm:$0xff]
        %v827 = vld [vmem:[%s214 + $0x1288] sm:$0xff]
        %v828 = vld [vmem:[%s214 + $0x1290] sm:$0xff]
        %v829 = vld [vmem:[%s214 + $0x1298] sm:$0xff]
        %v830 = vld [vmem:[%s214 + $0x12a0] sm:$0xff]
        %v831 = vld [vmem:[%s214 + $0x12a8] sm:$0xff]
        %v832 = vld [vmem:[%s214 + $0x12b0] sm:$0xff]
        %v833 = vld [vmem:[%s214 + $0x12b8] sm:$0xff]
        %v834 = vld [vmem:[%s214 + $0x12c0] sm:$0xff]
        %v835 = vld [vmem:[%s214 + $0x12c8] sm:$0xff]
        %v836 = vld [vmem:[%s214 + $0x12d0] sm:$0xff]
        %v837 = vld [vmem:[%s214 + $0x12d8] sm:$0xff]
        %v838 = vld [vmem:[%s214 + $0x12e0] sm:$0xff]
        %v839 = vld [vmem:[%s214 + $0x12e8] sm:$0xff]
        %v840 = vld [vmem:[%s214 + $0x12f0] sm:$0xff]
        %v841 = vld [vmem:[%s214 + $0x12f8] sm:$0xff]
        %v842 = vld [vmem:[%s214 + $0x1300] sm:$0xff]
        %v843 = vld [vmem:[%s214 + $0x1308] sm:$0xff]
        %v844 = vld [vmem:[%s214 + $0x1310] sm:$0xff]
        %v845 = vld [vmem:[%s214 + $0x1318] sm:$0xff]
        %v846 = vld [vmem:[%s214 + $0x1320] sm:$0xff]
        %v847 = vld [vmem:[%s214 + $0x1328] sm:$0xff]
        %v848 = vld [vmem:[%s214 + $0x1330] sm:$0xff]
        %v849 = vld [vmem:[%s214 + $0x1338] sm:$0xff]
        %v850 = vld [vmem:[%s214 + $0x1340] sm:$0xff]
        %v851 = vld [vmem:[%s214 + $0x1348] sm:$0xff]
        %v852 = vld [vmem:[%s214 + $0x1350] sm:$0xff]
        %v853 = vld [vmem:[%s214 + $0x1358] sm:$0xff]
        %v854 = vld [vmem:[%s214 + $0x1360] sm:$0xff]
        %v855 = vld [vmem:[%s214 + $0x1368] sm:$0xff]
        %v856 = vld [vmem:[%s214 + $0x1370] sm:$0xff]
        %v857 = vld [vmem:[%s214 + $0x1378] sm:$0xff]
        %v858 = vld [vmem:[%s214 + $0x1380] sm:$0xff]
        %v859 = vld [vmem:[%s214 + $0x1388] sm:$0xff]
        %v860 = vld [vmem:[%s214 + $0x1390] sm:$0xff]
        %v861 = vld [vmem:[%s214 + $0x1398] sm:$0xff]
        %v862 = vld [vmem:[%s214 + $0x13a0] sm:$0xff]
        %v863 = vld [vmem:[%s214 + $0x13a8] sm:$0xff]
        %v864 = vld [vmem:[%s214 + $0x13b0] sm:$0xff]
        %v865 = vld [vmem:[%s214 + $0x13b8] sm:$0xff]
        %v866 = vld [vmem:[%s214 + $0x13c0] sm:$0xff]
        %v867 = vld [vmem:[%s214 + $0x13c8] sm:$0xff]
        %v868 = vld [vmem:[%s214 + $0x13d0] sm:$0xff]
        %v869 = vld [vmem:[%s214 + $0x13d8] sm:$0xff]
        %v870 = vld [vmem:[%s214 + $0x13e0] sm:$0xff]
        %v871 = vld [vmem:[%s214 + $0x13e8] sm:$0xff]
        %v872 = vld [vmem:[%s214 + $0x13f0] sm:$0xff]
        %v873 = vld [vmem:[%s214 + $0x13f8] sm:$0xff]
        %v874 = vld [vmem:[%s214 + $0x1400] sm:$0xff]
        %v875 = vld [vmem:[%s214 + $0x1408] sm:$0xff]
        %v876 = vld [vmem:[%s214 + $0x1410] sm:$0xff]
        %v877 = vld [vmem:[%s214 + $0x1418] sm:$0xff]
        %v878 = vld [vmem:[%s214 + $0x1420] sm:$0xff]
        %v879 = vld [vmem:[%s214 + $0x1428] sm:$0xff]
        %v880 = vld [vmem:[%s214 + $0x1430] sm:$0xff]
        %v881 = vld [vmem:[%s214 + $0x1438] sm:$0xff]
        %v882 = vld [vmem:[%s214 + $0x1440] sm:$0xff]
        %v883 = vld [vmem:[%s214 + $0x1448] sm:$0xff]
        %v884 = vld [vmem:[%s214 + $0x1450] sm:$0xff]
        %v885 = vld [vmem:[%s214 + $0x1458] sm:$0xff]
        %v886 = vld [vmem:[%s214 + $0x1460] sm:$0xff]
        %v887 = vld [vmem:[%s214 + $0x1468] sm:$0xff]
        %v888 = vld [vmem:[%s214 + $0x1470] sm:$0xff]
        %v889 = vld [vmem:[%s214 + $0x1478] sm:$0xff]
        %v890 = vld [vmem:[%s214 + $0x1480] sm:$0xff]
        %v891 = vld [vmem:[%s214 + $0x1488] sm:$0xff]
        %v892 = vld [vmem:[%s214 + $0x1490] sm:$0xff]
        %v893 = vld [vmem:[%s214 + $0x1498] sm:$0xff]
        %v894 = vld [vmem:[%s214 + $0x14a0] sm:$0xff]
        %v895 = vld [vmem:[%s214 + $0x14a8] sm:$0xff]
        %v896 = vld [vmem:[%s214 + $0x14b0] sm:$0xff]
        %v897 = vld [vmem:[%s214 + $0x14b8] sm:$0xff]
        %v898 = vld [vmem:[%s214 + $0x14c0] sm:$0xff]
        %v899 = vld [vmem:[%s214 + $0x14c8] sm:$0xff]
        %v900 = vld [vmem:[%s214 + $0x14d0] sm:$0xff]
        %v901 = vld [vmem:[%s214 + $0x14d8] sm:$0xff]
        %v902 = vld [vmem:[%s214 + $0x14e0] sm:$0xff]
        %v903 = vld [vmem:[%s214 + $0x14e8] sm:$0xff]
        %v904 = vld [vmem:[%s214 + $0x14f0] sm:$0xff]
        %v905 = vld [vmem:[%s214 + $0x14f8] sm:$0xff]
        %v906 = vld [vmem:[%s214 + $0x1500] sm:$0xff]
        %v907 = vld [vmem:[%s214 + $0x1508] sm:$0xff]
        %v908 = vld [vmem:[%s214 + $0x1510] sm:$0xff]
        %v909 = vld [vmem:[%s214 + $0x1518] sm:$0xff]
        %v910 = vld [vmem:[%s214 + $0x1520] sm:$0xff]
        %v911 = vld [vmem:[%s214 + $0x1528] sm:$0xff]
        %v912 = vld [vmem:[%s214 + $0x1530] sm:$0xff]
        %v913 = vld [vmem:[%s214 + $0x1538] sm:$0xff]
        %v914 = vld [vmem:[%s214 + $0x1540] sm:$0xff]
        %v915 = vld [vmem:[%s214 + $0x1548] sm:$0xff]
        %v916 = vld [vmem:[%s214 + $0x1550] sm:$0xff]
        %v917 = vld [vmem:[%s214 + $0x1558] sm:$0xff]
        %v918 = vld [vmem:[%s214 + $0x1560] sm:$0xff]
        %v919 = vld [vmem:[%s214 + $0x1568] sm:$0xff]
        %v920 = vld [vmem:[%s214 + $0x1570] sm:$0xff]
        %v921 = vld [vmem:[%s214 + $0x1578] sm:$0xff]
        %v922 = vld [vmem:[%s214 + $0x1580] sm:$0xff]
        %v923 = vld [vmem:[%s214 + $0x1588] sm:$0xff]
        %v924 = vld [vmem:[%s214 + $0x1590] sm:$0xff]
        %v925 = vld [vmem:[%s214 + $0x1598] sm:$0xff]
        %v926 = vld [vmem:[%s214 + $0x15a0] sm:$0xff]
        %v927 = vld [vmem:[%s214 + $0x15a8] sm:$0xff]
        %v928 = vld [vmem:[%s214 + $0x15b0] sm:$0xff]
        %v929 = vld [vmem:[%s214 + $0x15b8] sm:$0xff]
        %v930 = vld [vmem:[%s214 + $0x15c0] sm:$0xff]
        %v931 = vld [vmem:[%s214 + $0x15c8] sm:$0xff]
        %v932 = vld [vmem:[%s214 + $0x15d0] sm:$0xff]
        %v933 = vld [vmem:[%s214 + $0x15d8] sm:$0xff]
        %v934 = vld [vmem:[%s214 + $0x15e0] sm:$0xff]
        %v935 = vld [vmem:[%s214 + $0x15e8] sm:$0xff]
        %v936 = vld [vmem:[%s214 + $0x15f0] sm:$0xff]
        %v937 = vld [vmem:[%s214 + $0x15f8] sm:$0xff]
        %v938 = vld [vmem:[%s214 + $0x1600] sm:$0xff]
        %v939 = vld [vmem:[%s214 + $0x1608] sm:$0xff]
        %v940 = vld [vmem:[%s214 + $0x1610] sm:$0xff]
        %v941 = vld [vmem:[%s214 + $0x1618] sm:$0xff]
        %v942 = vld [vmem:[%s214 + $0x1620] sm:$0xff]
        %v943 = vld [vmem:[%s214 + $0x1628] sm:$0xff]
        %v944 = vld [vmem:[%s214 + $0x1630] sm:$0xff]
        %v945 = vld [vmem:[%s214 + $0x1638] sm:$0xff]
        %v946 = vld [vmem:[%s214 + $0x1640] sm:$0xff]
        %v947 = vld [vmem:[%s214 + $0x1648] sm:$0xff]
        %v948 = vld [vmem:[%s214 + $0x1650] sm:$0xff]
        %v949 = vld [vmem:[%s214 + $0x1658] sm:$0xff]
        %v950 = vld [vmem:[%s214 + $0x1660] sm:$0xff]
        %v951 = vld [vmem:[%s214 + $0x1668] sm:$0xff]
        %v952 = vld [vmem:[%s214 + $0x1670] sm:$0xff]
        %v953 = vld [vmem:[%s214 + $0x1678] sm:$0xff]
        %v954 = vld [vmem:[%s214 + $0x1680] sm:$0xff]
        %v955 = vld [vmem:[%s214 + $0x1688] sm:$0xff]
        %v956 = vld [vmem:[%s214 + $0x1690] sm:$0xff]
        %v957 = vld [vmem:[%s214 + $0x1698] sm:$0xff]
        %v958 = vld [vmem:[%s214 + $0x16a0] sm:$0xff]
        %v959 = vld [vmem:[%s214 + $0x16a8] sm:$0xff]
        %v960 = vld [vmem:[%s214 + $0x16b0] sm:$0xff]
        %v961 = vld [vmem:[%s214 + $0x16b8] sm:$0xff]
        %v962 = vld [vmem:[%s214 + $0x16c0] sm:$0xff]
        %v963 = vld [vmem:[%s214 + $0x16c8] sm:$0xff]
        %v964 = vld [vmem:[%s214 + $0x16d0] sm:$0xff]
        %v965 = vld [vmem:[%s214 + $0x16d8] sm:$0xff]
        %v966 = vld [vmem:[%s214 + $0x16e0] sm:$0xff]
        %v967 = vld [vmem:[%s214 + $0x16e8] sm:$0xff]
        %v968 = vld [vmem:[%s214 + $0x16f0] sm:$0xff]
        %v969 = vld [vmem:[%s214 + $0x16f8] sm:$0xff]
        %v970 = vld [vmem:[%s214 + $0x1700] sm:$0xff]
        %v971 = vld [vmem:[%s214 + $0x1708] sm:$0xff]
        %v972 = vld [vmem:[%s214 + $0x1710] sm:$0xff]
        %v973 = vld [vmem:[%s214 + $0x1718] sm:$0xff]
        %v974 = vld [vmem:[%s214 + $0x1720] sm:$0xff]
        %v975 = vld [vmem:[%s214 + $0x1728] sm:$0xff]
        %v976 = vld [vmem:[%s214 + $0x1730] sm:$0xff]
        %v977 = vld [vmem:[%s214 + $0x1738] sm:$0xff]
        %v978 = vld [vmem:[%s214 + $0x1740] sm:$0xff]
        %v979 = vld [vmem:[%s214 + $0x1748] sm:$0xff]
        %v980 = vld [vmem:[%s214 + $0x1750] sm:$0xff]
        %v981 = vld [vmem:[%s214 + $0x1758] sm:$0xff]
        %v982 = vld [vmem:[%s214 + $0x1760] sm:$0xff]
        %v983 = vld [vmem:[%s214 + $0x1768] sm:$0xff]
        %v984 = vld [vmem:[%s214 + $0x1770] sm:$0xff]
        %v985 = vld [vmem:[%s214 + $0x1778] sm:$0xff]
        %v986 = vld [vmem:[%s214 + $0x1780] sm:$0xff]
        %v987 = vld [vmem:[%s214 + $0x1788] sm:$0xff]
        %v988 = vld [vmem:[%s214 + $0x1790] sm:$0xff]
        %v989 = vld [vmem:[%s214 + $0x1798] sm:$0xff]
        %v990 = vld [vmem:[%s214 + $0x17a0] sm:$0xff]
        %v991 = vld [vmem:[%s214 + $0x17a8] sm:$0xff]
        %v992 = vld [vmem:[%s214 + $0x17b0] sm:$0xff]
        %v993 = vld [vmem:[%s214 + $0x17b8] sm:$0xff]
        %v994 = vld [vmem:[%s214 + $0x17c0] sm:$0xff]
        %v995 = vld [vmem:[%s214 + $0x17c8] sm:$0xff]
        %v996 = vld [vmem:[%s214 + $0x17d0] sm:$0xff]
        %v997 = vld [vmem:[%s214 + $0x17d8] sm:$0xff]
        %v998 = vld [vmem:[%s214 + $0x17e0] sm:$0xff]
        %v999 = vld [vmem:[%s214 + $0x17e8] sm:$0xff]
        %v1000 = vld [vmem:[%s214 + $0x17f0] sm:$0xff]
        %v1001 = vld [vmem:[%s214 + $0x17f8] sm:$0xff]
        %v1002 = vld [vmem:[%s214 + $0x1800] sm:$0xff]
        %v1003 = vld [vmem:[%s214 + $0x1808] sm:$0xff]
        %v1004 = vld [vmem:[%s214 + $0x1810] sm:$0xff]
        %v1005 = vld [vmem:[%s214 + $0x1818] sm:$0xff]
        %v1006 = vld [vmem:[%s214 + $0x1820] sm:$0xff]
        %v1007 = vld [vmem:[%s214 + $0x1828] sm:$0xff]
        %v1008 = vld [vmem:[%s214 + $0x1830] sm:$0xff]
        %v1009 = vld [vmem:[%s214 + $0x1838] sm:$0xff]
        %v1010 = vld [vmem:[%s214 + $0x1840] sm:$0xff]
        %v1011 = vld [vmem:[%s214 + $0x1848] sm:$0xff]
        %v1012 = vld [vmem:[%s214 + $0x1850] sm:$0xff]
        %v1013 = vld [vmem:[%s214 + $0x1858] sm:$0xff]
        %v1014 = vld [vmem:[%s214 + $0x1860] sm:$0xff]
        %v1015 = vld [vmem:[%s214 + $0x1868] sm:$0xff]
        %v1016 = vld [vmem:[%s214 + $0x1870] sm:$0xff]
        %v1017 = vld [vmem:[%s214 + $0x1878] sm:$0xff]
        %v1018 = vld [vmem:[%s214 + $0x1880] sm:$0xff]
        %v1019 = vld [vmem:[%s214 + $0x1888] sm:$0xff]
        %v1020 = vld [vmem:[%s214 + $0x1890] sm:$0xff]
        %v1021 = vld [vmem:[%s214 + $0x1898] sm:$0xff]
        %v1022 = vld [vmem:[%s214 + $0x18a0] sm:$0xff]
        %v1023 = vld [vmem:[%s214 + $0x18a8] sm:$0xff]
        %v1024 = vld [vmem:[%s214 + $0x18b0] sm:$0xff]
        %v1025 = vld [vmem:[%s214 + $0x18b8] sm:$0xff]
        %v1026 = vld [vmem:[%s214 + $0x18c0] sm:$0xff]
        %v1027 = vld [vmem:[%s214 + $0x18c8] sm:$0xff]
        %v1028 = vld [vmem:[%s214 + $0x18d0] sm:$0xff]
        %v1029 = vld [vmem:[%s214 + $0x18d8] sm:$0xff]
        %v1030 = vld [vmem:[%s214 + $0x18e0] sm:$0xff]
        %v1031 = vld [vmem:[%s214 + $0x18e8] sm:$0xff]
        %v1032 = vld [vmem:[%s214 + $0x18f0] sm:$0xff]
        %v1033 = vld [vmem:[%s214 + $0x18f8] sm:$0xff]
        %v1034 = vld [vmem:[%s214 + $0x1900] sm:$0xff]
        %v1035 = vld [vmem:[%s214 + $0x1908] sm:$0xff]
        %v1036 = vld [vmem:[%s214 + $0x1910] sm:$0xff]
        %v1037 = vld [vmem:[%s214 + $0x1918] sm:$0xff]
        %v1038 = vld [vmem:[%s214 + $0x1920] sm:$0xff]
        %v1039 = vld [vmem:[%s214 + $0x1928] sm:$0xff]
        %v1040 = vld [vmem:[%s214 + $0x1930] sm:$0xff]
        %v1041 = vld [vmem:[%s214 + $0x1938] sm:$0xff]
        %v1042 = vld [vmem:[%s214 + $0x1940] sm:$0xff]
        %v1043 = vld [vmem:[%s214 + $0x1948] sm:$0xff]
        %v1044 = vld [vmem:[%s214 + $0x1950] sm:$0xff]
        %v1045 = vld [vmem:[%s214 + $0x1958] sm:$0xff]
        %v1046 = vld [vmem:[%s214 + $0x1960] sm:$0xff]
        %v1047 = vld [vmem:[%s214 + $0x1968] sm:$0xff]
        %v1048 = vld [vmem:[%s214 + $0x1970] sm:$0xff]
        %v1049 = vld [vmem:[%s214 + $0x1978] sm:$0xff]
        %v1050 = vld [vmem:[%s214 + $0x1980] sm:$0xff]
        %v1051 = vld [vmem:[%s214 + $0x1988] sm:$0xff]
        %v1052 = vld [vmem:[%s214 + $0x1990] sm:$0xff]
        %v1053 = vld [vmem:[%s214 + $0x1998] sm:$0xff]
        %v1054 = vld [vmem:[%s214 + $0x19a0] sm:$0xff]
        %v1055 = vld [vmem:[%s214 + $0x19a8] sm:$0xff]
        %v1056 = vld [vmem:[%s214 + $0x19b0] sm:$0xff]
        %v1057 = vld [vmem:[%s214 + $0x19b8] sm:$0xff]
        %v1058 = vld [vmem:[%s214 + $0x19c0] sm:$0xff]
        %v1059 = vld [vmem:[%s214 + $0x19c8] sm:$0xff]
        %v1060 = vld [vmem:[%s214 + $0x19d0] sm:$0xff]
        %v1061 = vld [vmem:[%s214 + $0x19d8] sm:$0xff]
        %v1062 = vld [vmem:[%s214 + $0x19e0] sm:$0xff]
        %v1063 = vld [vmem:[%s214 + $0x19e8] sm:$0xff]
        %v1064 = vld [vmem:[%s214 + $0x19f0] sm:$0xff]
        %v1065 = vld [vmem:[%s214 + $0x19f8] sm:$0xff]
        %v1066 = vld [vmem:[%s214 + $0x1a00] sm:$0xff]
        %v1067 = vld [vmem:[%s214 + $0x1a08] sm:$0xff]
        %v1068 = vld [vmem:[%s214 + $0x1a10] sm:$0xff]
        %v1069 = vld [vmem:[%s214 + $0x1a18] sm:$0xff]
        %v1070 = vld [vmem:[%s214 + $0x1a20] sm:$0xff]
        %v1071 = vld [vmem:[%s214 + $0x1a28] sm:$0xff]
        %v1072 = vld [vmem:[%s214 + $0x1a30] sm:$0xff]
        %v1073 = vld [vmem:[%s214 + $0x1a38] sm:$0xff]
        %v1074 = vld [vmem:[%s214 + $0x1a40] sm:$0xff]
        %v1075 = vld [vmem:[%s214 + $0x1a48] sm:$0xff]
        %v1076 = vld [vmem:[%s214 + $0x1a50] sm:$0xff]
        %v1077 = vld [vmem:[%s214 + $0x1a58] sm:$0xff]
        %v1078 = vld [vmem:[%s214 + $0x1a60] sm:$0xff]
        %v1079 = vld [vmem:[%s214 + $0x1a68] sm:$0xff]
        %v1080 = vld [vmem:[%s214 + $0x1a70] sm:$0xff]
        %v1081 = vld [vmem:[%s214 + $0x1a78] sm:$0xff]
        %v1082 = vld [vmem:[%s214 + $0x1a80] sm:$0xff]
        %v1083 = vld [vmem:[%s214 + $0x1a88] sm:$0xff]
        %v1084 = vld [vmem:[%s214 + $0x1a90] sm:$0xff]
        %v1085 = vld [vmem:[%s214 + $0x1a98] sm:$0xff]
        %v1086 = vld [vmem:[%s214 + $0x1aa0] sm:$0xff]
        %v1087 = vld [vmem:[%s214 + $0x1aa8] sm:$0xff]
        %v1088 = vld [vmem:[%s214 + $0x1ab0] sm:$0xff]
        %v1089 = vld [vmem:[%s214 + $0x1ab8] sm:$0xff]
        %v1090 = vld [vmem:[%s214 + $0x1ac0] sm:$0xff]
        %v1091 = vld [vmem:[%s214 + $0x1ac8] sm:$0xff]
        %v1092 = vld [vmem:[%s214 + $0x1ad0] sm:$0xff]
        %v1093 = vld [vmem:[%s214 + $0x1ad8] sm:$0xff]
        %v1094 = vld [vmem:[%s214 + $0x1ae0] sm:$0xff]
        %v1095 = vld [vmem:[%s214 + $0x1ae8] sm:$0xff]
        %v1096 = vld [vmem:[%s214 + $0x1af0] sm:$0xff]
        %v1097 = vld [vmem:[%s214 + $0x1af8] sm:$0xff]
        %v1098 = vld [vmem:[%s214 + $0x1b00] sm:$0xff]
        %v1099 = vld [vmem:[%s214 + $0x1b08] sm:$0xff]
        %v1100 = vld [vmem:[%s214 + $0x1b10] sm:$0xff]
        %v1101 = vld [vmem:[%s214 + $0x1b18] sm:$0xff]
        %v1102 = vld [vmem:[%s214 + $0x1b20] sm:$0xff]
        %v1103 = vld [vmem:[%s214 + $0x1b28] sm:$0xff]
        %v1104 = vld [vmem:[%s214 + $0x1b30] sm:$0xff]
        %v1105 = vld [vmem:[%s214 + $0x1b38] sm:$0xff]
        %v1106 = vld [vmem:[%s214 + $0x1b40] sm:$0xff]
        %v1107 = vld [vmem:[%s214 + $0x1b48] sm:$0xff]
        %v1108 = vld [vmem:[%s214 + $0x1b50] sm:$0xff]
        %v1109 = vld [vmem:[%s214 + $0x1b58] sm:$0xff]
        %v1110 = vld [vmem:[%s214 + $0x1b60] sm:$0xff]
        %v1111 = vld [vmem:[%s214 + $0x1b68] sm:$0xff]
        %v1112 = vld [vmem:[%s214 + $0x1b70] sm:$0xff]
        %v1113 = vld [vmem:[%s214 + $0x1b78] sm:$0xff]
        %v1114 = vld [vmem:[%s214 + $0x1b80] sm:$0xff]
        %v1115 = vld [vmem:[%s214 + $0x1b88] sm:$0xff]
        %v1116 = vld [vmem:[%s214 + $0x1b90] sm:$0xff]
        %v1117 = vld [vmem:[%s214 + $0x1b98] sm:$0xff]
        %v1118 = vld [vmem:[%s214 + $0x1ba0] sm:$0xff]
        %v1119 = vld [vmem:[%s214 + $0x1ba8] sm:$0xff]
        %v1120 = vld [vmem:[%s214 + $0x1bb0] sm:$0xff]
        %v1121 = vld [vmem:[%s214 + $0x1bb8] sm:$0xff]
        %v1122 = vld [vmem:[%s214 + $0x1bc0] sm:$0xff]
        %v1123 = vld [vmem:[%s214 + $0x1bc8] sm:$0xff]
        %v1124 = vld [vmem:[%s214 + $0x1bd0] sm:$0xff]
        %v1125 = vld [vmem:[%s214 + $0x1bd8] sm:$0xff]
        %v1126 = vld [vmem:[%s214 + $0x1be0] sm:$0xff]
        %v1127 = vld [vmem:[%s214 + $0x1be8] sm:$0xff]
        %v1128 = vld [vmem:[%s214 + $0x1bf0] sm:$0xff]
        %v1129 = vld [vmem:[%s214 + $0x1bf8] sm:$0xff]
        %v1130 = vld [vmem:[%s214 + $0x1c00] sm:$0xff]
        %v1131 = vld [vmem:[%s214 + $0x1c08] sm:$0xff]
        %v1132 = vld [vmem:[%s214 + $0x1c10] sm:$0xff]
        %v1133 = vld [vmem:[%s214 + $0x1c18] sm:$0xff]
        %v1134 = vld [vmem:[%s214 + $0x1c20] sm:$0xff]
        %v1135 = vld [vmem:[%s214 + $0x1c28] sm:$0xff]
        %v1136 = vld [vmem:[%s214 + $0x1c30] sm:$0xff]
        %v1137 = vld [vmem:[%s214 + $0x1c38] sm:$0xff]
        %v1138 = vld [vmem:[%s214 + $0x1c40] sm:$0xff]
        %v1139 = vld [vmem:[%s214 + $0x1c48] sm:$0xff]
        %v1140 = vld [vmem:[%s214 + $0x1c50] sm:$0xff]
        %v1141 = vld [vmem:[%s214 + $0x1c58] sm:$0xff]
        %v1142 = vld [vmem:[%s214 + $0x1c60] sm:$0xff]
        %v1143 = vld [vmem:[%s214 + $0x1c68] sm:$0xff]
        %v1144 = vld [vmem:[%s214 + $0x1c70] sm:$0xff]
        %v1145 = vld [vmem:[%s214 + $0x1c78] sm:$0xff]
        %v1146 = vld [vmem:[%s214 + $0x1c80] sm:$0xff]
        %v1147 = vld [vmem:[%s214 + $0x1c88] sm:$0xff]
        %v1148 = vld [vmem:[%s214 + $0x1c90] sm:$0xff]
        %v1149 = vld [vmem:[%s214 + $0x1c98] sm:$0xff]
        %v1150 = vld [vmem:[%s214 + $0x1ca0] sm:$0xff]
        %v1151 = vld [vmem:[%s214 + $0x1ca8] sm:$0xff]
        %v1152 = vld [vmem:[%s214 + $0x1cb0] sm:$0xff]
        %v1153 = vld [vmem:[%s214 + $0x1cb8] sm:$0xff]
        %v1154 = vld [vmem:[%s214 + $0x1cc0] sm:$0xff]
        %v1155 = vld [vmem:[%s214 + $0x1cc8] sm:$0xff]
        %v1156 = vld [vmem:[%s214 + $0x1cd0] sm:$0xff]
        %v1157 = vld [vmem:[%s214 + $0x1cd8] sm:$0xff]
        %v1158 = vld [vmem:[%s214 + $0x1ce0] sm:$0xff]
        %v1159 = vld [vmem:[%s214 + $0x1ce8] sm:$0xff]
        %v1160 = vld [vmem:[%s214 + $0x1cf0] sm:$0xff]
        %v1161 = vld [vmem:[%s214 + $0x1cf8] sm:$0xff]
        %v1162 = vld [vmem:[%s214 + $0x1d00] sm:$0xff]
        %v1163 = vld [vmem:[%s214 + $0x1d08] sm:$0xff]
        %v1164 = vld [vmem:[%s214 + $0x1d10] sm:$0xff]
        %v1165 = vld [vmem:[%s214 + $0x1d18] sm:$0xff]
        %v1166 = vld [vmem:[%s214 + $0x1d20] sm:$0xff]
        %v1167 = vld [vmem:[%s214 + $0x1d28] sm:$0xff]
        %v1168 = vld [vmem:[%s214 + $0x1d30] sm:$0xff]
        %v1169 = vld [vmem:[%s214 + $0x1d38] sm:$0xff]
        %v1170 = vld [vmem:[%s214 + $0x1d40] sm:$0xff]
        %v1171 = vld [vmem:[%s214 + $0x1d48] sm:$0xff]
        %v1172 = vld [vmem:[%s214 + $0x1d50] sm:$0xff]
        %v1173 = vld [vmem:[%s214 + $0x1d58] sm:$0xff]
        %v1174 = vld [vmem:[%s214 + $0x1d60] sm:$0xff]
        %v1175 = vld [vmem:[%s214 + $0x1d68] sm:$0xff]
        %v1176 = vld [vmem:[%s214 + $0x1d70] sm:$0xff]
        %v1177 = vld [vmem:[%s214 + $0x1d78] sm:$0xff]
        %v1178 = vld [vmem:[%s214 + $0x1d80] sm:$0xff]
        %v1179 = vld [vmem:[%s214 + $0x1d88] sm:$0xff]
        %v1180 = vld [vmem:[%s214 + $0x1d90] sm:$0xff]
        %v1181 = vld [vmem:[%s214 + $0x1d98] sm:$0xff]
        %v1182 = vld [vmem:[%s214 + $0x1da0] sm:$0xff]
        %v1183 = vld [vmem:[%s214 + $0x1da8] sm:$0xff]
        %v1184 = vld [vmem:[%s214 + $0x1db0] sm:$0xff]
        %v1185 = vld [vmem:[%s214 + $0x1db8] sm:$0xff]
        %v1186 = vld [vmem:[%s214 + $0x1dc0] sm:$0xff]
        %v1187 = vld [vmem:[%s214 + $0x1dc8] sm:$0xff]
        %v1188 = vld [vmem:[%s214 + $0x1dd0] sm:$0xff]
        %v1189 = vld [vmem:[%s214 + $0x1dd8] sm:$0xff]
        %v1190 = vld [vmem:[%s214 + $0x1de0] sm:$0xff]
        %v1191 = vld [vmem:[%s214 + $0x1de8] sm:$0xff]
        %v1192 = vld [vmem:[%s214 + $0x1df0] sm:$0xff]
        %v1193 = vld [vmem:[%s214 + $0x1df8] sm:$0xff]
        %v1202 = vcombine.high %v225, %v225
        %v1204 = vunpack.c.l.s4 1966171168
        %v1205 = vunpack.c.0.s8 %v1204
        %v1206 = vlaneseq
        %v1207 = vshrl.u32 %v1206, 7
        %v1208 = vsub.s32 %v1205, %v1207
        %v1209 = vrot.slane %v225, %v1208
        %v1211 = vunpack.c.l.s4 1966171168
        %v1212 = vunpack.c.0.s8 %v1211
        %v1213 = vlaneseq
        %v1214 = vshrl.u32 %v1213, 7
        %v1215 = vsub.s32 %v1212, %v1214
        %v1216 = vrot.slane %v1202, %v1215
        %v1217 = vcombine.high %v1209, %v1209
        %v1218 = vcombine.high %v1216, %v1216
        %v1220 = vunpack.c.l.s4 1966171168
        %v1221 = vunpack.c.0.s8 %v1220
        %v1222 = vlaneseq
        %v1223 = vshrl.u32 %v1222, 7
        %v1224 = vsub.s32 %v1221, %v1223
        %v1225 = vrot.slane %v1209, %v1224
        %v1227 = vunpack.c.l.s4 1966171168
        %v1228 = vunpack.c.0.s8 %v1227
        %v1229 = vlaneseq
        %v1230 = vshrl.u32 %v1229, 7
        %v1231 = vsub.s32 %v1228, %v1230
        %v1232 = vrot.slane %v1216, %v1231
        %v1234 = vunpack.c.l.s4 1966171168
        %v1235 = vunpack.c.0.s8 %v1234
        %v1236 = vlaneseq
        %v1237 = vshrl.u32 %v1236, 7
        %v1238 = vsub.s32 %v1235, %v1237
        %v1239 = vrot.slane %v1217, %v1238
        %v1241 = vunpack.c.l.s4 1966171168
        %v1242 = vunpack.c.0.s8 %v1241
        %v1243 = vlaneseq
        %v1244 = vshrl.u32 %v1243, 7
        %v1245 = vsub.s32 %v1242, %v1244
        %v1246 = vrot.slane %v1218, %v1245
        %v1247 = vcombine.high %v1225, %v1225
        %v1248 = vcombine.high %v1232, %v1232
        %v1249 = vcombine.high %v1239, %v1239
        %v1250 = vcombine.high %v1246, %v1246
        %v1251 = vcombine.high %v226, %v226
        %v1253 = vunpack.c.l.s4 1966171168
        %v1254 = vunpack.c.0.s8 %v1253
        %v1255 = vlaneseq
        %v1256 = vshrl.u32 %v1255, 7
        %v1257 = vsub.s32 %v1254, %v1256
        %v1258 = vrot.slane %v226, %v1257
        %v1260 = vunpack.c.l.s4 1966171168
        %v1261 = vunpack.c.0.s8 %v1260
        %v1262 = vlaneseq
        %v1263 = vshrl.u32 %v1262, 7
        %v1264 = vsub.s32 %v1261, %v1263
        %v1265 = vrot.slane %v1251, %v1264
        %v1266 = vcombine.high %v1258, %v1258
        %v1267 = vcombine.high %v1265, %v1265
        %v1269 = vunpack.c.l.s4 1966171168
        %v1270 = vunpack.c.0.s8 %v1269
        %v1271 = vlaneseq
        %v1272 = vshrl.u32 %v1271, 7
        %v1273 = vsub.s32 %v1270, %v1272
        %v1274 = vrot.slane %v1258, %v1273
        %v1276 = vunpack.c.l.s4 1966171168
        %v1277 = vunpack.c.0.s8 %v1276
        %v1278 = vlaneseq
        %v1279 = vshrl.u32 %v1278, 7
        %v1280 = vsub.s32 %v1277, %v1279
        %v1281 = vrot.slane %v1265, %v1280
        %v1283 = vunpack.c.l.s4 1966171168
        %v1284 = vunpack.c.0.s8 %v1283
        %v1285 = vlaneseq
        %v1286 = vshrl.u32 %v1285, 7
        %v1287 = vsub.s32 %v1284, %v1286
        %v1288 = vrot.slane %v1266, %v1287
        %v1290 = vunpack.c.l.s4 1966171168
        %v1291 = vunpack.c.0.s8 %v1290
        %v1292 = vlaneseq
        %v1293 = vshrl.u32 %v1292, 7
        %v1294 = vsub.s32 %v1291, %v1293
        %v1295 = vrot.slane %v1267, %v1294
        %v1296 = vcombine.high %v1274, %v1274
        %v1297 = vcombine.high %v1281, %v1281
        %v1298 = vcombine.high %v1288, %v1288
        %v1299 = vcombine.high %v1295, %v1295
        %v1300 = vcombine.high %v227, %v227
        %v1302 = vunpack.c.l.s4 1966171168
        %v1303 = vunpack.c.0.s8 %v1302
        %v1304 = vlaneseq
        %v1305 = vshrl.u32 %v1304, 7
        %v1306 = vsub.s32 %v1303, %v1305
        %v1307 = vrot.slane %v227, %v1306
        %v1309 = vunpack.c.l.s4 1966171168
        %v1310 = vunpack.c.0.s8 %v1309
        %v1311 = vlaneseq
        %v1312 = vshrl.u32 %v1311, 7
        %v1313 = vsub.s32 %v1310, %v1312
        %v1314 = vrot.slane %v1300, %v1313
        %v1315 = vcombine.high %v1307, %v1307
        %v1316 = vcombine.high %v1314, %v1314
        %v1318 = vunpack.c.l.s4 1966171168
        %v1319 = vunpack.c.0.s8 %v1318
        %v1320 = vlaneseq
        %v1321 = vshrl.u32 %v1320, 7
        %v1322 = vsub.s32 %v1319, %v1321
        %v1323 = vrot.slane %v1307, %v1322
        %v1325 = vunpack.c.l.s4 1966171168
        %v1326 = vunpack.c.0.s8 %v1325
        %v1327 = vlaneseq
        %v1328 = vshrl.u32 %v1327, 7
        %v1329 = vsub.s32 %v1326, %v1328
        %v1330 = vrot.slane %v1314, %v1329
        %v1332 = vunpack.c.l.s4 1966171168
        %v1333 = vunpack.c.0.s8 %v1332
        %v1334 = vlaneseq
        %v1335 = vshrl.u32 %v1334, 7
        %v1336 = vsub.s32 %v1333, %v1335
        %v1337 = vrot.slane %v1315, %v1336
        %v1339 = vunpack.c.l.s4 1966171168
        %v1340 = vunpack.c.0.s8 %v1339
        %v1341 = vlaneseq
        %v1342 = vshrl.u32 %v1341, 7
        %v1343 = vsub.s32 %v1340, %v1342
        %v1344 = vrot.slane %v1316, %v1343
        %v1345 = vcombine.high %v1323, %v1323
        %v1346 = vcombine.high %v1330, %v1330
        %v1347 = vcombine.high %v1337, %v1337
        %v1348 = vcombine.high %v1344, %v1344
        %v1349 = vcombine.high %v228, %v228
        %v1351 = vunpack.c.l.s4 1966171168
        %v1352 = vunpack.c.0.s8 %v1351
        %v1353 = vlaneseq
        %v1354 = vshrl.u32 %v1353, 7
        %v1355 = vsub.s32 %v1352, %v1354
        %v1356 = vrot.slane %v228, %v1355
        %v1358 = vunpack.c.l.s4 1966171168
        %v1359 = vunpack.c.0.s8 %v1358
        %v1360 = vlaneseq
        %v1361 = vshrl.u32 %v1360, 7
        %v1362 = vsub.s32 %v1359, %v1361
        %v1363 = vrot.slane %v1349, %v1362
        %v1364 = vcombine.high %v1356, %v1356
        %v1365 = vcombine.high %v1363, %v1363
        %v1367 = vunpack.c.l.s4 1966171168
        %v1368 = vunpack.c.0.s8 %v1367
        %v1369 = vlaneseq
        %v1370 = vshrl.u32 %v1369, 7
        %v1371 = vsub.s32 %v1368, %v1370
        %v1372 = vrot.slane %v1356, %v1371
        %v1374 = vunpack.c.l.s4 1966171168
        %v1375 = vunpack.c.0.s8 %v1374
        %v1376 = vlaneseq
        %v1377 = vshrl.u32 %v1376, 7
        %v1378 = vsub.s32 %v1375, %v1377
        %v1379 = vrot.slane %v1363, %v1378
        %v1381 = vunpack.c.l.s4 1966171168
        %v1382 = vunpack.c.0.s8 %v1381
        %v1383 = vlaneseq
        %v1384 = vshrl.u32 %v1383, 7
        %v1385 = vsub.s32 %v1382, %v1384
        %v1386 = vrot.slane %v1364, %v1385
        %v1388 = vunpack.c.l.s4 1966171168
        %v1389 = vunpack.c.0.s8 %v1388
        %v1390 = vlaneseq
        %v1391 = vshrl.u32 %v1390, 7
        %v1392 = vsub.s32 %v1389, %v1391
        %v1393 = vrot.slane %v1365, %v1392
        %v1394 = vcombine.high %v1372, %v1372
        %v1395 = vcombine.high %v1379, %v1379
        %v1396 = vcombine.high %v1386, %v1386
        %v1397 = vcombine.high %v1393, %v1393
        %v1398 = vcombine.high %v229, %v229
        %v1400 = vunpack.c.l.s4 1966171168
        %v1401 = vunpack.c.0.s8 %v1400
        %v1402 = vlaneseq
        %v1403 = vshrl.u32 %v1402, 7
        %v1404 = vsub.s32 %v1401, %v1403
        %v1405 = vrot.slane %v229, %v1404
        %v1407 = vunpack.c.l.s4 1966171168
        %v1408 = vunpack.c.0.s8 %v1407
        %v1409 = vlaneseq
        %v1410 = vshrl.u32 %v1409, 7
        %v1411 = vsub.s32 %v1408, %v1410
        %v1412 = vrot.slane %v1398, %v1411
        %v1413 = vcombine.high %v1405, %v1405
        %v1414 = vcombine.high %v1412, %v1412
        %v1416 = vunpack.c.l.s4 1966171168
        %v1417 = vunpack.c.0.s8 %v1416
        %v1418 = vlaneseq
        %v1419 = vshrl.u32 %v1418, 7
        %v1420 = vsub.s32 %v1417, %v1419
        %v1421 = vrot.slane %v1405, %v1420
        %v1423 = vunpack.c.l.s4 1966171168
        %v1424 = vunpack.c.0.s8 %v1423
        %v1425 = vlaneseq
        %v1426 = vshrl.u32 %v1425, 7
        %v1427 = vsub.s32 %v1424, %v1426
        %v1428 = vrot.slane %v1412, %v1427
        %v1430 = vunpack.c.l.s4 1966171168
        %v1431 = vunpack.c.0.s8 %v1430
        %v1432 = vlaneseq
        %v1433 = vshrl.u32 %v1432, 7
        %v1434 = vsub.s32 %v1431, %v1433
        %v1435 = vrot.slane %v1413, %v1434
        %v1437 = vunpack.c.l.s4 1966171168
        %v1438 = vunpack.c.0.s8 %v1437
        %v1439 = vlaneseq
        %v1440 = vshrl.u32 %v1439, 7
        %v1441 = vsub.s32 %v1438, %v1440
        %v1442 = vrot.slane %v1414, %v1441
        %v1443 = vcombine.high %v1421, %v1421
        %v1444 = vcombine.high %v1428, %v1428
        %v1445 = vcombine.high %v1435, %v1435
        %v1446 = vcombine.high %v1442, %v1442
        %v1447 = vcombine.high %v230, %v230
        %v1449 = vunpack.c.l.s4 1966171168
        %v1450 = vunpack.c.0.s8 %v1449
        %v1451 = vlaneseq
        %v1452 = vshrl.u32 %v1451, 7
        %v1453 = vsub.s32 %v1450, %v1452
        %v1454 = vrot.slane %v230, %v1453
        %v1456 = vunpack.c.l.s4 1966171168
        %v1457 = vunpack.c.0.s8 %v1456
        %v1458 = vlaneseq
        %v1459 = vshrl.u32 %v1458, 7
        %v1460 = vsub.s32 %v1457, %v1459
        %v1461 = vrot.slane %v1447, %v1460
        %v1462 = vcombine.high %v1454, %v1454
        %v1463 = vcombine.high %v1461, %v1461
        %v1465 = vunpack.c.l.s4 1966171168
        %v1466 = vunpack.c.0.s8 %v1465
        %v1467 = vlaneseq
        %v1468 = vshrl.u32 %v1467, 7
        %v1469 = vsub.s32 %v1466, %v1468
        %v1470 = vrot.slane %v1454, %v1469
        %v1472 = vunpack.c.l.s4 1966171168
        %v1473 = vunpack.c.0.s8 %v1472
        %v1474 = vlaneseq
        %v1475 = vshrl.u32 %v1474, 7
        %v1476 = vsub.s32 %v1473, %v1475
        %v1477 = vrot.slane %v1461, %v1476
        %v1479 = vunpack.c.l.s4 1966171168
        %v1480 = vunpack.c.0.s8 %v1479
        %v1481 = vlaneseq
        %v1482 = vshrl.u32 %v1481, 7
        %v1483 = vsub.s32 %v1480, %v1482
        %v1484 = vrot.slane %v1462, %v1483
        %v1486 = vunpack.c.l.s4 1966171168
        %v1487 = vunpack.c.0.s8 %v1486
        %v1488 = vlaneseq
        %v1489 = vshrl.u32 %v1488, 7
        %v1490 = vsub.s32 %v1487, %v1489
        %v1491 = vrot.slane %v1463, %v1490
        %v1492 = vcombine.high %v1470, %v1470
        %v1493 = vcombine.high %v1477, %v1477
        %v1494 = vcombine.high %v1484, %v1484
        %v1495 = vcombine.high %v1491, %v1491
        %v1496 = vcombine.high %v231, %v231
        %v1498 = vunpack.c.l.s4 1966171168
        %v1499 = vunpack.c.0.s8 %v1498
        %v1500 = vlaneseq
        %v1501 = vshrl.u32 %v1500, 7
        %v1502 = vsub.s32 %v1499, %v1501
        %v1503 = vrot.slane %v231, %v1502
        %v1505 = vunpack.c.l.s4 1966171168
        %v1506 = vunpack.c.0.s8 %v1505
        %v1507 = vlaneseq
        %v1508 = vshrl.u32 %v1507, 7
        %v1509 = vsub.s32 %v1506, %v1508
        %v1510 = vrot.slane %v1496, %v1509
        %v1511 = vcombine.high %v1503, %v1503
        %v1512 = vcombine.high %v1510, %v1510
        %v1514 = vunpack.c.l.s4 1966171168
        %v1515 = vunpack.c.0.s8 %v1514
        %v1516 = vlaneseq
        %v1517 = vshrl.u32 %v1516, 7
        %v1518 = vsub.s32 %v1515, %v1517
        %v1519 = vrot.slane %v1503, %v1518
        %v1521 = vunpack.c.l.s4 1966171168
        %v1522 = vunpack.c.0.s8 %v1521
        %v1523 = vlaneseq
        %v1524 = vshrl.u32 %v1523, 7
        %v1525 = vsub.s32 %v1522, %v1524
        %v1526 = vrot.slane %v1510, %v1525
        %v1528 = vunpack.c.l.s4 1966171168
        %v1529 = vunpack.c.0.s8 %v1528
        %v1530 = vlaneseq
        %v1531 = vshrl.u32 %v1530, 7
        %v1532 = vsub.s32 %v1529, %v1531
        %v1533 = vrot.slane %v1511, %v1532
        %v1535 = vunpack.c.l.s4 1966171168
        %v1536 = vunpack.c.0.s8 %v1535
        %v1537 = vlaneseq
        %v1538 = vshrl.u32 %v1537, 7
        %v1539 = vsub.s32 %v1536, %v1538
        %v1540 = vrot.slane %v1512, %v1539
        %v1541 = vcombine.high %v1519, %v1519
        %v1542 = vcombine.high %v1526, %v1526
        %v1543 = vcombine.high %v1533, %v1533
        %v1544 = vcombine.high %v1540, %v1540
        %v1546 = vunpack.c.l.s4 1966171168
        %v1547 = vunpack.c.0.s8 %v1546
        %v1548 = vlaneseq
        %v1549 = vshrl.u32 %v1548, 7
        %v1550 = vsub.s32 %v1547, %v1549
        %v1551 = vrot.slane %v232, %v1550
        %v1552 = vcombine.high %v1551, %v1551
        %v1554 = vunpack.c.l.s4 1966171168
        %v1555 = vunpack.c.0.s8 %v1554
        %v1556 = vlaneseq
        %v1557 = vshrl.u32 %v1556, 7
        %v1558 = vsub.s32 %v1555, %v1557
        %v1559 = vrot.slane %v1551, %v1558
        %v1561 = vunpack.c.l.s4 1966171168
        %v1562 = vunpack.c.0.s8 %v1561
        %v1563 = vlaneseq
        %v1564 = vshrl.u32 %v1563, 7
        %v1565 = vsub.s32 %v1562, %v1564
        %v1566 = vrot.slane %v1552, %v1565
        %v1567 = vcombine.high %v1559, %v1559
        %v1568 = vcombine.high %v1566, %v1566
        %v2589 = vunpack.c.l.b16 %v234
        %v2590 = vunpack.c.h.b16 %v234
        %v2591 = vunpack.c.l.b16 %v235
        %v2592 = vunpack.c.h.b16 %v235
        %v2593 = vunpack.c.l.b16 %v236
        %v2594 = vunpack.c.h.b16 %v236
        %v2595 = vunpack.c.l.b16 %v237
        %v2596 = vunpack.c.h.b16 %v237
        %v2597 = vunpack.c.l.b16 %v238
        %v2598 = vunpack.c.h.b16 %v238
        %v2599 = vunpack.c.l.b16 %v239
        %v2600 = vunpack.c.h.b16 %v239
        %v2601 = vunpack.c.l.b16 %v240
        %v2602 = vunpack.c.h.b16 %v240
        %v2603 = vunpack.c.l.b16 %v241
        %v2604 = vunpack.c.h.b16 %v241
        %v2605 = vunpack.c.l.b16 %v242
        %v2606 = vunpack.c.h.b16 %v242
        %v2607 = vunpack.c.l.b16 %v243
        %v2608 = vunpack.c.h.b16 %v243
        %v2609 = vunpack.c.l.b16 %v244
        %v2610 = vunpack.c.h.b16 %v244
        %v2611 = vunpack.c.l.b16 %v245
        %v2612 = vunpack.c.h.b16 %v245
        %v2613 = vunpack.c.l.b16 %v246
        %v2614 = vunpack.c.h.b16 %v246
        %v2615 = vunpack.c.l.b16 %v247
        %v2616 = vunpack.c.h.b16 %v247
        %v2617 = vunpack.c.l.b16 %v248
        %v2618 = vunpack.c.h.b16 %v248
        %v2619 = vunpack.c.l.b16 %v249
        %v2620 = vunpack.c.h.b16 %v249
        %v2621 = vunpack.c.l.b16 %v250
        %v2622 = vunpack.c.h.b16 %v250
        %v2623 = vunpack.c.l.b16 %v251
        %v2624 = vunpack.c.h.b16 %v251
        %v2625 = vunpack.c.l.b16 %v252
        %v2626 = vunpack.c.h.b16 %v252
        %v2627 = vunpack.c.l.b16 %v253
        %v2628 = vunpack.c.h.b16 %v253
        %v2629 = vunpack.c.l.b16 %v254
        %v2630 = vunpack.c.h.b16 %v254
        %v2631 = vunpack.c.l.b16 %v255
        %v2632 = vunpack.c.h.b16 %v255
        %v2633 = vunpack.c.l.b16 %v256
        %v2634 = vunpack.c.h.b16 %v256
        %v2635 = vunpack.c.l.b16 %v257
        %v2636 = vunpack.c.h.b16 %v257
        %v2637 = vunpack.c.l.b16 %v258
        %v2638 = vunpack.c.h.b16 %v258
        %v2639 = vunpack.c.l.b16 %v259
        %v2640 = vunpack.c.h.b16 %v259
        %v2641 = vunpack.c.l.b16 %v260
        %v2642 = vunpack.c.h.b16 %v260
        %v2643 = vunpack.c.l.b16 %v261
        %v2644 = vunpack.c.h.b16 %v261
        %v2645 = vunpack.c.l.b16 %v262
        %v2646 = vunpack.c.h.b16 %v262
        %v2647 = vunpack.c.l.b16 %v263
        %v2648 = vunpack.c.h.b16 %v263
        %v2649 = vunpack.c.l.b16 %v264
        %v2650 = vunpack.c.h.b16 %v264
        %v2651 = vunpack.c.l.b16 %v265
        %v2652 = vunpack.c.h.b16 %v265
        %v2653 = vunpack.c.l.b16 %v266
        %v2654 = vunpack.c.h.b16 %v266
        %v2655 = vunpack.c.l.b16 %v267
        %v2656 = vunpack.c.h.b16 %v267
        %v2657 = vunpack.c.l.b16 %v268
        %v2658 = vunpack.c.h.b16 %v268
        %v2659 = vunpack.c.l.b16 %v269
        %v2660 = vunpack.c.h.b16 %v269
        %v2661 = vunpack.c.l.b16 %v270
        %v2662 = vunpack.c.h.b16 %v270
        %v2663 = vunpack.c.l.b16 %v271
        %v2664 = vunpack.c.h.b16 %v271
        %v2665 = vunpack.c.l.b16 %v272
        %v2666 = vunpack.c.h.b16 %v272
        %v2667 = vunpack.c.l.b16 %v273
        %v2668 = vunpack.c.h.b16 %v273
        %v2669 = vunpack.c.l.b16 %v274
        %v2670 = vunpack.c.h.b16 %v274
        %v2671 = vunpack.c.l.b16 %v275
        %v2672 = vunpack.c.h.b16 %v275
        %v2673 = vunpack.c.l.b16 %v276
        %v2674 = vunpack.c.h.b16 %v276
        %v2675 = vunpack.c.l.b16 %v277
        %v2676 = vunpack.c.h.b16 %v277
        %v2677 = vunpack.c.l.b16 %v278
        %v2678 = vunpack.c.h.b16 %v278
        %v2679 = vunpack.c.l.b16 %v279
        %v2680 = vunpack.c.h.b16 %v279
        %v2681 = vunpack.c.l.b16 %v280
        %v2682 = vunpack.c.h.b16 %v280
        %v2683 = vunpack.c.l.b16 %v281
        %v2684 = vunpack.c.h.b16 %v281
        %v2685 = vunpack.c.l.b16 %v282
        %v2686 = vunpack.c.h.b16 %v282
        %v2687 = vunpack.c.l.b16 %v283
        %v2688 = vunpack.c.h.b16 %v283
        %v2689 = vunpack.c.l.b16 %v284
        %v2690 = vunpack.c.h.b16 %v284
        %v2691 = vunpack.c.l.b16 %v285
        %v2692 = vunpack.c.h.b16 %v285
        %v2693 = vunpack.c.l.b16 %v286
        %v2694 = vunpack.c.h.b16 %v286
        %v2695 = vunpack.c.l.b16 %v287
        %v2696 = vunpack.c.h.b16 %v287
        %v2697 = vunpack.c.l.b16 %v288
        %v2698 = vunpack.c.h.b16 %v288
        %v2699 = vunpack.c.l.b16 %v289
        %v2700 = vunpack.c.h.b16 %v289
        %v2701 = vunpack.c.l.b16 %v290
        %v2702 = vunpack.c.h.b16 %v290
        %v2703 = vunpack.c.l.b16 %v291
        %v2704 = vunpack.c.h.b16 %v291
        %v2705 = vunpack.c.l.b16 %v292
        %v2706 = vunpack.c.h.b16 %v292
        %v2707 = vunpack.c.l.b16 %v293
        %v2708 = vunpack.c.h.b16 %v293
        %v2709 = vunpack.c.l.b16 %v294
        %v2710 = vunpack.c.h.b16 %v294
        %v2711 = vunpack.c.l.b16 %v295
        %v2712 = vunpack.c.h.b16 %v295
        %v2713 = vunpack.c.l.b16 %v296
        %v2714 = vunpack.c.h.b16 %v296
        %v2715 = vunpack.c.l.b16 %v297
        %v2716 = vunpack.c.h.b16 %v297
        %v2717 = vunpack.c.l.b16 %v298
        %v2718 = vunpack.c.h.b16 %v298
        %v2719 = vunpack.c.l.b16 %v299
        %v2720 = vunpack.c.h.b16 %v299
        %v2721 = vunpack.c.l.b16 %v300
        %v2722 = vunpack.c.h.b16 %v300
        %v2723 = vunpack.c.l.b16 %v301
        %v2724 = vunpack.c.h.b16 %v301
        %v2725 = vunpack.c.l.b16 %v302
        %v2726 = vunpack.c.h.b16 %v302
        %v2727 = vunpack.c.l.b16 %v303
        %v2728 = vunpack.c.h.b16 %v303
        %v2729 = vunpack.c.l.b16 %v304
        %v2730 = vunpack.c.h.b16 %v304
        %v2731 = vunpack.c.l.b16 %v305
        %v2732 = vunpack.c.h.b16 %v305
        %v2733 = vunpack.c.l.b16 %v306
        %v2734 = vunpack.c.h.b16 %v306
        %v2735 = vunpack.c.l.b16 %v307
        %v2736 = vunpack.c.h.b16 %v307
        %v2737 = vunpack.c.l.b16 %v308
        %v2738 = vunpack.c.h.b16 %v308
        %v2739 = vunpack.c.l.b16 %v309
        %v2740 = vunpack.c.h.b16 %v309
        %v2741 = vunpack.c.l.b16 %v310
        %v2742 = vunpack.c.h.b16 %v310
        %v2743 = vunpack.c.l.b16 %v311
        %v2744 = vunpack.c.h.b16 %v311
        %v2745 = vunpack.c.l.b16 %v312
        %v2746 = vunpack.c.h.b16 %v312
        %v2747 = vunpack.c.l.b16 %v313
        %v2748 = vunpack.c.h.b16 %v313
        %v2749 = vunpack.c.l.b16 %v314
        %v2750 = vunpack.c.h.b16 %v314
        %v2751 = vunpack.c.l.b16 %v315
        %v2752 = vunpack.c.h.b16 %v315
        %v2753 = vunpack.c.l.b16 %v316
        %v2754 = vunpack.c.h.b16 %v316
        %v2755 = vunpack.c.l.b16 %v317
        %v2756 = vunpack.c.h.b16 %v317
        %v2757 = vunpack.c.l.b16 %v318
        %v2758 = vunpack.c.h.b16 %v318
        %v2759 = vunpack.c.l.b16 %v319
        %v2760 = vunpack.c.h.b16 %v319
        %v2761 = vunpack.c.l.b16 %v320
        %v2762 = vunpack.c.h.b16 %v320
        %v2763 = vunpack.c.l.b16 %v321
        %v2764 = vunpack.c.h.b16 %v321
        %v2765 = vunpack.c.l.b16 %v322
        %v2766 = vunpack.c.h.b16 %v322
        %v2767 = vunpack.c.l.b16 %v323
        %v2768 = vunpack.c.h.b16 %v323
        %v2769 = vunpack.c.l.b16 %v324
        %v2770 = vunpack.c.h.b16 %v324
        %v2771 = vunpack.c.l.b16 %v325
        %v2772 = vunpack.c.h.b16 %v325
        %v2773 = vunpack.c.l.b16 %v326
        %v2774 = vunpack.c.h.b16 %v326
        %v2775 = vunpack.c.l.b16 %v327
        %v2776 = vunpack.c.h.b16 %v327
        %v2777 = vunpack.c.l.b16 %v328
        %v2778 = vunpack.c.h.b16 %v328
        %v2779 = vunpack.c.l.b16 %v329
        %v2780 = vunpack.c.h.b16 %v329
        %v2781 = vunpack.c.l.b16 %v330
        %v2782 = vunpack.c.h.b16 %v330
        %v2783 = vunpack.c.l.b16 %v331
        %v2784 = vunpack.c.h.b16 %v331
        %v2785 = vunpack.c.l.b16 %v332
        %v2786 = vunpack.c.h.b16 %v332
        %v2787 = vunpack.c.l.b16 %v333
        %v2788 = vunpack.c.h.b16 %v333
        %v2789 = vunpack.c.l.b16 %v334
        %v2790 = vunpack.c.h.b16 %v334
        %v2791 = vunpack.c.l.b16 %v335
        %v2792 = vunpack.c.h.b16 %v335
        %v2793 = vunpack.c.l.b16 %v336
        %v2794 = vunpack.c.h.b16 %v336
        %v2795 = vunpack.c.l.b16 %v337
        %v2796 = vunpack.c.h.b16 %v337
        %v2797 = vunpack.c.l.b16 %v338
        %v2798 = vunpack.c.h.b16 %v338
        %v2799 = vunpack.c.l.b16 %v339
        %v2800 = vunpack.c.h.b16 %v339
        %v2801 = vunpack.c.l.b16 %v340
        %v2802 = vunpack.c.h.b16 %v340
        %v2803 = vunpack.c.l.b16 %v341
        %v2804 = vunpack.c.h.b16 %v341
        %v2805 = vunpack.c.l.b16 %v342
        %v2806 = vunpack.c.h.b16 %v342
        %v2807 = vunpack.c.l.b16 %v343
        %v2808 = vunpack.c.h.b16 %v343
        %v2809 = vunpack.c.l.b16 %v344
        %v2810 = vunpack.c.h.b16 %v344
        %v2811 = vunpack.c.l.b16 %v345
        %v2812 = vunpack.c.h.b16 %v345
        %v2813 = vunpack.c.l.b16 %v346
        %v2814 = vunpack.c.h.b16 %v346
        %v2815 = vunpack.c.l.b16 %v347
        %v2816 = vunpack.c.h.b16 %v347
        %v2817 = vunpack.c.l.b16 %v348
        %v2818 = vunpack.c.h.b16 %v348
        %v2819 = vunpack.c.l.b16 %v349
        %v2820 = vunpack.c.h.b16 %v349
        %v2821 = vunpack.c.l.b16 %v350
        %v2822 = vunpack.c.h.b16 %v350
        %v2823 = vunpack.c.l.b16 %v351
        %v2824 = vunpack.c.h.b16 %v351
        %v2825 = vunpack.c.l.b16 %v352
        %v2826 = vunpack.c.h.b16 %v352
        %v2827 = vunpack.c.l.b16 %v353
        %v2828 = vunpack.c.h.b16 %v353
        %v2829 = vunpack.c.l.b16 %v354
        %v2830 = vunpack.c.h.b16 %v354
        %v2831 = vunpack.c.l.b16 %v355
        %v2832 = vunpack.c.h.b16 %v355
        %v2833 = vunpack.c.l.b16 %v356
        %v2834 = vunpack.c.h.b16 %v356
        %v2835 = vunpack.c.l.b16 %v357
        %v2836 = vunpack.c.h.b16 %v357
        %v2837 = vunpack.c.l.b16 %v358
        %v2838 = vunpack.c.h.b16 %v358
        %v2839 = vunpack.c.l.b16 %v359
        %v2840 = vunpack.c.h.b16 %v359
        %v2841 = vunpack.c.l.b16 %v360
        %v2842 = vunpack.c.h.b16 %v360
        %v2843 = vunpack.c.l.b16 %v361
        %v2844 = vunpack.c.h.b16 %v361
        %v2845 = vunpack.c.l.b16 %v362
        %v2846 = vunpack.c.h.b16 %v362
        %v2847 = vunpack.c.l.b16 %v363
        %v2848 = vunpack.c.h.b16 %v363
        %v2849 = vunpack.c.l.b16 %v364
        %v2850 = vunpack.c.h.b16 %v364
        %v2851 = vunpack.c.l.b16 %v365
        %v2852 = vunpack.c.h.b16 %v365
        %v2853 = vunpack.c.l.b16 %v366
        %v2854 = vunpack.c.h.b16 %v366
        %v2855 = vunpack.c.l.b16 %v367
        %v2856 = vunpack.c.h.b16 %v367
        %v2857 = vunpack.c.l.b16 %v368
        %v2858 = vunpack.c.h.b16 %v368
        %v2859 = vunpack.c.l.b16 %v369
        %v2860 = vunpack.c.h.b16 %v369
        %v2861 = vunpack.c.l.b16 %v370
        %v2862 = vunpack.c.h.b16 %v370
        %v2863 = vunpack.c.l.b16 %v371
        %v2864 = vunpack.c.h.b16 %v371
        %v2865 = vunpack.c.l.b16 %v372
        %v2866 = vunpack.c.h.b16 %v372
        %v2867 = vunpack.c.l.b16 %v373
        %v2868 = vunpack.c.h.b16 %v373
        %v2869 = vunpack.c.l.b16 %v374
        %v2870 = vunpack.c.h.b16 %v374
        %v2871 = vunpack.c.l.b16 %v375
        %v2872 = vunpack.c.h.b16 %v375
        %v2873 = vunpack.c.l.b16 %v376
        %v2874 = vunpack.c.h.b16 %v376
        %v2875 = vunpack.c.l.b16 %v377
        %v2876 = vunpack.c.h.b16 %v377
        %v2877 = vunpack.c.l.b16 %v378
        %v2878 = vunpack.c.h.b16 %v378
        %v2879 = vunpack.c.l.b16 %v379
        %v2880 = vunpack.c.h.b16 %v379
        %v2881 = vunpack.c.l.b16 %v380
        %v2882 = vunpack.c.h.b16 %v380
        %v2883 = vunpack.c.l.b16 %v381
        %v2884 = vunpack.c.h.b16 %v381
        %v2885 = vunpack.c.l.b16 %v382
        %v2886 = vunpack.c.h.b16 %v382
        %v2887 = vunpack.c.l.b16 %v383
        %v2888 = vunpack.c.h.b16 %v383
        %v2889 = vunpack.c.l.b16 %v384
        %v2890 = vunpack.c.h.b16 %v384
        %v2891 = vunpack.c.l.b16 %v385
        %v2892 = vunpack.c.h.b16 %v385
        %v2893 = vunpack.c.l.b16 %v386
        %v2894 = vunpack.c.h.b16 %v386
        %v2895 = vunpack.c.l.b16 %v387
        %v2896 = vunpack.c.h.b16 %v387
        %v2897 = vunpack.c.l.b16 %v388
        %v2898 = vunpack.c.h.b16 %v388
        %v2899 = vunpack.c.l.b16 %v389
        %v2900 = vunpack.c.h.b16 %v389
        %v2901 = vunpack.c.l.b16 %v390
        %v2902 = vunpack.c.h.b16 %v390
        %v2903 = vunpack.c.l.b16 %v391
        %v2904 = vunpack.c.h.b16 %v391
        %v2905 = vunpack.c.l.b16 %v392
        %v2906 = vunpack.c.h.b16 %v392
        %v2907 = vunpack.c.l.b16 %v393
        %v2908 = vunpack.c.h.b16 %v393
        %v2909 = vunpack.c.l.b16 %v394
        %v2910 = vunpack.c.h.b16 %v394
        %v2911 = vunpack.c.l.b16 %v395
        %v2912 = vunpack.c.h.b16 %v395
        %v2913 = vunpack.c.l.b16 %v396
        %v2914 = vunpack.c.h.b16 %v396
        %v2915 = vunpack.c.l.b16 %v397
        %v2916 = vunpack.c.h.b16 %v397
        %v2917 = vunpack.c.l.b16 %v398
        %v2918 = vunpack.c.h.b16 %v398
        %v2919 = vunpack.c.l.b16 %v399
        %v2920 = vunpack.c.h.b16 %v399
        %v2921 = vunpack.c.l.b16 %v400
        %v2922 = vunpack.c.h.b16 %v400
        %v2923 = vunpack.c.l.b16 %v401
        %v2924 = vunpack.c.h.b16 %v401
        %v2925 = vunpack.c.l.b16 %v402
        %v2926 = vunpack.c.h.b16 %v402
        %v2927 = vunpack.c.l.b16 %v403
        %v2928 = vunpack.c.h.b16 %v403
        %v2929 = vunpack.c.l.b16 %v404
        %v2930 = vunpack.c.h.b16 %v404
        %v2931 = vunpack.c.l.b16 %v405
        %v2932 = vunpack.c.h.b16 %v405
        %v2933 = vunpack.c.l.b16 %v406
        %v2934 = vunpack.c.h.b16 %v406
        %v2935 = vunpack.c.l.b16 %v407
        %v2936 = vunpack.c.h.b16 %v407
        %v2937 = vunpack.c.l.b16 %v408
        %v2938 = vunpack.c.h.b16 %v408
        %v2939 = vunpack.c.l.b16 %v409
        %v2940 = vunpack.c.h.b16 %v409
        %v2941 = vunpack.c.l.b16 %v410
        %v2942 = vunpack.c.h.b16 %v410
        %v2943 = vunpack.c.l.b16 %v411
        %v2944 = vunpack.c.h.b16 %v411
        %v2945 = vunpack.c.l.b16 %v412
        %v2946 = vunpack.c.h.b16 %v412
        %v2947 = vunpack.c.l.b16 %v413
        %v2948 = vunpack.c.h.b16 %v413
        %v2949 = vunpack.c.l.b16 %v414
        %v2950 = vunpack.c.h.b16 %v414
        %v2951 = vunpack.c.l.b16 %v415
        %v2952 = vunpack.c.h.b16 %v415
        %v2953 = vunpack.c.l.b16 %v416
        %v2954 = vunpack.c.h.b16 %v416
        %v2955 = vunpack.c.l.b16 %v417
        %v2956 = vunpack.c.h.b16 %v417
        %v2957 = vunpack.c.l.b16 %v418
        %v2958 = vunpack.c.h.b16 %v418
        %v2959 = vunpack.c.l.b16 %v419
        %v2960 = vunpack.c.h.b16 %v419
        %v2961 = vunpack.c.l.b16 %v420
        %v2962 = vunpack.c.h.b16 %v420
        %v2963 = vunpack.c.l.b16 %v421
        %v2964 = vunpack.c.h.b16 %v421
        %v2965 = vunpack.c.l.b16 %v422
        %v2966 = vunpack.c.h.b16 %v422
        %v2967 = vunpack.c.l.b16 %v423
        %v2968 = vunpack.c.h.b16 %v423
        %v2969 = vunpack.c.l.b16 %v424
        %v2970 = vunpack.c.h.b16 %v424
        %v2971 = vunpack.c.l.b16 %v425
        %v2972 = vunpack.c.h.b16 %v425
        %v2973 = vunpack.c.l.b16 %v426
        %v2974 = vunpack.c.h.b16 %v426
        %v2975 = vunpack.c.l.b16 %v427
        %v2976 = vunpack.c.h.b16 %v427
        %v2977 = vunpack.c.l.b16 %v428
        %v2978 = vunpack.c.h.b16 %v428
        %v2979 = vunpack.c.l.b16 %v429
        %v2980 = vunpack.c.h.b16 %v429
        %v2981 = vunpack.c.l.b16 %v430
        %v2982 = vunpack.c.h.b16 %v430
        %v2983 = vunpack.c.l.b16 %v431
        %v2984 = vunpack.c.h.b16 %v431
        %v2985 = vunpack.c.l.b16 %v432
        %v2986 = vunpack.c.h.b16 %v432
        %v2987 = vunpack.c.l.b16 %v433
        %v2988 = vunpack.c.h.b16 %v433
        %v2989 = vunpack.c.l.b16 %v434
        %v2990 = vunpack.c.h.b16 %v434
        %v2991 = vunpack.c.l.b16 %v435
        %v2992 = vunpack.c.h.b16 %v435
        %v2993 = vunpack.c.l.b16 %v436
        %v2994 = vunpack.c.h.b16 %v436
        %v2995 = vunpack.c.l.b16 %v437
        %v2996 = vunpack.c.h.b16 %v437
        %v2997 = vunpack.c.l.b16 %v438
        %v2998 = vunpack.c.h.b16 %v438
        %v2999 = vunpack.c.l.b16 %v439
        %v3000 = vunpack.c.h.b16 %v439
        %v3001 = vunpack.c.l.b16 %v440
        %v3002 = vunpack.c.h.b16 %v440
        %v3003 = vunpack.c.l.b16 %v441
        %v3004 = vunpack.c.h.b16 %v441
        %v3005 = vunpack.c.l.b16 %v442
        %v3006 = vunpack.c.h.b16 %v442
        %v3007 = vunpack.c.l.b16 %v443
        %v3008 = vunpack.c.h.b16 %v443
        %v3009 = vunpack.c.l.b16 %v444
        %v3010 = vunpack.c.h.b16 %v444
        %v3011 = vunpack.c.l.b16 %v445
        %v3012 = vunpack.c.h.b16 %v445
        %v3013 = vunpack.c.l.b16 %v446
        %v3014 = vunpack.c.h.b16 %v446
        %v3015 = vunpack.c.l.b16 %v447
        %v3016 = vunpack.c.h.b16 %v447
        %v3017 = vunpack.c.l.b16 %v448
        %v3018 = vunpack.c.h.b16 %v448
        %v3019 = vunpack.c.l.b16 %v449
        %v3020 = vunpack.c.h.b16 %v449
        %v3021 = vunpack.c.l.b16 %v450
        %v3022 = vunpack.c.h.b16 %v450
        %v3023 = vunpack.c.l.b16 %v451
        %v3024 = vunpack.c.h.b16 %v451
        %v3025 = vunpack.c.l.b16 %v452
        %v3026 = vunpack.c.h.b16 %v452
        %v3027 = vunpack.c.l.b16 %v453
        %v3028 = vunpack.c.h.b16 %v453
        %v3029 = vunpack.c.l.b16 %v454
        %v3030 = vunpack.c.h.b16 %v454
        %v3031 = vunpack.c.l.b16 %v455
        %v3032 = vunpack.c.h.b16 %v455
        %v3033 = vunpack.c.l.b16 %v456
        %v3034 = vunpack.c.h.b16 %v456
        %v3035 = vunpack.c.l.b16 %v457
        %v3036 = vunpack.c.h.b16 %v457
        %v3037 = vunpack.c.l.b16 %v458
        %v3038 = vunpack.c.h.b16 %v458
        %v3039 = vunpack.c.l.b16 %v459
        %v3040 = vunpack.c.h.b16 %v459
        %v3041 = vunpack.c.l.b16 %v460
        %v3042 = vunpack.c.h.b16 %v460
        %v3043 = vunpack.c.l.b16 %v461
        %v3044 = vunpack.c.h.b16 %v461
        %v3045 = vunpack.c.l.b16 %v462
        %v3046 = vunpack.c.h.b16 %v462
        %v3047 = vunpack.c.l.b16 %v463
        %v3048 = vunpack.c.h.b16 %v463
        %v3049 = vunpack.c.l.b16 %v464
        %v3050 = vunpack.c.h.b16 %v464
        %v3051 = vunpack.c.l.b16 %v465
        %v3052 = vunpack.c.h.b16 %v465
        %v3053 = vunpack.c.l.b16 %v466
        %v3054 = vunpack.c.h.b16 %v466
        %v3055 = vunpack.c.l.b16 %v467
        %v3056 = vunpack.c.h.b16 %v467
        %v3057 = vunpack.c.l.b16 %v468
        %v3058 = vunpack.c.h.b16 %v468
        %v3059 = vunpack.c.l.b16 %v469
        %v3060 = vunpack.c.h.b16 %v469
        %v3061 = vunpack.c.l.b16 %v470
        %v3062 = vunpack.c.h.b16 %v470
        %v3063 = vunpack.c.l.b16 %v471
        %v3064 = vunpack.c.h.b16 %v471
        %v3065 = vunpack.c.l.b16 %v472
        %v3066 = vunpack.c.h.b16 %v472
        %v3067 = vunpack.c.l.b16 %v473
        %v3068 = vunpack.c.h.b16 %v473
        %v3069 = vunpack.c.l.b16 %v474
        %v3070 = vunpack.c.h.b16 %v474
        %v3071 = vunpack.c.l.b16 %v475
        %v3072 = vunpack.c.h.b16 %v475
        %v3073 = vunpack.c.l.b16 %v476
        %v3074 = vunpack.c.h.b16 %v476
        %v3075 = vunpack.c.l.b16 %v477
        %v3076 = vunpack.c.h.b16 %v477
        %v3077 = vunpack.c.l.b16 %v478
        %v3078 = vunpack.c.h.b16 %v478
        %v3079 = vunpack.c.l.b16 %v479
        %v3080 = vunpack.c.h.b16 %v479
        %v3081 = vunpack.c.l.b16 %v480
        %v3082 = vunpack.c.h.b16 %v480
        %v3083 = vunpack.c.l.b16 %v481
        %v3084 = vunpack.c.h.b16 %v481
        %v3085 = vunpack.c.l.b16 %v482
        %v3086 = vunpack.c.h.b16 %v482
        %v3087 = vunpack.c.l.b16 %v483
        %v3088 = vunpack.c.h.b16 %v483
        %v3089 = vunpack.c.l.b16 %v484
        %v3090 = vunpack.c.h.b16 %v484
        %v3091 = vunpack.c.l.b16 %v485
        %v3092 = vunpack.c.h.b16 %v485
        %v3093 = vunpack.c.l.b16 %v486
        %v3094 = vunpack.c.h.b16 %v486
        %v3095 = vunpack.c.l.b16 %v487
        %v3096 = vunpack.c.h.b16 %v487
        %v3097 = vunpack.c.l.b16 %v488
        %v3098 = vunpack.c.h.b16 %v488
        %v3099 = vunpack.c.l.b16 %v489
        %v3100 = vunpack.c.h.b16 %v489
        %v3101 = vunpack.c.l.b16 %v490
        %v3102 = vunpack.c.h.b16 %v490
        %v3103 = vunpack.c.l.b16 %v491
        %v3104 = vunpack.c.h.b16 %v491
        %v3105 = vunpack.c.l.b16 %v492
        %v3106 = vunpack.c.h.b16 %v492
        %v3107 = vunpack.c.l.b16 %v493
        %v3108 = vunpack.c.h.b16 %v493
        %v3109 = vunpack.c.l.b16 %v494
        %v3110 = vunpack.c.h.b16 %v494
        %v3111 = vunpack.c.l.b16 %v495
        %v3112 = vunpack.c.h.b16 %v495
        %v3113 = vunpack.c.l.b16 %v496
        %v3114 = vunpack.c.h.b16 %v496
        %v3115 = vunpack.c.l.b16 %v497
        %v3116 = vunpack.c.h.b16 %v497
        %v3117 = vunpack.c.l.b16 %v498
        %v3118 = vunpack.c.h.b16 %v498
        %v3119 = vunpack.c.l.b16 %v499
        %v3120 = vunpack.c.h.b16 %v499
        %v3121 = vunpack.c.l.b16 %v500
        %v3122 = vunpack.c.h.b16 %v500
        %v3123 = vunpack.c.l.b16 %v501
        %v3124 = vunpack.c.h.b16 %v501
        %v3125 = vunpack.c.l.b16 %v502
        %v3126 = vunpack.c.h.b16 %v502
        %v3127 = vunpack.c.l.b16 %v503
        %v3128 = vunpack.c.h.b16 %v503
        %v3129 = vunpack.c.l.b16 %v504
        %v3130 = vunpack.c.h.b16 %v504
        %v3131 = vunpack.c.l.b16 %v505
        %v3132 = vunpack.c.h.b16 %v505
        %v3133 = vunpack.c.l.b16 %v506
        %v3134 = vunpack.c.h.b16 %v506
        %v3135 = vunpack.c.l.b16 %v507
        %v3136 = vunpack.c.h.b16 %v507
        %v3137 = vunpack.c.l.b16 %v508
        %v3138 = vunpack.c.h.b16 %v508
        %v3139 = vunpack.c.l.b16 %v509
        %v3140 = vunpack.c.h.b16 %v509
        %v3141 = vunpack.c.l.b16 %v510
        %v3142 = vunpack.c.h.b16 %v510
        %v3143 = vunpack.c.l.b16 %v511
        %v3144 = vunpack.c.h.b16 %v511
        %v3145 = vunpack.c.l.b16 %v512
        %v3146 = vunpack.c.h.b16 %v512
        %v3147 = vunpack.c.l.b16 %v513
        %v3148 = vunpack.c.h.b16 %v513
        %v3149 = vunpack.c.l.b16 %v514
        %v3150 = vunpack.c.h.b16 %v514
        %v3151 = vunpack.c.l.b16 %v515
        %v3152 = vunpack.c.h.b16 %v515
        %v3153 = vunpack.c.l.b16 %v516
        %v3154 = vunpack.c.h.b16 %v516
        %v3155 = vunpack.c.l.b16 %v517
        %v3156 = vunpack.c.h.b16 %v517
        %v3157 = vunpack.c.l.b16 %v518
        %v3158 = vunpack.c.h.b16 %v518
        %v3159 = vunpack.c.l.b16 %v519
        %v3160 = vunpack.c.h.b16 %v519
        %v3161 = vunpack.c.l.b16 %v520
        %v3162 = vunpack.c.h.b16 %v520
        %v3163 = vunpack.c.l.b16 %v521
        %v3164 = vunpack.c.h.b16 %v521
        %v3165 = vunpack.c.l.b16 %v522
        %v3166 = vunpack.c.h.b16 %v522
        %v3167 = vunpack.c.l.b16 %v523
        %v3168 = vunpack.c.h.b16 %v523
        %v3169 = vunpack.c.l.b16 %v524
        %v3170 = vunpack.c.h.b16 %v524
        %v3171 = vunpack.c.l.b16 %v525
        %v3172 = vunpack.c.h.b16 %v525
        %v3173 = vunpack.c.l.b16 %v526
        %v3174 = vunpack.c.h.b16 %v526
        %v3175 = vunpack.c.l.b16 %v527
        %v3176 = vunpack.c.h.b16 %v527
        %v3177 = vunpack.c.l.b16 %v528
        %v3178 = vunpack.c.h.b16 %v528
        %v3179 = vunpack.c.l.b16 %v529
        %v3180 = vunpack.c.h.b16 %v529
        %v3181 = vunpack.c.l.b16 %v530
        %v3182 = vunpack.c.h.b16 %v530
        %v3183 = vunpack.c.l.b16 %v531
        %v3184 = vunpack.c.h.b16 %v531
        %v3185 = vunpack.c.l.b16 %v532
        %v3186 = vunpack.c.h.b16 %v532
        %v3187 = vunpack.c.l.b16 %v533
        %v3188 = vunpack.c.h.b16 %v533
        %v3189 = vunpack.c.l.b16 %v534
        %v3190 = vunpack.c.h.b16 %v534
        %v3191 = vunpack.c.l.b16 %v535
        %v3192 = vunpack.c.h.b16 %v535
        %v3193 = vunpack.c.l.b16 %v536
        %v3194 = vunpack.c.h.b16 %v536
        %v3195 = vunpack.c.l.b16 %v537
        %v3196 = vunpack.c.h.b16 %v537
        %v3197 = vunpack.c.l.b16 %v538
        %v3198 = vunpack.c.h.b16 %v538
        %v3199 = vunpack.c.l.b16 %v539
        %v3200 = vunpack.c.h.b16 %v539
        %v3201 = vunpack.c.l.b16 %v540
        %v3202 = vunpack.c.h.b16 %v540
        %v3203 = vunpack.c.l.b16 %v541
        %v3204 = vunpack.c.h.b16 %v541
        %v3205 = vunpack.c.l.b16 %v542
        %v3206 = vunpack.c.h.b16 %v542
        %v3207 = vunpack.c.l.b16 %v543
        %v3208 = vunpack.c.h.b16 %v543
        %v3209 = vunpack.c.l.b16 %v544
        %v3210 = vunpack.c.h.b16 %v544
        %v3211 = vunpack.c.l.b16 %v545
        %v3212 = vunpack.c.h.b16 %v545
        %v3213 = vunpack.c.l.b16 %v546
        %v3214 = vunpack.c.h.b16 %v546
        %v3215 = vunpack.c.l.b16 %v547
        %v3216 = vunpack.c.h.b16 %v547
        %v3217 = vunpack.c.l.b16 %v548
        %v3218 = vunpack.c.h.b16 %v548
        %v3219 = vunpack.c.l.b16 %v549
        %v3220 = vunpack.c.h.b16 %v549
        %v3221 = vunpack.c.l.b16 %v550
        %v3222 = vunpack.c.h.b16 %v550
        %v3223 = vunpack.c.l.b16 %v551
        %v3224 = vunpack.c.h.b16 %v551
        %v3225 = vunpack.c.l.b16 %v552
        %v3226 = vunpack.c.h.b16 %v552
        %v3227 = vunpack.c.l.b16 %v553
        %v3228 = vunpack.c.h.b16 %v553
        %v3229 = vunpack.c.l.b16 %v554
        %v3230 = vunpack.c.h.b16 %v554
        %v3231 = vunpack.c.l.b16 %v555
        %v3232 = vunpack.c.h.b16 %v555
        %v3233 = vunpack.c.l.b16 %v556
        %v3234 = vunpack.c.h.b16 %v556
        %v3235 = vunpack.c.l.b16 %v557
        %v3236 = vunpack.c.h.b16 %v557
        %v3237 = vunpack.c.l.b16 %v558
        %v3238 = vunpack.c.h.b16 %v558
        %v3239 = vunpack.c.l.b16 %v559
        %v3240 = vunpack.c.h.b16 %v559
        %v3241 = vunpack.c.l.b16 %v560
        %v3242 = vunpack.c.h.b16 %v560
        %v3243 = vunpack.c.l.b16 %v561
        %v3244 = vunpack.c.h.b16 %v561
        %v3245 = vunpack.c.l.b16 %v562
        %v3246 = vunpack.c.h.b16 %v562
        %v3247 = vunpack.c.l.b16 %v563
        %v3248 = vunpack.c.h.b16 %v563
        %v3249 = vunpack.c.l.b16 %v564
        %v3250 = vunpack.c.h.b16 %v564
        %v3251 = vunpack.c.l.b16 %v565
        %v3252 = vunpack.c.h.b16 %v565
        %v3253 = vunpack.c.l.b16 %v566
        %v3254 = vunpack.c.h.b16 %v566
        %v3255 = vunpack.c.l.b16 %v567
        %v3256 = vunpack.c.h.b16 %v567
        %v3257 = vunpack.c.l.b16 %v568
        %v3258 = vunpack.c.h.b16 %v568
        %v3259 = vunpack.c.l.b16 %v569
        %v3260 = vunpack.c.h.b16 %v569
        %v3261 = vunpack.c.l.b16 %v570
        %v3262 = vunpack.c.h.b16 %v570
        %v3263 = vunpack.c.l.b16 %v571
        %v3264 = vunpack.c.h.b16 %v571
        %v3265 = vunpack.c.l.b16 %v572
        %v3266 = vunpack.c.h.b16 %v572
        %v3267 = vunpack.c.l.b16 %v573
        %v3268 = vunpack.c.h.b16 %v573
        %v3269 = vunpack.c.l.b16 %v574
        %v3270 = vunpack.c.h.b16 %v574
        %v3271 = vunpack.c.l.b16 %v575
        %v3272 = vunpack.c.h.b16 %v575
        %v3273 = vunpack.c.l.b16 %v576
        %v3274 = vunpack.c.h.b16 %v576
        %v3275 = vunpack.c.l.b16 %v577
        %v3276 = vunpack.c.h.b16 %v577
        %v3277 = vunpack.c.l.b16 %v578
        %v3278 = vunpack.c.h.b16 %v578
        %v3279 = vunpack.c.l.b16 %v579
        %v3280 = vunpack.c.h.b16 %v579
        %v3281 = vunpack.c.l.b16 %v580
        %v3282 = vunpack.c.h.b16 %v580
        %v3283 = vunpack.c.l.b16 %v581
        %v3284 = vunpack.c.h.b16 %v581
        %v3285 = vunpack.c.l.b16 %v582
        %v3286 = vunpack.c.h.b16 %v582
        %v3287 = vunpack.c.l.b16 %v583
        %v3288 = vunpack.c.h.b16 %v583
        %v3289 = vunpack.c.l.b16 %v584
        %v3290 = vunpack.c.h.b16 %v584
        %v3291 = vunpack.c.l.b16 %v585
        %v3292 = vunpack.c.h.b16 %v585
        %v3293 = vunpack.c.l.b16 %v586
        %v3294 = vunpack.c.h.b16 %v586
        %v3295 = vunpack.c.l.b16 %v587
        %v3296 = vunpack.c.h.b16 %v587
        %v3297 = vunpack.c.l.b16 %v588
        %v3298 = vunpack.c.h.b16 %v588
        %v3299 = vunpack.c.l.b16 %v589
        %v3300 = vunpack.c.h.b16 %v589
        %v3301 = vunpack.c.l.b16 %v590
        %v3302 = vunpack.c.h.b16 %v590
        %v3303 = vunpack.c.l.b16 %v591
        %v3304 = vunpack.c.h.b16 %v591
        %v3305 = vunpack.c.l.b16 %v592
        %v3306 = vunpack.c.h.b16 %v592
        %v3307 = vunpack.c.l.b16 %v593
        %v3308 = vunpack.c.h.b16 %v593
        %v3309 = vunpack.c.l.b16 %v594
        %v3310 = vunpack.c.h.b16 %v594
        %v3311 = vunpack.c.l.b16 %v595
        %v3312 = vunpack.c.h.b16 %v595
        %v3313 = vunpack.c.l.b16 %v596
        %v3314 = vunpack.c.h.b16 %v596
        %v3315 = vunpack.c.l.b16 %v597
        %v3316 = vunpack.c.h.b16 %v597
        %v3317 = vunpack.c.l.b16 %v598
        %v3318 = vunpack.c.h.b16 %v598
        %v3319 = vunpack.c.l.b16 %v599
        %v3320 = vunpack.c.h.b16 %v599
        %v3321 = vunpack.c.l.b16 %v600
        %v3322 = vunpack.c.h.b16 %v600
        %v3323 = vunpack.c.l.b16 %v601
        %v3324 = vunpack.c.h.b16 %v601
        %v3325 = vunpack.c.l.b16 %v602
        %v3326 = vunpack.c.h.b16 %v602
        %v3327 = vunpack.c.l.b16 %v603
        %v3328 = vunpack.c.h.b16 %v603
        %v3329 = vunpack.c.l.b16 %v604
        %v3330 = vunpack.c.h.b16 %v604
        %v3331 = vunpack.c.l.b16 %v605
        %v3332 = vunpack.c.h.b16 %v605
        %v3333 = vunpack.c.l.b16 %v606
        %v3334 = vunpack.c.h.b16 %v606
        %v3335 = vunpack.c.l.b16 %v607
        %v3336 = vunpack.c.h.b16 %v607
        %v3337 = vunpack.c.l.b16 %v608
        %v3338 = vunpack.c.h.b16 %v608
        %v3339 = vunpack.c.l.b16 %v609
        %v3340 = vunpack.c.h.b16 %v609
        %v3341 = vunpack.c.l.b16 %v610
        %v3342 = vunpack.c.h.b16 %v610
        %v3343 = vunpack.c.l.b16 %v611
        %v3344 = vunpack.c.h.b16 %v611
        %v3345 = vunpack.c.l.b16 %v612
        %v3346 = vunpack.c.h.b16 %v612
        %v3347 = vunpack.c.l.b16 %v613
        %v3348 = vunpack.c.h.b16 %v613
        %v3349 = vunpack.c.l.b16 %v614
        %v3350 = vunpack.c.h.b16 %v614
        %v3351 = vunpack.c.l.b16 %v615
        %v3352 = vunpack.c.h.b16 %v615
        %v3353 = vunpack.c.l.b16 %v616
        %v3354 = vunpack.c.h.b16 %v616
        %v3355 = vunpack.c.l.b16 %v617
        %v3356 = vunpack.c.h.b16 %v617
        %v3357 = vunpack.c.l.b16 %v618
        %v3358 = vunpack.c.h.b16 %v618
        %v3359 = vunpack.c.l.b16 %v619
        %v3360 = vunpack.c.h.b16 %v619
        %v3361 = vunpack.c.l.b16 %v620
        %v3362 = vunpack.c.h.b16 %v620
        %v3363 = vunpack.c.l.b16 %v621
        %v3364 = vunpack.c.h.b16 %v621
        %v3365 = vunpack.c.l.b16 %v622
        %v3366 = vunpack.c.h.b16 %v622
        %v3367 = vunpack.c.l.b16 %v623
        %v3368 = vunpack.c.h.b16 %v623
        %v3369 = vunpack.c.l.b16 %v624
        %v3370 = vunpack.c.h.b16 %v624
        %v3371 = vunpack.c.l.b16 %v625
        %v3372 = vunpack.c.h.b16 %v625
        %v3373 = vunpack.c.l.b16 %v626
        %v3374 = vunpack.c.h.b16 %v626
        %v3375 = vunpack.c.l.b16 %v627
        %v3376 = vunpack.c.h.b16 %v627
        %v3377 = vunpack.c.l.b16 %v628
        %v3378 = vunpack.c.h.b16 %v628
        %v3379 = vunpack.c.l.b16 %v629
        %v3380 = vunpack.c.h.b16 %v629
        %v3381 = vunpack.c.l.b16 %v630
        %v3382 = vunpack.c.h.b16 %v630
        %v3383 = vunpack.c.l.b16 %v631
        %v3384 = vunpack.c.h.b16 %v631
        %v3385 = vunpack.c.l.b16 %v632
        %v3386 = vunpack.c.h.b16 %v632
        %v3387 = vunpack.c.l.b16 %v633
        %v3388 = vunpack.c.h.b16 %v633
        %v3389 = vunpack.c.l.b16 %v634
        %v3390 = vunpack.c.h.b16 %v634
        %v3391 = vunpack.c.l.b16 %v635
        %v3392 = vunpack.c.h.b16 %v635
        %v3393 = vunpack.c.l.b16 %v636
        %v3394 = vunpack.c.h.b16 %v636
        %v3395 = vunpack.c.l.b16 %v637
        %v3396 = vunpack.c.h.b16 %v637
        %v3397 = vunpack.c.l.b16 %v638
        %v3398 = vunpack.c.h.b16 %v638
        %v3399 = vunpack.c.l.b16 %v639
        %v3400 = vunpack.c.h.b16 %v639
        %v3401 = vunpack.c.l.b16 %v640
        %v3402 = vunpack.c.h.b16 %v640
        %v3403 = vunpack.c.l.b16 %v641
        %v3404 = vunpack.c.h.b16 %v641
        %v3405 = vunpack.c.l.b16 %v642
        %v3406 = vunpack.c.h.b16 %v642
        %v3407 = vunpack.c.l.b16 %v643
        %v3408 = vunpack.c.h.b16 %v643
        %v3409 = vunpack.c.l.b16 %v644
        %v3410 = vunpack.c.h.b16 %v644
        %v3411 = vunpack.c.l.b16 %v645
        %v3412 = vunpack.c.h.b16 %v645
        %v3413 = vunpack.c.l.b16 %v646
        %v3414 = vunpack.c.h.b16 %v646
        %v3415 = vunpack.c.l.b16 %v647
        %v3416 = vunpack.c.h.b16 %v647
        %v3417 = vunpack.c.l.b16 %v648
        %v3418 = vunpack.c.h.b16 %v648
        %v3419 = vunpack.c.l.b16 %v649
        %v3420 = vunpack.c.h.b16 %v649
        %v3421 = vunpack.c.l.b16 %v650
        %v3422 = vunpack.c.h.b16 %v650
        %v3423 = vunpack.c.l.b16 %v651
        %v3424 = vunpack.c.h.b16 %v651
        %v3425 = vunpack.c.l.b16 %v652
        %v3426 = vunpack.c.h.b16 %v652
        %v3427 = vunpack.c.l.b16 %v653
        %v3428 = vunpack.c.h.b16 %v653
        %v3429 = vunpack.c.l.b16 %v654
        %v3430 = vunpack.c.h.b16 %v654
        %v3431 = vunpack.c.l.b16 %v655
        %v3432 = vunpack.c.h.b16 %v655
        %v3433 = vunpack.c.l.b16 %v656
        %v3434 = vunpack.c.h.b16 %v656
        %v3435 = vunpack.c.l.b16 %v657
        %v3436 = vunpack.c.h.b16 %v657
        %v3437 = vunpack.c.l.b16 %v658
        %v3438 = vunpack.c.h.b16 %v658
        %v3439 = vunpack.c.l.b16 %v659
        %v3440 = vunpack.c.h.b16 %v659
        %v3441 = vunpack.c.l.b16 %v660
        %v3442 = vunpack.c.h.b16 %v660
        %v3443 = vunpack.c.l.b16 %v661
        %v3444 = vunpack.c.h.b16 %v661
        %v3445 = vunpack.c.l.b16 %v662
        %v3446 = vunpack.c.h.b16 %v662
        %v3447 = vunpack.c.l.b16 %v663
        %v3448 = vunpack.c.h.b16 %v663
        %v3449 = vunpack.c.l.b16 %v664
        %v3450 = vunpack.c.h.b16 %v664
        %v3451 = vunpack.c.l.b16 %v665
        %v3452 = vunpack.c.h.b16 %v665
        %v3453 = vunpack.c.l.b16 %v666
        %v3454 = vunpack.c.h.b16 %v666
        %v3455 = vunpack.c.l.b16 %v667
        %v3456 = vunpack.c.h.b16 %v667
        %v3457 = vunpack.c.l.b16 %v668
        %v3458 = vunpack.c.h.b16 %v668
        %v3459 = vunpack.c.l.b16 %v669
        %v3460 = vunpack.c.h.b16 %v669
        %v3461 = vunpack.c.l.b16 %v670
        %v3462 = vunpack.c.h.b16 %v670
        %v3463 = vunpack.c.l.b16 %v671
        %v3464 = vunpack.c.h.b16 %v671
        %v3465 = vunpack.c.l.b16 %v672
        %v3466 = vunpack.c.h.b16 %v672
        %v3467 = vunpack.c.l.b16 %v673
        %v3468 = vunpack.c.h.b16 %v673
        %v3469 = vunpack.c.l.b16 %v674
        %v3470 = vunpack.c.h.b16 %v674
        %v3471 = vunpack.c.l.b16 %v675
        %v3472 = vunpack.c.h.b16 %v675
        %v3473 = vunpack.c.l.b16 %v676
        %v3474 = vunpack.c.h.b16 %v676
        %v3475 = vunpack.c.l.b16 %v677
        %v3476 = vunpack.c.h.b16 %v677
        %v3477 = vunpack.c.l.b16 %v678
        %v3478 = vunpack.c.h.b16 %v678
        %v3479 = vunpack.c.l.b16 %v679
        %v3480 = vunpack.c.h.b16 %v679
        %v3481 = vunpack.c.l.b16 %v680
        %v3482 = vunpack.c.h.b16 %v680
        %v3483 = vunpack.c.l.b16 %v681
        %v3484 = vunpack.c.h.b16 %v681
        %v3485 = vunpack.c.l.b16 %v682
        %v3486 = vunpack.c.h.b16 %v682
        %v3487 = vunpack.c.l.b16 %v683
        %v3488 = vunpack.c.h.b16 %v683
        %v3489 = vunpack.c.l.b16 %v684
        %v3490 = vunpack.c.h.b16 %v684
        %v3491 = vunpack.c.l.b16 %v685
        %v3492 = vunpack.c.h.b16 %v685
        %v3493 = vunpack.c.l.b16 %v686
        %v3494 = vunpack.c.h.b16 %v686
        %v3495 = vunpack.c.l.b16 %v687
        %v3496 = vunpack.c.h.b16 %v687
        %v3497 = vunpack.c.l.b16 %v688
        %v3498 = vunpack.c.h.b16 %v688
        %v3499 = vunpack.c.l.b16 %v689
        %v3500 = vunpack.c.h.b16 %v689
        %v3501 = vunpack.c.l.b16 %v690
        %v3502 = vunpack.c.h.b16 %v690
        %v3503 = vunpack.c.l.b16 %v691
        %v3504 = vunpack.c.h.b16 %v691
        %v3505 = vunpack.c.l.b16 %v692
        %v3506 = vunpack.c.h.b16 %v692
        %v3507 = vunpack.c.l.b16 %v693
        %v3508 = vunpack.c.h.b16 %v693
        %v3509 = vunpack.c.l.b16 %v694
        %v3510 = vunpack.c.h.b16 %v694
        %v3511 = vunpack.c.l.b16 %v695
        %v3512 = vunpack.c.h.b16 %v695
        %v3513 = vunpack.c.l.b16 %v696
        %v3514 = vunpack.c.h.b16 %v696
        %v3515 = vunpack.c.l.b16 %v697
        %v3516 = vunpack.c.h.b16 %v697
        %v3517 = vunpack.c.l.b16 %v698
        %v3518 = vunpack.c.h.b16 %v698
        %v3519 = vunpack.c.l.b16 %v699
        %v3520 = vunpack.c.h.b16 %v699
        %v3521 = vunpack.c.l.b16 %v700
        %v3522 = vunpack.c.h.b16 %v700
        %v3523 = vunpack.c.l.b16 %v701
        %v3524 = vunpack.c.h.b16 %v701
        %v3525 = vunpack.c.l.b16 %v702
        %v3526 = vunpack.c.h.b16 %v702
        %v3527 = vunpack.c.l.b16 %v703
        %v3528 = vunpack.c.h.b16 %v703
        %v3529 = vunpack.c.l.b16 %v704
        %v3530 = vunpack.c.h.b16 %v704
        %v3531 = vunpack.c.l.b16 %v705
        %v3532 = vunpack.c.h.b16 %v705
        %v3533 = vunpack.c.l.b16 %v706
        %v3534 = vunpack.c.h.b16 %v706
        %v3535 = vunpack.c.l.b16 %v707
        %v3536 = vunpack.c.h.b16 %v707
        %v3537 = vunpack.c.l.b16 %v708
        %v3538 = vunpack.c.h.b16 %v708
        %v3539 = vunpack.c.l.b16 %v709
        %v3540 = vunpack.c.h.b16 %v709
        %v3541 = vunpack.c.l.b16 %v710
        %v3542 = vunpack.c.h.b16 %v710
        %v3543 = vunpack.c.l.b16 %v711
        %v3544 = vunpack.c.h.b16 %v711
        %v3545 = vunpack.c.l.b16 %v712
        %v3546 = vunpack.c.h.b16 %v712
        %v3547 = vunpack.c.l.b16 %v713
        %v3548 = vunpack.c.h.b16 %v713
        %v3549 = vunpack.c.l.b16 %v714
        %v3550 = vunpack.c.h.b16 %v714
        %v3551 = vunpack.c.l.b16 %v715
        %v3552 = vunpack.c.h.b16 %v715
        %v3553 = vunpack.c.l.b16 %v716
        %v3554 = vunpack.c.h.b16 %v716
        %v3555 = vunpack.c.l.b16 %v717
        %v3556 = vunpack.c.h.b16 %v717
        %v3557 = vunpack.c.l.b16 %v718
        %v3558 = vunpack.c.h.b16 %v718
        %v3559 = vunpack.c.l.b16 %v719
        %v3560 = vunpack.c.h.b16 %v719
        %v3561 = vunpack.c.l.b16 %v720
        %v3562 = vunpack.c.h.b16 %v720
        %v3563 = vunpack.c.l.b16 %v721
        %v3564 = vunpack.c.h.b16 %v721
        %v3565 = vunpack.c.l.b16 %v722
        %v3566 = vunpack.c.h.b16 %v722
        %v3567 = vunpack.c.l.b16 %v723
        %v3568 = vunpack.c.h.b16 %v723
        %v3569 = vunpack.c.l.b16 %v724
        %v3570 = vunpack.c.h.b16 %v724
        %v3571 = vunpack.c.l.b16 %v725
        %v3572 = vunpack.c.h.b16 %v725
        %v3573 = vunpack.c.l.b16 %v726
        %v3574 = vunpack.c.h.b16 %v726
        %v3575 = vunpack.c.l.b16 %v727
        %v3576 = vunpack.c.h.b16 %v727
        %v3577 = vunpack.c.l.b16 %v728
        %v3578 = vunpack.c.h.b16 %v728
        %v3579 = vunpack.c.l.b16 %v729
        %v3580 = vunpack.c.h.b16 %v729
        %v3581 = vunpack.c.l.b16 %v730
        %v3582 = vunpack.c.h.b16 %v730
        %v3583 = vunpack.c.l.b16 %v731
        %v3584 = vunpack.c.h.b16 %v731
        %v3585 = vunpack.c.l.b16 %v732
        %v3586 = vunpack.c.h.b16 %v732
        %v3587 = vunpack.c.l.b16 %v733
        %v3588 = vunpack.c.h.b16 %v733
        %v3589 = vunpack.c.l.b16 %v734
        %v3590 = vunpack.c.h.b16 %v734
        %v3591 = vunpack.c.l.b16 %v735
        %v3592 = vunpack.c.h.b16 %v735
        %v3593 = vunpack.c.l.b16 %v736
        %v3594 = vunpack.c.h.b16 %v736
        %v3595 = vunpack.c.l.b16 %v737
        %v3596 = vunpack.c.h.b16 %v737
        %v3597 = vunpack.c.l.b16 %v738
        %v3598 = vunpack.c.h.b16 %v738
        %v3599 = vunpack.c.l.b16 %v739
        %v3600 = vunpack.c.h.b16 %v739
        %v3601 = vunpack.c.l.b16 %v740
        %v3602 = vunpack.c.h.b16 %v740
        %v3603 = vunpack.c.l.b16 %v741
        %v3604 = vunpack.c.h.b16 %v741
        %v3605 = vunpack.c.l.b16 %v742
        %v3606 = vunpack.c.h.b16 %v742
        %v3607 = vunpack.c.l.b16 %v743
        %v3608 = vunpack.c.h.b16 %v743
        %v3609 = vunpack.c.l.b16 %v744
        %v3610 = vunpack.c.h.b16 %v744
        %v3611 = vunpack.c.l.b16 %v745
        %v3612 = vunpack.c.h.b16 %v745
        %v3613 = vunpack.c.l.b16 %v746
        %v3614 = vunpack.c.h.b16 %v746
        %v3615 = vunpack.c.l.b16 %v747
        %v3616 = vunpack.c.h.b16 %v747
        %v3617 = vunpack.c.l.b16 %v748
        %v3618 = vunpack.c.h.b16 %v748
        %v3619 = vunpack.c.l.b16 %v749
        %v3620 = vunpack.c.h.b16 %v749
        %v3621 = vunpack.c.l.b16 %v750
        %v3622 = vunpack.c.h.b16 %v750
        %v3623 = vunpack.c.l.b16 %v751
        %v3624 = vunpack.c.h.b16 %v751
        %v3625 = vunpack.c.l.b16 %v752
        %v3626 = vunpack.c.h.b16 %v752
        %v3627 = vunpack.c.l.b16 %v753
        %v3628 = vunpack.c.h.b16 %v753
        %v3629 = vunpack.c.l.b16 %v754
        %v3630 = vunpack.c.h.b16 %v754
        %v3631 = vunpack.c.l.b16 %v755
        %v3632 = vunpack.c.h.b16 %v755
        %v3633 = vunpack.c.l.b16 %v756
        %v3634 = vunpack.c.h.b16 %v756
        %v3635 = vunpack.c.l.b16 %v757
        %v3636 = vunpack.c.h.b16 %v757
        %v3637 = vunpack.c.l.b16 %v758
        %v3638 = vunpack.c.h.b16 %v758
        %v3639 = vunpack.c.l.b16 %v759
        %v3640 = vunpack.c.h.b16 %v759
        %v3641 = vunpack.c.l.b16 %v760
        %v3642 = vunpack.c.h.b16 %v760
        %v3643 = vunpack.c.l.b16 %v761
        %v3644 = vunpack.c.h.b16 %v761
        %v3645 = vunpack.c.l.b16 %v762
        %v3646 = vunpack.c.h.b16 %v762
        %v3647 = vunpack.c.l.b16 %v763
        %v3648 = vunpack.c.h.b16 %v763
        %v3649 = vunpack.c.l.b16 %v764
        %v3650 = vunpack.c.h.b16 %v764
        %v3651 = vunpack.c.l.b16 %v765
        %v3652 = vunpack.c.h.b16 %v765
        %v3653 = vunpack.c.l.b16 %v766
        %v3654 = vunpack.c.h.b16 %v766
        %v3655 = vunpack.c.l.b16 %v767
        %v3656 = vunpack.c.h.b16 %v767
        %v3657 = vunpack.c.l.b16 %v768
        %v3658 = vunpack.c.h.b16 %v768
        %v3659 = vunpack.c.l.b16 %v769
        %v3660 = vunpack.c.h.b16 %v769
        %v3661 = vunpack.c.l.b16 %v770
        %v3662 = vunpack.c.h.b16 %v770
        %v3663 = vunpack.c.l.b16 %v771
        %v3664 = vunpack.c.h.b16 %v771
        %v3665 = vunpack.c.l.b16 %v772
        %v3666 = vunpack.c.h.b16 %v772
        %v3667 = vunpack.c.l.b16 %v773
        %v3668 = vunpack.c.h.b16 %v773
        %v3669 = vunpack.c.l.b16 %v774
        %v3670 = vunpack.c.h.b16 %v774
        %v3671 = vunpack.c.l.b16 %v775
        %v3672 = vunpack.c.h.b16 %v775
        %v3673 = vunpack.c.l.b16 %v776
        %v3674 = vunpack.c.h.b16 %v776
        %v3675 = vunpack.c.l.b16 %v777
        %v3676 = vunpack.c.h.b16 %v777
        %v3677 = vunpack.c.l.b16 %v778
        %v3678 = vunpack.c.h.b16 %v778
        %v3679 = vunpack.c.l.b16 %v779
        %v3680 = vunpack.c.h.b16 %v779
        %v3681 = vunpack.c.l.b16 %v780
        %v3682 = vunpack.c.h.b16 %v780
        %v3683 = vunpack.c.l.b16 %v781
        %v3684 = vunpack.c.h.b16 %v781
        %v3685 = vunpack.c.l.b16 %v782
        %v3686 = vunpack.c.h.b16 %v782
        %v3687 = vunpack.c.l.b16 %v783
        %v3688 = vunpack.c.h.b16 %v783
        %v3689 = vunpack.c.l.b16 %v784
        %v3690 = vunpack.c.h.b16 %v784
        %v3691 = vunpack.c.l.b16 %v785
        %v3692 = vunpack.c.h.b16 %v785
        %v3693 = vunpack.c.l.b16 %v786
        %v3694 = vunpack.c.h.b16 %v786
        %v3695 = vunpack.c.l.b16 %v787
        %v3696 = vunpack.c.h.b16 %v787
        %v3697 = vunpack.c.l.b16 %v788
        %v3698 = vunpack.c.h.b16 %v788
        %v3699 = vunpack.c.l.b16 %v789
        %v3700 = vunpack.c.h.b16 %v789
        %v3701 = vunpack.c.l.b16 %v790
        %v3702 = vunpack.c.h.b16 %v790
        %v3703 = vunpack.c.l.b16 %v791
        %v3704 = vunpack.c.h.b16 %v791
        %v3705 = vunpack.c.l.b16 %v792
        %v3706 = vunpack.c.h.b16 %v792
        %v3707 = vunpack.c.l.b16 %v793
        %v3708 = vunpack.c.h.b16 %v793
        %v3709 = vunpack.c.l.b16 %v794
        %v3710 = vunpack.c.h.b16 %v794
        %v3711 = vunpack.c.l.b16 %v795
        %v3712 = vunpack.c.h.b16 %v795
        %v3713 = vunpack.c.l.b16 %v796
        %v3714 = vunpack.c.h.b16 %v796
        %v3715 = vunpack.c.l.b16 %v797
        %v3716 = vunpack.c.h.b16 %v797
        %v3717 = vunpack.c.l.b16 %v798
        %v3718 = vunpack.c.h.b16 %v798
        %v3719 = vunpack.c.l.b16 %v799
        %v3720 = vunpack.c.h.b16 %v799
        %v3721 = vunpack.c.l.b16 %v800
        %v3722 = vunpack.c.h.b16 %v800
        %v3723 = vunpack.c.l.b16 %v801
        %v3724 = vunpack.c.h.b16 %v801
        %v3725 = vunpack.c.l.b16 %v802
        %v3726 = vunpack.c.h.b16 %v802
        %v3727 = vunpack.c.l.b16 %v803
        %v3728 = vunpack.c.h.b16 %v803
        %v3729 = vunpack.c.l.b16 %v804
        %v3730 = vunpack.c.h.b16 %v804
        %v3731 = vunpack.c.l.b16 %v805
        %v3732 = vunpack.c.h.b16 %v805
        %v3733 = vunpack.c.l.b16 %v806
        %v3734 = vunpack.c.h.b16 %v806
        %v3735 = vunpack.c.l.b16 %v807
        %v3736 = vunpack.c.h.b16 %v807
        %v3737 = vunpack.c.l.b16 %v808
        %v3738 = vunpack.c.h.b16 %v808
        %v3739 = vunpack.c.l.b16 %v809
        %v3740 = vunpack.c.h.b16 %v809
        %v3741 = vunpack.c.l.b16 %v810
        %v3742 = vunpack.c.h.b16 %v810
        %v3743 = vunpack.c.l.b16 %v811
        %v3744 = vunpack.c.h.b16 %v811
        %v3745 = vunpack.c.l.b16 %v812
        %v3746 = vunpack.c.h.b16 %v812
        %v3747 = vunpack.c.l.b16 %v813
        %v3748 = vunpack.c.h.b16 %v813
        %v3749 = vunpack.c.l.b16 %v814
        %v3750 = vunpack.c.h.b16 %v814
        %v3751 = vunpack.c.l.b16 %v815
        %v3752 = vunpack.c.h.b16 %v815
        %v3753 = vunpack.c.l.b16 %v816
        %v3754 = vunpack.c.h.b16 %v816
        %v3755 = vunpack.c.l.b16 %v817
        %v3756 = vunpack.c.h.b16 %v817
        %v3757 = vunpack.c.l.b16 %v818
        %v3758 = vunpack.c.h.b16 %v818
        %v3759 = vunpack.c.l.b16 %v819
        %v3760 = vunpack.c.h.b16 %v819
        %v3761 = vunpack.c.l.b16 %v820
        %v3762 = vunpack.c.h.b16 %v820
        %v3763 = vunpack.c.l.b16 %v821
        %v3764 = vunpack.c.h.b16 %v821
        %v3765 = vunpack.c.l.b16 %v822
        %v3766 = vunpack.c.h.b16 %v822
        %v3767 = vunpack.c.l.b16 %v823
        %v3768 = vunpack.c.h.b16 %v823
        %v3769 = vunpack.c.l.b16 %v824
        %v3770 = vunpack.c.h.b16 %v824
        %v3771 = vunpack.c.l.b16 %v825
        %v3772 = vunpack.c.h.b16 %v825
        %v3773 = vunpack.c.l.b16 %v826
        %v3774 = vunpack.c.h.b16 %v826
        %v3775 = vunpack.c.l.b16 %v827
        %v3776 = vunpack.c.h.b16 %v827
        %v3777 = vunpack.c.l.b16 %v828
        %v3778 = vunpack.c.h.b16 %v828
        %v3779 = vunpack.c.l.b16 %v829
        %v3780 = vunpack.c.h.b16 %v829
        %v3781 = vunpack.c.l.b16 %v830
        %v3782 = vunpack.c.h.b16 %v830
        %v3783 = vunpack.c.l.b16 %v831
        %v3784 = vunpack.c.h.b16 %v831
        %v3785 = vunpack.c.l.b16 %v832
        %v3786 = vunpack.c.h.b16 %v832
        %v3787 = vunpack.c.l.b16 %v833
        %v3788 = vunpack.c.h.b16 %v833
        %v3789 = vunpack.c.l.b16 %v834
        %v3790 = vunpack.c.h.b16 %v834
        %v3791 = vunpack.c.l.b16 %v835
        %v3792 = vunpack.c.h.b16 %v835
        %v3793 = vunpack.c.l.b16 %v836
        %v3794 = vunpack.c.h.b16 %v836
        %v3795 = vunpack.c.l.b16 %v837
        %v3796 = vunpack.c.h.b16 %v837
        %v3797 = vunpack.c.l.b16 %v838
        %v3798 = vunpack.c.h.b16 %v838
        %v3799 = vunpack.c.l.b16 %v839
        %v3800 = vunpack.c.h.b16 %v839
        %v3801 = vunpack.c.l.b16 %v840
        %v3802 = vunpack.c.h.b16 %v840
        %v3803 = vunpack.c.l.b16 %v841
        %v3804 = vunpack.c.h.b16 %v841
        %v3805 = vunpack.c.l.b16 %v842
        %v3806 = vunpack.c.h.b16 %v842
        %v3807 = vunpack.c.l.b16 %v843
        %v3808 = vunpack.c.h.b16 %v843
        %v3809 = vunpack.c.l.b16 %v844
        %v3810 = vunpack.c.h.b16 %v844
        %v3811 = vunpack.c.l.b16 %v845
        %v3812 = vunpack.c.h.b16 %v845
        %v3813 = vunpack.c.l.b16 %v846
        %v3814 = vunpack.c.h.b16 %v846
        %v3815 = vunpack.c.l.b16 %v847
        %v3816 = vunpack.c.h.b16 %v847
        %v3817 = vunpack.c.l.b16 %v848
        %v3818 = vunpack.c.h.b16 %v848
        %v3819 = vunpack.c.l.b16 %v849
        %v3820 = vunpack.c.h.b16 %v849
        %v3821 = vunpack.c.l.b16 %v850
        %v3822 = vunpack.c.h.b16 %v850
        %v3823 = vunpack.c.l.b16 %v851
        %v3824 = vunpack.c.h.b16 %v851
        %v3825 = vunpack.c.l.b16 %v852
        %v3826 = vunpack.c.h.b16 %v852
        %v3827 = vunpack.c.l.b16 %v853
        %v3828 = vunpack.c.h.b16 %v853
        %v3829 = vunpack.c.l.b16 %v854
        %v3830 = vunpack.c.h.b16 %v854
        %v3831 = vunpack.c.l.b16 %v855
        %v3832 = vunpack.c.h.b16 %v855
        %v3833 = vunpack.c.l.b16 %v856
        %v3834 = vunpack.c.h.b16 %v856
        %v3835 = vunpack.c.l.b16 %v857
        %v3836 = vunpack.c.h.b16 %v857
        %v3837 = vunpack.c.l.b16 %v858
        %v3838 = vunpack.c.h.b16 %v858
        %v3839 = vunpack.c.l.b16 %v859
        %v3840 = vunpack.c.h.b16 %v859
        %v3841 = vunpack.c.l.b16 %v860
        %v3842 = vunpack.c.h.b16 %v860
        %v3843 = vunpack.c.l.b16 %v861
        %v3844 = vunpack.c.h.b16 %v861
        %v3845 = vunpack.c.l.b16 %v862
        %v3846 = vunpack.c.h.b16 %v862
        %v3847 = vunpack.c.l.b16 %v863
        %v3848 = vunpack.c.h.b16 %v863
        %v3849 = vunpack.c.l.b16 %v864
        %v3850 = vunpack.c.h.b16 %v864
        %v3851 = vunpack.c.l.b16 %v865
        %v3852 = vunpack.c.h.b16 %v865
        %v3853 = vunpack.c.l.b16 %v866
        %v3854 = vunpack.c.h.b16 %v866
        %v3855 = vunpack.c.l.b16 %v867
        %v3856 = vunpack.c.h.b16 %v867
        %v3857 = vunpack.c.l.b16 %v868
        %v3858 = vunpack.c.h.b16 %v868
        %v3859 = vunpack.c.l.b16 %v869
        %v3860 = vunpack.c.h.b16 %v869
        %v3861 = vunpack.c.l.b16 %v870
        %v3862 = vunpack.c.h.b16 %v870
        %v3863 = vunpack.c.l.b16 %v871
        %v3864 = vunpack.c.h.b16 %v871
        %v3865 = vunpack.c.l.b16 %v872
        %v3866 = vunpack.c.h.b16 %v872
        %v3867 = vunpack.c.l.b16 %v873
        %v3868 = vunpack.c.h.b16 %v873
        %v3869 = vunpack.c.l.b16 %v874
        %v3870 = vunpack.c.h.b16 %v874
        %v3871 = vunpack.c.l.b16 %v875
        %v3872 = vunpack.c.h.b16 %v875
        %v3873 = vunpack.c.l.b16 %v876
        %v3874 = vunpack.c.h.b16 %v876
        %v3875 = vunpack.c.l.b16 %v877
        %v3876 = vunpack.c.h.b16 %v877
        %v3877 = vunpack.c.l.b16 %v878
        %v3878 = vunpack.c.h.b16 %v878
        %v3879 = vunpack.c.l.b16 %v879
        %v3880 = vunpack.c.h.b16 %v879
        %v3881 = vunpack.c.l.b16 %v880
        %v3882 = vunpack.c.h.b16 %v880
        %v3883 = vunpack.c.l.b16 %v881
        %v3884 = vunpack.c.h.b16 %v881
        %v3885 = vunpack.c.l.b16 %v882
        %v3886 = vunpack.c.h.b16 %v882
        %v3887 = vunpack.c.l.b16 %v883
        %v3888 = vunpack.c.h.b16 %v883
        %v3889 = vunpack.c.l.b16 %v884
        %v3890 = vunpack.c.h.b16 %v884
        %v3891 = vunpack.c.l.b16 %v885
        %v3892 = vunpack.c.h.b16 %v885
        %v3893 = vunpack.c.l.b16 %v886
        %v3894 = vunpack.c.h.b16 %v886
        %v3895 = vunpack.c.l.b16 %v887
        %v3896 = vunpack.c.h.b16 %v887
        %v3897 = vunpack.c.l.b16 %v888
        %v3898 = vunpack.c.h.b16 %v888
        %v3899 = vunpack.c.l.b16 %v889
        %v3900 = vunpack.c.h.b16 %v889
        %v3901 = vunpack.c.l.b16 %v890
        %v3902 = vunpack.c.h.b16 %v890
        %v3903 = vunpack.c.l.b16 %v891
        %v3904 = vunpack.c.h.b16 %v891
        %v3905 = vunpack.c.l.b16 %v892
        %v3906 = vunpack.c.h.b16 %v892
        %v3907 = vunpack.c.l.b16 %v893
        %v3908 = vunpack.c.h.b16 %v893
        %v3909 = vunpack.c.l.b16 %v894
        %v3910 = vunpack.c.h.b16 %v894
        %v3911 = vunpack.c.l.b16 %v895
        %v3912 = vunpack.c.h.b16 %v895
        %v3913 = vunpack.c.l.b16 %v896
        %v3914 = vunpack.c.h.b16 %v896
        %v3915 = vunpack.c.l.b16 %v897
        %v3916 = vunpack.c.h.b16 %v897
        %v3917 = vunpack.c.l.b16 %v898
        %v3918 = vunpack.c.h.b16 %v898
        %v3919 = vunpack.c.l.b16 %v899
        %v3920 = vunpack.c.h.b16 %v899
        %v3921 = vunpack.c.l.b16 %v900
        %v3922 = vunpack.c.h.b16 %v900
        %v3923 = vunpack.c.l.b16 %v901
        %v3924 = vunpack.c.h.b16 %v901
        %v3925 = vunpack.c.l.b16 %v902
        %v3926 = vunpack.c.h.b16 %v902
        %v3927 = vunpack.c.l.b16 %v903
        %v3928 = vunpack.c.h.b16 %v903
        %v3929 = vunpack.c.l.b16 %v904
        %v3930 = vunpack.c.h.b16 %v904
        %v3931 = vunpack.c.l.b16 %v905
        %v3932 = vunpack.c.h.b16 %v905
        %v3933 = vunpack.c.l.b16 %v906
        %v3934 = vunpack.c.h.b16 %v906
        %v3935 = vunpack.c.l.b16 %v907
        %v3936 = vunpack.c.h.b16 %v907
        %v3937 = vunpack.c.l.b16 %v908
        %v3938 = vunpack.c.h.b16 %v908
        %v3939 = vunpack.c.l.b16 %v909
        %v3940 = vunpack.c.h.b16 %v909
        %v3941 = vunpack.c.l.b16 %v910
        %v3942 = vunpack.c.h.b16 %v910
        %v3943 = vunpack.c.l.b16 %v911
        %v3944 = vunpack.c.h.b16 %v911
        %v3945 = vunpack.c.l.b16 %v912
        %v3946 = vunpack.c.h.b16 %v912
        %v3947 = vunpack.c.l.b16 %v913
        %v3948 = vunpack.c.h.b16 %v913
        %v3949 = vunpack.c.l.b16 %v914
        %v3950 = vunpack.c.h.b16 %v914
        %v3951 = vunpack.c.l.b16 %v915
        %v3952 = vunpack.c.h.b16 %v915
        %v3953 = vunpack.c.l.b16 %v916
        %v3954 = vunpack.c.h.b16 %v916
        %v3955 = vunpack.c.l.b16 %v917
        %v3956 = vunpack.c.h.b16 %v917
        %v3957 = vunpack.c.l.b16 %v918
        %v3958 = vunpack.c.h.b16 %v918
        %v3959 = vunpack.c.l.b16 %v919
        %v3960 = vunpack.c.h.b16 %v919
        %v3961 = vunpack.c.l.b16 %v920
        %v3962 = vunpack.c.h.b16 %v920
        %v3963 = vunpack.c.l.b16 %v921
        %v3964 = vunpack.c.h.b16 %v921
        %v3965 = vunpack.c.l.b16 %v922
        %v3966 = vunpack.c.h.b16 %v922
        %v3967 = vunpack.c.l.b16 %v923
        %v3968 = vunpack.c.h.b16 %v923
        %v3969 = vunpack.c.l.b16 %v924
        %v3970 = vunpack.c.h.b16 %v924
        %v3971 = vunpack.c.l.b16 %v925
        %v3972 = vunpack.c.h.b16 %v925
        %v3973 = vunpack.c.l.b16 %v926
        %v3974 = vunpack.c.h.b16 %v926
        %v3975 = vunpack.c.l.b16 %v927
        %v3976 = vunpack.c.h.b16 %v927
        %v3977 = vunpack.c.l.b16 %v928
        %v3978 = vunpack.c.h.b16 %v928
        %v3979 = vunpack.c.l.b16 %v929
        %v3980 = vunpack.c.h.b16 %v929
        %v3981 = vunpack.c.l.b16 %v930
        %v3982 = vunpack.c.h.b16 %v930
        %v3983 = vunpack.c.l.b16 %v931
        %v3984 = vunpack.c.h.b16 %v931
        %v3985 = vunpack.c.l.b16 %v932
        %v3986 = vunpack.c.h.b16 %v932
        %v3987 = vunpack.c.l.b16 %v933
        %v3988 = vunpack.c.h.b16 %v933
        %v3989 = vunpack.c.l.b16 %v934
        %v3990 = vunpack.c.h.b16 %v934
        %v3991 = vunpack.c.l.b16 %v935
        %v3992 = vunpack.c.h.b16 %v935
        %v3993 = vunpack.c.l.b16 %v936
        %v3994 = vunpack.c.h.b16 %v936
        %v3995 = vunpack.c.l.b16 %v937
        %v3996 = vunpack.c.h.b16 %v937
        %v3997 = vunpack.c.l.b16 %v938
        %v3998 = vunpack.c.h.b16 %v938
        %v3999 = vunpack.c.l.b16 %v939
        %v4000 = vunpack.c.h.b16 %v939
        %v4001 = vunpack.c.l.b16 %v940
        %v4002 = vunpack.c.h.b16 %v940
        %v4003 = vunpack.c.l.b16 %v941
        %v4004 = vunpack.c.h.b16 %v941
        %v4005 = vunpack.c.l.b16 %v942
        %v4006 = vunpack.c.h.b16 %v942
        %v4007 = vunpack.c.l.b16 %v943
        %v4008 = vunpack.c.h.b16 %v943
        %v4009 = vunpack.c.l.b16 %v944
        %v4010 = vunpack.c.h.b16 %v944
        %v4011 = vunpack.c.l.b16 %v945
        %v4012 = vunpack.c.h.b16 %v945
        %v4013 = vunpack.c.l.b16 %v946
        %v4014 = vunpack.c.h.b16 %v946
        %v4015 = vunpack.c.l.b16 %v947
        %v4016 = vunpack.c.h.b16 %v947
        %v4017 = vunpack.c.l.b16 %v948
        %v4018 = vunpack.c.h.b16 %v948
        %v4019 = vunpack.c.l.b16 %v949
        %v4020 = vunpack.c.h.b16 %v949
        %v4021 = vunpack.c.l.b16 %v950
        %v4022 = vunpack.c.h.b16 %v950
        %v4023 = vunpack.c.l.b16 %v951
        %v4024 = vunpack.c.h.b16 %v951
        %v4025 = vunpack.c.l.b16 %v952
        %v4026 = vunpack.c.h.b16 %v952
        %v4027 = vunpack.c.l.b16 %v953
        %v4028 = vunpack.c.h.b16 %v953
        %v4029 = vunpack.c.l.b16 %v954
        %v4030 = vunpack.c.h.b16 %v954
        %v4031 = vunpack.c.l.b16 %v955
        %v4032 = vunpack.c.h.b16 %v955
        %v4033 = vunpack.c.l.b16 %v956
        %v4034 = vunpack.c.h.b16 %v956
        %v4035 = vunpack.c.l.b16 %v957
        %v4036 = vunpack.c.h.b16 %v957
        %v4037 = vunpack.c.l.b16 %v958
        %v4038 = vunpack.c.h.b16 %v958
        %v4039 = vunpack.c.l.b16 %v959
        %v4040 = vunpack.c.h.b16 %v959
        %v4041 = vunpack.c.l.b16 %v960
        %v4042 = vunpack.c.h.b16 %v960
        %v4043 = vunpack.c.l.b16 %v961
        %v4044 = vunpack.c.h.b16 %v961
        %v4045 = vunpack.c.l.b16 %v962
        %v4046 = vunpack.c.h.b16 %v962
        %v4047 = vunpack.c.l.b16 %v963
        %v4048 = vunpack.c.h.b16 %v963
        %v4049 = vunpack.c.l.b16 %v964
        %v4050 = vunpack.c.h.b16 %v964
        %v4051 = vunpack.c.l.b16 %v965
        %v4052 = vunpack.c.h.b16 %v965
        %v4053 = vunpack.c.l.b16 %v966
        %v4054 = vunpack.c.h.b16 %v966
        %v4055 = vunpack.c.l.b16 %v967
        %v4056 = vunpack.c.h.b16 %v967
        %v4057 = vunpack.c.l.b16 %v968
        %v4058 = vunpack.c.h.b16 %v968
        %v4059 = vunpack.c.l.b16 %v969
        %v4060 = vunpack.c.h.b16 %v969
        %v4061 = vunpack.c.l.b16 %v970
        %v4062 = vunpack.c.h.b16 %v970
        %v4063 = vunpack.c.l.b16 %v971
        %v4064 = vunpack.c.h.b16 %v971
        %v4065 = vunpack.c.l.b16 %v972
        %v4066 = vunpack.c.h.b16 %v972
        %v4067 = vunpack.c.l.b16 %v973
        %v4068 = vunpack.c.h.b16 %v973
        %v4069 = vunpack.c.l.b16 %v974
        %v4070 = vunpack.c.h.b16 %v974
        %v4071 = vunpack.c.l.b16 %v975
        %v4072 = vunpack.c.h.b16 %v975
        %v4073 = vunpack.c.l.b16 %v976
        %v4074 = vunpack.c.h.b16 %v976
        %v4075 = vunpack.c.l.b16 %v977
        %v4076 = vunpack.c.h.b16 %v977
        %v4077 = vunpack.c.l.b16 %v978
        %v4078 = vunpack.c.h.b16 %v978
        %v4079 = vunpack.c.l.b16 %v979
        %v4080 = vunpack.c.h.b16 %v979
        %v4081 = vunpack.c.l.b16 %v980
        %v4082 = vunpack.c.h.b16 %v980
        %v4083 = vunpack.c.l.b16 %v981
        %v4084 = vunpack.c.h.b16 %v981
        %v4085 = vunpack.c.l.b16 %v982
        %v4086 = vunpack.c.h.b16 %v982
        %v4087 = vunpack.c.l.b16 %v983
        %v4088 = vunpack.c.h.b16 %v983
        %v4089 = vunpack.c.l.b16 %v984
        %v4090 = vunpack.c.h.b16 %v984
        %v4091 = vunpack.c.l.b16 %v985
        %v4092 = vunpack.c.h.b16 %v985
        %v4093 = vunpack.c.l.b16 %v986
        %v4094 = vunpack.c.h.b16 %v986
        %v4095 = vunpack.c.l.b16 %v987
        %v4096 = vunpack.c.h.b16 %v987
        %v4097 = vunpack.c.l.b16 %v988
        %v4098 = vunpack.c.h.b16 %v988
        %v4099 = vunpack.c.l.b16 %v989
        %v4100 = vunpack.c.h.b16 %v989
        %v4101 = vunpack.c.l.b16 %v990
        %v4102 = vunpack.c.h.b16 %v990
        %v4103 = vunpack.c.l.b16 %v991
        %v4104 = vunpack.c.h.b16 %v991
        %v4105 = vunpack.c.l.b16 %v992
        %v4106 = vunpack.c.h.b16 %v992
        %v4107 = vunpack.c.l.b16 %v993
        %v4108 = vunpack.c.h.b16 %v993
        %v4109 = vunpack.c.l.b16 %v994
        %v4110 = vunpack.c.h.b16 %v994
        %v4111 = vunpack.c.l.b16 %v995
        %v4112 = vunpack.c.h.b16 %v995
        %v4113 = vunpack.c.l.b16 %v996
        %v4114 = vunpack.c.h.b16 %v996
        %v4115 = vunpack.c.l.b16 %v997
        %v4116 = vunpack.c.h.b16 %v997
        %v4117 = vunpack.c.l.b16 %v998
        %v4118 = vunpack.c.h.b16 %v998
        %v4119 = vunpack.c.l.b16 %v999
        %v4120 = vunpack.c.h.b16 %v999
        %v4121 = vunpack.c.l.b16 %v1000
        %v4122 = vunpack.c.h.b16 %v1000
        %v4123 = vunpack.c.l.b16 %v1001
        %v4124 = vunpack.c.h.b16 %v1001
        %v4125 = vunpack.c.l.b16 %v1002
        %v4126 = vunpack.c.h.b16 %v1002
        %v4127 = vunpack.c.l.b16 %v1003
        %v4128 = vunpack.c.h.b16 %v1003
        %v4129 = vunpack.c.l.b16 %v1004
        %v4130 = vunpack.c.h.b16 %v1004
        %v4131 = vunpack.c.l.b16 %v1005
        %v4132 = vunpack.c.h.b16 %v1005
        %v4133 = vunpack.c.l.b16 %v1006
        %v4134 = vunpack.c.h.b16 %v1006
        %v4135 = vunpack.c.l.b16 %v1007
        %v4136 = vunpack.c.h.b16 %v1007
        %v4137 = vunpack.c.l.b16 %v1008
        %v4138 = vunpack.c.h.b16 %v1008
        %v4139 = vunpack.c.l.b16 %v1009
        %v4140 = vunpack.c.h.b16 %v1009
        %v4141 = vunpack.c.l.b16 %v1010
        %v4142 = vunpack.c.h.b16 %v1010
        %v4143 = vunpack.c.l.b16 %v1011
        %v4144 = vunpack.c.h.b16 %v1011
        %v4145 = vunpack.c.l.b16 %v1012
        %v4146 = vunpack.c.h.b16 %v1012
        %v4147 = vunpack.c.l.b16 %v1013
        %v4148 = vunpack.c.h.b16 %v1013
        %v4149 = vunpack.c.l.b16 %v1014
        %v4150 = vunpack.c.h.b16 %v1014
        %v4151 = vunpack.c.l.b16 %v1015
        %v4152 = vunpack.c.h.b16 %v1015
        %v4153 = vunpack.c.l.b16 %v1016
        %v4154 = vunpack.c.h.b16 %v1016
        %v4155 = vunpack.c.l.b16 %v1017
        %v4156 = vunpack.c.h.b16 %v1017
        %v4157 = vunpack.c.l.b16 %v1018
        %v4158 = vunpack.c.h.b16 %v1018
        %v4159 = vunpack.c.l.b16 %v1019
        %v4160 = vunpack.c.h.b16 %v1019
        %v4161 = vunpack.c.l.b16 %v1020
        %v4162 = vunpack.c.h.b16 %v1020
        %v4163 = vunpack.c.l.b16 %v1021
        %v4164 = vunpack.c.h.b16 %v1021
        %v4165 = vunpack.c.l.b16 %v1022
        %v4166 = vunpack.c.h.b16 %v1022
        %v4167 = vunpack.c.l.b16 %v1023
        %v4168 = vunpack.c.h.b16 %v1023
        %v4169 = vunpack.c.l.b16 %v1024
        %v4170 = vunpack.c.h.b16 %v1024
        %v4171 = vunpack.c.l.b16 %v1025
        %v4172 = vunpack.c.h.b16 %v1025
        %v4173 = vunpack.c.l.b16 %v1026
        %v4174 = vunpack.c.h.b16 %v1026
        %v4175 = vunpack.c.l.b16 %v1027
        %v4176 = vunpack.c.h.b16 %v1027
        %v4177 = vunpack.c.l.b16 %v1028
        %v4178 = vunpack.c.h.b16 %v1028
        %v4179 = vunpack.c.l.b16 %v1029
        %v4180 = vunpack.c.h.b16 %v1029
        %v4181 = vunpack.c.l.b16 %v1030
        %v4182 = vunpack.c.h.b16 %v1030
        %v4183 = vunpack.c.l.b16 %v1031
        %v4184 = vunpack.c.h.b16 %v1031
        %v4185 = vunpack.c.l.b16 %v1032
        %v4186 = vunpack.c.h.b16 %v1032
        %v4187 = vunpack.c.l.b16 %v1033
        %v4188 = vunpack.c.h.b16 %v1033
        %v4189 = vunpack.c.l.b16 %v1034
        %v4190 = vunpack.c.h.b16 %v1034
        %v4191 = vunpack.c.l.b16 %v1035
        %v4192 = vunpack.c.h.b16 %v1035
        %v4193 = vunpack.c.l.b16 %v1036
        %v4194 = vunpack.c.h.b16 %v1036
        %v4195 = vunpack.c.l.b16 %v1037
        %v4196 = vunpack.c.h.b16 %v1037
        %v4197 = vunpack.c.l.b16 %v1038
        %v4198 = vunpack.c.h.b16 %v1038
        %v4199 = vunpack.c.l.b16 %v1039
        %v4200 = vunpack.c.h.b16 %v1039
        %v4201 = vunpack.c.l.b16 %v1040
        %v4202 = vunpack.c.h.b16 %v1040
        %v4203 = vunpack.c.l.b16 %v1041
        %v4204 = vunpack.c.h.b16 %v1041
        %v4205 = vunpack.c.l.b16 %v1042
        %v4206 = vunpack.c.h.b16 %v1042
        %v4207 = vunpack.c.l.b16 %v1043
        %v4208 = vunpack.c.h.b16 %v1043
        %v4209 = vunpack.c.l.b16 %v1044
        %v4210 = vunpack.c.h.b16 %v1044
        %v4211 = vunpack.c.l.b16 %v1045
        %v4212 = vunpack.c.h.b16 %v1045
        %v4213 = vunpack.c.l.b16 %v1046
        %v4214 = vunpack.c.h.b16 %v1046
        %v4215 = vunpack.c.l.b16 %v1047
        %v4216 = vunpack.c.h.b16 %v1047
        %v4217 = vunpack.c.l.b16 %v1048
        %v4218 = vunpack.c.h.b16 %v1048
        %v4219 = vunpack.c.l.b16 %v1049
        %v4220 = vunpack.c.h.b16 %v1049
        %v4221 = vunpack.c.l.b16 %v1050
        %v4222 = vunpack.c.h.b16 %v1050
        %v4223 = vunpack.c.l.b16 %v1051
        %v4224 = vunpack.c.h.b16 %v1051
        %v4225 = vunpack.c.l.b16 %v1052
        %v4226 = vunpack.c.h.b16 %v1052
        %v4227 = vunpack.c.l.b16 %v1053
        %v4228 = vunpack.c.h.b16 %v1053
        %v4229 = vunpack.c.l.b16 %v1054
        %v4230 = vunpack.c.h.b16 %v1054
        %v4231 = vunpack.c.l.b16 %v1055
        %v4232 = vunpack.c.h.b16 %v1055
        %v4233 = vunpack.c.l.b16 %v1056
        %v4234 = vunpack.c.h.b16 %v1056
        %v4235 = vunpack.c.l.b16 %v1057
        %v4236 = vunpack.c.h.b16 %v1057
        %v4237 = vunpack.c.l.b16 %v1058
        %v4238 = vunpack.c.h.b16 %v1058
        %v4239 = vunpack.c.l.b16 %v1059
        %v4240 = vunpack.c.h.b16 %v1059
        %v4241 = vunpack.c.l.b16 %v1060
        %v4242 = vunpack.c.h.b16 %v1060
        %v4243 = vunpack.c.l.b16 %v1061
        %v4244 = vunpack.c.h.b16 %v1061
        %v4245 = vunpack.c.l.b16 %v1062
        %v4246 = vunpack.c.h.b16 %v1062
        %v4247 = vunpack.c.l.b16 %v1063
        %v4248 = vunpack.c.h.b16 %v1063
        %v4249 = vunpack.c.l.b16 %v1064
        %v4250 = vunpack.c.h.b16 %v1064
        %v4251 = vunpack.c.l.b16 %v1065
        %v4252 = vunpack.c.h.b16 %v1065
        %v4253 = vunpack.c.l.b16 %v1066
        %v4254 = vunpack.c.h.b16 %v1066
        %v4255 = vunpack.c.l.b16 %v1067
        %v4256 = vunpack.c.h.b16 %v1067
        %v4257 = vunpack.c.l.b16 %v1068
        %v4258 = vunpack.c.h.b16 %v1068
        %v4259 = vunpack.c.l.b16 %v1069
        %v4260 = vunpack.c.h.b16 %v1069
        %v4261 = vunpack.c.l.b16 %v1070
        %v4262 = vunpack.c.h.b16 %v1070
        %v4263 = vunpack.c.l.b16 %v1071
        %v4264 = vunpack.c.h.b16 %v1071
        %v4265 = vunpack.c.l.b16 %v1072
        %v4266 = vunpack.c.h.b16 %v1072
        %v4267 = vunpack.c.l.b16 %v1073
        %v4268 = vunpack.c.h.b16 %v1073
        %v4269 = vunpack.c.l.b16 %v1074
        %v4270 = vunpack.c.h.b16 %v1074
        %v4271 = vunpack.c.l.b16 %v1075
        %v4272 = vunpack.c.h.b16 %v1075
        %v4273 = vunpack.c.l.b16 %v1076
        %v4274 = vunpack.c.h.b16 %v1076
        %v4275 = vunpack.c.l.b16 %v1077
        %v4276 = vunpack.c.h.b16 %v1077
        %v4277 = vunpack.c.l.b16 %v1078
        %v4278 = vunpack.c.h.b16 %v1078
        %v4279 = vunpack.c.l.b16 %v1079
        %v4280 = vunpack.c.h.b16 %v1079
        %v4281 = vunpack.c.l.b16 %v1080
        %v4282 = vunpack.c.h.b16 %v1080
        %v4283 = vunpack.c.l.b16 %v1081
        %v4284 = vunpack.c.h.b16 %v1081
        %v4285 = vunpack.c.l.b16 %v1082
        %v4286 = vunpack.c.h.b16 %v1082
        %v4287 = vunpack.c.l.b16 %v1083
        %v4288 = vunpack.c.h.b16 %v1083
        %v4289 = vunpack.c.l.b16 %v1084
        %v4290 = vunpack.c.h.b16 %v1084
        %v4291 = vunpack.c.l.b16 %v1085
        %v4292 = vunpack.c.h.b16 %v1085
        %v4293 = vunpack.c.l.b16 %v1086
        %v4294 = vunpack.c.h.b16 %v1086
        %v4295 = vunpack.c.l.b16 %v1087
        %v4296 = vunpack.c.h.b16 %v1087
        %v4297 = vunpack.c.l.b16 %v1088
        %v4298 = vunpack.c.h.b16 %v1088
        %v4299 = vunpack.c.l.b16 %v1089
        %v4300 = vunpack.c.h.b16 %v1089
        %v4301 = vunpack.c.l.b16 %v1090
        %v4302 = vunpack.c.h.b16 %v1090
        %v4303 = vunpack.c.l.b16 %v1091
        %v4304 = vunpack.c.h.b16 %v1091
        %v4305 = vunpack.c.l.b16 %v1092
        %v4306 = vunpack.c.h.b16 %v1092
        %v4307 = vunpack.c.l.b16 %v1093
        %v4308 = vunpack.c.h.b16 %v1093
        %v4309 = vunpack.c.l.b16 %v1094
        %v4310 = vunpack.c.h.b16 %v1094
        %v4311 = vunpack.c.l.b16 %v1095
        %v4312 = vunpack.c.h.b16 %v1095
        %v4313 = vunpack.c.l.b16 %v1096
        %v4314 = vunpack.c.h.b16 %v1096
        %v4315 = vunpack.c.l.b16 %v1097
        %v4316 = vunpack.c.h.b16 %v1097
        %v4317 = vunpack.c.l.b16 %v1098
        %v4318 = vunpack.c.h.b16 %v1098
        %v4319 = vunpack.c.l.b16 %v1099
        %v4320 = vunpack.c.h.b16 %v1099
        %v4321 = vunpack.c.l.b16 %v1100
        %v4322 = vunpack.c.h.b16 %v1100
        %v4323 = vunpack.c.l.b16 %v1101
        %v4324 = vunpack.c.h.b16 %v1101
        %v4325 = vunpack.c.l.b16 %v1102
        %v4326 = vunpack.c.h.b16 %v1102
        %v4327 = vunpack.c.l.b16 %v1103
        %v4328 = vunpack.c.h.b16 %v1103
        %v4329 = vunpack.c.l.b16 %v1104
        %v4330 = vunpack.c.h.b16 %v1104
        %v4331 = vunpack.c.l.b16 %v1105
        %v4332 = vunpack.c.h.b16 %v1105
        %v4333 = vunpack.c.l.b16 %v1106
        %v4334 = vunpack.c.h.b16 %v1106
        %v4335 = vunpack.c.l.b16 %v1107
        %v4336 = vunpack.c.h.b16 %v1107
        %v4337 = vunpack.c.l.b16 %v1108
        %v4338 = vunpack.c.h.b16 %v1108
        %v4339 = vunpack.c.l.b16 %v1109
        %v4340 = vunpack.c.h.b16 %v1109
        %v4341 = vunpack.c.l.b16 %v1110
        %v4342 = vunpack.c.h.b16 %v1110
        %v4343 = vunpack.c.l.b16 %v1111
        %v4344 = vunpack.c.h.b16 %v1111
        %v4345 = vunpack.c.l.b16 %v1112
        %v4346 = vunpack.c.h.b16 %v1112
        %v4347 = vunpack.c.l.b16 %v1113
        %v4348 = vunpack.c.h.b16 %v1113
        %v4349 = vunpack.c.l.b16 %v1114
        %v4350 = vunpack.c.h.b16 %v1114
        %v4351 = vunpack.c.l.b16 %v1115
        %v4352 = vunpack.c.h.b16 %v1115
        %v4353 = vunpack.c.l.b16 %v1116
        %v4354 = vunpack.c.h.b16 %v1116
        %v4355 = vunpack.c.l.b16 %v1117
        %v4356 = vunpack.c.h.b16 %v1117
        %v4357 = vunpack.c.l.b16 %v1118
        %v4358 = vunpack.c.h.b16 %v1118
        %v4359 = vunpack.c.l.b16 %v1119
        %v4360 = vunpack.c.h.b16 %v1119
        %v4361 = vunpack.c.l.b16 %v1120
        %v4362 = vunpack.c.h.b16 %v1120
        %v4363 = vunpack.c.l.b16 %v1121
        %v4364 = vunpack.c.h.b16 %v1121
        %v4365 = vunpack.c.l.b16 %v1122
        %v4366 = vunpack.c.h.b16 %v1122
        %v4367 = vunpack.c.l.b16 %v1123
        %v4368 = vunpack.c.h.b16 %v1123
        %v4369 = vunpack.c.l.b16 %v1124
        %v4370 = vunpack.c.h.b16 %v1124
        %v4371 = vunpack.c.l.b16 %v1125
        %v4372 = vunpack.c.h.b16 %v1125
        %v4373 = vunpack.c.l.b16 %v1126
        %v4374 = vunpack.c.h.b16 %v1126
        %v4375 = vunpack.c.l.b16 %v1127
        %v4376 = vunpack.c.h.b16 %v1127
        %v4377 = vunpack.c.l.b16 %v1128
        %v4378 = vunpack.c.h.b16 %v1128
        %v4379 = vunpack.c.l.b16 %v1129
        %v4380 = vunpack.c.h.b16 %v1129
        %v4381 = vunpack.c.l.b16 %v1130
        %v4382 = vunpack.c.h.b16 %v1130
        %v4383 = vunpack.c.l.b16 %v1131
        %v4384 = vunpack.c.h.b16 %v1131
        %v4385 = vunpack.c.l.b16 %v1132
        %v4386 = vunpack.c.h.b16 %v1132
        %v4387 = vunpack.c.l.b16 %v1133
        %v4388 = vunpack.c.h.b16 %v1133
        %v4389 = vunpack.c.l.b16 %v1134
        %v4390 = vunpack.c.h.b16 %v1134
        %v4391 = vunpack.c.l.b16 %v1135
        %v4392 = vunpack.c.h.b16 %v1135
        %v4393 = vunpack.c.l.b16 %v1136
        %v4394 = vunpack.c.h.b16 %v1136
        %v4395 = vunpack.c.l.b16 %v1137
        %v4396 = vunpack.c.h.b16 %v1137
        %v4397 = vunpack.c.l.b16 %v1138
        %v4398 = vunpack.c.h.b16 %v1138
        %v4399 = vunpack.c.l.b16 %v1139
        %v4400 = vunpack.c.h.b16 %v1139
        %v4401 = vunpack.c.l.b16 %v1140
        %v4402 = vunpack.c.h.b16 %v1140
        %v4403 = vunpack.c.l.b16 %v1141
        %v4404 = vunpack.c.h.b16 %v1141
        %v4405 = vunpack.c.l.b16 %v1142
        %v4406 = vunpack.c.h.b16 %v1142
        %v4407 = vunpack.c.l.b16 %v1143
        %v4408 = vunpack.c.h.b16 %v1143
        %v4409 = vunpack.c.l.b16 %v1144
        %v4410 = vunpack.c.h.b16 %v1144
        %v4411 = vunpack.c.l.b16 %v1145
        %v4412 = vunpack.c.h.b16 %v1145
        %v4413 = vunpack.c.l.b16 %v1146
        %v4414 = vunpack.c.h.b16 %v1146
        %v4415 = vunpack.c.l.b16 %v1147
        %v4416 = vunpack.c.h.b16 %v1147
        %v4417 = vunpack.c.l.b16 %v1148
        %v4418 = vunpack.c.h.b16 %v1148
        %v4419 = vunpack.c.l.b16 %v1149
        %v4420 = vunpack.c.h.b16 %v1149
        %v4421 = vunpack.c.l.b16 %v1150
        %v4422 = vunpack.c.h.b16 %v1150
        %v4423 = vunpack.c.l.b16 %v1151
        %v4424 = vunpack.c.h.b16 %v1151
        %v4425 = vunpack.c.l.b16 %v1152
        %v4426 = vunpack.c.h.b16 %v1152
        %v4427 = vunpack.c.l.b16 %v1153
        %v4428 = vunpack.c.h.b16 %v1153
        %v4429 = vunpack.c.l.b16 %v1154
        %v4430 = vunpack.c.h.b16 %v1154
        %v4431 = vunpack.c.l.b16 %v1155
        %v4432 = vunpack.c.h.b16 %v1155
        %v4433 = vunpack.c.l.b16 %v1156
        %v4434 = vunpack.c.h.b16 %v1156
        %v4435 = vunpack.c.l.b16 %v1157
        %v4436 = vunpack.c.h.b16 %v1157
        %v4437 = vunpack.c.l.b16 %v1158
        %v4438 = vunpack.c.h.b16 %v1158
        %v4439 = vunpack.c.l.b16 %v1159
        %v4440 = vunpack.c.h.b16 %v1159
        %v4441 = vunpack.c.l.b16 %v1160
        %v4442 = vunpack.c.h.b16 %v1160
        %v4443 = vunpack.c.l.b16 %v1161
        %v4444 = vunpack.c.h.b16 %v1161
        %v4445 = vunpack.c.l.b16 %v1162
        %v4446 = vunpack.c.h.b16 %v1162
        %v4447 = vunpack.c.l.b16 %v1163
        %v4448 = vunpack.c.h.b16 %v1163
        %v4449 = vunpack.c.l.b16 %v1164
        %v4450 = vunpack.c.h.b16 %v1164
        %v4451 = vunpack.c.l.b16 %v1165
        %v4452 = vunpack.c.h.b16 %v1165
        %v4453 = vunpack.c.l.b16 %v1166
        %v4454 = vunpack.c.h.b16 %v1166
        %v4455 = vunpack.c.l.b16 %v1167
        %v4456 = vunpack.c.h.b16 %v1167
        %v4457 = vunpack.c.l.b16 %v1168
        %v4458 = vunpack.c.h.b16 %v1168
        %v4459 = vunpack.c.l.b16 %v1169
        %v4460 = vunpack.c.h.b16 %v1169
        %v4461 = vunpack.c.l.b16 %v1170
        %v4462 = vunpack.c.h.b16 %v1170
        %v4463 = vunpack.c.l.b16 %v1171
        %v4464 = vunpack.c.h.b16 %v1171
        %v4465 = vunpack.c.l.b16 %v1172
        %v4466 = vunpack.c.h.b16 %v1172
        %v4467 = vunpack.c.l.b16 %v1173
        %v4468 = vunpack.c.h.b16 %v1173
        %v4469 = vunpack.c.l.b16 %v1174
        %v4470 = vunpack.c.h.b16 %v1174
        %v4471 = vunpack.c.l.b16 %v1175
        %v4472 = vunpack.c.h.b16 %v1175
        %v4473 = vunpack.c.l.b16 %v1176
        %v4474 = vunpack.c.h.b16 %v1176
        %v4475 = vunpack.c.l.b16 %v1177
        %v4476 = vunpack.c.h.b16 %v1177
        %v4477 = vunpack.c.l.b16 %v1178
        %v4478 = vunpack.c.h.b16 %v1178
        %v4479 = vunpack.c.l.b16 %v1179
        %v4480 = vunpack.c.h.b16 %v1179
        %v4481 = vunpack.c.l.b16 %v1180
        %v4482 = vunpack.c.h.b16 %v1180
        %v4483 = vunpack.c.l.b16 %v1181
        %v4484 = vunpack.c.h.b16 %v1181
        %v4485 = vunpack.c.l.b16 %v1182
        %v4486 = vunpack.c.h.b16 %v1182
        %v4487 = vunpack.c.l.b16 %v1183
        %v4488 = vunpack.c.h.b16 %v1183
        %v4489 = vunpack.c.l.b16 %v1184
        %v4490 = vunpack.c.h.b16 %v1184
        %v4491 = vunpack.c.l.b16 %v1185
        %v4492 = vunpack.c.h.b16 %v1185
        %v4493 = vunpack.c.l.b16 %v1186
        %v4494 = vunpack.c.h.b16 %v1186
        %v4495 = vunpack.c.l.b16 %v1187
        %v4496 = vunpack.c.h.b16 %v1187
        %v4497 = vunpack.c.l.b16 %v1188
        %v4498 = vunpack.c.h.b16 %v1188
        %v4499 = vunpack.c.l.b16 %v1189
        %v4500 = vunpack.c.h.b16 %v1189
        %v4501 = vunpack.c.l.b16 %v1190
        %v4502 = vunpack.c.h.b16 %v1190
        %v4503 = vunpack.c.l.b16 %v1191
        %v4504 = vunpack.c.h.b16 %v1191
        %v4505 = vunpack.c.l.b16 %v1192
        %v4506 = vunpack.c.h.b16 %v1192
        %v4507 = vunpack.c.l.b16 %v1193
        %v4508 = vunpack.c.h.b16 %v1193
        %v4509 = vpack.c.b16 %v2591, %v2589
        %v4510 = vpack.c.b16 %v2592, %v2590
        %v4511 = vpack.c.b16 %v2595, %v2593
        %v4512 = vpack.c.b16 %v2596, %v2594
        %v4513 = vpack.c.b16 %v2599, %v2597
        %v4514 = vpack.c.b16 %v2600, %v2598
        %v4515 = vpack.c.b16 %v2603, %v2601
        %v4516 = vpack.c.b16 %v2604, %v2602
        %v4517 = vpack.c.b16 %v2607, %v2605
        %v4518 = vpack.c.b16 %v2608, %v2606
        %v4519 = vpack.c.b16 %v2611, %v2609
        %v4520 = vpack.c.b16 %v2612, %v2610
        %v4521 = vpack.c.b16 %v2615, %v2613
        %v4522 = vpack.c.b16 %v2616, %v2614
        %v4523 = vpack.c.b16 %v2619, %v2617
        %v4524 = vpack.c.b16 %v2620, %v2618
        %v4525 = vpack.c.b16 %v2623, %v2621
        %v4526 = vpack.c.b16 %v2624, %v2622
        %v4527 = vpack.c.b16 %v2627, %v2625
        %v4528 = vpack.c.b16 %v2628, %v2626
        %v4529 = vpack.c.b16 %v2631, %v2629
        %v4530 = vpack.c.b16 %v2632, %v2630
        %v4531 = vpack.c.b16 %v2635, %v2633
        %v4532 = vpack.c.b16 %v2636, %v2634
        %v4533 = vpack.c.b16 %v2639, %v2637
        %v4534 = vpack.c.b16 %v2640, %v2638
        %v4535 = vpack.c.b16 %v2643, %v2641
        %v4536 = vpack.c.b16 %v2644, %v2642
        %v4537 = vpack.c.b16 %v2647, %v2645
        %v4538 = vpack.c.b16 %v2648, %v2646
        %v4539 = vpack.c.b16 %v2651, %v2649
        %v4540 = vpack.c.b16 %v2652, %v2650
        %v4541 = vpack.c.b16 %v2655, %v2653
        %v4542 = vpack.c.b16 %v2656, %v2654
        %v4543 = vpack.c.b16 %v2659, %v2657
        %v4544 = vpack.c.b16 %v2660, %v2658
        %v4545 = vpack.c.b16 %v2663, %v2661
        %v4546 = vpack.c.b16 %v2664, %v2662
        %v4547 = vpack.c.b16 %v2667, %v2665
        %v4548 = vpack.c.b16 %v2668, %v2666
        %v4549 = vpack.c.b16 %v2671, %v2669
        %v4550 = vpack.c.b16 %v2672, %v2670
        %v4551 = vpack.c.b16 %v2675, %v2673
        %v4552 = vpack.c.b16 %v2676, %v2674
        %v4553 = vpack.c.b16 %v2679, %v2677
        %v4554 = vpack.c.b16 %v2680, %v2678
        %v4555 = vpack.c.b16 %v2683, %v2681
        %v4556 = vpack.c.b16 %v2684, %v2682
        %v4557 = vpack.c.b16 %v2687, %v2685
        %v4558 = vpack.c.b16 %v2688, %v2686
        %v4559 = vpack.c.b16 %v2691, %v2689
        %v4560 = vpack.c.b16 %v2692, %v2690
        %v4561 = vpack.c.b16 %v2695, %v2693
        %v4562 = vpack.c.b16 %v2696, %v2694
        %v4563 = vpack.c.b16 %v2699, %v2697
        %v4564 = vpack.c.b16 %v2700, %v2698
        %v4565 = vpack.c.b16 %v2703, %v2701
        %v4566 = vpack.c.b16 %v2704, %v2702
        %v4567 = vpack.c.b16 %v2707, %v2705
        %v4568 = vpack.c.b16 %v2708, %v2706
        %v4569 = vpack.c.b16 %v2711, %v2709
        %v4570 = vpack.c.b16 %v2712, %v2710
        %v4571 = vpack.c.b16 %v2715, %v2713
        %v4572 = vpack.c.b16 %v2716, %v2714
        %v4573 = vpack.c.b16 %v2719, %v2717
        %v4574 = vpack.c.b16 %v2720, %v2718
        %v4575 = vpack.c.b16 %v2723, %v2721
        %v4576 = vpack.c.b16 %v2724, %v2722
        %v4577 = vpack.c.b16 %v2727, %v2725
        %v4578 = vpack.c.b16 %v2728, %v2726
        %v4579 = vpack.c.b16 %v2731, %v2729
        %v4580 = vpack.c.b16 %v2732, %v2730
        %v4581 = vpack.c.b16 %v2735, %v2733
        %v4582 = vpack.c.b16 %v2736, %v2734
        %v4583 = vpack.c.b16 %v2739, %v2737
        %v4584 = vpack.c.b16 %v2740, %v2738
        %v4585 = vpack.c.b16 %v2743, %v2741
        %v4586 = vpack.c.b16 %v2744, %v2742
        %v4587 = vpack.c.b16 %v2747, %v2745
        %v4588 = vpack.c.b16 %v2748, %v2746
        %v4589 = vpack.c.b16 %v2751, %v2749
        %v4590 = vpack.c.b16 %v2752, %v2750
        %v4591 = vpack.c.b16 %v2755, %v2753
        %v4592 = vpack.c.b16 %v2756, %v2754
        %v4593 = vpack.c.b16 %v2759, %v2757
        %v4594 = vpack.c.b16 %v2760, %v2758
        %v4595 = vpack.c.b16 %v2763, %v2761
        %v4596 = vpack.c.b16 %v2764, %v2762
        %v4597 = vpack.c.b16 %v2767, %v2765
        %v4598 = vpack.c.b16 %v2768, %v2766
        %v4599 = vpack.c.b16 %v2771, %v2769
        %v4600 = vpack.c.b16 %v2772, %v2770
        %v4601 = vpack.c.b16 %v2775, %v2773
        %v4602 = vpack.c.b16 %v2776, %v2774
        %v4603 = vpack.c.b16 %v2779, %v2777
        %v4604 = vpack.c.b16 %v2780, %v2778
        %v4605 = vpack.c.b16 %v2783, %v2781
        %v4606 = vpack.c.b16 %v2784, %v2782
        %v4607 = vpack.c.b16 %v2787, %v2785
        %v4608 = vpack.c.b16 %v2788, %v2786
        %v4609 = vpack.c.b16 %v2791, %v2789
        %v4610 = vpack.c.b16 %v2792, %v2790
        %v4611 = vpack.c.b16 %v2795, %v2793
        %v4612 = vpack.c.b16 %v2796, %v2794
        %v4613 = vpack.c.b16 %v2799, %v2797
        %v4614 = vpack.c.b16 %v2800, %v2798
        %v4615 = vpack.c.b16 %v2803, %v2801
        %v4616 = vpack.c.b16 %v2804, %v2802
        %v4617 = vpack.c.b16 %v2807, %v2805
        %v4618 = vpack.c.b16 %v2808, %v2806
        %v4619 = vpack.c.b16 %v2811, %v2809
        %v4620 = vpack.c.b16 %v2812, %v2810
        %v4621 = vpack.c.b16 %v2815, %v2813
        %v4622 = vpack.c.b16 %v2816, %v2814
        %v4623 = vpack.c.b16 %v2819, %v2817
        %v4624 = vpack.c.b16 %v2820, %v2818
        %v4625 = vpack.c.b16 %v2823, %v2821
        %v4626 = vpack.c.b16 %v2824, %v2822
        %v4627 = vpack.c.b16 %v2827, %v2825
        %v4628 = vpack.c.b16 %v2828, %v2826
        %v4629 = vpack.c.b16 %v2831, %v2829
        %v4630 = vpack.c.b16 %v2832, %v2830
        %v4631 = vpack.c.b16 %v2835, %v2833
        %v4632 = vpack.c.b16 %v2836, %v2834
        %v4633 = vpack.c.b16 %v2839, %v2837
        %v4634 = vpack.c.b16 %v2840, %v2838
        %v4635 = vpack.c.b16 %v2843, %v2841
        %v4636 = vpack.c.b16 %v2844, %v2842
        %v4637 = vpack.c.b16 %v2847, %v2845
        %v4638 = vpack.c.b16 %v2848, %v2846
        %v4639 = vpack.c.b16 %v2851, %v2849
        %v4640 = vpack.c.b16 %v2852, %v2850
        %v4641 = vpack.c.b16 %v2855, %v2853
        %v4642 = vpack.c.b16 %v2856, %v2854
        %v4643 = vpack.c.b16 %v2859, %v2857
        %v4644 = vpack.c.b16 %v2860, %v2858
        %v4645 = vpack.c.b16 %v2863, %v2861
        %v4646 = vpack.c.b16 %v2864, %v2862
        %v4647 = vpack.c.b16 %v2867, %v2865
        %v4648 = vpack.c.b16 %v2868, %v2866
        %v4649 = vpack.c.b16 %v2871, %v2869
        %v4650 = vpack.c.b16 %v2872, %v2870
        %v4651 = vpack.c.b16 %v2875, %v2873
        %v4652 = vpack.c.b16 %v2876, %v2874
        %v4653 = vpack.c.b16 %v2879, %v2877
        %v4654 = vpack.c.b16 %v2880, %v2878
        %v4655 = vpack.c.b16 %v2883, %v2881
        %v4656 = vpack.c.b16 %v2884, %v2882
        %v4657 = vpack.c.b16 %v2887, %v2885
        %v4658 = vpack.c.b16 %v2888, %v2886
        %v4659 = vpack.c.b16 %v2891, %v2889
        %v4660 = vpack.c.b16 %v2892, %v2890
        %v4661 = vpack.c.b16 %v2895, %v2893
        %v4662 = vpack.c.b16 %v2896, %v2894
        %v4663 = vpack.c.b16 %v2899, %v2897
        %v4664 = vpack.c.b16 %v2900, %v2898
        %v4665 = vpack.c.b16 %v2903, %v2901
        %v4666 = vpack.c.b16 %v2904, %v2902
        %v4667 = vpack.c.b16 %v2907, %v2905
        %v4668 = vpack.c.b16 %v2908, %v2906
        %v4669 = vpack.c.b16 %v2911, %v2909
        %v4670 = vpack.c.b16 %v2912, %v2910
        %v4671 = vpack.c.b16 %v2915, %v2913
        %v4672 = vpack.c.b16 %v2916, %v2914
        %v4673 = vpack.c.b16 %v2919, %v2917
        %v4674 = vpack.c.b16 %v2920, %v2918
        %v4675 = vpack.c.b16 %v2923, %v2921
        %v4676 = vpack.c.b16 %v2924, %v2922
        %v4677 = vpack.c.b16 %v2927, %v2925
        %v4678 = vpack.c.b16 %v2928, %v2926
        %v4679 = vpack.c.b16 %v2931, %v2929
        %v4680 = vpack.c.b16 %v2932, %v2930
        %v4681 = vpack.c.b16 %v2935, %v2933
        %v4682 = vpack.c.b16 %v2936, %v2934
        %v4683 = vpack.c.b16 %v2939, %v2937
        %v4684 = vpack.c.b16 %v2940, %v2938
        %v4685 = vpack.c.b16 %v2943, %v2941
        %v4686 = vpack.c.b16 %v2944, %v2942
        %v4687 = vpack.c.b16 %v2947, %v2945
        %v4688 = vpack.c.b16 %v2948, %v2946
        %v4689 = vpack.c.b16 %v2951, %v2949
        %v4690 = vpack.c.b16 %v2952, %v2950
        %v4691 = vpack.c.b16 %v2955, %v2953
        %v4692 = vpack.c.b16 %v2956, %v2954
        %v4693 = vpack.c.b16 %v2959, %v2957
        %v4694 = vpack.c.b16 %v2960, %v2958
        %v4695 = vpack.c.b16 %v2963, %v2961
        %v4696 = vpack.c.b16 %v2964, %v2962
        %v4697 = vpack.c.b16 %v2967, %v2965
        %v4698 = vpack.c.b16 %v2968, %v2966
        %v4699 = vpack.c.b16 %v2971, %v2969
        %v4700 = vpack.c.b16 %v2972, %v2970
        %v4701 = vpack.c.b16 %v2975, %v2973
        %v4702 = vpack.c.b16 %v2976, %v2974
        %v4703 = vpack.c.b16 %v2979, %v2977
        %v4704 = vpack.c.b16 %v2980, %v2978
        %v4705 = vpack.c.b16 %v2983, %v2981
        %v4706 = vpack.c.b16 %v2984, %v2982
        %v4707 = vpack.c.b16 %v2987, %v2985
        %v4708 = vpack.c.b16 %v2988, %v2986
        %v4709 = vpack.c.b16 %v2991, %v2989
        %v4710 = vpack.c.b16 %v2992, %v2990
        %v4711 = vpack.c.b16 %v2995, %v2993
        %v4712 = vpack.c.b16 %v2996, %v2994
        %v4713 = vpack.c.b16 %v2999, %v2997
        %v4714 = vpack.c.b16 %v3000, %v2998
        %v4715 = vpack.c.b16 %v3003, %v3001
        %v4716 = vpack.c.b16 %v3004, %v3002
        %v4717 = vpack.c.b16 %v3007, %v3005
        %v4718 = vpack.c.b16 %v3008, %v3006
        %v4719 = vpack.c.b16 %v3011, %v3009
        %v4720 = vpack.c.b16 %v3012, %v3010
        %v4721 = vpack.c.b16 %v3015, %v3013
        %v4722 = vpack.c.b16 %v3016, %v3014
        %v4723 = vpack.c.b16 %v3019, %v3017
        %v4724 = vpack.c.b16 %v3020, %v3018
        %v4725 = vpack.c.b16 %v3023, %v3021
        %v4726 = vpack.c.b16 %v3024, %v3022
        %v4727 = vpack.c.b16 %v3027, %v3025
        %v4728 = vpack.c.b16 %v3028, %v3026
        %v4729 = vpack.c.b16 %v3031, %v3029
        %v4730 = vpack.c.b16 %v3032, %v3030
        %v4731 = vpack.c.b16 %v3035, %v3033
        %v4732 = vpack.c.b16 %v3036, %v3034
        %v4733 = vpack.c.b16 %v3039, %v3037
        %v4734 = vpack.c.b16 %v3040, %v3038
        %v4735 = vpack.c.b16 %v3043, %v3041
        %v4736 = vpack.c.b16 %v3044, %v3042
        %v4737 = vpack.c.b16 %v3047, %v3045
        %v4738 = vpack.c.b16 %v3048, %v3046
        %v4739 = vpack.c.b16 %v3051, %v3049
        %v4740 = vpack.c.b16 %v3052, %v3050
        %v4741 = vpack.c.b16 %v3055, %v3053
        %v4742 = vpack.c.b16 %v3056, %v3054
        %v4743 = vpack.c.b16 %v3059, %v3057
        %v4744 = vpack.c.b16 %v3060, %v3058
        %v4745 = vpack.c.b16 %v3063, %v3061
        %v4746 = vpack.c.b16 %v3064, %v3062
        %v4747 = vpack.c.b16 %v3067, %v3065
        %v4748 = vpack.c.b16 %v3068, %v3066
        %v4749 = vpack.c.b16 %v3071, %v3069
        %v4750 = vpack.c.b16 %v3072, %v3070
        %v4751 = vpack.c.b16 %v3075, %v3073
        %v4752 = vpack.c.b16 %v3076, %v3074
        %v4753 = vpack.c.b16 %v3079, %v3077
        %v4754 = vpack.c.b16 %v3080, %v3078
        %v4755 = vpack.c.b16 %v3083, %v3081
        %v4756 = vpack.c.b16 %v3084, %v3082
        %v4757 = vpack.c.b16 %v3087, %v3085
        %v4758 = vpack.c.b16 %v3088, %v3086
        %v4759 = vpack.c.b16 %v3091, %v3089
        %v4760 = vpack.c.b16 %v3092, %v3090
        %v4761 = vpack.c.b16 %v3095, %v3093
        %v4762 = vpack.c.b16 %v3096, %v3094
        %v4763 = vpack.c.b16 %v3099, %v3097
        %v4764 = vpack.c.b16 %v3100, %v3098
        %v4765 = vpack.c.b16 %v3103, %v3101
        %v4766 = vpack.c.b16 %v3104, %v3102
        %v4767 = vpack.c.b16 %v3107, %v3105
        %v4768 = vpack.c.b16 %v3108, %v3106
        %v4769 = vpack.c.b16 %v3111, %v3109
        %v4770 = vpack.c.b16 %v3112, %v3110
        %v4771 = vpack.c.b16 %v3115, %v3113
        %v4772 = vpack.c.b16 %v3116, %v3114
        %v4773 = vpack.c.b16 %v3119, %v3117
        %v4774 = vpack.c.b16 %v3120, %v3118
        %v4775 = vpack.c.b16 %v3123, %v3121
        %v4776 = vpack.c.b16 %v3124, %v3122
        %v4777 = vpack.c.b16 %v3127, %v3125
        %v4778 = vpack.c.b16 %v3128, %v3126
        %v4779 = vpack.c.b16 %v3131, %v3129
        %v4780 = vpack.c.b16 %v3132, %v3130
        %v4781 = vpack.c.b16 %v3135, %v3133
        %v4782 = vpack.c.b16 %v3136, %v3134
        %v4783 = vpack.c.b16 %v3139, %v3137
        %v4784 = vpack.c.b16 %v3140, %v3138
        %v4785 = vpack.c.b16 %v3143, %v3141
        %v4786 = vpack.c.b16 %v3144, %v3142
        %v4787 = vpack.c.b16 %v3147, %v3145
        %v4788 = vpack.c.b16 %v3148, %v3146
        %v4789 = vpack.c.b16 %v3151, %v3149
        %v4790 = vpack.c.b16 %v3152, %v3150
        %v4791 = vpack.c.b16 %v3155, %v3153
        %v4792 = vpack.c.b16 %v3156, %v3154
        %v4793 = vpack.c.b16 %v3159, %v3157
        %v4794 = vpack.c.b16 %v3160, %v3158
        %v4795 = vpack.c.b16 %v3163, %v3161
        %v4796 = vpack.c.b16 %v3164, %v3162
        %v4797 = vpack.c.b16 %v3167, %v3165
        %v4798 = vpack.c.b16 %v3168, %v3166
        %v4799 = vpack.c.b16 %v3171, %v3169
        %v4800 = vpack.c.b16 %v3172, %v3170
        %v4801 = vpack.c.b16 %v3175, %v3173
        %v4802 = vpack.c.b16 %v3176, %v3174
        %v4803 = vpack.c.b16 %v3179, %v3177
        %v4804 = vpack.c.b16 %v3180, %v3178
        %v4805 = vpack.c.b16 %v3183, %v3181
        %v4806 = vpack.c.b16 %v3184, %v3182
        %v4807 = vpack.c.b16 %v3187, %v3185
        %v4808 = vpack.c.b16 %v3188, %v3186
        %v4809 = vpack.c.b16 %v3191, %v3189
        %v4810 = vpack.c.b16 %v3192, %v3190
        %v4811 = vpack.c.b16 %v3195, %v3193
        %v4812 = vpack.c.b16 %v3196, %v3194
        %v4813 = vpack.c.b16 %v3199, %v3197
        %v4814 = vpack.c.b16 %v3200, %v3198
        %v4815 = vpack.c.b16 %v3203, %v3201
        %v4816 = vpack.c.b16 %v3204, %v3202
        %v4817 = vpack.c.b16 %v3207, %v3205
        %v4818 = vpack.c.b16 %v3208, %v3206
        %v4819 = vpack.c.b16 %v3211, %v3209
        %v4820 = vpack.c.b16 %v3212, %v3210
        %v4821 = vpack.c.b16 %v3215, %v3213
        %v4822 = vpack.c.b16 %v3216, %v3214
        %v4823 = vpack.c.b16 %v3219, %v3217
        %v4824 = vpack.c.b16 %v3220, %v3218
        %v4825 = vpack.c.b16 %v3223, %v3221
        %v4826 = vpack.c.b16 %v3224, %v3222
        %v4827 = vpack.c.b16 %v3227, %v3225
        %v4828 = vpack.c.b16 %v3228, %v3226
        %v4829 = vpack.c.b16 %v3231, %v3229
        %v4830 = vpack.c.b16 %v3232, %v3230
        %v4831 = vpack.c.b16 %v3235, %v3233
        %v4832 = vpack.c.b16 %v3236, %v3234
        %v4833 = vpack.c.b16 %v3239, %v3237
        %v4834 = vpack.c.b16 %v3240, %v3238
        %v4835 = vpack.c.b16 %v3243, %v3241
        %v4836 = vpack.c.b16 %v3244, %v3242
        %v4837 = vpack.c.b16 %v3247, %v3245
        %v4838 = vpack.c.b16 %v3248, %v3246
        %v4839 = vpack.c.b16 %v3251, %v3249
        %v4840 = vpack.c.b16 %v3252, %v3250
        %v4841 = vpack.c.b16 %v3255, %v3253
        %v4842 = vpack.c.b16 %v3256, %v3254
        %v4843 = vpack.c.b16 %v3259, %v3257
        %v4844 = vpack.c.b16 %v3260, %v3258
        %v4845 = vpack.c.b16 %v3263, %v3261
        %v4846 = vpack.c.b16 %v3264, %v3262
        %v4847 = vpack.c.b16 %v3267, %v3265
        %v4848 = vpack.c.b16 %v3268, %v3266
        %v4849 = vpack.c.b16 %v3271, %v3269
        %v4850 = vpack.c.b16 %v3272, %v3270
        %v4851 = vpack.c.b16 %v3275, %v3273
        %v4852 = vpack.c.b16 %v3276, %v3274
        %v4853 = vpack.c.b16 %v3279, %v3277
        %v4854 = vpack.c.b16 %v3280, %v3278
        %v4855 = vpack.c.b16 %v3283, %v3281
        %v4856 = vpack.c.b16 %v3284, %v3282
        %v4857 = vpack.c.b16 %v3287, %v3285
        %v4858 = vpack.c.b16 %v3288, %v3286
        %v4859 = vpack.c.b16 %v3291, %v3289
        %v4860 = vpack.c.b16 %v3292, %v3290
        %v4861 = vpack.c.b16 %v3295, %v3293
        %v4862 = vpack.c.b16 %v3296, %v3294
        %v4863 = vpack.c.b16 %v3299, %v3297
        %v4864 = vpack.c.b16 %v3300, %v3298
        %v4865 = vpack.c.b16 %v3303, %v3301
        %v4866 = vpack.c.b16 %v3304, %v3302
        %v4867 = vpack.c.b16 %v3307, %v3305
        %v4868 = vpack.c.b16 %v3308, %v3306
        %v4869 = vpack.c.b16 %v3311, %v3309
        %v4870 = vpack.c.b16 %v3312, %v3310
        %v4871 = vpack.c.b16 %v3315, %v3313
        %v4872 = vpack.c.b16 %v3316, %v3314
        %v4873 = vpack.c.b16 %v3319, %v3317
        %v4874 = vpack.c.b16 %v3320, %v3318
        %v4875 = vpack.c.b16 %v3323, %v3321
        %v4876 = vpack.c.b16 %v3324, %v3322
        %v4877 = vpack.c.b16 %v3327, %v3325
        %v4878 = vpack.c.b16 %v3328, %v3326
        %v4879 = vpack.c.b16 %v3331, %v3329
        %v4880 = vpack.c.b16 %v3332, %v3330
        %v4881 = vpack.c.b16 %v3335, %v3333
        %v4882 = vpack.c.b16 %v3336, %v3334
        %v4883 = vpack.c.b16 %v3339, %v3337
        %v4884 = vpack.c.b16 %v3340, %v3338
        %v4885 = vpack.c.b16 %v3343, %v3341
        %v4886 = vpack.c.b16 %v3344, %v3342
        %v4887 = vpack.c.b16 %v3347, %v3345
        %v4888 = vpack.c.b16 %v3348, %v3346
        %v4889 = vpack.c.b16 %v3351, %v3349
        %v4890 = vpack.c.b16 %v3352, %v3350
        %v4891 = vpack.c.b16 %v3355, %v3353
        %v4892 = vpack.c.b16 %v3356, %v3354
        %v4893 = vpack.c.b16 %v3359, %v3357
        %v4894 = vpack.c.b16 %v3360, %v3358
        %v4895 = vpack.c.b16 %v3363, %v3361
        %v4896 = vpack.c.b16 %v3364, %v3362
        %v4897 = vpack.c.b16 %v3367, %v3365
        %v4898 = vpack.c.b16 %v3368, %v3366
        %v4899 = vpack.c.b16 %v3371, %v3369
        %v4900 = vpack.c.b16 %v3372, %v3370
        %v4901 = vpack.c.b16 %v3375, %v3373
        %v4902 = vpack.c.b16 %v3376, %v3374
        %v4903 = vpack.c.b16 %v3379, %v3377
        %v4904 = vpack.c.b16 %v3380, %v3378
        %v4905 = vpack.c.b16 %v3383, %v3381
        %v4906 = vpack.c.b16 %v3384, %v3382
        %v4907 = vpack.c.b16 %v3387, %v3385
        %v4908 = vpack.c.b16 %v3388, %v3386
        %v4909 = vpack.c.b16 %v3391, %v3389
        %v4910 = vpack.c.b16 %v3392, %v3390
        %v4911 = vpack.c.b16 %v3395, %v3393
        %v4912 = vpack.c.b16 %v3396, %v3394
        %v4913 = vpack.c.b16 %v3399, %v3397
        %v4914 = vpack.c.b16 %v3400, %v3398
        %v4915 = vpack.c.b16 %v3403, %v3401
        %v4916 = vpack.c.b16 %v3404, %v3402
        %v4917 = vpack.c.b16 %v3407, %v3405
        %v4918 = vpack.c.b16 %v3408, %v3406
        %v4919 = vpack.c.b16 %v3411, %v3409
        %v4920 = vpack.c.b16 %v3412, %v3410
        %v4921 = vpack.c.b16 %v3415, %v3413
        %v4922 = vpack.c.b16 %v3416, %v3414
        %v4923 = vpack.c.b16 %v3419, %v3417
        %v4924 = vpack.c.b16 %v3420, %v3418
        %v4925 = vpack.c.b16 %v3423, %v3421
        %v4926 = vpack.c.b16 %v3424, %v3422
        %v4927 = vpack.c.b16 %v3427, %v3425
        %v4928 = vpack.c.b16 %v3428, %v3426
        %v4929 = vpack.c.b16 %v3431, %v3429
        %v4930 = vpack.c.b16 %v3432, %v3430
        %v4931 = vpack.c.b16 %v3435, %v3433
        %v4932 = vpack.c.b16 %v3436, %v3434
        %v4933 = vpack.c.b16 %v3439, %v3437
        %v4934 = vpack.c.b16 %v3440, %v3438
        %v4935 = vpack.c.b16 %v3443, %v3441
        %v4936 = vpack.c.b16 %v3444, %v3442
        %v4937 = vpack.c.b16 %v3447, %v3445
        %v4938 = vpack.c.b16 %v3448, %v3446
        %v4939 = vpack.c.b16 %v3451, %v3449
        %v4940 = vpack.c.b16 %v3452, %v3450
        %v4941 = vpack.c.b16 %v3455, %v3453
        %v4942 = vpack.c.b16 %v3456, %v3454
        %v4943 = vpack.c.b16 %v3459, %v3457
        %v4944 = vpack.c.b16 %v3460, %v3458
        %v4945 = vpack.c.b16 %v3463, %v3461
        %v4946 = vpack.c.b16 %v3464, %v3462
        %v4947 = vpack.c.b16 %v3467, %v3465
        %v4948 = vpack.c.b16 %v3468, %v3466
        %v4949 = vpack.c.b16 %v3471, %v3469
        %v4950 = vpack.c.b16 %v3472, %v3470
        %v4951 = vpack.c.b16 %v3475, %v3473
        %v4952 = vpack.c.b16 %v3476, %v3474
        %v4953 = vpack.c.b16 %v3479, %v3477
        %v4954 = vpack.c.b16 %v3480, %v3478
        %v4955 = vpack.c.b16 %v3483, %v3481
        %v4956 = vpack.c.b16 %v3484, %v3482
        %v4957 = vpack.c.b16 %v3487, %v3485
        %v4958 = vpack.c.b16 %v3488, %v3486
        %v4959 = vpack.c.b16 %v3491, %v3489
        %v4960 = vpack.c.b16 %v3492, %v3490
        %v4961 = vpack.c.b16 %v3495, %v3493
        %v4962 = vpack.c.b16 %v3496, %v3494
        %v4963 = vpack.c.b16 %v3499, %v3497
        %v4964 = vpack.c.b16 %v3500, %v3498
        %v4965 = vpack.c.b16 %v3503, %v3501
        %v4966 = vpack.c.b16 %v3504, %v3502
        %v4967 = vpack.c.b16 %v3507, %v3505
        %v4968 = vpack.c.b16 %v3508, %v3506
        %v4969 = vpack.c.b16 %v3511, %v3509
        %v4970 = vpack.c.b16 %v3512, %v3510
        %v4971 = vpack.c.b16 %v3515, %v3513
        %v4972 = vpack.c.b16 %v3516, %v3514
        %v4973 = vpack.c.b16 %v3519, %v3517
        %v4974 = vpack.c.b16 %v3520, %v3518
        %v4975 = vpack.c.b16 %v3523, %v3521
        %v4976 = vpack.c.b16 %v3524, %v3522
        %v4977 = vpack.c.b16 %v3527, %v3525
        %v4978 = vpack.c.b16 %v3528, %v3526
        %v4979 = vpack.c.b16 %v3531, %v3529
        %v4980 = vpack.c.b16 %v3532, %v3530
        %v4981 = vpack.c.b16 %v3535, %v3533
        %v4982 = vpack.c.b16 %v3536, %v3534
        %v4983 = vpack.c.b16 %v3539, %v3537
        %v4984 = vpack.c.b16 %v3540, %v3538
        %v4985 = vpack.c.b16 %v3543, %v3541
        %v4986 = vpack.c.b16 %v3544, %v3542
        %v4987 = vpack.c.b16 %v3547, %v3545
        %v4988 = vpack.c.b16 %v3548, %v3546
        %v4989 = vpack.c.b16 %v3551, %v3549
        %v4990 = vpack.c.b16 %v3552, %v3550
        %v4991 = vpack.c.b16 %v3555, %v3553
        %v4992 = vpack.c.b16 %v3556, %v3554
        %v4993 = vpack.c.b16 %v3559, %v3557
        %v4994 = vpack.c.b16 %v3560, %v3558
        %v4995 = vpack.c.b16 %v3563, %v3561
        %v4996 = vpack.c.b16 %v3564, %v3562
        %v4997 = vpack.c.b16 %v3567, %v3565
        %v4998 = vpack.c.b16 %v3568, %v3566
        %v4999 = vpack.c.b16 %v3571, %v3569
        %v5000 = vpack.c.b16 %v3572, %v3570
        %v5001 = vpack.c.b16 %v3575, %v3573
        %v5002 = vpack.c.b16 %v3576, %v3574
        %v5003 = vpack.c.b16 %v3579, %v3577
        %v5004 = vpack.c.b16 %v3580, %v3578
        %v5005 = vpack.c.b16 %v3583, %v3581
        %v5006 = vpack.c.b16 %v3584, %v3582
        %v5007 = vpack.c.b16 %v3587, %v3585
        %v5008 = vpack.c.b16 %v3588, %v3586
        %v5009 = vpack.c.b16 %v3591, %v3589
        %v5010 = vpack.c.b16 %v3592, %v3590
        %v5011 = vpack.c.b16 %v3595, %v3593
        %v5012 = vpack.c.b16 %v3596, %v3594
        %v5013 = vpack.c.b16 %v3599, %v3597
        %v5014 = vpack.c.b16 %v3600, %v3598
        %v5015 = vpack.c.b16 %v3603, %v3601
        %v5016 = vpack.c.b16 %v3604, %v3602
        %v5017 = vpack.c.b16 %v3607, %v3605
        %v5018 = vpack.c.b16 %v3608, %v3606
        %v5019 = vpack.c.b16 %v3611, %v3609
        %v5020 = vpack.c.b16 %v3612, %v3610
        %v5021 = vpack.c.b16 %v3615, %v3613
        %v5022 = vpack.c.b16 %v3616, %v3614
        %v5023 = vpack.c.b16 %v3619, %v3617
        %v5024 = vpack.c.b16 %v3620, %v3618
        %v5025 = vpack.c.b16 %v3623, %v3621
        %v5026 = vpack.c.b16 %v3624, %v3622
        %v5027 = vpack.c.b16 %v3627, %v3625
        %v5028 = vpack.c.b16 %v3628, %v3626
        %v5029 = vpack.c.b16 %v3631, %v3629
        %v5030 = vpack.c.b16 %v3632, %v3630
        %v5031 = vpack.c.b16 %v3635, %v3633
        %v5032 = vpack.c.b16 %v3636, %v3634
        %v5033 = vpack.c.b16 %v3639, %v3637
        %v5034 = vpack.c.b16 %v3640, %v3638
        %v5035 = vpack.c.b16 %v3643, %v3641
        %v5036 = vpack.c.b16 %v3644, %v3642
        %v5037 = vpack.c.b16 %v3647, %v3645
        %v5038 = vpack.c.b16 %v3648, %v3646
        %v5039 = vpack.c.b16 %v3651, %v3649
        %v5040 = vpack.c.b16 %v3652, %v3650
        %v5041 = vpack.c.b16 %v3655, %v3653
        %v5042 = vpack.c.b16 %v3656, %v3654
        %v5043 = vpack.c.b16 %v3659, %v3657
        %v5044 = vpack.c.b16 %v3660, %v3658
        %v5045 = vpack.c.b16 %v3663, %v3661
        %v5046 = vpack.c.b16 %v3664, %v3662
        %v5047 = vpack.c.b16 %v3667, %v3665
        %v5048 = vpack.c.b16 %v3668, %v3666
        %v5049 = vpack.c.b16 %v3671, %v3669
        %v5050 = vpack.c.b16 %v3672, %v3670
        %v5051 = vpack.c.b16 %v3675, %v3673
        %v5052 = vpack.c.b16 %v3676, %v3674
        %v5053 = vpack.c.b16 %v3679, %v3677
        %v5054 = vpack.c.b16 %v3680, %v3678
        %v5055 = vpack.c.b16 %v3683, %v3681
        %v5056 = vpack.c.b16 %v3684, %v3682
        %v5057 = vpack.c.b16 %v3687, %v3685
        %v5058 = vpack.c.b16 %v3688, %v3686
        %v5059 = vpack.c.b16 %v3691, %v3689
        %v5060 = vpack.c.b16 %v3692, %v3690
        %v5061 = vpack.c.b16 %v3695, %v3693
        %v5062 = vpack.c.b16 %v3696, %v3694
        %v5063 = vpack.c.b16 %v3699, %v3697
        %v5064 = vpack.c.b16 %v3700, %v3698
        %v5065 = vpack.c.b16 %v3703, %v3701
        %v5066 = vpack.c.b16 %v3704, %v3702
        %v5067 = vpack.c.b16 %v3707, %v3705
        %v5068 = vpack.c.b16 %v3708, %v3706
        %v5069 = vpack.c.b16 %v3711, %v3709
        %v5070 = vpack.c.b16 %v3712, %v3710
        %v5071 = vpack.c.b16 %v3715, %v3713
        %v5072 = vpack.c.b16 %v3716, %v3714
        %v5073 = vpack.c.b16 %v3719, %v3717
        %v5074 = vpack.c.b16 %v3720, %v3718
        %v5075 = vpack.c.b16 %v3723, %v3721
        %v5076 = vpack.c.b16 %v3724, %v3722
        %v5077 = vpack.c.b16 %v3727, %v3725
        %v5078 = vpack.c.b16 %v3728, %v3726
        %v5079 = vpack.c.b16 %v3731, %v3729
        %v5080 = vpack.c.b16 %v3732, %v3730
        %v5081 = vpack.c.b16 %v3735, %v3733
        %v5082 = vpack.c.b16 %v3736, %v3734
        %v5083 = vpack.c.b16 %v3739, %v3737
        %v5084 = vpack.c.b16 %v3740, %v3738
        %v5085 = vpack.c.b16 %v3743, %v3741
        %v5086 = vpack.c.b16 %v3744, %v3742
        %v5087 = vpack.c.b16 %v3747, %v3745
        %v5088 = vpack.c.b16 %v3748, %v3746
        %v5089 = vpack.c.b16 %v3751, %v3749
        %v5090 = vpack.c.b16 %v3752, %v3750
        %v5091 = vpack.c.b16 %v3755, %v3753
        %v5092 = vpack.c.b16 %v3756, %v3754
        %v5093 = vpack.c.b16 %v3759, %v3757
        %v5094 = vpack.c.b16 %v3760, %v3758
        %v5095 = vpack.c.b16 %v3763, %v3761
        %v5096 = vpack.c.b16 %v3764, %v3762
        %v5097 = vpack.c.b16 %v3767, %v3765
        %v5098 = vpack.c.b16 %v3768, %v3766
        %v5099 = vpack.c.b16 %v3771, %v3769
        %v5100 = vpack.c.b16 %v3772, %v3770
        %v5101 = vpack.c.b16 %v3775, %v3773
        %v5102 = vpack.c.b16 %v3776, %v3774
        %v5103 = vpack.c.b16 %v3779, %v3777
        %v5104 = vpack.c.b16 %v3780, %v3778
        %v5105 = vpack.c.b16 %v3783, %v3781
        %v5106 = vpack.c.b16 %v3784, %v3782
        %v5107 = vpack.c.b16 %v3787, %v3785
        %v5108 = vpack.c.b16 %v3788, %v3786
        %v5109 = vpack.c.b16 %v3791, %v3789
        %v5110 = vpack.c.b16 %v3792, %v3790
        %v5111 = vpack.c.b16 %v3795, %v3793
        %v5112 = vpack.c.b16 %v3796, %v3794
        %v5113 = vpack.c.b16 %v3799, %v3797
        %v5114 = vpack.c.b16 %v3800, %v3798
        %v5115 = vpack.c.b16 %v3803, %v3801
        %v5116 = vpack.c.b16 %v3804, %v3802
        %v5117 = vpack.c.b16 %v3807, %v3805
        %v5118 = vpack.c.b16 %v3808, %v3806
        %v5119 = vpack.c.b16 %v3811, %v3809
        %v5120 = vpack.c.b16 %v3812, %v3810
        %v5121 = vpack.c.b16 %v3815, %v3813
        %v5122 = vpack.c.b16 %v3816, %v3814
        %v5123 = vpack.c.b16 %v3819, %v3817
        %v5124 = vpack.c.b16 %v3820, %v3818
        %v5125 = vpack.c.b16 %v3823, %v3821
        %v5126 = vpack.c.b16 %v3824, %v3822
        %v5127 = vpack.c.b16 %v3827, %v3825
        %v5128 = vpack.c.b16 %v3828, %v3826
        %v5129 = vpack.c.b16 %v3831, %v3829
        %v5130 = vpack.c.b16 %v3832, %v3830
        %v5131 = vpack.c.b16 %v3835, %v3833
        %v5132 = vpack.c.b16 %v3836, %v3834
        %v5133 = vpack.c.b16 %v3839, %v3837
        %v5134 = vpack.c.b16 %v3840, %v3838
        %v5135 = vpack.c.b16 %v3843, %v3841
        %v5136 = vpack.c.b16 %v3844, %v3842
        %v5137 = vpack.c.b16 %v3847, %v3845
        %v5138 = vpack.c.b16 %v3848, %v3846
        %v5139 = vpack.c.b16 %v3851, %v3849
        %v5140 = vpack.c.b16 %v3852, %v3850
        %v5141 = vpack.c.b16 %v3855, %v3853
        %v5142 = vpack.c.b16 %v3856, %v3854
        %v5143 = vpack.c.b16 %v3859, %v3857
        %v5144 = vpack.c.b16 %v3860, %v3858
        %v5145 = vpack.c.b16 %v3863, %v3861
        %v5146 = vpack.c.b16 %v3864, %v3862
        %v5147 = vpack.c.b16 %v3867, %v3865
        %v5148 = vpack.c.b16 %v3868, %v3866
        %v5149 = vpack.c.b16 %v3871, %v3869
        %v5150 = vpack.c.b16 %v3872, %v3870
        %v5151 = vpack.c.b16 %v3875, %v3873
        %v5152 = vpack.c.b16 %v3876, %v3874
        %v5153 = vpack.c.b16 %v3879, %v3877
        %v5154 = vpack.c.b16 %v3880, %v3878
        %v5155 = vpack.c.b16 %v3883, %v3881
        %v5156 = vpack.c.b16 %v3884, %v3882
        %v5157 = vpack.c.b16 %v3887, %v3885
        %v5158 = vpack.c.b16 %v3888, %v3886
        %v5159 = vpack.c.b16 %v3891, %v3889
        %v5160 = vpack.c.b16 %v3892, %v3890
        %v5161 = vpack.c.b16 %v3895, %v3893
        %v5162 = vpack.c.b16 %v3896, %v3894
        %v5163 = vpack.c.b16 %v3899, %v3897
        %v5164 = vpack.c.b16 %v3900, %v3898
        %v5165 = vpack.c.b16 %v3903, %v3901
        %v5166 = vpack.c.b16 %v3904, %v3902
        %v5167 = vpack.c.b16 %v3907, %v3905
        %v5168 = vpack.c.b16 %v3908, %v3906
        %v5169 = vpack.c.b16 %v3911, %v3909
        %v5170 = vpack.c.b16 %v3912, %v3910
        %v5171 = vpack.c.b16 %v3915, %v3913
        %v5172 = vpack.c.b16 %v3916, %v3914
        %v5173 = vpack.c.b16 %v3919, %v3917
        %v5174 = vpack.c.b16 %v3920, %v3918
        %v5175 = vpack.c.b16 %v3923, %v3921
        %v5176 = vpack.c.b16 %v3924, %v3922
        %v5177 = vpack.c.b16 %v3927, %v3925
        %v5178 = vpack.c.b16 %v3928, %v3926
        %v5179 = vpack.c.b16 %v3931, %v3929
        %v5180 = vpack.c.b16 %v3932, %v3930
        %v5181 = vpack.c.b16 %v3935, %v3933
        %v5182 = vpack.c.b16 %v3936, %v3934
        %v5183 = vpack.c.b16 %v3939, %v3937
        %v5184 = vpack.c.b16 %v3940, %v3938
        %v5185 = vpack.c.b16 %v3943, %v3941
        %v5186 = vpack.c.b16 %v3944, %v3942
        %v5187 = vpack.c.b16 %v3947, %v3945
        %v5188 = vpack.c.b16 %v3948, %v3946
        %v5189 = vpack.c.b16 %v3951, %v3949
        %v5190 = vpack.c.b16 %v3952, %v3950
        %v5191 = vpack.c.b16 %v3955, %v3953
        %v5192 = vpack.c.b16 %v3956, %v3954
        %v5193 = vpack.c.b16 %v3959, %v3957
        %v5194 = vpack.c.b16 %v3960, %v3958
        %v5195 = vpack.c.b16 %v3963, %v3961
        %v5196 = vpack.c.b16 %v3964, %v3962
        %v5197 = vpack.c.b16 %v3967, %v3965
        %v5198 = vpack.c.b16 %v3968, %v3966
        %v5199 = vpack.c.b16 %v3971, %v3969
        %v5200 = vpack.c.b16 %v3972, %v3970
        %v5201 = vpack.c.b16 %v3975, %v3973
        %v5202 = vpack.c.b16 %v3976, %v3974
        %v5203 = vpack.c.b16 %v3979, %v3977
        %v5204 = vpack.c.b16 %v3980, %v3978
        %v5205 = vpack.c.b16 %v3983, %v3981
        %v5206 = vpack.c.b16 %v3984, %v3982
        %v5207 = vpack.c.b16 %v3987, %v3985
        %v5208 = vpack.c.b16 %v3988, %v3986
        %v5209 = vpack.c.b16 %v3991, %v3989
        %v5210 = vpack.c.b16 %v3992, %v3990
        %v5211 = vpack.c.b16 %v3995, %v3993
        %v5212 = vpack.c.b16 %v3996, %v3994
        %v5213 = vpack.c.b16 %v3999, %v3997
        %v5214 = vpack.c.b16 %v4000, %v3998
        %v5215 = vpack.c.b16 %v4003, %v4001
        %v5216 = vpack.c.b16 %v4004, %v4002
        %v5217 = vpack.c.b16 %v4007, %v4005
        %v5218 = vpack.c.b16 %v4008, %v4006
        %v5219 = vpack.c.b16 %v4011, %v4009
        %v5220 = vpack.c.b16 %v4012, %v4010
        %v5221 = vpack.c.b16 %v4015, %v4013
        %v5222 = vpack.c.b16 %v4016, %v4014
        %v5223 = vpack.c.b16 %v4019, %v4017
        %v5224 = vpack.c.b16 %v4020, %v4018
        %v5225 = vpack.c.b16 %v4023, %v4021
        %v5226 = vpack.c.b16 %v4024, %v4022
        %v5227 = vpack.c.b16 %v4027, %v4025
        %v5228 = vpack.c.b16 %v4028, %v4026
        %v5229 = vpack.c.b16 %v4031, %v4029
        %v5230 = vpack.c.b16 %v4032, %v4030
        %v5231 = vpack.c.b16 %v4035, %v4033
        %v5232 = vpack.c.b16 %v4036, %v4034
        %v5233 = vpack.c.b16 %v4039, %v4037
        %v5234 = vpack.c.b16 %v4040, %v4038
        %v5235 = vpack.c.b16 %v4043, %v4041
        %v5236 = vpack.c.b16 %v4044, %v4042
        %v5237 = vpack.c.b16 %v4047, %v4045
        %v5238 = vpack.c.b16 %v4048, %v4046
        %v5239 = vpack.c.b16 %v4051, %v4049
        %v5240 = vpack.c.b16 %v4052, %v4050
        %v5241 = vpack.c.b16 %v4055, %v4053
        %v5242 = vpack.c.b16 %v4056, %v4054
        %v5243 = vpack.c.b16 %v4059, %v4057
        %v5244 = vpack.c.b16 %v4060, %v4058
        %v5245 = vpack.c.b16 %v4063, %v4061
        %v5246 = vpack.c.b16 %v4064, %v4062
        %v5247 = vpack.c.b16 %v4067, %v4065
        %v5248 = vpack.c.b16 %v4068, %v4066
        %v5249 = vpack.c.b16 %v4071, %v4069
        %v5250 = vpack.c.b16 %v4072, %v4070
        %v5251 = vpack.c.b16 %v4075, %v4073
        %v5252 = vpack.c.b16 %v4076, %v4074
        %v5253 = vpack.c.b16 %v4079, %v4077
        %v5254 = vpack.c.b16 %v4080, %v4078
        %v5255 = vpack.c.b16 %v4083, %v4081
        %v5256 = vpack.c.b16 %v4084, %v4082
        %v5257 = vpack.c.b16 %v4087, %v4085
        %v5258 = vpack.c.b16 %v4088, %v4086
        %v5259 = vpack.c.b16 %v4091, %v4089
        %v5260 = vpack.c.b16 %v4092, %v4090
        %v5261 = vpack.c.b16 %v4095, %v4093
        %v5262 = vpack.c.b16 %v4096, %v4094
        %v5263 = vpack.c.b16 %v4099, %v4097
        %v5264 = vpack.c.b16 %v4100, %v4098
        %v5265 = vpack.c.b16 %v4103, %v4101
        %v5266 = vpack.c.b16 %v4104, %v4102
        %v5267 = vpack.c.b16 %v4107, %v4105
        %v5268 = vpack.c.b16 %v4108, %v4106
        %v5269 = vpack.c.b16 %v4111, %v4109
        %v5270 = vpack.c.b16 %v4112, %v4110
        %v5271 = vpack.c.b16 %v4115, %v4113
        %v5272 = vpack.c.b16 %v4116, %v4114
        %v5273 = vpack.c.b16 %v4119, %v4117
        %v5274 = vpack.c.b16 %v4120, %v4118
        %v5275 = vpack.c.b16 %v4123, %v4121
        %v5276 = vpack.c.b16 %v4124, %v4122
        %v5277 = vpack.c.b16 %v4127, %v4125
        %v5278 = vpack.c.b16 %v4128, %v4126
        %v5279 = vpack.c.b16 %v4131, %v4129
        %v5280 = vpack.c.b16 %v4132, %v4130
        %v5281 = vpack.c.b16 %v4135, %v4133
        %v5282 = vpack.c.b16 %v4136, %v4134
        %v5283 = vpack.c.b16 %v4139, %v4137
        %v5284 = vpack.c.b16 %v4140, %v4138
        %v5285 = vpack.c.b16 %v4143, %v4141
        %v5286 = vpack.c.b16 %v4144, %v4142
        %v5287 = vpack.c.b16 %v4147, %v4145
        %v5288 = vpack.c.b16 %v4148, %v4146
        %v5289 = vpack.c.b16 %v4151, %v4149
        %v5290 = vpack.c.b16 %v4152, %v4150
        %v5291 = vpack.c.b16 %v4155, %v4153
        %v5292 = vpack.c.b16 %v4156, %v4154
        %v5293 = vpack.c.b16 %v4159, %v4157
        %v5294 = vpack.c.b16 %v4160, %v4158
        %v5295 = vpack.c.b16 %v4163, %v4161
        %v5296 = vpack.c.b16 %v4164, %v4162
        %v5297 = vpack.c.b16 %v4167, %v4165
        %v5298 = vpack.c.b16 %v4168, %v4166
        %v5299 = vpack.c.b16 %v4171, %v4169
        %v5300 = vpack.c.b16 %v4172, %v4170
        %v5301 = vpack.c.b16 %v4175, %v4173
        %v5302 = vpack.c.b16 %v4176, %v4174
        %v5303 = vpack.c.b16 %v4179, %v4177
        %v5304 = vpack.c.b16 %v4180, %v4178
        %v5305 = vpack.c.b16 %v4183, %v4181
        %v5306 = vpack.c.b16 %v4184, %v4182
        %v5307 = vpack.c.b16 %v4187, %v4185
        %v5308 = vpack.c.b16 %v4188, %v4186
        %v5309 = vpack.c.b16 %v4191, %v4189
        %v5310 = vpack.c.b16 %v4192, %v4190
        %v5311 = vpack.c.b16 %v4195, %v4193
        %v5312 = vpack.c.b16 %v4196, %v4194
        %v5313 = vpack.c.b16 %v4199, %v4197
        %v5314 = vpack.c.b16 %v4200, %v4198
        %v5315 = vpack.c.b16 %v4203, %v4201
        %v5316 = vpack.c.b16 %v4204, %v4202
        %v5317 = vpack.c.b16 %v4207, %v4205
        %v5318 = vpack.c.b16 %v4208, %v4206
        %v5319 = vpack.c.b16 %v4211, %v4209
        %v5320 = vpack.c.b16 %v4212, %v4210
        %v5321 = vpack.c.b16 %v4215, %v4213
        %v5322 = vpack.c.b16 %v4216, %v4214
        %v5323 = vpack.c.b16 %v4219, %v4217
        %v5324 = vpack.c.b16 %v4220, %v4218
        %v5325 = vpack.c.b16 %v4223, %v4221
        %v5326 = vpack.c.b16 %v4224, %v4222
        %v5327 = vpack.c.b16 %v4227, %v4225
        %v5328 = vpack.c.b16 %v4228, %v4226
        %v5329 = vpack.c.b16 %v4231, %v4229
        %v5330 = vpack.c.b16 %v4232, %v4230
        %v5331 = vpack.c.b16 %v4235, %v4233
        %v5332 = vpack.c.b16 %v4236, %v4234
        %v5333 = vpack.c.b16 %v4239, %v4237
        %v5334 = vpack.c.b16 %v4240, %v4238
        %v5335 = vpack.c.b16 %v4243, %v4241
        %v5336 = vpack.c.b16 %v4244, %v4242
        %v5337 = vpack.c.b16 %v4247, %v4245
        %v5338 = vpack.c.b16 %v4248, %v4246
        %v5339 = vpack.c.b16 %v4251, %v4249
        %v5340 = vpack.c.b16 %v4252, %v4250
        %v5341 = vpack.c.b16 %v4255, %v4253
        %v5342 = vpack.c.b16 %v4256, %v4254
        %v5343 = vpack.c.b16 %v4259, %v4257
        %v5344 = vpack.c.b16 %v4260, %v4258
        %v5345 = vpack.c.b16 %v4263, %v4261
        %v5346 = vpack.c.b16 %v4264, %v4262
        %v5347 = vpack.c.b16 %v4267, %v4265
        %v5348 = vpack.c.b16 %v4268, %v4266
        %v5349 = vpack.c.b16 %v4271, %v4269
        %v5350 = vpack.c.b16 %v4272, %v4270
        %v5351 = vpack.c.b16 %v4275, %v4273
        %v5352 = vpack.c.b16 %v4276, %v4274
        %v5353 = vpack.c.b16 %v4279, %v4277
        %v5354 = vpack.c.b16 %v4280, %v4278
        %v5355 = vpack.c.b16 %v4283, %v4281
        %v5356 = vpack.c.b16 %v4284, %v4282
        %v5357 = vpack.c.b16 %v4287, %v4285
        %v5358 = vpack.c.b16 %v4288, %v4286
        %v5359 = vpack.c.b16 %v4291, %v4289
        %v5360 = vpack.c.b16 %v4292, %v4290
        %v5361 = vpack.c.b16 %v4295, %v4293
        %v5362 = vpack.c.b16 %v4296, %v4294
        %v5363 = vpack.c.b16 %v4299, %v4297
        %v5364 = vpack.c.b16 %v4300, %v4298
        %v5365 = vpack.c.b16 %v4303, %v4301
        %v5366 = vpack.c.b16 %v4304, %v4302
        %v5367 = vpack.c.b16 %v4307, %v4305
        %v5368 = vpack.c.b16 %v4308, %v4306
        %v5369 = vpack.c.b16 %v4311, %v4309
        %v5370 = vpack.c.b16 %v4312, %v4310
        %v5371 = vpack.c.b16 %v4315, %v4313
        %v5372 = vpack.c.b16 %v4316, %v4314
        %v5373 = vpack.c.b16 %v4319, %v4317
        %v5374 = vpack.c.b16 %v4320, %v4318
        %v5375 = vpack.c.b16 %v4323, %v4321
        %v5376 = vpack.c.b16 %v4324, %v4322
        %v5377 = vpack.c.b16 %v4327, %v4325
        %v5378 = vpack.c.b16 %v4328, %v4326
        %v5379 = vpack.c.b16 %v4331, %v4329
        %v5380 = vpack.c.b16 %v4332, %v4330
        %v5381 = vpack.c.b16 %v4335, %v4333
        %v5382 = vpack.c.b16 %v4336, %v4334
        %v5383 = vpack.c.b16 %v4339, %v4337
        %v5384 = vpack.c.b16 %v4340, %v4338
        %v5385 = vpack.c.b16 %v4343, %v4341
        %v5386 = vpack.c.b16 %v4344, %v4342
        %v5387 = vpack.c.b16 %v4347, %v4345
        %v5388 = vpack.c.b16 %v4348, %v4346
        %v5389 = vpack.c.b16 %v4351, %v4349
        %v5390 = vpack.c.b16 %v4352, %v4350
        %v5391 = vpack.c.b16 %v4355, %v4353
        %v5392 = vpack.c.b16 %v4356, %v4354
        %v5393 = vpack.c.b16 %v4359, %v4357
        %v5394 = vpack.c.b16 %v4360, %v4358
        %v5395 = vpack.c.b16 %v4363, %v4361
        %v5396 = vpack.c.b16 %v4364, %v4362
        %v5397 = vpack.c.b16 %v4367, %v4365
        %v5398 = vpack.c.b16 %v4368, %v4366
        %v5399 = vpack.c.b16 %v4371, %v4369
        %v5400 = vpack.c.b16 %v4372, %v4370
        %v5401 = vpack.c.b16 %v4375, %v4373
        %v5402 = vpack.c.b16 %v4376, %v4374
        %v5403 = vpack.c.b16 %v4379, %v4377
        %v5404 = vpack.c.b16 %v4380, %v4378
        %v5405 = vpack.c.b16 %v4383, %v4381
        %v5406 = vpack.c.b16 %v4384, %v4382
        %v5407 = vpack.c.b16 %v4387, %v4385
        %v5408 = vpack.c.b16 %v4388, %v4386
        %v5409 = vpack.c.b16 %v4391, %v4389
        %v5410 = vpack.c.b16 %v4392, %v4390
        %v5411 = vpack.c.b16 %v4395, %v4393
        %v5412 = vpack.c.b16 %v4396, %v4394
        %v5413 = vpack.c.b16 %v4399, %v4397
        %v5414 = vpack.c.b16 %v4400, %v4398
        %v5415 = vpack.c.b16 %v4403, %v4401
        %v5416 = vpack.c.b16 %v4404, %v4402
        %v5417 = vpack.c.b16 %v4407, %v4405
        %v5418 = vpack.c.b16 %v4408, %v4406
        %v5419 = vpack.c.b16 %v4411, %v4409
        %v5420 = vpack.c.b16 %v4412, %v4410
        %v5421 = vpack.c.b16 %v4415, %v4413
        %v5422 = vpack.c.b16 %v4416, %v4414
        %v5423 = vpack.c.b16 %v4419, %v4417
        %v5424 = vpack.c.b16 %v4420, %v4418
        %v5425 = vpack.c.b16 %v4423, %v4421
        %v5426 = vpack.c.b16 %v4424, %v4422
        %v5427 = vpack.c.b16 %v4427, %v4425
        %v5428 = vpack.c.b16 %v4428, %v4426
        %v5429 = vpack.c.b16 %v4431, %v4429
        %v5430 = vpack.c.b16 %v4432, %v4430
        %v5431 = vpack.c.b16 %v4435, %v4433
        %v5432 = vpack.c.b16 %v4436, %v4434
        %v5433 = vpack.c.b16 %v4439, %v4437
        %v5434 = vpack.c.b16 %v4440, %v4438
        %v5435 = vpack.c.b16 %v4443, %v4441
        %v5436 = vpack.c.b16 %v4444, %v4442
        %v5437 = vpack.c.b16 %v4447, %v4445
        %v5438 = vpack.c.b16 %v4448, %v4446
        %v5439 = vpack.c.b16 %v4451, %v4449
        %v5440 = vpack.c.b16 %v4452, %v4450
        %v5441 = vpack.c.b16 %v4455, %v4453
        %v5442 = vpack.c.b16 %v4456, %v4454
        %v5443 = vpack.c.b16 %v4459, %v4457
        %v5444 = vpack.c.b16 %v4460, %v4458
        %v5445 = vpack.c.b16 %v4463, %v4461
        %v5446 = vpack.c.b16 %v4464, %v4462
        %v5447 = vpack.c.b16 %v4467, %v4465
        %v5448 = vpack.c.b16 %v4468, %v4466
        %v5449 = vpack.c.b16 %v4471, %v4469
        %v5450 = vpack.c.b16 %v4472, %v4470
        %v5451 = vpack.c.b16 %v4475, %v4473
        %v5452 = vpack.c.b16 %v4476, %v4474
        %v5453 = vpack.c.b16 %v4479, %v4477
        %v5454 = vpack.c.b16 %v4480, %v4478
        %v5455 = vpack.c.b16 %v4483, %v4481
        %v5456 = vpack.c.b16 %v4484, %v4482
        %v5457 = vpack.c.b16 %v4487, %v4485
        %v5458 = vpack.c.b16 %v4488, %v4486
        %v5459 = vpack.c.b16 %v4491, %v4489
        %v5460 = vpack.c.b16 %v4492, %v4490
        %v5461 = vpack.c.b16 %v4495, %v4493
        %v5462 = vpack.c.b16 %v4496, %v4494
        %v5463 = vpack.c.b16 %v4499, %v4497
        %v5464 = vpack.c.b16 %v4500, %v4498
        %v5465 = vpack.c.b16 %v4503, %v4501
        %v5466 = vpack.c.b16 %v4504, %v4502
        %v5467 = vpack.c.b16 %v4507, %v4505
        %v5468 = vpack.c.b16 %v4508, %v4506
        %6429 = vmatprep.subr.bf16.mxu0 %v4524
        %6430 = vmatpush1.bf16.msra.mxu0 %v4523
        %6431 = vmatprep.subr.bf16.mxu0 %v4522
        %6432 = vmatpush1.bf16.msra.mxu0 %v4521
        %6433 = vmatprep.subr.bf16.mxu0 %v4520
        %6434 = vmatpush1.bf16.msra.mxu0 %v4519
        %6435 = vmatprep.subr.bf16.mxu0 %v4518
        %6436 = vmatpush1.bf16.msra.mxu0 %v4517
        %6437 = vmatprep.subr.bf16.mxu0 %v4516
        %6438 = vmatpush1.bf16.msra.mxu0 %v4515
        %6439 = vmatprep.subr.bf16.mxu0 %v4514
        %6440 = vmatpush1.bf16.msra.mxu0 %v4513
        %6441 = vmatprep.subr.bf16.mxu0 %v4512
        %6442 = vmatpush1.bf16.msra.mxu0 %v4511
        %6443 = vmatprep.subr.bf16.mxu0 %v4510
        %6444 = vmatpush1.bf16.msra.mxu0 %v4509
        %6445 = vmatprep.subr.bf16.mxu0 %v4540
        %6446 = vmatpush2.bf16.msra.mxu0 %v4539
        %6447 = vmatprep.subr.bf16.mxu0 %v4538
        %6448 = vmatpush2.bf16.msra.mxu0 %v4537
        %6449 = vmatprep.subr.bf16.mxu0 %v4536
        %6450 = vmatpush2.bf16.msra.mxu0 %v4535
        %6451 = vmatprep.subr.bf16.mxu0 %v4534
        %6452 = vmatpush2.bf16.msra.mxu0 %v4533
        %6453 = vmatprep.subr.bf16.mxu0 %v4532
        %6454 = vmatpush2.bf16.msra.mxu0 %v4531
        %6455 = vmatprep.subr.bf16.mxu0 %v4530
        %6456 = vmatpush2.bf16.msra.mxu0 %v4529
        %6457 = vmatprep.subr.bf16.mxu0 %v4528
        %6458 = vmatpush2.bf16.msra.mxu0 %v4527
        %6459 = vmatprep.subr.bf16.mxu0 %v4526
        %6460 = vmatpush2.bf16.msra.mxu0 %v4525
        %6461 = vmatprep.mubr.bf16.mxu0 %v1239
        %6462 = vmatmul.mubr.bf16.gmra.mxu0 %v1225
        %v6463 = vpop.f32.mrf.mxu0
        %v6464 = vadd.f32 0.0, %v6463
        %v6465 = vpop.f32.mrf.mxu0
        %v6466 = vadd.f32 0.0, %v6465
        %v6467 = vpop.f32.mrf.mxu0
        %v6468 = vpop.f32.mrf.mxu0
        %6469 = vdwg.mxu0
        %6470 = vmatprep.subr.bf16.mxu0 %v4556
        %6471 = vmatpush1.bf16.msra.mxu0 %v4555
        %6472 = vmatprep.subr.bf16.mxu0 %v4554
        %6473 = vmatpush1.bf16.msra.mxu0 %v4553
        %6474 = vmatprep.subr.bf16.mxu0 %v4552
        %6475 = vmatpush1.bf16.msra.mxu0 %v4551
        %6476 = vmatprep.subr.bf16.mxu0 %v4550
        %6477 = vmatpush1.bf16.msra.mxu0 %v4549
        %6478 = vmatprep.subr.bf16.mxu0 %v4548
        %6479 = vmatpush1.bf16.msra.mxu0 %v4547
        %6480 = vmatprep.subr.bf16.mxu0 %v4546
        %6481 = vmatpush1.bf16.msra.mxu0 %v4545
        %6482 = vmatprep.subr.bf16.mxu0 %v4544
        %6483 = vmatpush1.bf16.msra.mxu0 %v4543
        %6484 = vmatprep.subr.bf16.mxu0 %v4542
        %6485 = vmatpush1.bf16.msra.mxu0 %v4541
        %6486 = vmatprep.subr.bf16.mxu0 %v4572
        %6487 = vmatpush2.bf16.msra.mxu0 %v4571
        %6488 = vmatprep.subr.bf16.mxu0 %v4570
        %6489 = vmatpush2.bf16.msra.mxu0 %v4569
        %6490 = vmatprep.subr.bf16.mxu0 %v4568
        %6491 = vmatpush2.bf16.msra.mxu0 %v4567
        %6492 = vmatprep.subr.bf16.mxu0 %v4566
        %6493 = vmatpush2.bf16.msra.mxu0 %v4565
        %6494 = vmatprep.subr.bf16.mxu0 %v4564
        %6495 = vmatpush2.bf16.msra.mxu0 %v4563
        %6496 = vmatprep.subr.bf16.mxu0 %v4562
        %6497 = vmatpush2.bf16.msra.mxu0 %v4561
        %6498 = vmatprep.subr.bf16.mxu0 %v4560
        %6499 = vmatpush2.bf16.msra.mxu0 %v4559
        %6500 = vmatprep.subr.bf16.mxu0 %v4558
        %6501 = vmatpush2.bf16.msra.mxu0 %v4557
        %6502 = vmatprep.mubr.bf16.mxu0 %v1249
        %6503 = vmatmul.mubr.bf16.gmra.mxu0 %v1247
        %v6504 = vpop.f32.mrf.mxu0
        %v6505 = vadd.f32 %v6464, %v6504
        %v6506 = vpop.f32.mrf.mxu0
        %v6507 = vadd.f32 %v6466, %v6506
        %v6508 = vpop.f32.mrf.mxu0
        %v6509 = vpop.f32.mrf.mxu0
        %6510 = vdwg.mxu0
        %6511 = vmatprep.subr.bf16.mxu0 %v4588
        %6512 = vmatpush1.bf16.msra.mxu0 %v4587
        %6513 = vmatprep.subr.bf16.mxu0 %v4586
        %6514 = vmatpush1.bf16.msra.mxu0 %v4585
        %6515 = vmatprep.subr.bf16.mxu0 %v4584
        %6516 = vmatpush1.bf16.msra.mxu0 %v4583
        %6517 = vmatprep.subr.bf16.mxu0 %v4582
        %6518 = vmatpush1.bf16.msra.mxu0 %v4581
        %6519 = vmatprep.subr.bf16.mxu0 %v4580
        %6520 = vmatpush1.bf16.msra.mxu0 %v4579
        %6521 = vmatprep.subr.bf16.mxu0 %v4578
        %6522 = vmatpush1.bf16.msra.mxu0 %v4577
        %6523 = vmatprep.subr.bf16.mxu0 %v4576
        %6524 = vmatpush1.bf16.msra.mxu0 %v4575
        %6525 = vmatprep.subr.bf16.mxu0 %v4574
        %6526 = vmatpush1.bf16.msra.mxu0 %v4573
        %6527 = vmatprep.subr.bf16.mxu0 %v4604
        %6528 = vmatpush2.bf16.msra.mxu0 %v4603
        %6529 = vmatprep.subr.bf16.mxu0 %v4602
        %6530 = vmatpush2.bf16.msra.mxu0 %v4601
        %6531 = vmatprep.subr.bf16.mxu0 %v4600
        %6532 = vmatpush2.bf16.msra.mxu0 %v4599
        %6533 = vmatprep.subr.bf16.mxu0 %v4598
        %6534 = vmatpush2.bf16.msra.mxu0 %v4597
        %6535 = vmatprep.subr.bf16.mxu0 %v4596
        %6536 = vmatpush2.bf16.msra.mxu0 %v4595
        %6537 = vmatprep.subr.bf16.mxu0 %v4594
        %6538 = vmatpush2.bf16.msra.mxu0 %v4593
        %6539 = vmatprep.subr.bf16.mxu0 %v4592
        %6540 = vmatpush2.bf16.msra.mxu0 %v4591
        %6541 = vmatprep.subr.bf16.mxu0 %v4590
        %6542 = vmatpush2.bf16.msra.mxu0 %v4589
        %6543 = vmatprep.mubr.bf16.mxu0 %v1246
        %6544 = vmatmul.mubr.bf16.gmra.mxu0 %v1232
        %v6545 = vpop.f32.mrf.mxu0
        %v6546 = vadd.f32 %v6505, %v6545
        %v6547 = vpop.f32.mrf.mxu0
        %v6548 = vadd.f32 %v6507, %v6547
        %v6549 = vpop.f32.mrf.mxu0
        %v6550 = vpop.f32.mrf.mxu0
        %6551 = vdwg.mxu0
        %6552 = vmatprep.subr.bf16.mxu0 %v4620
        %6553 = vmatpush1.bf16.msra.mxu0 %v4619
        %6554 = vmatprep.subr.bf16.mxu0 %v4618
        %6555 = vmatpush1.bf16.msra.mxu0 %v4617
        %6556 = vmatprep.subr.bf16.mxu0 %v4616
        %6557 = vmatpush1.bf16.msra.mxu0 %v4615
        %6558 = vmatprep.subr.bf16.mxu0 %v4614
        %6559 = vmatpush1.bf16.msra.mxu0 %v4613
        %6560 = vmatprep.subr.bf16.mxu0 %v4612
        %6561 = vmatpush1.bf16.msra.mxu0 %v4611
        %6562 = vmatprep.subr.bf16.mxu0 %v4610
        %6563 = vmatpush1.bf16.msra.mxu0 %v4609
        %6564 = vmatprep.subr.bf16.mxu0 %v4608
        %6565 = vmatpush1.bf16.msra.mxu0 %v4607
        %6566 = vmatprep.subr.bf16.mxu0 %v4606
        %6567 = vmatpush1.bf16.msra.mxu0 %v4605
        %6568 = vmatprep.subr.bf16.mxu0 %v4636
        %6569 = vmatpush2.bf16.msra.mxu0 %v4635
        %6570 = vmatprep.subr.bf16.mxu0 %v4634
        %6571 = vmatpush2.bf16.msra.mxu0 %v4633
        %6572 = vmatprep.subr.bf16.mxu0 %v4632
        %6573 = vmatpush2.bf16.msra.mxu0 %v4631
        %6574 = vmatprep.subr.bf16.mxu0 %v4630
        %6575 = vmatpush2.bf16.msra.mxu0 %v4629
        %6576 = vmatprep.subr.bf16.mxu0 %v4628
        %6577 = vmatpush2.bf16.msra.mxu0 %v4627
        %6578 = vmatprep.subr.bf16.mxu0 %v4626
        %6579 = vmatpush2.bf16.msra.mxu0 %v4625
        %6580 = vmatprep.subr.bf16.mxu0 %v4624
        %6581 = vmatpush2.bf16.msra.mxu0 %v4623
        %6582 = vmatprep.subr.bf16.mxu0 %v4622
        %6583 = vmatpush2.bf16.msra.mxu0 %v4621
        %6584 = vmatprep.mubr.bf16.mxu0 %v1250
        %6585 = vmatmul.mubr.bf16.gmra.mxu0 %v1248
        %v6586 = vpop.f32.mrf.mxu0
        %v6587 = vadd.f32 %v6546, %v6586
        %v6588 = vpop.f32.mrf.mxu0
        %v6589 = vadd.f32 %v6548, %v6588
        %v6590 = vpop.f32.mrf.mxu0
        %v6591 = vpop.f32.mrf.mxu0
        %6592 = vdwg.mxu0
        %6593 = vmatprep.subr.bf16.mxu0 %v4652
        %6594 = vmatpush1.bf16.msra.mxu0 %v4651
        %6595 = vmatprep.subr.bf16.mxu0 %v4650
        %6596 = vmatpush1.bf16.msra.mxu0 %v4649
        %6597 = vmatprep.subr.bf16.mxu0 %v4648
        %6598 = vmatpush1.bf16.msra.mxu0 %v4647
        %6599 = vmatprep.subr.bf16.mxu0 %v4646
        %6600 = vmatpush1.bf16.msra.mxu0 %v4645
        %6601 = vmatprep.subr.bf16.mxu0 %v4644
        %6602 = vmatpush1.bf16.msra.mxu0 %v4643
        %6603 = vmatprep.subr.bf16.mxu0 %v4642
        %6604 = vmatpush1.bf16.msra.mxu0 %v4641
        %6605 = vmatprep.subr.bf16.mxu0 %v4640
        %6606 = vmatpush1.bf16.msra.mxu0 %v4639
        %6607 = vmatprep.subr.bf16.mxu0 %v4638
        %6608 = vmatpush1.bf16.msra.mxu0 %v4637
        %6609 = vmatprep.subr.bf16.mxu0 %v4668
        %6610 = vmatpush2.bf16.msra.mxu0 %v4667
        %6611 = vmatprep.subr.bf16.mxu0 %v4666
        %6612 = vmatpush2.bf16.msra.mxu0 %v4665
        %6613 = vmatprep.subr.bf16.mxu0 %v4664
        %6614 = vmatpush2.bf16.msra.mxu0 %v4663
        %6615 = vmatprep.subr.bf16.mxu0 %v4662
        %6616 = vmatpush2.bf16.msra.mxu0 %v4661
        %6617 = vmatprep.subr.bf16.mxu0 %v4660
        %6618 = vmatpush2.bf16.msra.mxu0 %v4659
        %6619 = vmatprep.subr.bf16.mxu0 %v4658
        %6620 = vmatpush2.bf16.msra.mxu0 %v4657
        %6621 = vmatprep.subr.bf16.mxu0 %v4656
        %6622 = vmatpush2.bf16.msra.mxu0 %v4655
        %6623 = vmatprep.subr.bf16.mxu0 %v4654
        %6624 = vmatpush2.bf16.msra.mxu0 %v4653
        %6625 = vmatprep.mubr.bf16.mxu0 %v1288
        %6626 = vmatmul.mubr.bf16.gmra.mxu0 %v1274
        %v6627 = vpop.f32.mrf.mxu0
        %v6628 = vadd.f32 %v6587, %v6627
        %v6629 = vpop.f32.mrf.mxu0
        %v6630 = vadd.f32 %v6589, %v6629
        %v6631 = vpop.f32.mrf.mxu0
        %v6632 = vpop.f32.mrf.mxu0
        %6633 = vdwg.mxu0
        %6634 = vmatprep.subr.bf16.mxu0 %v4684
        %6635 = vmatpush1.bf16.msra.mxu0 %v4683
        %6636 = vmatprep.subr.bf16.mxu0 %v4682
        %6637 = vmatpush1.bf16.msra.mxu0 %v4681
        %6638 = vmatprep.subr.bf16.mxu0 %v4680
        %6639 = vmatpush1.bf16.msra.mxu0 %v4679
        %6640 = vmatprep.subr.bf16.mxu0 %v4678
        %6641 = vmatpush1.bf16.msra.mxu0 %v4677
        %6642 = vmatprep.subr.bf16.mxu0 %v4676
        %6643 = vmatpush1.bf16.msra.mxu0 %v4675
        %6644 = vmatprep.subr.bf16.mxu0 %v4674
        %6645 = vmatpush1.bf16.msra.mxu0 %v4673
        %6646 = vmatprep.subr.bf16.mxu0 %v4672
        %6647 = vmatpush1.bf16.msra.mxu0 %v4671
        %6648 = vmatprep.subr.bf16.mxu0 %v4670
        %6649 = vmatpush1.bf16.msra.mxu0 %v4669
        %6650 = vmatprep.subr.bf16.mxu0 %v4700
        %6651 = vmatpush2.bf16.msra.mxu0 %v4699
        %6652 = vmatprep.subr.bf16.mxu0 %v4698
        %6653 = vmatpush2.bf16.msra.mxu0 %v4697
        %6654 = vmatprep.subr.bf16.mxu0 %v4696
        %6655 = vmatpush2.bf16.msra.mxu0 %v4695
        %6656 = vmatprep.subr.bf16.mxu0 %v4694
        %6657 = vmatpush2.bf16.msra.mxu0 %v4693
        %6658 = vmatprep.subr.bf16.mxu0 %v4692
        %6659 = vmatpush2.bf16.msra.mxu0 %v4691
        %6660 = vmatprep.subr.bf16.mxu0 %v4690
        %6661 = vmatpush2.bf16.msra.mxu0 %v4689
        %6662 = vmatprep.subr.bf16.mxu0 %v4688
        %6663 = vmatpush2.bf16.msra.mxu0 %v4687
        %6664 = vmatprep.subr.bf16.mxu0 %v4686
        %6665 = vmatpush2.bf16.msra.mxu0 %v4685
        %6666 = vmatprep.mubr.bf16.mxu0 %v1298
        %6667 = vmatmul.mubr.bf16.gmra.mxu0 %v1296
        %v6668 = vpop.f32.mrf.mxu0
        %v6669 = vadd.f32 %v6628, %v6668
        %v6670 = vpop.f32.mrf.mxu0
        %v6671 = vadd.f32 %v6630, %v6670
        %v6672 = vpop.f32.mrf.mxu0
        %v6673 = vpop.f32.mrf.mxu0
        %6674 = vdwg.mxu0
        %6675 = vmatprep.subr.bf16.mxu0 %v4716
        %6676 = vmatpush1.bf16.msra.mxu0 %v4715
        %6677 = vmatprep.subr.bf16.mxu0 %v4714
        %6678 = vmatpush1.bf16.msra.mxu0 %v4713
        %6679 = vmatprep.subr.bf16.mxu0 %v4712
        %6680 = vmatpush1.bf16.msra.mxu0 %v4711
        %6681 = vmatprep.subr.bf16.mxu0 %v4710
        %6682 = vmatpush1.bf16.msra.mxu0 %v4709
        %6683 = vmatprep.subr.bf16.mxu0 %v4708
        %6684 = vmatpush1.bf16.msra.mxu0 %v4707
        %6685 = vmatprep.subr.bf16.mxu0 %v4706
        %6686 = vmatpush1.bf16.msra.mxu0 %v4705
        %6687 = vmatprep.subr.bf16.mxu0 %v4704
        %6688 = vmatpush1.bf16.msra.mxu0 %v4703
        %6689 = vmatprep.subr.bf16.mxu0 %v4702
        %6690 = vmatpush1.bf16.msra.mxu0 %v4701
        %6691 = vmatprep.subr.bf16.mxu0 %v4732
        %6692 = vmatpush2.bf16.msra.mxu0 %v4731
        %6693 = vmatprep.subr.bf16.mxu0 %v4730
        %6694 = vmatpush2.bf16.msra.mxu0 %v4729
        %6695 = vmatprep.subr.bf16.mxu0 %v4728
        %6696 = vmatpush2.bf16.msra.mxu0 %v4727
        %6697 = vmatprep.subr.bf16.mxu0 %v4726
        %6698 = vmatpush2.bf16.msra.mxu0 %v4725
        %6699 = vmatprep.subr.bf16.mxu0 %v4724
        %6700 = vmatpush2.bf16.msra.mxu0 %v4723
        %6701 = vmatprep.subr.bf16.mxu0 %v4722
        %6702 = vmatpush2.bf16.msra.mxu0 %v4721
        %6703 = vmatprep.subr.bf16.mxu0 %v4720
        %6704 = vmatpush2.bf16.msra.mxu0 %v4719
        %6705 = vmatprep.subr.bf16.mxu0 %v4718
        %6706 = vmatpush2.bf16.msra.mxu0 %v4717
        %6707 = vmatprep.mubr.bf16.mxu0 %v1295
        %6708 = vmatmul.mubr.bf16.gmra.mxu0 %v1281
        %v6709 = vpop.f32.mrf.mxu0
        %v6710 = vadd.f32 %v6669, %v6709
        %v6711 = vpop.f32.mrf.mxu0
        %v6712 = vadd.f32 %v6671, %v6711
        %v6713 = vpop.f32.mrf.mxu0
        %v6714 = vpop.f32.mrf.mxu0
        %6715 = vdwg.mxu0
        %6716 = vmatprep.subr.bf16.mxu0 %v4748
        %6717 = vmatpush1.bf16.msra.mxu0 %v4747
        %6718 = vmatprep.subr.bf16.mxu0 %v4746
        %6719 = vmatpush1.bf16.msra.mxu0 %v4745
        %6720 = vmatprep.subr.bf16.mxu0 %v4744
        %6721 = vmatpush1.bf16.msra.mxu0 %v4743
        %6722 = vmatprep.subr.bf16.mxu0 %v4742
        %6723 = vmatpush1.bf16.msra.mxu0 %v4741
        %6724 = vmatprep.subr.bf16.mxu0 %v4740
        %6725 = vmatpush1.bf16.msra.mxu0 %v4739
        %6726 = vmatprep.subr.bf16.mxu0 %v4738
        %6727 = vmatpush1.bf16.msra.mxu0 %v4737
        %6728 = vmatprep.subr.bf16.mxu0 %v4736
        %6729 = vmatpush1.bf16.msra.mxu0 %v4735
        %6730 = vmatprep.subr.bf16.mxu0 %v4734
        %6731 = vmatpush1.bf16.msra.mxu0 %v4733
        %6732 = vmatprep.subr.bf16.mxu0 %v4764
        %6733 = vmatpush2.bf16.msra.mxu0 %v4763
        %6734 = vmatprep.subr.bf16.mxu0 %v4762
        %6735 = vmatpush2.bf16.msra.mxu0 %v4761
        %6736 = vmatprep.subr.bf16.mxu0 %v4760
        %6737 = vmatpush2.bf16.msra.mxu0 %v4759
        %6738 = vmatprep.subr.bf16.mxu0 %v4758
        %6739 = vmatpush2.bf16.msra.mxu0 %v4757
        %6740 = vmatprep.subr.bf16.mxu0 %v4756
        %6741 = vmatpush2.bf16.msra.mxu0 %v4755
        %6742 = vmatprep.subr.bf16.mxu0 %v4754
        %6743 = vmatpush2.bf16.msra.mxu0 %v4753
        %6744 = vmatprep.subr.bf16.mxu0 %v4752
        %6745 = vmatpush2.bf16.msra.mxu0 %v4751
        %6746 = vmatprep.subr.bf16.mxu0 %v4750
        %6747 = vmatpush2.bf16.msra.mxu0 %v4749
        %6748 = vmatprep.mubr.bf16.mxu0 %v1299
        %6749 = vmatmul.mubr.bf16.gmra.mxu0 %v1297
        %v6750 = vpop.f32.mrf.mxu0
        %v6751 = vadd.f32 %v6710, %v6750
        %v6752 = vpop.f32.mrf.mxu0
        %v6753 = vadd.f32 %v6712, %v6752
        %v6754 = vpop.f32.mrf.mxu0
        %v6755 = vpop.f32.mrf.mxu0
        %6756 = vdwg.mxu0
        %6757 = vmatprep.subr.bf16.mxu0 %v4780
        %6758 = vmatpush1.bf16.msra.mxu0 %v4779
        %6759 = vmatprep.subr.bf16.mxu0 %v4778
        %6760 = vmatpush1.bf16.msra.mxu0 %v4777
        %6761 = vmatprep.subr.bf16.mxu0 %v4776
        %6762 = vmatpush1.bf16.msra.mxu0 %v4775
        %6763 = vmatprep.subr.bf16.mxu0 %v4774
        %6764 = vmatpush1.bf16.msra.mxu0 %v4773
        %6765 = vmatprep.subr.bf16.mxu0 %v4772
        %6766 = vmatpush1.bf16.msra.mxu0 %v4771
        %6767 = vmatprep.subr.bf16.mxu0 %v4770
        %6768 = vmatpush1.bf16.msra.mxu0 %v4769
        %6769 = vmatprep.subr.bf16.mxu0 %v4768
        %6770 = vmatpush1.bf16.msra.mxu0 %v4767
        %6771 = vmatprep.subr.bf16.mxu0 %v4766
        %6772 = vmatpush1.bf16.msra.mxu0 %v4765
        %6773 = vmatprep.subr.bf16.mxu0 %v4796
        %6774 = vmatpush2.bf16.msra.mxu0 %v4795
        %6775 = vmatprep.subr.bf16.mxu0 %v4794
        %6776 = vmatpush2.bf16.msra.mxu0 %v4793
        %6777 = vmatprep.subr.bf16.mxu0 %v4792
        %6778 = vmatpush2.bf16.msra.mxu0 %v4791
        %6779 = vmatprep.subr.bf16.mxu0 %v4790
        %6780 = vmatpush2.bf16.msra.mxu0 %v4789
        %6781 = vmatprep.subr.bf16.mxu0 %v4788
        %6782 = vmatpush2.bf16.msra.mxu0 %v4787
        %6783 = vmatprep.subr.bf16.mxu0 %v4786
        %6784 = vmatpush2.bf16.msra.mxu0 %v4785
        %6785 = vmatprep.subr.bf16.mxu0 %v4784
        %6786 = vmatpush2.bf16.msra.mxu0 %v4783
        %6787 = vmatprep.subr.bf16.mxu0 %v4782
        %6788 = vmatpush2.bf16.msra.mxu0 %v4781
        %6789 = vmatprep.mubr.bf16.mxu0 %v1337
        %6790 = vmatmul.mubr.bf16.gmra.mxu0 %v1323
        %v6791 = vpop.f32.mrf.mxu0
        %v6792 = vadd.f32 %v6751, %v6791
        %v6793 = vpop.f32.mrf.mxu0
        %v6794 = vadd.f32 %v6753, %v6793
        %v6795 = vpop.f32.mrf.mxu0
        %v6796 = vpop.f32.mrf.mxu0
        %6797 = vdwg.mxu0
        %6798 = vmatprep.subr.bf16.mxu0 %v4812
        %6799 = vmatpush1.bf16.msra.mxu0 %v4811
        %6800 = vmatprep.subr.bf16.mxu0 %v4810
        %6801 = vmatpush1.bf16.msra.mxu0 %v4809
        %6802 = vmatprep.subr.bf16.mxu0 %v4808
        %6803 = vmatpush1.bf16.msra.mxu0 %v4807
        %6804 = vmatprep.subr.bf16.mxu0 %v4806
        %6805 = vmatpush1.bf16.msra.mxu0 %v4805
        %6806 = vmatprep.subr.bf16.mxu0 %v4804
        %6807 = vmatpush1.bf16.msra.mxu0 %v4803
        %6808 = vmatprep.subr.bf16.mxu0 %v4802
        %6809 = vmatpush1.bf16.msra.mxu0 %v4801
        %6810 = vmatprep.subr.bf16.mxu0 %v4800
        %6811 = vmatpush1.bf16.msra.mxu0 %v4799
        %6812 = vmatprep.subr.bf16.mxu0 %v4798
        %6813 = vmatpush1.bf16.msra.mxu0 %v4797
        %6814 = vmatprep.subr.bf16.mxu0 %v4828
        %6815 = vmatpush2.bf16.msra.mxu0 %v4827
        %6816 = vmatprep.subr.bf16.mxu0 %v4826
        %6817 = vmatpush2.bf16.msra.mxu0 %v4825
        %6818 = vmatprep.subr.bf16.mxu0 %v4824
        %6819 = vmatpush2.bf16.msra.mxu0 %v4823
        %6820 = vmatprep.subr.bf16.mxu0 %v4822
        %6821 = vmatpush2.bf16.msra.mxu0 %v4821
        %6822 = vmatprep.subr.bf16.mxu0 %v4820
        %6823 = vmatpush2.bf16.msra.mxu0 %v4819
        %6824 = vmatprep.subr.bf16.mxu0 %v4818
        %6825 = vmatpush2.bf16.msra.mxu0 %v4817
        %6826 = vmatprep.subr.bf16.mxu0 %v4816
        %6827 = vmatpush2.bf16.msra.mxu0 %v4815
        %6828 = vmatprep.subr.bf16.mxu0 %v4814
        %6829 = vmatpush2.bf16.msra.mxu0 %v4813
        %6830 = vmatprep.mubr.bf16.mxu0 %v1347
        %6831 = vmatmul.mubr.bf16.gmra.mxu0 %v1345
        %v6832 = vpop.f32.mrf.mxu0
        %v6833 = vadd.f32 %v6792, %v6832
        %v6834 = vpop.f32.mrf.mxu0
        %v6835 = vadd.f32 %v6794, %v6834
        %v6836 = vpop.f32.mrf.mxu0
        %v6837 = vpop.f32.mrf.mxu0
        %6838 = vdwg.mxu0
        %6839 = vmatprep.subr.bf16.mxu0 %v4844
        %6840 = vmatpush1.bf16.msra.mxu0 %v4843
        %6841 = vmatprep.subr.bf16.mxu0 %v4842
        %6842 = vmatpush1.bf16.msra.mxu0 %v4841
        %6843 = vmatprep.subr.bf16.mxu0 %v4840
        %6844 = vmatpush1.bf16.msra.mxu0 %v4839
        %6845 = vmatprep.subr.bf16.mxu0 %v4838
        %6846 = vmatpush1.bf16.msra.mxu0 %v4837
        %6847 = vmatprep.subr.bf16.mxu0 %v4836
        %6848 = vmatpush1.bf16.msra.mxu0 %v4835
        %6849 = vmatprep.subr.bf16.mxu0 %v4834
        %6850 = vmatpush1.bf16.msra.mxu0 %v4833
        %6851 = vmatprep.subr.bf16.mxu0 %v4832
        %6852 = vmatpush1.bf16.msra.mxu0 %v4831
        %6853 = vmatprep.subr.bf16.mxu0 %v4830
        %6854 = vmatpush1.bf16.msra.mxu0 %v4829
        %6855 = vmatprep.subr.bf16.mxu0 %v4860
        %6856 = vmatpush2.bf16.msra.mxu0 %v4859
        %6857 = vmatprep.subr.bf16.mxu0 %v4858
        %6858 = vmatpush2.bf16.msra.mxu0 %v4857
        %6859 = vmatprep.subr.bf16.mxu0 %v4856
        %6860 = vmatpush2.bf16.msra.mxu0 %v4855
        %6861 = vmatprep.subr.bf16.mxu0 %v4854
        %6862 = vmatpush2.bf16.msra.mxu0 %v4853
        %6863 = vmatprep.subr.bf16.mxu0 %v4852
        %6864 = vmatpush2.bf16.msra.mxu0 %v4851
        %6865 = vmatprep.subr.bf16.mxu0 %v4850
        %6866 = vmatpush2.bf16.msra.mxu0 %v4849
        %6867 = vmatprep.subr.bf16.mxu0 %v4848
        %6868 = vmatpush2.bf16.msra.mxu0 %v4847
        %6869 = vmatprep.subr.bf16.mxu0 %v4846
        %6870 = vmatpush2.bf16.msra.mxu0 %v4845
        %6871 = vmatprep.mubr.bf16.mxu0 %v1344
        %6872 = vmatmul.mubr.bf16.gmra.mxu0 %v1330
        %v6873 = vpop.f32.mrf.mxu0
        %v6874 = vadd.f32 %v6833, %v6873
        %v6875 = vpop.f32.mrf.mxu0
        %v6876 = vadd.f32 %v6835, %v6875
        %v6877 = vpop.f32.mrf.mxu0
        %v6878 = vpop.f32.mrf.mxu0
        %6879 = vdwg.mxu0
        %6880 = vmatprep.subr.bf16.mxu0 %v4876
        %6881 = vmatpush1.bf16.msra.mxu0 %v4875
        %6882 = vmatprep.subr.bf16.mxu0 %v4874
        %6883 = vmatpush1.bf16.msra.mxu0 %v4873
        %6884 = vmatprep.subr.bf16.mxu0 %v4872
        %6885 = vmatpush1.bf16.msra.mxu0 %v4871
        %6886 = vmatprep.subr.bf16.mxu0 %v4870
        %6887 = vmatpush1.bf16.msra.mxu0 %v4869
        %6888 = vmatprep.subr.bf16.mxu0 %v4868
        %6889 = vmatpush1.bf16.msra.mxu0 %v4867
        %6890 = vmatprep.subr.bf16.mxu0 %v4866
        %6891 = vmatpush1.bf16.msra.mxu0 %v4865
        %6892 = vmatprep.subr.bf16.mxu0 %v4864
        %6893 = vmatpush1.bf16.msra.mxu0 %v4863
        %6894 = vmatprep.subr.bf16.mxu0 %v4862
        %6895 = vmatpush1.bf16.msra.mxu0 %v4861
        %6896 = vmatprep.subr.bf16.mxu0 %v4892
        %6897 = vmatpush2.bf16.msra.mxu0 %v4891
        %6898 = vmatprep.subr.bf16.mxu0 %v4890
        %6899 = vmatpush2.bf16.msra.mxu0 %v4889
        %6900 = vmatprep.subr.bf16.mxu0 %v4888
        %6901 = vmatpush2.bf16.msra.mxu0 %v4887
        %6902 = vmatprep.subr.bf16.mxu0 %v4886
        %6903 = vmatpush2.bf16.msra.mxu0 %v4885
        %6904 = vmatprep.subr.bf16.mxu0 %v4884
        %6905 = vmatpush2.bf16.msra.mxu0 %v4883
        %6906 = vmatprep.subr.bf16.mxu0 %v4882
        %6907 = vmatpush2.bf16.msra.mxu0 %v4881
        %6908 = vmatprep.subr.bf16.mxu0 %v4880
        %6909 = vmatpush2.bf16.msra.mxu0 %v4879
        %6910 = vmatprep.subr.bf16.mxu0 %v4878
        %6911 = vmatpush2.bf16.msra.mxu0 %v4877
        %6912 = vmatprep.mubr.bf16.mxu0 %v1348
        %6913 = vmatmul.mubr.bf16.gmra.mxu0 %v1346
        %v6914 = vpop.f32.mrf.mxu0
        %v6915 = vadd.f32 %v6874, %v6914
        %v6916 = vpop.f32.mrf.mxu0
        %v6917 = vadd.f32 %v6876, %v6916
        %v6918 = vpop.f32.mrf.mxu0
        %v6919 = vpop.f32.mrf.mxu0
        %6920 = vdwg.mxu0
        %6921 = vmatprep.subr.bf16.mxu0 %v4908
        %6922 = vmatpush1.bf16.msra.mxu0 %v4907
        %6923 = vmatprep.subr.bf16.mxu0 %v4906
        %6924 = vmatpush1.bf16.msra.mxu0 %v4905
        %6925 = vmatprep.subr.bf16.mxu0 %v4904
        %6926 = vmatpush1.bf16.msra.mxu0 %v4903
        %6927 = vmatprep.subr.bf16.mxu0 %v4902
        %6928 = vmatpush1.bf16.msra.mxu0 %v4901
        %6929 = vmatprep.subr.bf16.mxu0 %v4900
        %6930 = vmatpush1.bf16.msra.mxu0 %v4899
        %6931 = vmatprep.subr.bf16.mxu0 %v4898
        %6932 = vmatpush1.bf16.msra.mxu0 %v4897
        %6933 = vmatprep.subr.bf16.mxu0 %v4896
        %6934 = vmatpush1.bf16.msra.mxu0 %v4895
        %6935 = vmatprep.subr.bf16.mxu0 %v4894
        %6936 = vmatpush1.bf16.msra.mxu0 %v4893
        %6937 = vmatprep.subr.bf16.mxu0 %v4924
        %6938 = vmatpush2.bf16.msra.mxu0 %v4923
        %6939 = vmatprep.subr.bf16.mxu0 %v4922
        %6940 = vmatpush2.bf16.msra.mxu0 %v4921
        %6941 = vmatprep.subr.bf16.mxu0 %v4920
        %6942 = vmatpush2.bf16.msra.mxu0 %v4919
        %6943 = vmatprep.subr.bf16.mxu0 %v4918
        %6944 = vmatpush2.bf16.msra.mxu0 %v4917
        %6945 = vmatprep.subr.bf16.mxu0 %v4916
        %6946 = vmatpush2.bf16.msra.mxu0 %v4915
        %6947 = vmatprep.subr.bf16.mxu0 %v4914
        %6948 = vmatpush2.bf16.msra.mxu0 %v4913
        %6949 = vmatprep.subr.bf16.mxu0 %v4912
        %6950 = vmatpush2.bf16.msra.mxu0 %v4911
        %6951 = vmatprep.subr.bf16.mxu0 %v4910
        %6952 = vmatpush2.bf16.msra.mxu0 %v4909
        %6953 = vmatprep.mubr.bf16.mxu0 %v1386
        %6954 = vmatmul.mubr.bf16.gmra.mxu0 %v1372
        %v6955 = vpop.f32.mrf.mxu0
        %v6956 = vadd.f32 %v6915, %v6955
        %v6957 = vpop.f32.mrf.mxu0
        %v6958 = vadd.f32 %v6917, %v6957
        %v6959 = vpop.f32.mrf.mxu0
        %v6960 = vpop.f32.mrf.mxu0
        %6961 = vdwg.mxu0
        %6962 = vmatprep.subr.bf16.mxu0 %v4940
        %6963 = vmatpush1.bf16.msra.mxu0 %v4939
        %6964 = vmatprep.subr.bf16.mxu0 %v4938
        %6965 = vmatpush1.bf16.msra.mxu0 %v4937
        %6966 = vmatprep.subr.bf16.mxu0 %v4936
        %6967 = vmatpush1.bf16.msra.mxu0 %v4935
        %6968 = vmatprep.subr.bf16.mxu0 %v4934
        %6969 = vmatpush1.bf16.msra.mxu0 %v4933
        %6970 = vmatprep.subr.bf16.mxu0 %v4932
        %6971 = vmatpush1.bf16.msra.mxu0 %v4931
        %6972 = vmatprep.subr.bf16.mxu0 %v4930
        %6973 = vmatpush1.bf16.msra.mxu0 %v4929
        %6974 = vmatprep.subr.bf16.mxu0 %v4928
        %6975 = vmatpush1.bf16.msra.mxu0 %v4927
        %6976 = vmatprep.subr.bf16.mxu0 %v4926
        %6977 = vmatpush1.bf16.msra.mxu0 %v4925
        %6978 = vmatprep.subr.bf16.mxu0 %v4956
        %6979 = vmatpush2.bf16.msra.mxu0 %v4955
        %6980 = vmatprep.subr.bf16.mxu0 %v4954
        %6981 = vmatpush2.bf16.msra.mxu0 %v4953
        %6982 = vmatprep.subr.bf16.mxu0 %v4952
        %6983 = vmatpush2.bf16.msra.mxu0 %v4951
        %6984 = vmatprep.subr.bf16.mxu0 %v4950
        %6985 = vmatpush2.bf16.msra.mxu0 %v4949
        %6986 = vmatprep.subr.bf16.mxu0 %v4948
        %6987 = vmatpush2.bf16.msra.mxu0 %v4947
        %6988 = vmatprep.subr.bf16.mxu0 %v4946
        %6989 = vmatpush2.bf16.msra.mxu0 %v4945
        %6990 = vmatprep.subr.bf16.mxu0 %v4944
        %6991 = vmatpush2.bf16.msra.mxu0 %v4943
        %6992 = vmatprep.subr.bf16.mxu0 %v4942
        %6993 = vmatpush2.bf16.msra.mxu0 %v4941
        %6994 = vmatprep.mubr.bf16.mxu0 %v1396
        %6995 = vmatmul.mubr.bf16.gmra.mxu0 %v1394
        %v6996 = vpop.f32.mrf.mxu0
        %v6997 = vadd.f32 %v6956, %v6996
        %v6998 = vpop.f32.mrf.mxu0
        %v6999 = vadd.f32 %v6958, %v6998
        %v7000 = vpop.f32.mrf.mxu0
        %v7001 = vpop.f32.mrf.mxu0
        %7002 = vdwg.mxu0
        %7003 = vmatprep.subr.bf16.mxu0 %v4972
        %7004 = vmatpush1.bf16.msra.mxu0 %v4971
        %7005 = vmatprep.subr.bf16.mxu0 %v4970
        %7006 = vmatpush1.bf16.msra.mxu0 %v4969
        %7007 = vmatprep.subr.bf16.mxu0 %v4968
        %7008 = vmatpush1.bf16.msra.mxu0 %v4967
        %7009 = vmatprep.subr.bf16.mxu0 %v4966
        %7010 = vmatpush1.bf16.msra.mxu0 %v4965
        %7011 = vmatprep.subr.bf16.mxu0 %v4964
        %7012 = vmatpush1.bf16.msra.mxu0 %v4963
        %7013 = vmatprep.subr.bf16.mxu0 %v4962
        %7014 = vmatpush1.bf16.msra.mxu0 %v4961
        %7015 = vmatprep.subr.bf16.mxu0 %v4960
        %7016 = vmatpush1.bf16.msra.mxu0 %v4959
        %7017 = vmatprep.subr.bf16.mxu0 %v4958
        %7018 = vmatpush1.bf16.msra.mxu0 %v4957
        %7019 = vmatprep.subr.bf16.mxu0 %v4988
        %7020 = vmatpush2.bf16.msra.mxu0 %v4987
        %7021 = vmatprep.subr.bf16.mxu0 %v4986
        %7022 = vmatpush2.bf16.msra.mxu0 %v4985
        %7023 = vmatprep.subr.bf16.mxu0 %v4984
        %7024 = vmatpush2.bf16.msra.mxu0 %v4983
        %7025 = vmatprep.subr.bf16.mxu0 %v4982
        %7026 = vmatpush2.bf16.msra.mxu0 %v4981
        %7027 = vmatprep.subr.bf16.mxu0 %v4980
        %7028 = vmatpush2.bf16.msra.mxu0 %v4979
        %7029 = vmatprep.subr.bf16.mxu0 %v4978
        %7030 = vmatpush2.bf16.msra.mxu0 %v4977
        %7031 = vmatprep.subr.bf16.mxu0 %v4976
        %7032 = vmatpush2.bf16.msra.mxu0 %v4975
        %7033 = vmatprep.subr.bf16.mxu0 %v4974
        %7034 = vmatpush2.bf16.msra.mxu0 %v4973
        %7035 = vmatprep.mubr.bf16.mxu0 %v1393
        %7036 = vmatmul.mubr.bf16.gmra.mxu0 %v1379
        %v7037 = vpop.f32.mrf.mxu0
        %v7038 = vadd.f32 %v6997, %v7037
        %v7039 = vpop.f32.mrf.mxu0
        %v7040 = vadd.f32 %v6999, %v7039
        %v7041 = vpop.f32.mrf.mxu0
        %v7042 = vpop.f32.mrf.mxu0
        %7043 = vdwg.mxu0
        %7044 = vmatprep.subr.bf16.mxu0 %v5004
        %7045 = vmatpush1.bf16.msra.mxu0 %v5003
        %7046 = vmatprep.subr.bf16.mxu0 %v5002
        %7047 = vmatpush1.bf16.msra.mxu0 %v5001
        %7048 = vmatprep.subr.bf16.mxu0 %v5000
        %7049 = vmatpush1.bf16.msra.mxu0 %v4999
        %7050 = vmatprep.subr.bf16.mxu0 %v4998
        %7051 = vmatpush1.bf16.msra.mxu0 %v4997
        %7052 = vmatprep.subr.bf16.mxu0 %v4996
        %7053 = vmatpush1.bf16.msra.mxu0 %v4995
        %7054 = vmatprep.subr.bf16.mxu0 %v4994
        %7055 = vmatpush1.bf16.msra.mxu0 %v4993
        %7056 = vmatprep.subr.bf16.mxu0 %v4992
        %7057 = vmatpush1.bf16.msra.mxu0 %v4991
        %7058 = vmatprep.subr.bf16.mxu0 %v4990
        %7059 = vmatpush1.bf16.msra.mxu0 %v4989
        %7060 = vmatprep.subr.bf16.mxu0 %v5020
        %7061 = vmatpush2.bf16.msra.mxu0 %v5019
        %7062 = vmatprep.subr.bf16.mxu0 %v5018
        %7063 = vmatpush2.bf16.msra.mxu0 %v5017
        %7064 = vmatprep.subr.bf16.mxu0 %v5016
        %7065 = vmatpush2.bf16.msra.mxu0 %v5015
        %7066 = vmatprep.subr.bf16.mxu0 %v5014
        %7067 = vmatpush2.bf16.msra.mxu0 %v5013
        %7068 = vmatprep.subr.bf16.mxu0 %v5012
        %7069 = vmatpush2.bf16.msra.mxu0 %v5011
        %7070 = vmatprep.subr.bf16.mxu0 %v5010
        %7071 = vmatpush2.bf16.msra.mxu0 %v5009
        %7072 = vmatprep.subr.bf16.mxu0 %v5008
        %7073 = vmatpush2.bf16.msra.mxu0 %v5007
        %7074 = vmatprep.subr.bf16.mxu0 %v5006
        %7075 = vmatpush2.bf16.msra.mxu0 %v5005
        %7076 = vmatprep.mubr.bf16.mxu0 %v1397
        %7077 = vmatmul.mubr.bf16.gmra.mxu0 %v1395
        %v7078 = vpop.f32.mrf.mxu0
        %v7079 = vadd.f32 %v7038, %v7078
        %v7080 = vpop.f32.mrf.mxu0
        %v7081 = vadd.f32 %v7040, %v7080
        %v7082 = vpop.f32.mrf.mxu0
        %v7083 = vpop.f32.mrf.mxu0
        %7084 = vdwg.mxu0
        %7085 = vmatprep.subr.bf16.mxu0 %v5036
        %7086 = vmatpush1.bf16.msra.mxu0 %v5035
        %7087 = vmatprep.subr.bf16.mxu0 %v5034
        %7088 = vmatpush1.bf16.msra.mxu0 %v5033
        %7089 = vmatprep.subr.bf16.mxu0 %v5032
        %7090 = vmatpush1.bf16.msra.mxu0 %v5031
        %7091 = vmatprep.subr.bf16.mxu0 %v5030
        %7092 = vmatpush1.bf16.msra.mxu0 %v5029
        %7093 = vmatprep.subr.bf16.mxu0 %v5028
        %7094 = vmatpush1.bf16.msra.mxu0 %v5027
        %7095 = vmatprep.subr.bf16.mxu0 %v5026
        %7096 = vmatpush1.bf16.msra.mxu0 %v5025
        %7097 = vmatprep.subr.bf16.mxu0 %v5024
        %7098 = vmatpush1.bf16.msra.mxu0 %v5023
        %7099 = vmatprep.subr.bf16.mxu0 %v5022
        %7100 = vmatpush1.bf16.msra.mxu0 %v5021
        %7101 = vmatprep.subr.bf16.mxu0 %v5052
        %7102 = vmatpush2.bf16.msra.mxu0 %v5051
        %7103 = vmatprep.subr.bf16.mxu0 %v5050
        %7104 = vmatpush2.bf16.msra.mxu0 %v5049
        %7105 = vmatprep.subr.bf16.mxu0 %v5048
        %7106 = vmatpush2.bf16.msra.mxu0 %v5047
        %7107 = vmatprep.subr.bf16.mxu0 %v5046
        %7108 = vmatpush2.bf16.msra.mxu0 %v5045
        %7109 = vmatprep.subr.bf16.mxu0 %v5044
        %7110 = vmatpush2.bf16.msra.mxu0 %v5043
        %7111 = vmatprep.subr.bf16.mxu0 %v5042
        %7112 = vmatpush2.bf16.msra.mxu0 %v5041
        %7113 = vmatprep.subr.bf16.mxu0 %v5040
        %7114 = vmatpush2.bf16.msra.mxu0 %v5039
        %7115 = vmatprep.subr.bf16.mxu0 %v5038
        %7116 = vmatpush2.bf16.msra.mxu0 %v5037
        %7117 = vmatprep.mubr.bf16.mxu0 %v1435
        %7118 = vmatmul.mubr.bf16.gmra.mxu0 %v1421
        %v7119 = vpop.f32.mrf.mxu0
        %v7120 = vadd.f32 %v7079, %v7119
        %v7121 = vpop.f32.mrf.mxu0
        %v7122 = vadd.f32 %v7081, %v7121
        %v7123 = vpop.f32.mrf.mxu0
        %v7124 = vpop.f32.mrf.mxu0
        %7125 = vdwg.mxu0
        %7126 = vmatprep.subr.bf16.mxu0 %v5068
        %7127 = vmatpush1.bf16.msra.mxu0 %v5067
        %7128 = vmatprep.subr.bf16.mxu0 %v5066
        %7129 = vmatpush1.bf16.msra.mxu0 %v5065
        %7130 = vmatprep.subr.bf16.mxu0 %v5064
        %7131 = vmatpush1.bf16.msra.mxu0 %v5063
        %7132 = vmatprep.subr.bf16.mxu0 %v5062
        %7133 = vmatpush1.bf16.msra.mxu0 %v5061
        %7134 = vmatprep.subr.bf16.mxu0 %v5060
        %7135 = vmatpush1.bf16.msra.mxu0 %v5059
        %7136 = vmatprep.subr.bf16.mxu0 %v5058
        %7137 = vmatpush1.bf16.msra.mxu0 %v5057
        %7138 = vmatprep.subr.bf16.mxu0 %v5056
        %7139 = vmatpush1.bf16.msra.mxu0 %v5055
        %7140 = vmatprep.subr.bf16.mxu0 %v5054
        %7141 = vmatpush1.bf16.msra.mxu0 %v5053
        %7142 = vmatprep.subr.bf16.mxu0 %v5084
        %7143 = vmatpush2.bf16.msra.mxu0 %v5083
        %7144 = vmatprep.subr.bf16.mxu0 %v5082
        %7145 = vmatpush2.bf16.msra.mxu0 %v5081
        %7146 = vmatprep.subr.bf16.mxu0 %v5080
        %7147 = vmatpush2.bf16.msra.mxu0 %v5079
        %7148 = vmatprep.subr.bf16.mxu0 %v5078
        %7149 = vmatpush2.bf16.msra.mxu0 %v5077
        %7150 = vmatprep.subr.bf16.mxu0 %v5076
        %7151 = vmatpush2.bf16.msra.mxu0 %v5075
        %7152 = vmatprep.subr.bf16.mxu0 %v5074
        %7153 = vmatpush2.bf16.msra.mxu0 %v5073
        %7154 = vmatprep.subr.bf16.mxu0 %v5072
        %7155 = vmatpush2.bf16.msra.mxu0 %v5071
        %7156 = vmatprep.subr.bf16.mxu0 %v5070
        %7157 = vmatpush2.bf16.msra.mxu0 %v5069
        %7158 = vmatprep.mubr.bf16.mxu0 %v1445
        %7159 = vmatmul.mubr.bf16.gmra.mxu0 %v1443
        %v7160 = vpop.f32.mrf.mxu0
        %v7161 = vadd.f32 %v7120, %v7160
        %v7162 = vpop.f32.mrf.mxu0
        %v7163 = vadd.f32 %v7122, %v7162
        %v7164 = vpop.f32.mrf.mxu0
        %v7165 = vpop.f32.mrf.mxu0
        %7166 = vdwg.mxu0
        %7167 = vmatprep.subr.bf16.mxu0 %v5100
        %7168 = vmatpush1.bf16.msra.mxu0 %v5099
        %7169 = vmatprep.subr.bf16.mxu0 %v5098
        %7170 = vmatpush1.bf16.msra.mxu0 %v5097
        %7171 = vmatprep.subr.bf16.mxu0 %v5096
        %7172 = vmatpush1.bf16.msra.mxu0 %v5095
        %7173 = vmatprep.subr.bf16.mxu0 %v5094
        %7174 = vmatpush1.bf16.msra.mxu0 %v5093
        %7175 = vmatprep.subr.bf16.mxu0 %v5092
        %7176 = vmatpush1.bf16.msra.mxu0 %v5091
        %7177 = vmatprep.subr.bf16.mxu0 %v5090
        %7178 = vmatpush1.bf16.msra.mxu0 %v5089
        %7179 = vmatprep.subr.bf16.mxu0 %v5088
        %7180 = vmatpush1.bf16.msra.mxu0 %v5087
        %7181 = vmatprep.subr.bf16.mxu0 %v5086
        %7182 = vmatpush1.bf16.msra.mxu0 %v5085
        %7183 = vmatprep.subr.bf16.mxu0 %v5116
        %7184 = vmatpush2.bf16.msra.mxu0 %v5115
        %7185 = vmatprep.subr.bf16.mxu0 %v5114
        %7186 = vmatpush2.bf16.msra.mxu0 %v5113
        %7187 = vmatprep.subr.bf16.mxu0 %v5112
        %7188 = vmatpush2.bf16.msra.mxu0 %v5111
        %7189 = vmatprep.subr.bf16.mxu0 %v5110
        %7190 = vmatpush2.bf16.msra.mxu0 %v5109
        %7191 = vmatprep.subr.bf16.mxu0 %v5108
        %7192 = vmatpush2.bf16.msra.mxu0 %v5107
        %7193 = vmatprep.subr.bf16.mxu0 %v5106
        %7194 = vmatpush2.bf16.msra.mxu0 %v5105
        %7195 = vmatprep.subr.bf16.mxu0 %v5104
        %7196 = vmatpush2.bf16.msra.mxu0 %v5103
        %7197 = vmatprep.subr.bf16.mxu0 %v5102
        %7198 = vmatpush2.bf16.msra.mxu0 %v5101
        %7199 = vmatprep.mubr.bf16.mxu0 %v1442
        %7200 = vmatmul.mubr.bf16.gmra.mxu0 %v1428
        %v7201 = vpop.f32.mrf.mxu0
        %v7202 = vadd.f32 %v7161, %v7201
        %v7203 = vpop.f32.mrf.mxu0
        %v7204 = vadd.f32 %v7163, %v7203
        %v7205 = vpop.f32.mrf.mxu0
        %v7206 = vpop.f32.mrf.mxu0
        %7207 = vdwg.mxu0
        %7208 = vmatprep.subr.bf16.mxu0 %v5132
        %7209 = vmatpush1.bf16.msra.mxu0 %v5131
        %7210 = vmatprep.subr.bf16.mxu0 %v5130
        %7211 = vmatpush1.bf16.msra.mxu0 %v5129
        %7212 = vmatprep.subr.bf16.mxu0 %v5128
        %7213 = vmatpush1.bf16.msra.mxu0 %v5127
        %7214 = vmatprep.subr.bf16.mxu0 %v5126
        %7215 = vmatpush1.bf16.msra.mxu0 %v5125
        %7216 = vmatprep.subr.bf16.mxu0 %v5124
        %7217 = vmatpush1.bf16.msra.mxu0 %v5123
        %7218 = vmatprep.subr.bf16.mxu0 %v5122
        %7219 = vmatpush1.bf16.msra.mxu0 %v5121
        %7220 = vmatprep.subr.bf16.mxu0 %v5120
        %7221 = vmatpush1.bf16.msra.mxu0 %v5119
        %7222 = vmatprep.subr.bf16.mxu0 %v5118
        %7223 = vmatpush1.bf16.msra.mxu0 %v5117
        %7224 = vmatprep.subr.bf16.mxu0 %v5148
        %7225 = vmatpush2.bf16.msra.mxu0 %v5147
        %7226 = vmatprep.subr.bf16.mxu0 %v5146
        %7227 = vmatpush2.bf16.msra.mxu0 %v5145
        %7228 = vmatprep.subr.bf16.mxu0 %v5144
        %7229 = vmatpush2.bf16.msra.mxu0 %v5143
        %7230 = vmatprep.subr.bf16.mxu0 %v5142
        %7231 = vmatpush2.bf16.msra.mxu0 %v5141
        %7232 = vmatprep.subr.bf16.mxu0 %v5140
        %7233 = vmatpush2.bf16.msra.mxu0 %v5139
        %7234 = vmatprep.subr.bf16.mxu0 %v5138
        %7235 = vmatpush2.bf16.msra.mxu0 %v5137
        %7236 = vmatprep.subr.bf16.mxu0 %v5136
        %7237 = vmatpush2.bf16.msra.mxu0 %v5135
        %7238 = vmatprep.subr.bf16.mxu0 %v5134
        %7239 = vmatpush2.bf16.msra.mxu0 %v5133
        %7240 = vmatprep.mubr.bf16.mxu0 %v1446
        %7241 = vmatmul.mubr.bf16.gmra.mxu0 %v1444
        %v7242 = vpop.f32.mrf.mxu0
        %v7243 = vadd.f32 %v7202, %v7242
        %v7244 = vpop.f32.mrf.mxu0
        %v7245 = vadd.f32 %v7204, %v7244
        %v7246 = vpop.f32.mrf.mxu0
        %v7247 = vpop.f32.mrf.mxu0
        %7248 = vdwg.mxu0
        %7249 = vmatprep.subr.bf16.mxu0 %v5164
        %7250 = vmatpush1.bf16.msra.mxu0 %v5163
        %7251 = vmatprep.subr.bf16.mxu0 %v5162
        %7252 = vmatpush1.bf16.msra.mxu0 %v5161
        %7253 = vmatprep.subr.bf16.mxu0 %v5160
        %7254 = vmatpush1.bf16.msra.mxu0 %v5159
        %7255 = vmatprep.subr.bf16.mxu0 %v5158
        %7256 = vmatpush1.bf16.msra.mxu0 %v5157
        %7257 = vmatprep.subr.bf16.mxu0 %v5156
        %7258 = vmatpush1.bf16.msra.mxu0 %v5155
        %7259 = vmatprep.subr.bf16.mxu0 %v5154
        %7260 = vmatpush1.bf16.msra.mxu0 %v5153
        %7261 = vmatprep.subr.bf16.mxu0 %v5152
        %7262 = vmatpush1.bf16.msra.mxu0 %v5151
        %7263 = vmatprep.subr.bf16.mxu0 %v5150
        %7264 = vmatpush1.bf16.msra.mxu0 %v5149
        %7265 = vmatprep.subr.bf16.mxu0 %v5180
        %7266 = vmatpush2.bf16.msra.mxu0 %v5179
        %7267 = vmatprep.subr.bf16.mxu0 %v5178
        %7268 = vmatpush2.bf16.msra.mxu0 %v5177
        %7269 = vmatprep.subr.bf16.mxu0 %v5176
        %7270 = vmatpush2.bf16.msra.mxu0 %v5175
        %7271 = vmatprep.subr.bf16.mxu0 %v5174
        %7272 = vmatpush2.bf16.msra.mxu0 %v5173
        %7273 = vmatprep.subr.bf16.mxu0 %v5172
        %7274 = vmatpush2.bf16.msra.mxu0 %v5171
        %7275 = vmatprep.subr.bf16.mxu0 %v5170
        %7276 = vmatpush2.bf16.msra.mxu0 %v5169
        %7277 = vmatprep.subr.bf16.mxu0 %v5168
        %7278 = vmatpush2.bf16.msra.mxu0 %v5167
        %7279 = vmatprep.subr.bf16.mxu0 %v5166
        %7280 = vmatpush2.bf16.msra.mxu0 %v5165
        %7281 = vmatprep.mubr.bf16.mxu0 %v1484
        %7282 = vmatmul.mubr.bf16.gmra.mxu0 %v1470
        %v7283 = vpop.f32.mrf.mxu0
        %v7284 = vadd.f32 %v7243, %v7283
        %v7285 = vpop.f32.mrf.mxu0
        %v7286 = vadd.f32 %v7245, %v7285
        %v7287 = vpop.f32.mrf.mxu0
        %v7288 = vpop.f32.mrf.mxu0
        %7289 = vdwg.mxu0
        %7290 = vmatprep.subr.bf16.mxu0 %v5196
        %7291 = vmatpush1.bf16.msra.mxu0 %v5195
        %7292 = vmatprep.subr.bf16.mxu0 %v5194
        %7293 = vmatpush1.bf16.msra.mxu0 %v5193
        %7294 = vmatprep.subr.bf16.mxu0 %v5192
        %7295 = vmatpush1.bf16.msra.mxu0 %v5191
        %7296 = vmatprep.subr.bf16.mxu0 %v5190
        %7297 = vmatpush1.bf16.msra.mxu0 %v5189
        %7298 = vmatprep.subr.bf16.mxu0 %v5188
        %7299 = vmatpush1.bf16.msra.mxu0 %v5187
        %7300 = vmatprep.subr.bf16.mxu0 %v5186
        %7301 = vmatpush1.bf16.msra.mxu0 %v5185
        %7302 = vmatprep.subr.bf16.mxu0 %v5184
        %7303 = vmatpush1.bf16.msra.mxu0 %v5183
        %7304 = vmatprep.subr.bf16.mxu0 %v5182
        %7305 = vmatpush1.bf16.msra.mxu0 %v5181
        %7306 = vmatprep.subr.bf16.mxu0 %v5212
        %7307 = vmatpush2.bf16.msra.mxu0 %v5211
        %7308 = vmatprep.subr.bf16.mxu0 %v5210
        %7309 = vmatpush2.bf16.msra.mxu0 %v5209
        %7310 = vmatprep.subr.bf16.mxu0 %v5208
        %7311 = vmatpush2.bf16.msra.mxu0 %v5207
        %7312 = vmatprep.subr.bf16.mxu0 %v5206
        %7313 = vmatpush2.bf16.msra.mxu0 %v5205
        %7314 = vmatprep.subr.bf16.mxu0 %v5204
        %7315 = vmatpush2.bf16.msra.mxu0 %v5203
        %7316 = vmatprep.subr.bf16.mxu0 %v5202
        %7317 = vmatpush2.bf16.msra.mxu0 %v5201
        %7318 = vmatprep.subr.bf16.mxu0 %v5200
        %7319 = vmatpush2.bf16.msra.mxu0 %v5199
        %7320 = vmatprep.subr.bf16.mxu0 %v5198
        %7321 = vmatpush2.bf16.msra.mxu0 %v5197
        %7322 = vmatprep.mubr.bf16.mxu0 %v1494
        %7323 = vmatmul.mubr.bf16.gmra.mxu0 %v1492
        %v7324 = vpop.f32.mrf.mxu0
        %v7325 = vadd.f32 %v7284, %v7324
        %v7326 = vpop.f32.mrf.mxu0
        %v7327 = vadd.f32 %v7286, %v7326
        %v7328 = vpop.f32.mrf.mxu0
        %v7329 = vpop.f32.mrf.mxu0
        %7330 = vdwg.mxu0
        %7331 = vmatprep.subr.bf16.mxu0 %v5228
        %7332 = vmatpush1.bf16.msra.mxu0 %v5227
        %7333 = vmatprep.subr.bf16.mxu0 %v5226
        %7334 = vmatpush1.bf16.msra.mxu0 %v5225
        %7335 = vmatprep.subr.bf16.mxu0 %v5224
        %7336 = vmatpush1.bf16.msra.mxu0 %v5223
        %7337 = vmatprep.subr.bf16.mxu0 %v5222
        %7338 = vmatpush1.bf16.msra.mxu0 %v5221
        %7339 = vmatprep.subr.bf16.mxu0 %v5220
        %7340 = vmatpush1.bf16.msra.mxu0 %v5219
        %7341 = vmatprep.subr.bf16.mxu0 %v5218
        %7342 = vmatpush1.bf16.msra.mxu0 %v5217
        %7343 = vmatprep.subr.bf16.mxu0 %v5216
        %7344 = vmatpush1.bf16.msra.mxu0 %v5215
        %7345 = vmatprep.subr.bf16.mxu0 %v5214
        %7346 = vmatpush1.bf16.msra.mxu0 %v5213
        %7347 = vmatprep.subr.bf16.mxu0 %v5244
        %7348 = vmatpush2.bf16.msra.mxu0 %v5243
        %7349 = vmatprep.subr.bf16.mxu0 %v5242
        %7350 = vmatpush2.bf16.msra.mxu0 %v5241
        %7351 = vmatprep.subr.bf16.mxu0 %v5240
        %7352 = vmatpush2.bf16.msra.mxu0 %v5239
        %7353 = vmatprep.subr.bf16.mxu0 %v5238
        %7354 = vmatpush2.bf16.msra.mxu0 %v5237
        %7355 = vmatprep.subr.bf16.mxu0 %v5236
        %7356 = vmatpush2.bf16.msra.mxu0 %v5235
        %7357 = vmatprep.subr.bf16.mxu0 %v5234
        %7358 = vmatpush2.bf16.msra.mxu0 %v5233
        %7359 = vmatprep.subr.bf16.mxu0 %v5232
        %7360 = vmatpush2.bf16.msra.mxu0 %v5231
        %7361 = vmatprep.subr.bf16.mxu0 %v5230
        %7362 = vmatpush2.bf16.msra.mxu0 %v5229
        %7363 = vmatprep.mubr.bf16.mxu0 %v1491
        %7364 = vmatmul.mubr.bf16.gmra.mxu0 %v1477
        %v7365 = vpop.f32.mrf.mxu0
        %v7366 = vadd.f32 %v7325, %v7365
        %v7367 = vpop.f32.mrf.mxu0
        %v7368 = vadd.f32 %v7327, %v7367
        %v7369 = vpop.f32.mrf.mxu0
        %v7370 = vpop.f32.mrf.mxu0
        %7371 = vdwg.mxu0
        %7372 = vmatprep.subr.bf16.mxu0 %v5260
        %7373 = vmatpush1.bf16.msra.mxu0 %v5259
        %7374 = vmatprep.subr.bf16.mxu0 %v5258
        %7375 = vmatpush1.bf16.msra.mxu0 %v5257
        %7376 = vmatprep.subr.bf16.mxu0 %v5256
        %7377 = vmatpush1.bf16.msra.mxu0 %v5255
        %7378 = vmatprep.subr.bf16.mxu0 %v5254
        %7379 = vmatpush1.bf16.msra.mxu0 %v5253
        %7380 = vmatprep.subr.bf16.mxu0 %v5252
        %7381 = vmatpush1.bf16.msra.mxu0 %v5251
        %7382 = vmatprep.subr.bf16.mxu0 %v5250
        %7383 = vmatpush1.bf16.msra.mxu0 %v5249
        %7384 = vmatprep.subr.bf16.mxu0 %v5248
        %7385 = vmatpush1.bf16.msra.mxu0 %v5247
        %7386 = vmatprep.subr.bf16.mxu0 %v5246
        %7387 = vmatpush1.bf16.msra.mxu0 %v5245
        %7388 = vmatprep.subr.bf16.mxu0 %v5276
        %7389 = vmatpush2.bf16.msra.mxu0 %v5275
        %7390 = vmatprep.subr.bf16.mxu0 %v5274
        %7391 = vmatpush2.bf16.msra.mxu0 %v5273
        %7392 = vmatprep.subr.bf16.mxu0 %v5272
        %7393 = vmatpush2.bf16.msra.mxu0 %v5271
        %7394 = vmatprep.subr.bf16.mxu0 %v5270
        %7395 = vmatpush2.bf16.msra.mxu0 %v5269
        %7396 = vmatprep.subr.bf16.mxu0 %v5268
        %7397 = vmatpush2.bf16.msra.mxu0 %v5267
        %7398 = vmatprep.subr.bf16.mxu0 %v5266
        %7399 = vmatpush2.bf16.msra.mxu0 %v5265
        %7400 = vmatprep.subr.bf16.mxu0 %v5264
        %7401 = vmatpush2.bf16.msra.mxu0 %v5263
        %7402 = vmatprep.subr.bf16.mxu0 %v5262
        %7403 = vmatpush2.bf16.msra.mxu0 %v5261
        %7404 = vmatprep.mubr.bf16.mxu0 %v1495
        %7405 = vmatmul.mubr.bf16.gmra.mxu0 %v1493
        %v7406 = vpop.f32.mrf.mxu0
        %v7407 = vadd.f32 %v7366, %v7406
        %v7408 = vpop.f32.mrf.mxu0
        %v7409 = vadd.f32 %v7368, %v7408
        %v7410 = vpop.f32.mrf.mxu0
        %v7411 = vpop.f32.mrf.mxu0
        %7412 = vdwg.mxu0
        %7413 = vmatprep.subr.bf16.mxu0 %v5292
        %7414 = vmatpush1.bf16.msra.mxu0 %v5291
        %7415 = vmatprep.subr.bf16.mxu0 %v5290
        %7416 = vmatpush1.bf16.msra.mxu0 %v5289
        %7417 = vmatprep.subr.bf16.mxu0 %v5288
        %7418 = vmatpush1.bf16.msra.mxu0 %v5287
        %7419 = vmatprep.subr.bf16.mxu0 %v5286
        %7420 = vmatpush1.bf16.msra.mxu0 %v5285
        %7421 = vmatprep.subr.bf16.mxu0 %v5284
        %7422 = vmatpush1.bf16.msra.mxu0 %v5283
        %7423 = vmatprep.subr.bf16.mxu0 %v5282
        %7424 = vmatpush1.bf16.msra.mxu0 %v5281
        %7425 = vmatprep.subr.bf16.mxu0 %v5280
        %7426 = vmatpush1.bf16.msra.mxu0 %v5279
        %7427 = vmatprep.subr.bf16.mxu0 %v5278
        %7428 = vmatpush1.bf16.msra.mxu0 %v5277
        %7429 = vmatprep.subr.bf16.mxu0 %v5308
        %7430 = vmatpush2.bf16.msra.mxu0 %v5307
        %7431 = vmatprep.subr.bf16.mxu0 %v5306
        %7432 = vmatpush2.bf16.msra.mxu0 %v5305
        %7433 = vmatprep.subr.bf16.mxu0 %v5304
        %7434 = vmatpush2.bf16.msra.mxu0 %v5303
        %7435 = vmatprep.subr.bf16.mxu0 %v5302
        %7436 = vmatpush2.bf16.msra.mxu0 %v5301
        %7437 = vmatprep.subr.bf16.mxu0 %v5300
        %7438 = vmatpush2.bf16.msra.mxu0 %v5299
        %7439 = vmatprep.subr.bf16.mxu0 %v5298
        %7440 = vmatpush2.bf16.msra.mxu0 %v5297
        %7441 = vmatprep.subr.bf16.mxu0 %v5296
        %7442 = vmatpush2.bf16.msra.mxu0 %v5295
        %7443 = vmatprep.subr.bf16.mxu0 %v5294
        %7444 = vmatpush2.bf16.msra.mxu0 %v5293
        %7445 = vmatprep.mubr.bf16.mxu0 %v1533
        %7446 = vmatmul.mubr.bf16.gmra.mxu0 %v1519
        %v7447 = vpop.f32.mrf.mxu0
        %v7448 = vadd.f32 %v7407, %v7447
        %v7449 = vpop.f32.mrf.mxu0
        %v7450 = vadd.f32 %v7409, %v7449
        %v7451 = vpop.f32.mrf.mxu0
        %v7452 = vpop.f32.mrf.mxu0
        %7453 = vdwg.mxu0
        %7454 = vmatprep.subr.bf16.mxu0 %v5324
        %7455 = vmatpush1.bf16.msra.mxu0 %v5323
        %7456 = vmatprep.subr.bf16.mxu0 %v5322
        %7457 = vmatpush1.bf16.msra.mxu0 %v5321
        %7458 = vmatprep.subr.bf16.mxu0 %v5320
        %7459 = vmatpush1.bf16.msra.mxu0 %v5319
        %7460 = vmatprep.subr.bf16.mxu0 %v5318
        %7461 = vmatpush1.bf16.msra.mxu0 %v5317
        %7462 = vmatprep.subr.bf16.mxu0 %v5316
        %7463 = vmatpush1.bf16.msra.mxu0 %v5315
        %7464 = vmatprep.subr.bf16.mxu0 %v5314
        %7465 = vmatpush1.bf16.msra.mxu0 %v5313
        %7466 = vmatprep.subr.bf16.mxu0 %v5312
        %7467 = vmatpush1.bf16.msra.mxu0 %v5311
        %7468 = vmatprep.subr.bf16.mxu0 %v5310
        %7469 = vmatpush1.bf16.msra.mxu0 %v5309
        %7470 = vmatprep.subr.bf16.mxu0 %v5340
        %7471 = vmatpush2.bf16.msra.mxu0 %v5339
        %7472 = vmatprep.subr.bf16.mxu0 %v5338
        %7473 = vmatpush2.bf16.msra.mxu0 %v5337
        %7474 = vmatprep.subr.bf16.mxu0 %v5336
        %7475 = vmatpush2.bf16.msra.mxu0 %v5335
        %7476 = vmatprep.subr.bf16.mxu0 %v5334
        %7477 = vmatpush2.bf16.msra.mxu0 %v5333
        %7478 = vmatprep.subr.bf16.mxu0 %v5332
        %7479 = vmatpush2.bf16.msra.mxu0 %v5331
        %7480 = vmatprep.subr.bf16.mxu0 %v5330
        %7481 = vmatpush2.bf16.msra.mxu0 %v5329
        %7482 = vmatprep.subr.bf16.mxu0 %v5328
        %7483 = vmatpush2.bf16.msra.mxu0 %v5327
        %7484 = vmatprep.subr.bf16.mxu0 %v5326
        %7485 = vmatpush2.bf16.msra.mxu0 %v5325
        %7486 = vmatprep.mubr.bf16.mxu0 %v1543
        %7487 = vmatmul.mubr.bf16.gmra.mxu0 %v1541
        %v7488 = vpop.f32.mrf.mxu0
        %v7489 = vadd.f32 %v7448, %v7488
        %v7490 = vpop.f32.mrf.mxu0
        %v7491 = vadd.f32 %v7450, %v7490
        %v7492 = vpop.f32.mrf.mxu0
        %v7493 = vpop.f32.mrf.mxu0
        %7494 = vdwg.mxu0
        %7495 = vmatprep.subr.bf16.mxu0 %v5356
        %7496 = vmatpush1.bf16.msra.mxu0 %v5355
        %7497 = vmatprep.subr.bf16.mxu0 %v5354
        %7498 = vmatpush1.bf16.msra.mxu0 %v5353
        %7499 = vmatprep.subr.bf16.mxu0 %v5352
        %7500 = vmatpush1.bf16.msra.mxu0 %v5351
        %7501 = vmatprep.subr.bf16.mxu0 %v5350
        %7502 = vmatpush1.bf16.msra.mxu0 %v5349
        %7503 = vmatprep.subr.bf16.mxu0 %v5348
        %7504 = vmatpush1.bf16.msra.mxu0 %v5347
        %7505 = vmatprep.subr.bf16.mxu0 %v5346
        %7506 = vmatpush1.bf16.msra.mxu0 %v5345
        %7507 = vmatprep.subr.bf16.mxu0 %v5344
        %7508 = vmatpush1.bf16.msra.mxu0 %v5343
        %7509 = vmatprep.subr.bf16.mxu0 %v5342
        %7510 = vmatpush1.bf16.msra.mxu0 %v5341
        %7511 = vmatprep.subr.bf16.mxu0 %v5372
        %7512 = vmatpush2.bf16.msra.mxu0 %v5371
        %7513 = vmatprep.subr.bf16.mxu0 %v5370
        %7514 = vmatpush2.bf16.msra.mxu0 %v5369
        %7515 = vmatprep.subr.bf16.mxu0 %v5368
        %7516 = vmatpush2.bf16.msra.mxu0 %v5367
        %7517 = vmatprep.subr.bf16.mxu0 %v5366
        %7518 = vmatpush2.bf16.msra.mxu0 %v5365
        %7519 = vmatprep.subr.bf16.mxu0 %v5364
        %7520 = vmatpush2.bf16.msra.mxu0 %v5363
        %7521 = vmatprep.subr.bf16.mxu0 %v5362
        %7522 = vmatpush2.bf16.msra.mxu0 %v5361
        %7523 = vmatprep.subr.bf16.mxu0 %v5360
        %7524 = vmatpush2.bf16.msra.mxu0 %v5359
        %7525 = vmatprep.subr.bf16.mxu0 %v5358
        %7526 = vmatpush2.bf16.msra.mxu0 %v5357
        %7527 = vmatprep.mubr.bf16.mxu0 %v1540
        %7528 = vmatmul.mubr.bf16.gmra.mxu0 %v1526
        %v7529 = vpop.f32.mrf.mxu0
        %v7530 = vadd.f32 %v7489, %v7529
        %v7531 = vpop.f32.mrf.mxu0
        %v7532 = vadd.f32 %v7491, %v7531
        %v7533 = vpop.f32.mrf.mxu0
        %v7534 = vpop.f32.mrf.mxu0
        %7535 = vdwg.mxu0
        %7536 = vmatprep.subr.bf16.mxu0 %v5388
        %7537 = vmatpush1.bf16.msra.mxu0 %v5387
        %7538 = vmatprep.subr.bf16.mxu0 %v5386
        %7539 = vmatpush1.bf16.msra.mxu0 %v5385
        %7540 = vmatprep.subr.bf16.mxu0 %v5384
        %7541 = vmatpush1.bf16.msra.mxu0 %v5383
        %7542 = vmatprep.subr.bf16.mxu0 %v5382
        %7543 = vmatpush1.bf16.msra.mxu0 %v5381
        %7544 = vmatprep.subr.bf16.mxu0 %v5380
        %7545 = vmatpush1.bf16.msra.mxu0 %v5379
        %7546 = vmatprep.subr.bf16.mxu0 %v5378
        %7547 = vmatpush1.bf16.msra.mxu0 %v5377
        %7548 = vmatprep.subr.bf16.mxu0 %v5376
        %7549 = vmatpush1.bf16.msra.mxu0 %v5375
        %7550 = vmatprep.subr.bf16.mxu0 %v5374
        %7551 = vmatpush1.bf16.msra.mxu0 %v5373
        %7552 = vmatprep.subr.bf16.mxu0 %v5404
        %7553 = vmatpush2.bf16.msra.mxu0 %v5403
        %7554 = vmatprep.subr.bf16.mxu0 %v5402
        %7555 = vmatpush2.bf16.msra.mxu0 %v5401
        %7556 = vmatprep.subr.bf16.mxu0 %v5400
        %7557 = vmatpush2.bf16.msra.mxu0 %v5399
        %7558 = vmatprep.subr.bf16.mxu0 %v5398
        %7559 = vmatpush2.bf16.msra.mxu0 %v5397
        %7560 = vmatprep.subr.bf16.mxu0 %v5396
        %7561 = vmatpush2.bf16.msra.mxu0 %v5395
        %7562 = vmatprep.subr.bf16.mxu0 %v5394
        %7563 = vmatpush2.bf16.msra.mxu0 %v5393
        %7564 = vmatprep.subr.bf16.mxu0 %v5392
        %7565 = vmatpush2.bf16.msra.mxu0 %v5391
        %7566 = vmatprep.subr.bf16.mxu0 %v5390
        %7567 = vmatpush2.bf16.msra.mxu0 %v5389
        %7568 = vmatprep.mubr.bf16.mxu0 %v1544
        %7569 = vmatmul.mubr.bf16.gmra.mxu0 %v1542
        %v7570 = vpop.f32.mrf.mxu0
        %v7571 = vadd.f32 %v7530, %v7570
        %v7572 = vpop.f32.mrf.mxu0
        %v7573 = vadd.f32 %v7532, %v7572
        %v7574 = vpop.f32.mrf.mxu0
        %v7575 = vpop.f32.mrf.mxu0
        %7576 = vdwg.mxu0
        %7577 = vmatprep.subr.bf16.mxu0 %v5420
        %7578 = vmatpush1.bf16.msra.mxu0 %v5419
        %7579 = vmatprep.subr.bf16.mxu0 %v5418
        %7580 = vmatpush1.bf16.msra.mxu0 %v5417
        %7581 = vmatprep.subr.bf16.mxu0 %v5416
        %7582 = vmatpush1.bf16.msra.mxu0 %v5415
        %7583 = vmatprep.subr.bf16.mxu0 %v5414
        %7584 = vmatpush1.bf16.msra.mxu0 %v5413
        %7585 = vmatprep.subr.bf16.mxu0 %v5412
        %7586 = vmatpush1.bf16.msra.mxu0 %v5411
        %7587 = vmatprep.subr.bf16.mxu0 %v5410
        %7588 = vmatpush1.bf16.msra.mxu0 %v5409
        %7589 = vmatprep.subr.bf16.mxu0 %v5408
        %7590 = vmatpush1.bf16.msra.mxu0 %v5407
        %7591 = vmatprep.subr.bf16.mxu0 %v5406
        %7592 = vmatpush1.bf16.msra.mxu0 %v5405
        %7593 = vmatprep.subr.bf16.mxu0 %v5436
        %7594 = vmatpush2.bf16.msra.mxu0 %v5435
        %7595 = vmatprep.subr.bf16.mxu0 %v5434
        %7596 = vmatpush2.bf16.msra.mxu0 %v5433
        %7597 = vmatprep.subr.bf16.mxu0 %v5432
        %7598 = vmatpush2.bf16.msra.mxu0 %v5431
        %7599 = vmatprep.subr.bf16.mxu0 %v5430
        %7600 = vmatpush2.bf16.msra.mxu0 %v5429
        %7601 = vmatprep.subr.bf16.mxu0 %v5428
        %7602 = vmatpush2.bf16.msra.mxu0 %v5427
        %7603 = vmatprep.subr.bf16.mxu0 %v5426
        %7604 = vmatpush2.bf16.msra.mxu0 %v5425
        %7605 = vmatprep.subr.bf16.mxu0 %v5424
        %7606 = vmatpush2.bf16.msra.mxu0 %v5423
        %7607 = vmatprep.subr.bf16.mxu0 %v5422
        %7608 = vmatpush2.bf16.msra.mxu0 %v5421
        %7609 = vmatprep.mubr.bf16.mxu0 %v1566
        %7610 = vmatmul.mubr.bf16.gmra.mxu0 %v1559
        %v7611 = vpop.f32.mrf.mxu0
        %v7612 = vadd.f32 %v7571, %v7611
        %v7613 = vpop.f32.mrf.mxu0
        %v7614 = vadd.f32 %v7573, %v7613
        %v7615 = vpop.f32.mrf.mxu0
        %v7616 = vpop.f32.mrf.mxu0
        %7617 = vdwg.mxu0
        %7618 = vmatprep.subr.bf16.mxu0 %v5452
        %7619 = vmatpush1.bf16.msra.mxu0 %v5451
        %7620 = vmatprep.subr.bf16.mxu0 %v5450
        %7621 = vmatpush1.bf16.msra.mxu0 %v5449
        %7622 = vmatprep.subr.bf16.mxu0 %v5448
        %7623 = vmatpush1.bf16.msra.mxu0 %v5447
        %7624 = vmatprep.subr.bf16.mxu0 %v5446
        %7625 = vmatpush1.bf16.msra.mxu0 %v5445
        %7626 = vmatprep.subr.bf16.mxu0 %v5444
        %7627 = vmatpush1.bf16.msra.mxu0 %v5443
        %7628 = vmatprep.subr.bf16.mxu0 %v5442
        %7629 = vmatpush1.bf16.msra.mxu0 %v5441
        %7630 = vmatprep.subr.bf16.mxu0 %v5440
        %7631 = vmatpush1.bf16.msra.mxu0 %v5439
        %7632 = vmatprep.subr.bf16.mxu0 %v5438
        %7633 = vmatpush1.bf16.msra.mxu0 %v5437
        %7634 = vmatprep.subr.bf16.mxu0 %v5468
        %7635 = vmatpush2.bf16.msra.mxu0 %v5467
        %7636 = vmatprep.subr.bf16.mxu0 %v5466
        %7637 = vmatpush2.bf16.msra.mxu0 %v5465
        %7638 = vmatprep.subr.bf16.mxu0 %v5464
        %7639 = vmatpush2.bf16.msra.mxu0 %v5463
        %7640 = vmatprep.subr.bf16.mxu0 %v5462
        %7641 = vmatpush2.bf16.msra.mxu0 %v5461
        %7642 = vmatprep.subr.bf16.mxu0 %v5460
        %7643 = vmatpush2.bf16.msra.mxu0 %v5459
        %7644 = vmatprep.subr.bf16.mxu0 %v5458
        %7645 = vmatpush2.bf16.msra.mxu0 %v5457
        %7646 = vmatprep.subr.bf16.mxu0 %v5456
        %7647 = vmatpush2.bf16.msra.mxu0 %v5455
        %7648 = vmatprep.subr.bf16.mxu0 %v5454
        %7649 = vmatpush2.bf16.msra.mxu0 %v5453
        %7650 = vmatprep.mubr.bf16.mxu0 %v1568
        %7651 = vmatmul.mubr.bf16.gmra.mxu0 %v1567
        %v7652 = vpop.f32.mrf.mxu0
        %v7653 = vadd.f32 %v7612, %v7652
        %v7654 = vpop.f32.mrf.mxu0
        %v7655 = vadd.f32 %v7614, %v7654
        %v7656 = vpop.f32.mrf.mxu0
        %v7657 = vpop.f32.mrf.mxu0
        %7658 = vdwg.mxu0
        %v7661 = vcombine.low %v7653, %v7655
        %v7663 = vunpack.c.l.s4 1983009808
        %v7664 = vunpack.c.0.s8 %v7663
        %v7665 = vlaneseq
        %v7666 = vshrl.u32 %v7665, 7
        %v7667 = vsub.s32 %v7664, %v7666
        %v7668 = vrot.slane %v7661, %v7667
        %v7670 = vadd.f32 %v233, %v7668
        %7671 = vst [vmem:[#allocation2] sm:$0xf] %v7670
        %p7672 = scmp.eq.s32.totalorder %s17, 1
        // Predicated region
        $region45: #{two_arg_cnn_forward.5} parent=39 // pred_check
          %p7673 = pneg %p7672
        $region46: #{two_arg_cnn_forward.5} parent=39 // pred_check_branch
          %7675 = sbr.rel (%p7673) target = $region48
        $region47: #{two_arg_cnn_forward.5} parent=39 // pred_region
          %v7676 = vld [vmem:[#allocation2] sm:$0xf]
          %v7677 = vld [vmem:[%s2] sm:$0x3]
          %v7679 = vlaneseq
          %v7680 = vshrl.u32 %v7679, 7
          %v7681 = vsub.s32 0, %v7680
          %v7682 = vrot.slane %v7677, %v7681
          %v7683 = vlaneseq
          %v7684 = vshrl.u32 %v7683, 7
          %v7685 = vsub.s32 1, %v7684
          %v7686 = vrot.slane %v7677, %v7685
          %v7687 = vcombine.low %v7682, %v7686
          %v7689 = vunpack.c.l.s4 1983009808
          %v7690 = vunpack.c.0.s8 %v7689
          %v7691 = vlaneseq
          %v7692 = vshrl.u32 %v7691, 7
          %v7693 = vsub.s32 %v7690, %v7692
          %v7694 = vrot.slane %v7687, %v7693
          %v7696 = vadd.f32 %v7676, %v7694
          %v7697 = vtanh.pop %v7696
          %v7698 = vld [vmem:[%s3] sm:$0xff]
          %v7699 = vld [vmem:[%s3 + $0x8] sm:$0xff]
          %v7700 = vld [vmem:[%s3 + $0x10] sm:$0xff]
          %v7701 = vld [vmem:[%s3 + $0x18] sm:$0xff]
          %v7702 = vld [vmem:[%s3 + $0x20] sm:$0xff]
          %v7703 = vld [vmem:[%s3 + $0x28] sm:$0xff]
          %v7704 = vld [vmem:[%s3 + $0x30] sm:$0xff]
          %v7705 = vld [vmem:[%s3 + $0x38] sm:$0xff]
          %v7706 = vld [vmem:[%s3 + $0x40] sm:$0xff]
          %v7707 = vld [vmem:[%s3 + $0x48] sm:$0xff]
          %v7708 = vld [vmem:[%s3 + $0x50] sm:$0xff]
          %v7709 = vld [vmem:[%s3 + $0x58] sm:$0xff]
          %v7710 = vld [vmem:[%s3 + $0x60] sm:$0xff]
          %v7711 = vld [vmem:[%s3 + $0x68] sm:$0xff]
          %v7712 = vld [vmem:[%s3 + $0x70] sm:$0xff]
          %v7713 = vld [vmem:[%s3 + $0x78] sm:$0xff]
          %v7714 = vld [vmem:[%s3 + $0x80] sm:$0xff]
          %v7715 = vld [vmem:[%s3 + $0x88] sm:$0xff]
          %v7716 = vld [vmem:[%s3 + $0x90] sm:$0xff]
          %v7717 = vld [vmem:[%s3 + $0x98] sm:$0xff]
          %v7718 = vld [vmem:[%s3 + $0xa0] sm:$0xff]
          %v7719 = vld [vmem:[%s3 + $0xa8] sm:$0xff]
          %v7720 = vld [vmem:[%s3 + $0xb0] sm:$0xff]
          %v7721 = vld [vmem:[%s3 + $0xb8] sm:$0xff]
          %v7722 = vld [vmem:[%s3 + $0xc0] sm:$0xff]
          %v7723 = vld [vmem:[%s3 + $0xc8] sm:$0xff]
          %v7724 = vld [vmem:[%s3 + $0xd0] sm:$0xff]
          %v7725 = vld [vmem:[%s3 + $0xd8] sm:$0xff]
          %v7726 = vld [vmem:[%s3 + $0xe0] sm:$0xff]
          %v7727 = vld [vmem:[%s3 + $0xe8] sm:$0xff]
          %v7728 = vld [vmem:[%s3 + $0xf0] sm:$0xff]
          %v7729 = vld [vmem:[%s3 + $0xf8] sm:$0xff]
          %v7730 = vld [vmem:[%s4] sm:$0x1]
          %v7732 = vlaneseq
          %v7733 = vshrl.u32 %v7732, 7
          %v7734 = vsub.s32 0, %v7733
          %v7735 = vrot.slane %v7730, %v7734
          %v7739 = vunpack.c.l.s4 1983009808
          %v7740 = vunpack.c.0.s8 %v7739
          %v7741 = vlaneseq
          %v7742 = vshrl.u32 %v7741, 7
          %v7743 = vsub.s32 %v7740, %v7742
          %v7744 = vrot.slane %v7697, %v7743
          %v7745 = vcombine.high %v7744, %v7744
          %7748 = vmatprep.subr.mxu0 0.0
          %7749 = vmatpush1.msra.mxu0 %v7713
          %7750 = vmatprep.subr.mxu0 0.0
          %7751 = vmatpush1.msra.mxu0 %v7712
          %7752 = vmatprep.subr.mxu0 0.0
          %7753 = vmatpush1.msra.mxu0 %v7711
          %7754 = vmatprep.subr.mxu0 0.0
          %7755 = vmatpush1.msra.mxu0 %v7710
          %7756 = vmatprep.subr.mxu0 0.0
          %7757 = vmatpush1.msra.mxu0 %v7709
          %7758 = vmatprep.subr.mxu0 0.0
          %7759 = vmatpush1.msra.mxu0 %v7708
          %7760 = vmatprep.subr.mxu0 0.0
          %7761 = vmatpush1.msra.mxu0 %v7707
          %7762 = vmatprep.subr.mxu0 0.0
          %7763 = vmatpush1.msra.mxu0 %v7706
          %7764 = vmatprep.subr.mxu0 0.0
          %7765 = vmatpush1.msra.mxu0 %v7705
          %7766 = vmatprep.subr.mxu0 0.0
          %7767 = vmatpush1.msra.mxu0 %v7704
          %7768 = vmatprep.subr.mxu0 0.0
          %7769 = vmatpush1.msra.mxu0 %v7703
          %7770 = vmatprep.subr.mxu0 0.0
          %7771 = vmatpush1.msra.mxu0 %v7702
          %7772 = vmatprep.subr.mxu0 0.0
          %7773 = vmatpush1.msra.mxu0 %v7701
          %7774 = vmatprep.subr.mxu0 0.0
          %7775 = vmatpush1.msra.mxu0 %v7700
          %7776 = vmatprep.subr.mxu0 0.0
          %7777 = vmatpush1.msra.mxu0 %v7699
          %7778 = vmatprep.subr.mxu0 0.0
          %7779 = vmatpush1.msra.mxu0 %v7698
          %7780 = vmatprep.subr.mxu0 0.0
          %7781 = vmatpush2.msra.mxu0 %v7729
          %7782 = vmatprep.subr.mxu0 0.0
          %7783 = vmatpush2.msra.mxu0 %v7728
          %7784 = vmatprep.subr.mxu0 0.0
          %7785 = vmatpush2.msra.mxu0 %v7727
          %7786 = vmatprep.subr.mxu0 0.0
          %7787 = vmatpush2.msra.mxu0 %v7726
          %7788 = vmatprep.subr.mxu0 0.0
          %7789 = vmatpush2.msra.mxu0 %v7725
          %7790 = vmatprep.subr.mxu0 0.0
          %7791 = vmatpush2.msra.mxu0 %v7724
          %7792 = vmatprep.subr.mxu0 0.0
          %7793 = vmatpush2.msra.mxu0 %v7723
          %7794 = vmatprep.subr.mxu0 0.0
          %7795 = vmatpush2.msra.mxu0 %v7722
          %7796 = vmatprep.subr.mxu0 0.0
          %7797 = vmatpush2.msra.mxu0 %v7721
          %7798 = vmatprep.subr.mxu0 0.0
          %7799 = vmatpush2.msra.mxu0 %v7720
          %7800 = vmatprep.subr.mxu0 0.0
          %7801 = vmatpush2.msra.mxu0 %v7719
          %7802 = vmatprep.subr.mxu0 0.0
          %7803 = vmatpush2.msra.mxu0 %v7718
          %7804 = vmatprep.subr.mxu0 0.0
          %7805 = vmatpush2.msra.mxu0 %v7717
          %7806 = vmatprep.subr.mxu0 0.0
          %7807 = vmatpush2.msra.mxu0 %v7716
          %7808 = vmatprep.subr.mxu0 0.0
          %7809 = vmatpush2.msra.mxu0 %v7715
          %7810 = vmatprep.subr.mxu0 0.0
          %7811 = vmatpush2.msra.mxu0 %v7714
          %7812 = vmatprep.mubr.f32.mxu0 %v7745
          %7813 = vmatmul.mubr.f32.gmra.mxu0 %v7744
          %v7814 = vpop.f32.mrf.mxu0
          %v7815 = vadd.f32 %v7735, %v7814
          %v7816 = vpop.f32.mrf.mxu0
          %7817 = vdwg.mxu0
          %vm7818 = vcmask 9216
          %v7819 = vsel %vm7818, %v7815, -inf
          %7820 = vmax.xlane.f32.xlu0 %v7819
          %v7821 = vpop.xlane.xlu0 %7820
          %v7822 = vsub.f32 %v7815, %v7821
          %v7823 = vmul.f32 %v7822, 1.442695
          %v7824 = vpow.pop %v7823
          %v7825 = vsel %vm7818, %v7824, 0.0
          %7826 = vadd.xlane.f32.xlu0 %v7825
          %v7827 = vpop.xlane.xlu0 %7826
          %v7828 = vrcp.pop %v7827
          %v7829 = vmul.f32 %v7824, %v7828
          %7830 = vst.msk [vmem:[#allocation3] sm:$0x3] %vm7818, %v7829
        $region48: #{two_arg_cnn_forward.5} parent=39 // pred_fallthru
          _
        // Predicated region
        $region49: #{two_arg_cnn_forward.5} parent=39 // pred_check
          %p7831 = pneg %p140
        $region50: #{two_arg_cnn_forward.5} parent=39 // pred_check_branch
          %7833 = sbr.rel (%p7831) target = $region52
        $region51: #{two_arg_cnn_forward.5} parent=39 // pred_region
          %s7835 = ssub.s32 32, 32
          %7836 = vsyncadd [#allocation4], %s7835
          %s7838 = sshll.u32 [#allocation3], 4
          %s7839 = int_to_ptr.vmem [resolvable:$true] %s7838
          %7841 = dma.vmem_to_hbm [thread:$0]  %s7839, 32, %s5, [#allocation4]
        $region52: #{two_arg_cnn_forward.5} parent=39 // pred_fallthru
          _
        // Predicated region
        $region53: #{two_arg_cnn_forward.5} parent=39 // pred_check
          %p7842 = pneg %p140
        $region54: #{two_arg_cnn_forward.5} parent=39 // pred_check_branch
          %7844 = sbr.rel (%p7842) target = $region56
        $region55: #{two_arg_cnn_forward.5} parent=39 // pred_region
          %7845 = dma.done [#allocation4], 32
        $region56: #{two_arg_cnn_forward.5} parent=39 // pred_fallthru
          _
      $region40: #{two_arg_cnn_forward.5} parent=5 // pred_fallthru
        _
      %p7846 = scmp.le.s32.totalorder 2, %s12
      // Predicated region
      $region57: #{two_arg_cnn_forward.5} parent=5 // pred_check
        %p7847 = pneg %p7846
      $region58: #{two_arg_cnn_forward.5} parent=5 // pred_check_branch
        %7849 = sbr.rel (%p7847) target = $region60
      $region59: #{two_arg_cnn_forward.5} parent=5 // pred_region
        %s7850 = ssub.s32 %s12, 2
      $region60: #{two_arg_cnn_forward.5} parent=5 // pred_fallthru
        _
    $region6: #{two_arg_cnn_forward.5} parent=1 // loop_footer
      %s16 = sadd.s32 1, %s12
    $region7: #{two_arg_cnn_forward.5} parent=1 // loop_footer_branch
      %11 = sbr.rel target = $region3
    $region8: #{two_arg_cnn_forward.5} parent=1 // loop_exit
      _
    %7851 = vsyncpa [#allocation4], 1
    %s7852 = scalar_lea.sflag [#allocation4], 1
    %7853 = vsyncpa %s7852, 1

</llo_original>
